<compile_context>
chip_gen: v7x
topology: tpu7x:2x2x1
jax: 0.10.0
libtpu: 0.0.40
codegen_flags: <defaults>
</compile_context>

<pallas_src>
import numpy as np
import jax
import jax.numpy as jnp
from jax.experimental import pallas as pl
from jax.experimental.pallas import tpu as pltpu

# DeepCAD-style CMD_ARGS_MASK buffer: [n_commands=6, n_args=16]
CMD_ARGS_MASK = np.array(
    [
        [1, 1, 0, 0, 0, 0, 0, 0, 0, 0, 0, 0, 0, 0, 0, 0],  # Line
        [1, 1, 1, 1, 0, 0, 0, 0, 0, 0, 0, 0, 0, 0, 0, 0],  # Arc
        [1, 1, 0, 0, 1, 0, 0, 0, 0, 0, 0, 0, 0, 0, 0, 0],  # Circle
        [0] * 16,                                           # EOS
        [0] * 16,                                           # SOL
        [0, 0, 0, 0, 0, 1, 1, 1, 1, 1, 1, 1, 1, 1, 1, 1],  # Ext
    ],
    dtype=np.float32,
)

N_COMMANDS = 6
N_ARGS = 16
CFG_ARGS_DIM = 32               # cfg.args_dim (small synthetic value)
ARGS_DIM = CFG_ARGS_DIM + 1     # self.args_dim = cfg.args_dim + 1


def _masked_ce_block_kernel(logits_ref, tgt_ref, out_ref):
    """Per-block partial sums of weight*CE and weight, packed on lanes 0/1."""
    logits = logits_ref[...].astype(jnp.float32)                    # [TR, C] (f32/bf16 in)
    tgt = tgt_ref[...]                                               # [TR, 1] int32, -1 = ignore

    # Stable log-sum-exp over the class (lane) axis.
    m = jnp.max(logits, axis=-1, keepdims=True)                      # XLU reduce #1
    shifted = logits - m                                             # [TR, C]
    sumexp = jnp.sum(jnp.exp(shifted), axis=-1, keepdims=True)       # EUP exp + XLU reduce #2

    valid = tgt >= 0                                                 # [TR, 1] bool (weight)
    # log only contributes on valid rows; garbage/ignored rows (tgt == -1)
    # are select-masked so NaN/Inf there never reaches the sum.
    log_z = jnp.where(valid, jnp.log(sumexp), 0.0)                   # [TR, 1]

    # Target-logit gather folded into ONE 2-D masked sum (VALU accumulate +
    # single final reduce) instead of a third per-row XLU reduce.
    # tgt == -1 never matches `col`, so ignored rows and the stale tail rows
    # of a partial last block contribute exactly 0.
    col = jax.lax.broadcasted_iota(jnp.int32, logits.shape, 1)       # [TR, C]
    tgt_contrib = jnp.sum(jnp.where(col == tgt, shifted, 0.0))       # scalar
    # ce = log(sum exp(x - m)) - (x[tgt] - m)  (m cancels analytically)
    ce_blk = jnp.sum(log_z) - tgt_contrib                            # scalar
    w_blk = jnp.sum(valid.astype(jnp.float32))                       # scalar

    # Pack both partial sums into one lane-dense (1,1,128) output block:
    # lane 0 = sum(w*ce), lane 1 = sum(w).
    ce_vec = jnp.broadcast_to(ce_blk.reshape(1, 1, 1), (1, 1, 128))
    w_vec = jnp.broadcast_to(w_blk.reshape(1, 1, 1), (1, 1, 128))
    lane = jax.lax.broadcasted_iota(jnp.int32, (1, 1, 128), 2)
    out_ref[...] = jnp.where(lane == 0, ce_vec,
                             jnp.where(lane == 1, w_vec, jnp.zeros_like(ce_vec)))


def _round_up(x, m):
    return ((x + m - 1) // m) * m


def masked_cross_entropy_pallas(logits_flat, tgt_enc_flat, tile_rows=8192):
    """Mean CE over rows with tgt_enc >= 0 (tgt_enc == -1 rows are ignored)."""
    R, C = logits_flat.shape
    # Multiple of 16 so bf16 (16,128) sublane packing is also satisfied.
    tile_rows = _round_up(min(tile_rows, _round_up(R, 16)), 16)
    nblocks = pl.cdiv(R, tile_rows)
    rp = nblocks * tile_rows

    # Only the tiny per-row target vector is padded (with -1 == ignore).  The
    # big logits tensor is NOT copied; the partial last block is handled by
    # bounded DMA + in-kernel masking (see tail-block note at top of file).
    pad = rp - R
    if pad:
        tgt_enc_flat = jnp.pad(tgt_enc_flat, ((0, pad),), constant_values=-1)

    logits_itemsize = np.dtype(logits_flat.dtype).itemsize
    # VMEM occupancy per stream: last dim lane-pads to 128 (C=33, and the
    # (TR,1) int32 column), double-buffered by the pipeline. Add headroom for
    # compiler scratch; cap below v7x's 64 MiB physical per-TC VMEM.
    vmem_bytes = 2 * tile_rows * 128 * (logits_itemsize + 4) + (16 << 20)
    vmem_bytes = int(min(vmem_bytes, 48 << 20))

    cost = pl.CostEstimate(
        flops=8 * R * C,                       # sub/cmp/select/adds (approx)
        transcendentals=R * (C + 1),           # exp per element + log per row
        bytes_accessed=R * C * logits_itemsize + R * 4 + nblocks * 128 * 4,
    )

    parts = pl.pallas_call(
        _masked_ce_block_kernel,
        out_shape=jax.ShapeDtypeStruct((nblocks, 1, 128), jnp.float32),
        grid=(nblocks,),
        in_specs=[
            pl.BlockSpec((tile_rows, C), lambda i: (i, 0)),
            pl.BlockSpec((tile_rows, 1), lambda i: (i, 0)),
        ],
        out_specs=pl.BlockSpec((1, 1, 128), lambda i: (i, 0, 0)),
        compiler_params=pltpu.CompilerParams(
            dimension_semantics=("parallel",),    # v7x: blocks split over 2 TCs
            vmem_limit_bytes=vmem_bytes,
        ),
        cost_estimate=cost,
    )(logits_flat, tgt_enc_flat.reshape(-1, 1))

    # Tiny final reduction + divide in plain JAX (nblocks values).
    # NOTE: if every row is masked, sum(w) == 0 and this returns NaN, which
    # matches F.cross_entropy's behaviour on an all-ignored batch.
    ce_total = jnp.sum(parts[:, 0, 0])
    w_total = jnp.sum(parts[:, 0, 1])
    return ce_total / w_total


def cad_loss(output):
    """JAX/Pallas equivalent of CADLoss.forward (returns loss_args)."""
    tgt_commands = output["tgt_commands"]        # [N, S] int32
    tgt_args = output["tgt_args"]                # [N, S, N_ARGS] int32
    args_logits = output["args_logits"]          # [N, S, N_ARGS, ARGS_DIM] f32/bf16

    # TODO(synk): visibility_mask / padding_mask are computed in the PyTorch
    # forward but never used for the returned loss — omitted here.
    # TODO(synk): the softmax/argmax -> np.savetxt debug dump is host file I/O
    # with no Pallas equivalent — omitted.

    cmd_args_mask = jnp.asarray(CMD_ARGS_MASK)
    mask = cmd_args_mask[tgt_commands]                       # [N, S, N_ARGS]
    shifted = tgt_args.astype(jnp.int32) + 1                 # CE targets
    valid = (mask > 0) & (shifted != -1)                     # ignore_index=-1 parity

    C = args_logits.shape[-1]
    # Single encoded target stream: -1 == "ignore this row" (weight 0).
    tgt_enc = jnp.where(valid, jnp.clip(shifted, 0, C - 1), -1).astype(jnp.int32)
    # Keep producer dtype (bf16 stays bf16 — no extra full-size f32 HBM copy);
    # the f32 upcast happens in-kernel on the VMEM tile.
    logits_flat = args_logits.reshape(-1, C)
    return masked_cross_entropy_pallas(logits_flat, tgt_enc.reshape(-1))


def cad_loss_ref(output):
    """Pure-JAX reference for correctness checking."""
    tgt_commands = output["tgt_commands"]
    tgt_args = output["tgt_args"]
    args_logits = output["args_logits"].astype(jnp.float32)
    cmd_args_mask = jnp.asarray(CMD_ARGS_MASK)
    mask = cmd_args_mask[tgt_commands]
    shifted = tgt_args.astype(jnp.int32) + 1
    valid = (mask > 0) & (shifted != -1)
    w = valid.astype(jnp.float32)
    C = args_logits.shape[-1]
    logp = jax.nn.log_softmax(args_logits, axis=-1)
    nll = -jnp.take_along_axis(
        logp, jnp.clip(shifted, 0, C - 1)[..., None], axis=-1
    )[..., 0]
    return jnp.sum(nll * w) / jnp.sum(w)


if __name__ == "__main__":
    key = jax.random.PRNGKey(0)
    k1, k2, k3 = jax.random.split(key, 3)

    N, S = 8, 16   # small stand-in for [256, 64]
    tgt_commands = jax.random.randint(k1, (N, S), 0, N_COMMANDS, dtype=jnp.int32)
    tgt_args = jax.random.randint(k2, (N, S, N_ARGS), -1, CFG_ARGS_DIM, dtype=jnp.int32)
    args_logits = jax.random.normal(k3, (N, S, N_ARGS, ARGS_DIM), dtype=jnp.float32)

    output = {
        "tgt_commands": tgt_commands,
        "tgt_args": tgt_args,
        "args_logits": args_logits,
    }

    loss_ref = jax.block_until_ready(cad_loss_ref(output))

    # 1) Default f32 path (single full block at this small size).
    loss = jax.block_until_ready(cad_loss(output))
    assert np.isfinite(float(loss))
    np.testing.assert_allclose(float(loss), float(loss_ref), rtol=1e-5, atol=1e-5)

    # 2) bf16 producer path: no wrapper cast, upcast happens in-kernel.
    out_bf16 = dict(output, args_logits=args_logits.astype(jnp.bfloat16))
    loss_bf16 = jax.block_until_ready(cad_loss(out_bf16))
    loss_ref_bf16 = jax.block_until_ready(cad_loss_ref(out_bf16))
    np.testing.assert_allclose(float(loss_bf16), float(loss_ref_bf16),
                               rtol=1e-4, atol=1e-4)

    # 3) Multi-block path with a ragged last block (exercises the bounded-DMA
    #    + tgt==-1 tail masking: R=2048 rows, tile_rows=768 -> 3 blocks).
    cmd_args_mask = jnp.asarray(CMD_ARGS_MASK)
    m = cmd_args_mask[tgt_commands]
    sh = tgt_args.astype(jnp.int32) + 1
    valid = (m > 0) & (sh != -1)
    tgt_enc = jnp.where(valid, jnp.clip(sh, 0, ARGS_DIM - 1), -1).astype(jnp.int32)
    loss_ragged = jax.block_until_ready(
        masked_cross_entropy_pallas(
            args_logits.reshape(-1, ARGS_DIM),
            tgt_enc.reshape(-1),
            tile_rows=768,
        )
    )
    np.testing.assert_allclose(float(loss_ragged), float(loss_ref), rtol=1e-5, atol=1e-5)

    print("KERNEL_OK")
</pallas_src>

<mosaic_0001>
module attributes {stable_mosaic.version = 11 : i64} {
  func.func @_masked_ce_block_kernel(%arg0: i32, %arg1: memref<2048x33xf32, #tpu.memory_space<vmem>>, %arg2: memref<2048x1xi32, #tpu.memory_space<vmem>>, %arg3: memref<1x1x128xf32, #tpu.memory_space<vmem>>) attributes {dimension_semantics = [#tpu.dimension_semantics<parallel>], iteration_bounds = array<i64: 1>, scalar_prefetch = 0 : i64, scratch_operands = 0 : i64, tpu.core_type = #tpu.core_type<tc>, window_params = [{transform_indices = @transform_0, window_bounds = array<i64: 2048, 33>}, {transform_indices = @transform_1, window_bounds = array<i64: 2048, 1>}, {transform_indices = @transform_2, window_bounds = array<i64: 1, 1, 128>}]} {
    %c0 = arith.constant 0 : index
    %c0_0 = arith.constant 0 : index
    %0 = vector.load %arg1[%c0, %c0_0] : memref<2048x33xf32, #tpu.memory_space<vmem>>, vector<2048x33xf32>
    %c0_1 = arith.constant 0 : index
    %c0_2 = arith.constant 0 : index
    %1 = vector.load %arg2[%c0_1, %c0_2] : memref<2048x1xi32, #tpu.memory_space<vmem>>, vector<2048x1xi32>
    %cst = arith.constant dense<0xFF800000> : vector<2048xf32>
    %2 = vector.multi_reduction <maximumf>, %0, %cst [1] : vector<2048x33xf32> to vector<2048xf32>
    %3 = vector.shape_cast %2 : vector<2048xf32> to vector<2048x1xf32>
    %4 = vector.broadcast %3 : vector<2048x1xf32> to vector<2048x33xf32>
    %5 = arith.subf %0, %4 : vector<2048x33xf32>
    %6 = math.exp %5 : vector<2048x33xf32>
    %cst_3 = arith.constant dense<0.000000e+00> : vector<2048xf32>
    %7 = vector.multi_reduction <add>, %6, %cst_3 [1] : vector<2048x33xf32> to vector<2048xf32>
    %8 = vector.shape_cast %7 : vector<2048xf32> to vector<2048x1xf32>
    %c0_i32 = arith.constant 0 : i32
    %9 = vector.broadcast %c0_i32 : i32 to vector<2048x1xi32>
    %10 = arith.cmpi sge, %1, %9 : vector<2048x1xi32>
    %11 = math.log %8 : vector<2048x1xf32>
    %cst_4 = arith.constant 0.000000e+00 : f32
    %12 = vector.broadcast %cst_4 : f32 to vector<2048x1xf32>
    %13 = arith.select %10, %11, %12 : vector<2048x1xi1>, vector<2048x1xf32>
    %14 = tpu.iota {dimensions = array<i32: 1>} : vector<2048x33xi32>
    %15 = vector.broadcast %1 : vector<2048x1xi32> to vector<2048x33xi32>
    %16 = arith.cmpi eq, %14, %15 : vector<2048x33xi32>
    %cst_5 = arith.constant 0.000000e+00 : f32
    %17 = vector.broadcast %cst_5 : f32 to vector<2048x33xf32>
    %18 = arith.select %16, %5, %17 : vector<2048x33xi1>, vector<2048x33xf32>
    %19 = vector.shape_cast %18 : vector<2048x33xf32> to vector<1x2048x33xf32>
    %cst_6 = arith.constant dense<0.000000e+00> : vector<1xf32>
    %20 = vector.multi_reduction <add>, %19, %cst_6 [1, 2] : vector<1x2048x33xf32> to vector<1xf32>
    %21 = vector.shape_cast %20 : vector<1xf32> to vector<1x1x1xf32>
    %22 = vector.extract %21[0, 0, 0] : f32 from vector<1x1x1xf32>
    %23 = vector.shape_cast %13 : vector<2048x1xf32> to vector<1x2048x1xf32>
    %cst_7 = arith.constant dense<0.000000e+00> : vector<1xf32>
    %24 = vector.multi_reduction <add>, %23, %cst_7 [1, 2] : vector<1x2048x1xf32> to vector<1xf32>
    %25 = vector.shape_cast %24 : vector<1xf32> to vector<1x1x1xf32>
    %26 = vector.extract %25[0, 0, 0] : f32 from vector<1x1x1xf32>
    %27 = arith.subf %26, %22 : f32
    %28 = arith.extui %10 : vector<2048x1xi1> to vector<2048x1xi32>
    %29 = arith.sitofp %28 : vector<2048x1xi32> to vector<2048x1xf32>
    %30 = vector.shape_cast %29 : vector<2048x1xf32> to vector<1x2048x1xf32>
    %cst_8 = arith.constant dense<0.000000e+00> : vector<1xf32>
    %31 = vector.multi_reduction <add>, %30, %cst_8 [1, 2] : vector<1x2048x1xf32> to vector<1xf32>
    %32 = vector.shape_cast %31 : vector<1xf32> to vector<1x1x1xf32>
    %33 = vector.extract %32[0, 0, 0] : f32 from vector<1x1x1xf32>
    %34 = vector.broadcast %27 : f32 to vector<1x1x1xf32>
    %35 = vector.shape_cast %34 : vector<1x1x1xf32> to vector<1x1x1xf32>
    %36 = vector.broadcast %35 : vector<1x1x1xf32> to vector<1x1x128xf32>
    %37 = vector.broadcast %33 : f32 to vector<1x1x1xf32>
    %38 = vector.shape_cast %37 : vector<1x1x1xf32> to vector<1x1x1xf32>
    %39 = vector.broadcast %38 : vector<1x1x1xf32> to vector<1x1x128xf32>
    %40 = tpu.iota {dimensions = array<i32: 2>} : vector<1x1x128xi32>
    %c0_i32_9 = arith.constant 0 : i32
    %41 = vector.broadcast %c0_i32_9 : i32 to vector<1x1x128xi32>
    %42 = arith.cmpi eq, %40, %41 : vector<1x1x128xi32>
    %c1_i32 = arith.constant 1 : i32
    %43 = vector.broadcast %c1_i32 : i32 to vector<1x1x128xi32>
    %44 = arith.cmpi eq, %40, %43 : vector<1x1x128xi32>
    %cst_10 = arith.constant 0.000000e+00 : f32
    %45 = vector.broadcast %cst_10 : f32 to vector<1x1x128xf32>
    %46 = arith.select %44, %39, %45 : vector<1x1x128xi1>, vector<1x1x128xf32>
    %47 = arith.select %42, %36, %46 : vector<1x1x128xi1>, vector<1x1x128xf32>
    %c0_11 = arith.constant 0 : index
    %c0_12 = arith.constant 0 : index
    %c0_13 = arith.constant 0 : index
    %48 = vector.load %arg3[%c0_11, %c0_12, %c0_13] : memref<1x1x128xf32, #tpu.memory_space<vmem>>, vector<1x1x128xf32>
    tpu.vector_store %arg3[%c0_11, %c0_12, %c0_13], %47 {strides = array<i32>} : memref<1x1x128xf32, #tpu.memory_space<vmem>>, vector<1x1x128xf32>,
    return
  }
  func.func @transform_0(%arg0: i32) -> (i32, i32) {
    %c0_i32 = arith.constant 0 : i32
    %c0_i32_0 = arith.constant 0 : i32
    return %arg0, %c0_i32 : i32, i32
  }
  func.func @transform_1(%arg0: i32) -> (i32, i32) {
    %c0_i32 = arith.constant 0 : i32
    %c0_i32_0 = arith.constant 0 : i32
    return %arg0, %c0_i32 : i32, i32
  }
  func.func @transform_2(%arg0: i32) -> (i32, i32, i32) {
    %c0_i32 = arith.constant 0 : i32
    %c0_i32_0 = arith.constant 0 : i32
    %c0_i32_1 = arith.constant 0 : i32
    return %arg0, %c0_i32, %c0_i32_0 : i32, i32, i32
  }
}

</mosaic_0001>

<llo_original>
// kernel: tpu_custom_call.1
$region0: #{tpu_custom_call.1}
  #allocation0 [shape = 'u32[]', space=smem, size = 0x4, offset = 0x4, fixed_abs, tag = 'smem constant byte address 0x4 - core index']
  #allocation1 [shape = 'u32[144,128]{1,0:T(1,128)}', space=vmem, size = 0x12000, scoped, tag = 'internal scratch']
  %s0 = inlined_call_operand.vmem [shape: f32[2048,33], index: 0, kind: input, shape index: {}]
  %s1 = inlined_call_operand.vmem [shape: s32[2048,1], index: 1, kind: input, shape index: {}]
  %s2 = inlined_call_operand.hbm [shape: f32[1,1,128], index: 2, kind: output, shape index: {}]
  %s3 = sld [smem:[#allocation0]]
  $region18: #{tpu_custom_call.1} parent=0
    _
  %s5 = ssub.s32 1, %s3
  %s6 = scalar_select 0, %s5, %s3
  $region1: #{tpu_custom_call.1} parent=0
    #allocation2 [shape = 'u8[512]{0}', space=vmem, size = 0x400, scoped, tag = 'output window, operand 0, single buffered']
    #allocation3 [shape = 's32[1]{0}', space=sflag, size = 0x4, scoped, tag = 'scoped memory for tpu_custom_call.1']
    %7 = vsyncpa [#allocation3], 0
    // Predicated region
    $region2: #{tpu_custom_call.1} parent=1 // pred_check
      _
    $region3: #{tpu_custom_call.1} parent=1 // pred_check_branch
      %9 = sbr.rel (0) target = $region5
    $region4: #{tpu_custom_call.1} parent=1 // pred_region
      _
    $region5: #{tpu_custom_call.1} parent=1 // pred_fallthru
      _
    // Predicated region
    $region6: #{tpu_custom_call.1} parent=1 // pred_check
      _
    $region7: #{tpu_custom_call.1} parent=1 // pred_check_branch
      %11 = sbr.rel (0) target = $region9
    $region8: #{tpu_custom_call.1} parent=1 // pred_region
      _
    $region9: #{tpu_custom_call.1} parent=1 // pred_fallthru
      _
    %v12 = vld [vmem:[%s0] sm:$0xff]
    %v13 = vld [vmem:[%s0 + $0x8] sm:$0xff]
    %v14 = vld [vmem:[%s0 + $0x10] sm:$0xff]
    %v15 = vld [vmem:[%s0 + $0x18] sm:$0xff]
    %v16 = vld [vmem:[%s0 + $0x20] sm:$0xff]
    %v17 = vld [vmem:[%s0 + $0x28] sm:$0xff]
    %v18 = vld [vmem:[%s0 + $0x30] sm:$0xff]
    %v19 = vld [vmem:[%s0 + $0x38] sm:$0xff]
    %v20 = vld [vmem:[%s0 + $0x40] sm:$0xff]
    %v21 = vld [vmem:[%s0 + $0x48] sm:$0xff]
    %v22 = vld [vmem:[%s0 + $0x50] sm:$0xff]
    %v23 = vld [vmem:[%s0 + $0x58] sm:$0xff]
    %v24 = vld [vmem:[%s0 + $0x60] sm:$0xff]
    %v25 = vld [vmem:[%s0 + $0x68] sm:$0xff]
    %v26 = vld [vmem:[%s0 + $0x70] sm:$0xff]
    %v27 = vld [vmem:[%s0 + $0x78] sm:$0xff]
    %v28 = vld [vmem:[%s0 + $0x80] sm:$0xff]
    %v29 = vld [vmem:[%s0 + $0x88] sm:$0xff]
    %v30 = vld [vmem:[%s0 + $0x90] sm:$0xff]
    %v31 = vld [vmem:[%s0 + $0x98] sm:$0xff]
    %v32 = vld [vmem:[%s0 + $0xa0] sm:$0xff]
    %v33 = vld [vmem:[%s0 + $0xa8] sm:$0xff]
    %v34 = vld [vmem:[%s0 + $0xb0] sm:$0xff]
    %v35 = vld [vmem:[%s0 + $0xb8] sm:$0xff]
    %v36 = vld [vmem:[%s0 + $0xc0] sm:$0xff]
    %v37 = vld [vmem:[%s0 + $0xc8] sm:$0xff]
    %v38 = vld [vmem:[%s0 + $0xd0] sm:$0xff]
    %v39 = vld [vmem:[%s0 + $0xd8] sm:$0xff]
    %v40 = vld [vmem:[%s0 + $0xe0] sm:$0xff]
    %v41 = vld [vmem:[%s0 + $0xe8] sm:$0xff]
    %v42 = vld [vmem:[%s0 + $0xf0] sm:$0xff]
    %v43 = vld [vmem:[%s0 + $0xf8] sm:$0xff]
    %v44 = vld [vmem:[%s0 + $0x100] sm:$0xff]
    %v45 = vld [vmem:[%s0 + $0x108] sm:$0xff]
    %v46 = vld [vmem:[%s0 + $0x110] sm:$0xff]
    %v47 = vld [vmem:[%s0 + $0x118] sm:$0xff]
    %v48 = vld [vmem:[%s0 + $0x120] sm:$0xff]
    %v49 = vld [vmem:[%s0 + $0x128] sm:$0xff]
    %v50 = vld [vmem:[%s0 + $0x130] sm:$0xff]
    %v51 = vld [vmem:[%s0 + $0x138] sm:$0xff]
    %v52 = vld [vmem:[%s0 + $0x140] sm:$0xff]
    %v53 = vld [vmem:[%s0 + $0x148] sm:$0xff]
    %v54 = vld [vmem:[%s0 + $0x150] sm:$0xff]
    %v55 = vld [vmem:[%s0 + $0x158] sm:$0xff]
    %v56 = vld [vmem:[%s0 + $0x160] sm:$0xff]
    %v57 = vld [vmem:[%s0 + $0x168] sm:$0xff]
    %v58 = vld [vmem:[%s0 + $0x170] sm:$0xff]
    %v59 = vld [vmem:[%s0 + $0x178] sm:$0xff]
    %v60 = vld [vmem:[%s0 + $0x180] sm:$0xff]
    %v61 = vld [vmem:[%s0 + $0x188] sm:$0xff]
    %v62 = vld [vmem:[%s0 + $0x190] sm:$0xff]
    %v63 = vld [vmem:[%s0 + $0x198] sm:$0xff]
    %v64 = vld [vmem:[%s0 + $0x1a0] sm:$0xff]
    %v65 = vld [vmem:[%s0 + $0x1a8] sm:$0xff]
    %v66 = vld [vmem:[%s0 + $0x1b0] sm:$0xff]
    %v67 = vld [vmem:[%s0 + $0x1b8] sm:$0xff]
    %v68 = vld [vmem:[%s0 + $0x1c0] sm:$0xff]
    %v69 = vld [vmem:[%s0 + $0x1c8] sm:$0xff]
    %v70 = vld [vmem:[%s0 + $0x1d0] sm:$0xff]
    %v71 = vld [vmem:[%s0 + $0x1d8] sm:$0xff]
    %v72 = vld [vmem:[%s0 + $0x1e0] sm:$0xff]
    %v73 = vld [vmem:[%s0 + $0x1e8] sm:$0xff]
    %v74 = vld [vmem:[%s0 + $0x1f0] sm:$0xff]
    %v75 = vld [vmem:[%s0 + $0x1f8] sm:$0xff]
    %v76 = vld [vmem:[%s0 + $0x200] sm:$0xff]
    %v77 = vld [vmem:[%s0 + $0x208] sm:$0xff]
    %v78 = vld [vmem:[%s0 + $0x210] sm:$0xff]
    %v79 = vld [vmem:[%s0 + $0x218] sm:$0xff]
    %v80 = vld [vmem:[%s0 + $0x220] sm:$0xff]
    %v81 = vld [vmem:[%s0 + $0x228] sm:$0xff]
    %v82 = vld [vmem:[%s0 + $0x230] sm:$0xff]
    %v83 = vld [vmem:[%s0 + $0x238] sm:$0xff]
    %v84 = vld [vmem:[%s0 + $0x240] sm:$0xff]
    %v85 = vld [vmem:[%s0 + $0x248] sm:$0xff]
    %v86 = vld [vmem:[%s0 + $0x250] sm:$0xff]
    %v87 = vld [vmem:[%s0 + $0x258] sm:$0xff]
    %v88 = vld [vmem:[%s0 + $0x260] sm:$0xff]
    %v89 = vld [vmem:[%s0 + $0x268] sm:$0xff]
    %v90 = vld [vmem:[%s0 + $0x270] sm:$0xff]
    %v91 = vld [vmem:[%s0 + $0x278] sm:$0xff]
    %v92 = vld [vmem:[%s0 + $0x280] sm:$0xff]
    %v93 = vld [vmem:[%s0 + $0x288] sm:$0xff]
    %v94 = vld [vmem:[%s0 + $0x290] sm:$0xff]
    %v95 = vld [vmem:[%s0 + $0x298] sm:$0xff]
    %v96 = vld [vmem:[%s0 + $0x2a0] sm:$0xff]
    %v97 = vld [vmem:[%s0 + $0x2a8] sm:$0xff]
    %v98 = vld [vmem:[%s0 + $0x2b0] sm:$0xff]
    %v99 = vld [vmem:[%s0 + $0x2b8] sm:$0xff]
    %v100 = vld [vmem:[%s0 + $0x2c0] sm:$0xff]
    %v101 = vld [vmem:[%s0 + $0x2c8] sm:$0xff]
    %v102 = vld [vmem:[%s0 + $0x2d0] sm:$0xff]
    %v103 = vld [vmem:[%s0 + $0x2d8] sm:$0xff]
    %v104 = vld [vmem:[%s0 + $0x2e0] sm:$0xff]
    %v105 = vld [vmem:[%s0 + $0x2e8] sm:$0xff]
    %v106 = vld [vmem:[%s0 + $0x2f0] sm:$0xff]
    %v107 = vld [vmem:[%s0 + $0x2f8] sm:$0xff]
    %v108 = vld [vmem:[%s0 + $0x300] sm:$0xff]
    %v109 = vld [vmem:[%s0 + $0x308] sm:$0xff]
    %v110 = vld [vmem:[%s0 + $0x310] sm:$0xff]
    %v111 = vld [vmem:[%s0 + $0x318] sm:$0xff]
    %v112 = vld [vmem:[%s0 + $0x320] sm:$0xff]
    %v113 = vld [vmem:[%s0 + $0x328] sm:$0xff]
    %v114 = vld [vmem:[%s0 + $0x330] sm:$0xff]
    %v115 = vld [vmem:[%s0 + $0x338] sm:$0xff]
    %v116 = vld [vmem:[%s0 + $0x340] sm:$0xff]
    %v117 = vld [vmem:[%s0 + $0x348] sm:$0xff]
    %v118 = vld [vmem:[%s0 + $0x350] sm:$0xff]
    %v119 = vld [vmem:[%s0 + $0x358] sm:$0xff]
    %v120 = vld [vmem:[%s0 + $0x360] sm:$0xff]
    %v121 = vld [vmem:[%s0 + $0x368] sm:$0xff]
    %v122 = vld [vmem:[%s0 + $0x370] sm:$0xff]
    %v123 = vld [vmem:[%s0 + $0x378] sm:$0xff]
    %v124 = vld [vmem:[%s0 + $0x380] sm:$0xff]
    %v125 = vld [vmem:[%s0 + $0x388] sm:$0xff]
    %v126 = vld [vmem:[%s0 + $0x390] sm:$0xff]
    %v127 = vld [vmem:[%s0 + $0x398] sm:$0xff]
    %v128 = vld [vmem:[%s0 + $0x3a0] sm:$0xff]
    %v129 = vld [vmem:[%s0 + $0x3a8] sm:$0xff]
    %v130 = vld [vmem:[%s0 + $0x3b0] sm:$0xff]
    %v131 = vld [vmem:[%s0 + $0x3b8] sm:$0xff]
    %v132 = vld [vmem:[%s0 + $0x3c0] sm:$0xff]
    %v133 = vld [vmem:[%s0 + $0x3c8] sm:$0xff]
    %v134 = vld [vmem:[%s0 + $0x3d0] sm:$0xff]
    %v135 = vld [vmem:[%s0 + $0x3d8] sm:$0xff]
    %v136 = vld [vmem:[%s0 + $0x3e0] sm:$0xff]
    %v137 = vld [vmem:[%s0 + $0x3e8] sm:$0xff]
    %v138 = vld [vmem:[%s0 + $0x3f0] sm:$0xff]
    %v139 = vld [vmem:[%s0 + $0x3f8] sm:$0xff]
    %v140 = vld [vmem:[%s0 + $0x400] sm:$0xff]
    %v141 = vld [vmem:[%s0 + $0x408] sm:$0xff]
    %v142 = vld [vmem:[%s0 + $0x410] sm:$0xff]
    %v143 = vld [vmem:[%s0 + $0x418] sm:$0xff]
    %v144 = vld [vmem:[%s0 + $0x420] sm:$0xff]
    %v145 = vld [vmem:[%s0 + $0x428] sm:$0xff]
    %v146 = vld [vmem:[%s0 + $0x430] sm:$0xff]
    %v147 = vld [vmem:[%s0 + $0x438] sm:$0xff]
    %v148 = vld [vmem:[%s0 + $0x440] sm:$0xff]
    %v149 = vld [vmem:[%s0 + $0x448] sm:$0xff]
    %v150 = vld [vmem:[%s0 + $0x450] sm:$0xff]
    %v151 = vld [vmem:[%s0 + $0x458] sm:$0xff]
    %v152 = vld [vmem:[%s0 + $0x460] sm:$0xff]
    %v153 = vld [vmem:[%s0 + $0x468] sm:$0xff]
    %v154 = vld [vmem:[%s0 + $0x470] sm:$0xff]
    %v155 = vld [vmem:[%s0 + $0x478] sm:$0xff]
    %v156 = vld [vmem:[%s0 + $0x480] sm:$0xff]
    %v157 = vld [vmem:[%s0 + $0x488] sm:$0xff]
    %v158 = vld [vmem:[%s0 + $0x490] sm:$0xff]
    %v159 = vld [vmem:[%s0 + $0x498] sm:$0xff]
    %v160 = vld [vmem:[%s0 + $0x4a0] sm:$0xff]
    %v161 = vld [vmem:[%s0 + $0x4a8] sm:$0xff]
    %v162 = vld [vmem:[%s0 + $0x4b0] sm:$0xff]
    %v163 = vld [vmem:[%s0 + $0x4b8] sm:$0xff]
    %v164 = vld [vmem:[%s0 + $0x4c0] sm:$0xff]
    %v165 = vld [vmem:[%s0 + $0x4c8] sm:$0xff]
    %v166 = vld [vmem:[%s0 + $0x4d0] sm:$0xff]
    %v167 = vld [vmem:[%s0 + $0x4d8] sm:$0xff]
    %v168 = vld [vmem:[%s0 + $0x4e0] sm:$0xff]
    %v169 = vld [vmem:[%s0 + $0x4e8] sm:$0xff]
    %v170 = vld [vmem:[%s0 + $0x4f0] sm:$0xff]
    %v171 = vld [vmem:[%s0 + $0x4f8] sm:$0xff]
    %v172 = vld [vmem:[%s0 + $0x500] sm:$0xff]
    %v173 = vld [vmem:[%s0 + $0x508] sm:$0xff]
    %v174 = vld [vmem:[%s0 + $0x510] sm:$0xff]
    %v175 = vld [vmem:[%s0 + $0x518] sm:$0xff]
    %v176 = vld [vmem:[%s0 + $0x520] sm:$0xff]
    %v177 = vld [vmem:[%s0 + $0x528] sm:$0xff]
    %v178 = vld [vmem:[%s0 + $0x530] sm:$0xff]
    %v179 = vld [vmem:[%s0 + $0x538] sm:$0xff]
    %v180 = vld [vmem:[%s0 + $0x540] sm:$0xff]
    %v181 = vld [vmem:[%s0 + $0x548] sm:$0xff]
    %v182 = vld [vmem:[%s0 + $0x550] sm:$0xff]
    %v183 = vld [vmem:[%s0 + $0x558] sm:$0xff]
    %v184 = vld [vmem:[%s0 + $0x560] sm:$0xff]
    %v185 = vld [vmem:[%s0 + $0x568] sm:$0xff]
    %v186 = vld [vmem:[%s0 + $0x570] sm:$0xff]
    %v187 = vld [vmem:[%s0 + $0x578] sm:$0xff]
    %v188 = vld [vmem:[%s0 + $0x580] sm:$0xff]
    %v189 = vld [vmem:[%s0 + $0x588] sm:$0xff]
    %v190 = vld [vmem:[%s0 + $0x590] sm:$0xff]
    %v191 = vld [vmem:[%s0 + $0x598] sm:$0xff]
    %v192 = vld [vmem:[%s0 + $0x5a0] sm:$0xff]
    %v193 = vld [vmem:[%s0 + $0x5a8] sm:$0xff]
    %v194 = vld [vmem:[%s0 + $0x5b0] sm:$0xff]
    %v195 = vld [vmem:[%s0 + $0x5b8] sm:$0xff]
    %v196 = vld [vmem:[%s0 + $0x5c0] sm:$0xff]
    %v197 = vld [vmem:[%s0 + $0x5c8] sm:$0xff]
    %v198 = vld [vmem:[%s0 + $0x5d0] sm:$0xff]
    %v199 = vld [vmem:[%s0 + $0x5d8] sm:$0xff]
    %v200 = vld [vmem:[%s0 + $0x5e0] sm:$0xff]
    %v201 = vld [vmem:[%s0 + $0x5e8] sm:$0xff]
    %v202 = vld [vmem:[%s0 + $0x5f0] sm:$0xff]
    %v203 = vld [vmem:[%s0 + $0x5f8] sm:$0xff]
    %v204 = vld [vmem:[%s0 + $0x600] sm:$0xff]
    %v205 = vld [vmem:[%s0 + $0x608] sm:$0xff]
    %v206 = vld [vmem:[%s0 + $0x610] sm:$0xff]
    %v207 = vld [vmem:[%s0 + $0x618] sm:$0xff]
    %v208 = vld [vmem:[%s0 + $0x620] sm:$0xff]
    %v209 = vld [vmem:[%s0 + $0x628] sm:$0xff]
    %v210 = vld [vmem:[%s0 + $0x630] sm:$0xff]
    %v211 = vld [vmem:[%s0 + $0x638] sm:$0xff]
    %v212 = vld [vmem:[%s0 + $0x640] sm:$0xff]
    %v213 = vld [vmem:[%s0 + $0x648] sm:$0xff]
    %v214 = vld [vmem:[%s0 + $0x650] sm:$0xff]
    %v215 = vld [vmem:[%s0 + $0x658] sm:$0xff]
    %v216 = vld [vmem:[%s0 + $0x660] sm:$0xff]
    %v217 = vld [vmem:[%s0 + $0x668] sm:$0xff]
    %v218 = vld [vmem:[%s0 + $0x670] sm:$0xff]
    %v219 = vld [vmem:[%s0 + $0x678] sm:$0xff]
    %v220 = vld [vmem:[%s0 + $0x680] sm:$0xff]
    %v221 = vld [vmem:[%s0 + $0x688] sm:$0xff]
    %v222 = vld [vmem:[%s0 + $0x690] sm:$0xff]
    %v223 = vld [vmem:[%s0 + $0x698] sm:$0xff]
    %v224 = vld [vmem:[%s0 + $0x6a0] sm:$0xff]
    %v225 = vld [vmem:[%s0 + $0x6a8] sm:$0xff]
    %v226 = vld [vmem:[%s0 + $0x6b0] sm:$0xff]
    %v227 = vld [vmem:[%s0 + $0x6b8] sm:$0xff]
    %v228 = vld [vmem:[%s0 + $0x6c0] sm:$0xff]
    %v229 = vld [vmem:[%s0 + $0x6c8] sm:$0xff]
    %v230 = vld [vmem:[%s0 + $0x6d0] sm:$0xff]
    %v231 = vld [vmem:[%s0 + $0x6d8] sm:$0xff]
    %v232 = vld [vmem:[%s0 + $0x6e0] sm:$0xff]
    %v233 = vld [vmem:[%s0 + $0x6e8] sm:$0xff]
    %v234 = vld [vmem:[%s0 + $0x6f0] sm:$0xff]
    %v235 = vld [vmem:[%s0 + $0x6f8] sm:$0xff]
    %v236 = vld [vmem:[%s0 + $0x700] sm:$0xff]
    %v237 = vld [vmem:[%s0 + $0x708] sm:$0xff]
    %v238 = vld [vmem:[%s0 + $0x710] sm:$0xff]
    %v239 = vld [vmem:[%s0 + $0x718] sm:$0xff]
    %v240 = vld [vmem:[%s0 + $0x720] sm:$0xff]
    %v241 = vld [vmem:[%s0 + $0x728] sm:$0xff]
    %v242 = vld [vmem:[%s0 + $0x730] sm:$0xff]
    %v243 = vld [vmem:[%s0 + $0x738] sm:$0xff]
    %v244 = vld [vmem:[%s0 + $0x740] sm:$0xff]
    %v245 = vld [vmem:[%s0 + $0x748] sm:$0xff]
    %v246 = vld [vmem:[%s0 + $0x750] sm:$0xff]
    %v247 = vld [vmem:[%s0 + $0x758] sm:$0xff]
    %v248 = vld [vmem:[%s0 + $0x760] sm:$0xff]
    %v249 = vld [vmem:[%s0 + $0x768] sm:$0xff]
    %v250 = vld [vmem:[%s0 + $0x770] sm:$0xff]
    %v251 = vld [vmem:[%s0 + $0x778] sm:$0xff]
    %v252 = vld [vmem:[%s0 + $0x780] sm:$0xff]
    %v253 = vld [vmem:[%s0 + $0x788] sm:$0xff]
    %v254 = vld [vmem:[%s0 + $0x790] sm:$0xff]
    %v255 = vld [vmem:[%s0 + $0x798] sm:$0xff]
    %v256 = vld [vmem:[%s0 + $0x7a0] sm:$0xff]
    %v257 = vld [vmem:[%s0 + $0x7a8] sm:$0xff]
    %v258 = vld [vmem:[%s0 + $0x7b0] sm:$0xff]
    %v259 = vld [vmem:[%s0 + $0x7b8] sm:$0xff]
    %v260 = vld [vmem:[%s0 + $0x7c0] sm:$0xff]
    %v261 = vld [vmem:[%s0 + $0x7c8] sm:$0xff]
    %v262 = vld [vmem:[%s0 + $0x7d0] sm:$0xff]
    %v263 = vld [vmem:[%s0 + $0x7d8] sm:$0xff]
    %v264 = vld [vmem:[%s0 + $0x7e0] sm:$0xff]
    %v265 = vld [vmem:[%s0 + $0x7e8] sm:$0xff]
    %v266 = vld [vmem:[%s0 + $0x7f0] sm:$0xff]
    %v267 = vld [vmem:[%s0 + $0x7f8] sm:$0xff]
    %v268 = vld [vmem:[%s1] sm:$0xff]
    %v269 = vld [vmem:[%s1 + $0x8] sm:$0xff]
    %v270 = vld [vmem:[%s1 + $0x10] sm:$0xff]
    %v271 = vld [vmem:[%s1 + $0x18] sm:$0xff]
    %v272 = vld [vmem:[%s1 + $0x20] sm:$0xff]
    %v273 = vld [vmem:[%s1 + $0x28] sm:$0xff]
    %v274 = vld [vmem:[%s1 + $0x30] sm:$0xff]
    %v275 = vld [vmem:[%s1 + $0x38] sm:$0xff]
    %v276 = vld [vmem:[%s1 + $0x40] sm:$0xff]
    %v277 = vld [vmem:[%s1 + $0x48] sm:$0xff]
    %v278 = vld [vmem:[%s1 + $0x50] sm:$0xff]
    %v279 = vld [vmem:[%s1 + $0x58] sm:$0xff]
    %v280 = vld [vmem:[%s1 + $0x60] sm:$0xff]
    %v281 = vld [vmem:[%s1 + $0x68] sm:$0xff]
    %v282 = vld [vmem:[%s1 + $0x70] sm:$0xff]
    %v283 = vld [vmem:[%s1 + $0x78] sm:$0xff]
    %v284 = vld [vmem:[%s1 + $0x80] sm:$0xff]
    %v285 = vld [vmem:[%s1 + $0x88] sm:$0xff]
    %v286 = vld [vmem:[%s1 + $0x90] sm:$0xff]
    %v287 = vld [vmem:[%s1 + $0x98] sm:$0xff]
    %v288 = vld [vmem:[%s1 + $0xa0] sm:$0xff]
    %v289 = vld [vmem:[%s1 + $0xa8] sm:$0xff]
    %v290 = vld [vmem:[%s1 + $0xb0] sm:$0xff]
    %v291 = vld [vmem:[%s1 + $0xb8] sm:$0xff]
    %v292 = vld [vmem:[%s1 + $0xc0] sm:$0xff]
    %v293 = vld [vmem:[%s1 + $0xc8] sm:$0xff]
    %v294 = vld [vmem:[%s1 + $0xd0] sm:$0xff]
    %v295 = vld [vmem:[%s1 + $0xd8] sm:$0xff]
    %v296 = vld [vmem:[%s1 + $0xe0] sm:$0xff]
    %v297 = vld [vmem:[%s1 + $0xe8] sm:$0xff]
    %v298 = vld [vmem:[%s1 + $0xf0] sm:$0xff]
    %v299 = vld [vmem:[%s1 + $0xf8] sm:$0xff]
    %v300 = vld [vmem:[%s1 + $0x100] sm:$0xff]
    %v301 = vld [vmem:[%s1 + $0x108] sm:$0xff]
    %v302 = vld [vmem:[%s1 + $0x110] sm:$0xff]
    %v303 = vld [vmem:[%s1 + $0x118] sm:$0xff]
    %v304 = vld [vmem:[%s1 + $0x120] sm:$0xff]
    %v305 = vld [vmem:[%s1 + $0x128] sm:$0xff]
    %v306 = vld [vmem:[%s1 + $0x130] sm:$0xff]
    %v307 = vld [vmem:[%s1 + $0x138] sm:$0xff]
    %v308 = vld [vmem:[%s1 + $0x140] sm:$0xff]
    %v309 = vld [vmem:[%s1 + $0x148] sm:$0xff]
    %v310 = vld [vmem:[%s1 + $0x150] sm:$0xff]
    %v311 = vld [vmem:[%s1 + $0x158] sm:$0xff]
    %v312 = vld [vmem:[%s1 + $0x160] sm:$0xff]
    %v313 = vld [vmem:[%s1 + $0x168] sm:$0xff]
    %v314 = vld [vmem:[%s1 + $0x170] sm:$0xff]
    %v315 = vld [vmem:[%s1 + $0x178] sm:$0xff]
    %v316 = vld [vmem:[%s1 + $0x180] sm:$0xff]
    %v317 = vld [vmem:[%s1 + $0x188] sm:$0xff]
    %v318 = vld [vmem:[%s1 + $0x190] sm:$0xff]
    %v319 = vld [vmem:[%s1 + $0x198] sm:$0xff]
    %v320 = vld [vmem:[%s1 + $0x1a0] sm:$0xff]
    %v321 = vld [vmem:[%s1 + $0x1a8] sm:$0xff]
    %v322 = vld [vmem:[%s1 + $0x1b0] sm:$0xff]
    %v323 = vld [vmem:[%s1 + $0x1b8] sm:$0xff]
    %v324 = vld [vmem:[%s1 + $0x1c0] sm:$0xff]
    %v325 = vld [vmem:[%s1 + $0x1c8] sm:$0xff]
    %v326 = vld [vmem:[%s1 + $0x1d0] sm:$0xff]
    %v327 = vld [vmem:[%s1 + $0x1d8] sm:$0xff]
    %v328 = vld [vmem:[%s1 + $0x1e0] sm:$0xff]
    %v329 = vld [vmem:[%s1 + $0x1e8] sm:$0xff]
    %v330 = vld [vmem:[%s1 + $0x1f0] sm:$0xff]
    %v331 = vld [vmem:[%s1 + $0x1f8] sm:$0xff]
    %v332 = vld [vmem:[%s1 + $0x200] sm:$0xff]
    %v333 = vld [vmem:[%s1 + $0x208] sm:$0xff]
    %v334 = vld [vmem:[%s1 + $0x210] sm:$0xff]
    %v335 = vld [vmem:[%s1 + $0x218] sm:$0xff]
    %v336 = vld [vmem:[%s1 + $0x220] sm:$0xff]
    %v337 = vld [vmem:[%s1 + $0x228] sm:$0xff]
    %v338 = vld [vmem:[%s1 + $0x230] sm:$0xff]
    %v339 = vld [vmem:[%s1 + $0x238] sm:$0xff]
    %v340 = vld [vmem:[%s1 + $0x240] sm:$0xff]
    %v341 = vld [vmem:[%s1 + $0x248] sm:$0xff]
    %v342 = vld [vmem:[%s1 + $0x250] sm:$0xff]
    %v343 = vld [vmem:[%s1 + $0x258] sm:$0xff]
    %v344 = vld [vmem:[%s1 + $0x260] sm:$0xff]
    %v345 = vld [vmem:[%s1 + $0x268] sm:$0xff]
    %v346 = vld [vmem:[%s1 + $0x270] sm:$0xff]
    %v347 = vld [vmem:[%s1 + $0x278] sm:$0xff]
    %v348 = vld [vmem:[%s1 + $0x280] sm:$0xff]
    %v349 = vld [vmem:[%s1 + $0x288] sm:$0xff]
    %v350 = vld [vmem:[%s1 + $0x290] sm:$0xff]
    %v351 = vld [vmem:[%s1 + $0x298] sm:$0xff]
    %v352 = vld [vmem:[%s1 + $0x2a0] sm:$0xff]
    %v353 = vld [vmem:[%s1 + $0x2a8] sm:$0xff]
    %v354 = vld [vmem:[%s1 + $0x2b0] sm:$0xff]
    %v355 = vld [vmem:[%s1 + $0x2b8] sm:$0xff]
    %v356 = vld [vmem:[%s1 + $0x2c0] sm:$0xff]
    %v357 = vld [vmem:[%s1 + $0x2c8] sm:$0xff]
    %v358 = vld [vmem:[%s1 + $0x2d0] sm:$0xff]
    %v359 = vld [vmem:[%s1 + $0x2d8] sm:$0xff]
    %v360 = vld [vmem:[%s1 + $0x2e0] sm:$0xff]
    %v361 = vld [vmem:[%s1 + $0x2e8] sm:$0xff]
    %v362 = vld [vmem:[%s1 + $0x2f0] sm:$0xff]
    %v363 = vld [vmem:[%s1 + $0x2f8] sm:$0xff]
    %v364 = vld [vmem:[%s1 + $0x300] sm:$0xff]
    %v365 = vld [vmem:[%s1 + $0x308] sm:$0xff]
    %v366 = vld [vmem:[%s1 + $0x310] sm:$0xff]
    %v367 = vld [vmem:[%s1 + $0x318] sm:$0xff]
    %v368 = vld [vmem:[%s1 + $0x320] sm:$0xff]
    %v369 = vld [vmem:[%s1 + $0x328] sm:$0xff]
    %v370 = vld [vmem:[%s1 + $0x330] sm:$0xff]
    %v371 = vld [vmem:[%s1 + $0x338] sm:$0xff]
    %v372 = vld [vmem:[%s1 + $0x340] sm:$0xff]
    %v373 = vld [vmem:[%s1 + $0x348] sm:$0xff]
    %v374 = vld [vmem:[%s1 + $0x350] sm:$0xff]
    %v375 = vld [vmem:[%s1 + $0x358] sm:$0xff]
    %v376 = vld [vmem:[%s1 + $0x360] sm:$0xff]
    %v377 = vld [vmem:[%s1 + $0x368] sm:$0xff]
    %v378 = vld [vmem:[%s1 + $0x370] sm:$0xff]
    %v379 = vld [vmem:[%s1 + $0x378] sm:$0xff]
    %v380 = vld [vmem:[%s1 + $0x380] sm:$0xff]
    %v381 = vld [vmem:[%s1 + $0x388] sm:$0xff]
    %v382 = vld [vmem:[%s1 + $0x390] sm:$0xff]
    %v383 = vld [vmem:[%s1 + $0x398] sm:$0xff]
    %v384 = vld [vmem:[%s1 + $0x3a0] sm:$0xff]
    %v385 = vld [vmem:[%s1 + $0x3a8] sm:$0xff]
    %v386 = vld [vmem:[%s1 + $0x3b0] sm:$0xff]
    %v387 = vld [vmem:[%s1 + $0x3b8] sm:$0xff]
    %v388 = vld [vmem:[%s1 + $0x3c0] sm:$0xff]
    %v389 = vld [vmem:[%s1 + $0x3c8] sm:$0xff]
    %v390 = vld [vmem:[%s1 + $0x3d0] sm:$0xff]
    %v391 = vld [vmem:[%s1 + $0x3d8] sm:$0xff]
    %v392 = vld [vmem:[%s1 + $0x3e0] sm:$0xff]
    %v393 = vld [vmem:[%s1 + $0x3e8] sm:$0xff]
    %v394 = vld [vmem:[%s1 + $0x3f0] sm:$0xff]
    %v395 = vld [vmem:[%s1 + $0x3f8] sm:$0xff]
    %v396 = vld [vmem:[%s1 + $0x400] sm:$0xff]
    %v397 = vld [vmem:[%s1 + $0x408] sm:$0xff]
    %v398 = vld [vmem:[%s1 + $0x410] sm:$0xff]
    %v399 = vld [vmem:[%s1 + $0x418] sm:$0xff]
    %v400 = vld [vmem:[%s1 + $0x420] sm:$0xff]
    %v401 = vld [vmem:[%s1 + $0x428] sm:$0xff]
    %v402 = vld [vmem:[%s1 + $0x430] sm:$0xff]
    %v403 = vld [vmem:[%s1 + $0x438] sm:$0xff]
    %v404 = vld [vmem:[%s1 + $0x440] sm:$0xff]
    %v405 = vld [vmem:[%s1 + $0x448] sm:$0xff]
    %v406 = vld [vmem:[%s1 + $0x450] sm:$0xff]
    %v407 = vld [vmem:[%s1 + $0x458] sm:$0xff]
    %v408 = vld [vmem:[%s1 + $0x460] sm:$0xff]
    %v409 = vld [vmem:[%s1 + $0x468] sm:$0xff]
    %v410 = vld [vmem:[%s1 + $0x470] sm:$0xff]
    %v411 = vld [vmem:[%s1 + $0x478] sm:$0xff]
    %v412 = vld [vmem:[%s1 + $0x480] sm:$0xff]
    %v413 = vld [vmem:[%s1 + $0x488] sm:$0xff]
    %v414 = vld [vmem:[%s1 + $0x490] sm:$0xff]
    %v415 = vld [vmem:[%s1 + $0x498] sm:$0xff]
    %v416 = vld [vmem:[%s1 + $0x4a0] sm:$0xff]
    %v417 = vld [vmem:[%s1 + $0x4a8] sm:$0xff]
    %v418 = vld [vmem:[%s1 + $0x4b0] sm:$0xff]
    %v419 = vld [vmem:[%s1 + $0x4b8] sm:$0xff]
    %v420 = vld [vmem:[%s1 + $0x4c0] sm:$0xff]
    %v421 = vld [vmem:[%s1 + $0x4c8] sm:$0xff]
    %v422 = vld [vmem:[%s1 + $0x4d0] sm:$0xff]
    %v423 = vld [vmem:[%s1 + $0x4d8] sm:$0xff]
    %v424 = vld [vmem:[%s1 + $0x4e0] sm:$0xff]
    %v425 = vld [vmem:[%s1 + $0x4e8] sm:$0xff]
    %v426 = vld [vmem:[%s1 + $0x4f0] sm:$0xff]
    %v427 = vld [vmem:[%s1 + $0x4f8] sm:$0xff]
    %v428 = vld [vmem:[%s1 + $0x500] sm:$0xff]
    %v429 = vld [vmem:[%s1 + $0x508] sm:$0xff]
    %v430 = vld [vmem:[%s1 + $0x510] sm:$0xff]
    %v431 = vld [vmem:[%s1 + $0x518] sm:$0xff]
    %v432 = vld [vmem:[%s1 + $0x520] sm:$0xff]
    %v433 = vld [vmem:[%s1 + $0x528] sm:$0xff]
    %v434 = vld [vmem:[%s1 + $0x530] sm:$0xff]
    %v435 = vld [vmem:[%s1 + $0x538] sm:$0xff]
    %v436 = vld [vmem:[%s1 + $0x540] sm:$0xff]
    %v437 = vld [vmem:[%s1 + $0x548] sm:$0xff]
    %v438 = vld [vmem:[%s1 + $0x550] sm:$0xff]
    %v439 = vld [vmem:[%s1 + $0x558] sm:$0xff]
    %v440 = vld [vmem:[%s1 + $0x560] sm:$0xff]
    %v441 = vld [vmem:[%s1 + $0x568] sm:$0xff]
    %v442 = vld [vmem:[%s1 + $0x570] sm:$0xff]
    %v443 = vld [vmem:[%s1 + $0x578] sm:$0xff]
    %v444 = vld [vmem:[%s1 + $0x580] sm:$0xff]
    %v445 = vld [vmem:[%s1 + $0x588] sm:$0xff]
    %v446 = vld [vmem:[%s1 + $0x590] sm:$0xff]
    %v447 = vld [vmem:[%s1 + $0x598] sm:$0xff]
    %v448 = vld [vmem:[%s1 + $0x5a0] sm:$0xff]
    %v449 = vld [vmem:[%s1 + $0x5a8] sm:$0xff]
    %v450 = vld [vmem:[%s1 + $0x5b0] sm:$0xff]
    %v451 = vld [vmem:[%s1 + $0x5b8] sm:$0xff]
    %v452 = vld [vmem:[%s1 + $0x5c0] sm:$0xff]
    %v453 = vld [vmem:[%s1 + $0x5c8] sm:$0xff]
    %v454 = vld [vmem:[%s1 + $0x5d0] sm:$0xff]
    %v455 = vld [vmem:[%s1 + $0x5d8] sm:$0xff]
    %v456 = vld [vmem:[%s1 + $0x5e0] sm:$0xff]
    %v457 = vld [vmem:[%s1 + $0x5e8] sm:$0xff]
    %v458 = vld [vmem:[%s1 + $0x5f0] sm:$0xff]
    %v459 = vld [vmem:[%s1 + $0x5f8] sm:$0xff]
    %v460 = vld [vmem:[%s1 + $0x600] sm:$0xff]
    %v461 = vld [vmem:[%s1 + $0x608] sm:$0xff]
    %v462 = vld [vmem:[%s1 + $0x610] sm:$0xff]
    %v463 = vld [vmem:[%s1 + $0x618] sm:$0xff]
    %v464 = vld [vmem:[%s1 + $0x620] sm:$0xff]
    %v465 = vld [vmem:[%s1 + $0x628] sm:$0xff]
    %v466 = vld [vmem:[%s1 + $0x630] sm:$0xff]
    %v467 = vld [vmem:[%s1 + $0x638] sm:$0xff]
    %v468 = vld [vmem:[%s1 + $0x640] sm:$0xff]
    %v469 = vld [vmem:[%s1 + $0x648] sm:$0xff]
    %v470 = vld [vmem:[%s1 + $0x650] sm:$0xff]
    %v471 = vld [vmem:[%s1 + $0x658] sm:$0xff]
    %v472 = vld [vmem:[%s1 + $0x660] sm:$0xff]
    %v473 = vld [vmem:[%s1 + $0x668] sm:$0xff]
    %v474 = vld [vmem:[%s1 + $0x670] sm:$0xff]
    %v475 = vld [vmem:[%s1 + $0x678] sm:$0xff]
    %v476 = vld [vmem:[%s1 + $0x680] sm:$0xff]
    %v477 = vld [vmem:[%s1 + $0x688] sm:$0xff]
    %v478 = vld [vmem:[%s1 + $0x690] sm:$0xff]
    %v479 = vld [vmem:[%s1 + $0x698] sm:$0xff]
    %v480 = vld [vmem:[%s1 + $0x6a0] sm:$0xff]
    %v481 = vld [vmem:[%s1 + $0x6a8] sm:$0xff]
    %v482 = vld [vmem:[%s1 + $0x6b0] sm:$0xff]
    %v483 = vld [vmem:[%s1 + $0x6b8] sm:$0xff]
    %v484 = vld [vmem:[%s1 + $0x6c0] sm:$0xff]
    %v485 = vld [vmem:[%s1 + $0x6c8] sm:$0xff]
    %v486 = vld [vmem:[%s1 + $0x6d0] sm:$0xff]
    %v487 = vld [vmem:[%s1 + $0x6d8] sm:$0xff]
    %v488 = vld [vmem:[%s1 + $0x6e0] sm:$0xff]
    %v489 = vld [vmem:[%s1 + $0x6e8] sm:$0xff]
    %v490 = vld [vmem:[%s1 + $0x6f0] sm:$0xff]
    %v491 = vld [vmem:[%s1 + $0x6f8] sm:$0xff]
    %v492 = vld [vmem:[%s1 + $0x700] sm:$0xff]
    %v493 = vld [vmem:[%s1 + $0x708] sm:$0xff]
    %v494 = vld [vmem:[%s1 + $0x710] sm:$0xff]
    %v495 = vld [vmem:[%s1 + $0x718] sm:$0xff]
    %v496 = vld [vmem:[%s1 + $0x720] sm:$0xff]
    %v497 = vld [vmem:[%s1 + $0x728] sm:$0xff]
    %v498 = vld [vmem:[%s1 + $0x730] sm:$0xff]
    %v499 = vld [vmem:[%s1 + $0x738] sm:$0xff]
    %v500 = vld [vmem:[%s1 + $0x740] sm:$0xff]
    %v501 = vld [vmem:[%s1 + $0x748] sm:$0xff]
    %v502 = vld [vmem:[%s1 + $0x750] sm:$0xff]
    %v503 = vld [vmem:[%s1 + $0x758] sm:$0xff]
    %v504 = vld [vmem:[%s1 + $0x760] sm:$0xff]
    %v505 = vld [vmem:[%s1 + $0x768] sm:$0xff]
    %v506 = vld [vmem:[%s1 + $0x770] sm:$0xff]
    %v507 = vld [vmem:[%s1 + $0x778] sm:$0xff]
    %v508 = vld [vmem:[%s1 + $0x780] sm:$0xff]
    %v509 = vld [vmem:[%s1 + $0x788] sm:$0xff]
    %v510 = vld [vmem:[%s1 + $0x790] sm:$0xff]
    %v511 = vld [vmem:[%s1 + $0x798] sm:$0xff]
    %v512 = vld [vmem:[%s1 + $0x7a0] sm:$0xff]
    %v513 = vld [vmem:[%s1 + $0x7a8] sm:$0xff]
    %v514 = vld [vmem:[%s1 + $0x7b0] sm:$0xff]
    %v515 = vld [vmem:[%s1 + $0x7b8] sm:$0xff]
    %v516 = vld [vmem:[%s1 + $0x7c0] sm:$0xff]
    %v517 = vld [vmem:[%s1 + $0x7c8] sm:$0xff]
    %v518 = vld [vmem:[%s1 + $0x7d0] sm:$0xff]
    %v519 = vld [vmem:[%s1 + $0x7d8] sm:$0xff]
    %v520 = vld [vmem:[%s1 + $0x7e0] sm:$0xff]
    %v521 = vld [vmem:[%s1 + $0x7e8] sm:$0xff]
    %v522 = vld [vmem:[%s1 + $0x7f0] sm:$0xff]
    %v523 = vld [vmem:[%s1 + $0x7f8] sm:$0xff]
    %vm524 = vcmask 269312
    %v525 = vsel %vm524, %v12, -inf
    %526 = vmax.xlane.f32.xlu0 %v525
    %v527 = vpop.xlane.xlu0 %526
    %v528 = vsel %vm524, %v13, -inf
    %529 = vmax.xlane.f32.xlu0 %v528
    %v530 = vpop.xlane.xlu0 %529
    %v531 = vsel %vm524, %v14, -inf
    %532 = vmax.xlane.f32.xlu0 %v531
    %v533 = vpop.xlane.xlu0 %532
    %v534 = vsel %vm524, %v15, -inf
    %535 = vmax.xlane.f32.xlu0 %v534
    %v536 = vpop.xlane.xlu0 %535
    %v537 = vsel %vm524, %v16, -inf
    %538 = vmax.xlane.f32.xlu0 %v537
    %v539 = vpop.xlane.xlu0 %538
    %v540 = vsel %vm524, %v17, -inf
    %541 = vmax.xlane.f32.xlu0 %v540
    %v542 = vpop.xlane.xlu0 %541
    %v543 = vsel %vm524, %v18, -inf
    %544 = vmax.xlane.f32.xlu0 %v543
    %v545 = vpop.xlane.xlu0 %544
    %v546 = vsel %vm524, %v19, -inf
    %547 = vmax.xlane.f32.xlu0 %v546
    %v548 = vpop.xlane.xlu0 %547
    %v549 = vsel %vm524, %v20, -inf
    %550 = vmax.xlane.f32.xlu0 %v549
    %v551 = vpop.xlane.xlu0 %550
    %v552 = vsel %vm524, %v21, -inf
    %553 = vmax.xlane.f32.xlu0 %v552
    %v554 = vpop.xlane.xlu0 %553
    %v555 = vsel %vm524, %v22, -inf
    %556 = vmax.xlane.f32.xlu0 %v555
    %v557 = vpop.xlane.xlu0 %556
    %v558 = vsel %vm524, %v23, -inf
    %559 = vmax.xlane.f32.xlu0 %v558
    %v560 = vpop.xlane.xlu0 %559
    %v561 = vsel %vm524, %v24, -inf
    %562 = vmax.xlane.f32.xlu0 %v561
    %v563 = vpop.xlane.xlu0 %562
    %v564 = vsel %vm524, %v25, -inf
    %565 = vmax.xlane.f32.xlu0 %v564
    %v566 = vpop.xlane.xlu0 %565
    %v567 = vsel %vm524, %v26, -inf
    %568 = vmax.xlane.f32.xlu0 %v567
    %v569 = vpop.xlane.xlu0 %568
    %v570 = vsel %vm524, %v27, -inf
    %571 = vmax.xlane.f32.xlu0 %v570
    %v572 = vpop.xlane.xlu0 %571
    %v573 = vsel %vm524, %v28, -inf
    %574 = vmax.xlane.f32.xlu0 %v573
    %v575 = vpop.xlane.xlu0 %574
    %v576 = vsel %vm524, %v29, -inf
    %577 = vmax.xlane.f32.xlu0 %v576
    %v578 = vpop.xlane.xlu0 %577
    %v579 = vsel %vm524, %v30, -inf
    %580 = vmax.xlane.f32.xlu0 %v579
    %v581 = vpop.xlane.xlu0 %580
    %v582 = vsel %vm524, %v31, -inf
    %583 = vmax.xlane.f32.xlu0 %v582
    %v584 = vpop.xlane.xlu0 %583
    %v585 = vsel %vm524, %v32, -inf
    %586 = vmax.xlane.f32.xlu0 %v585
    %v587 = vpop.xlane.xlu0 %586
    %v588 = vsel %vm524, %v33, -inf
    %589 = vmax.xlane.f32.xlu0 %v588
    %v590 = vpop.xlane.xlu0 %589
    %v591 = vsel %vm524, %v34, -inf
    %592 = vmax.xlane.f32.xlu0 %v591
    %v593 = vpop.xlane.xlu0 %592
    %v594 = vsel %vm524, %v35, -inf
    %595 = vmax.xlane.f32.xlu0 %v594
    %v596 = vpop.xlane.xlu0 %595
    %v597 = vsel %vm524, %v36, -inf
    %598 = vmax.xlane.f32.xlu0 %v597
    %v599 = vpop.xlane.xlu0 %598
    %v600 = vsel %vm524, %v37, -inf
    %601 = vmax.xlane.f32.xlu0 %v600
    %v602 = vpop.xlane.xlu0 %601
    %v603 = vsel %vm524, %v38, -inf
    %604 = vmax.xlane.f32.xlu0 %v603
    %v605 = vpop.xlane.xlu0 %604
    %v606 = vsel %vm524, %v39, -inf
    %607 = vmax.xlane.f32.xlu0 %v606
    %v608 = vpop.xlane.xlu0 %607
    %v609 = vsel %vm524, %v40, -inf
    %610 = vmax.xlane.f32.xlu0 %v609
    %v611 = vpop.xlane.xlu0 %610
    %v612 = vsel %vm524, %v41, -inf
    %613 = vmax.xlane.f32.xlu0 %v612
    %v614 = vpop.xlane.xlu0 %613
    %v615 = vsel %vm524, %v42, -inf
    %616 = vmax.xlane.f32.xlu0 %v615
    %v617 = vpop.xlane.xlu0 %616
    %v618 = vsel %vm524, %v43, -inf
    %619 = vmax.xlane.f32.xlu0 %v618
    %v620 = vpop.xlane.xlu0 %619
    %v621 = vsel %vm524, %v44, -inf
    %622 = vmax.xlane.f32.xlu0 %v621
    %v623 = vpop.xlane.xlu0 %622
    %v624 = vsel %vm524, %v45, -inf
    %625 = vmax.xlane.f32.xlu0 %v624
    %v626 = vpop.xlane.xlu0 %625
    %v627 = vsel %vm524, %v46, -inf
    %628 = vmax.xlane.f32.xlu0 %v627
    %v629 = vpop.xlane.xlu0 %628
    %v630 = vsel %vm524, %v47, -inf
    %631 = vmax.xlane.f32.xlu0 %v630
    %v632 = vpop.xlane.xlu0 %631
    %v633 = vsel %vm524, %v48, -inf
    %634 = vmax.xlane.f32.xlu0 %v633
    %v635 = vpop.xlane.xlu0 %634
    %v636 = vsel %vm524, %v49, -inf
    %637 = vmax.xlane.f32.xlu0 %v636
    %v638 = vpop.xlane.xlu0 %637
    %v639 = vsel %vm524, %v50, -inf
    %640 = vmax.xlane.f32.xlu0 %v639
    %v641 = vpop.xlane.xlu0 %640
    %v642 = vsel %vm524, %v51, -inf
    %643 = vmax.xlane.f32.xlu0 %v642
    %v644 = vpop.xlane.xlu0 %643
    %v645 = vsel %vm524, %v52, -inf
    %646 = vmax.xlane.f32.xlu0 %v645
    %v647 = vpop.xlane.xlu0 %646
    %v648 = vsel %vm524, %v53, -inf
    %649 = vmax.xlane.f32.xlu0 %v648
    %v650 = vpop.xlane.xlu0 %649
    %v651 = vsel %vm524, %v54, -inf
    %652 = vmax.xlane.f32.xlu0 %v651
    %v653 = vpop.xlane.xlu0 %652
    %v654 = vsel %vm524, %v55, -inf
    %655 = vmax.xlane.f32.xlu0 %v654
    %v656 = vpop.xlane.xlu0 %655
    %v657 = vsel %vm524, %v56, -inf
    %658 = vmax.xlane.f32.xlu0 %v657
    %v659 = vpop.xlane.xlu0 %658
    %v660 = vsel %vm524, %v57, -inf
    %661 = vmax.xlane.f32.xlu0 %v660
    %v662 = vpop.xlane.xlu0 %661
    %v663 = vsel %vm524, %v58, -inf
    %664 = vmax.xlane.f32.xlu0 %v663
    %v665 = vpop.xlane.xlu0 %664
    %v666 = vsel %vm524, %v59, -inf
    %667 = vmax.xlane.f32.xlu0 %v666
    %v668 = vpop.xlane.xlu0 %667
    %v669 = vsel %vm524, %v60, -inf
    %670 = vmax.xlane.f32.xlu0 %v669
    %v671 = vpop.xlane.xlu0 %670
    %v672 = vsel %vm524, %v61, -inf
    %673 = vmax.xlane.f32.xlu0 %v672
    %v674 = vpop.xlane.xlu0 %673
    %v675 = vsel %vm524, %v62, -inf
    %676 = vmax.xlane.f32.xlu0 %v675
    %v677 = vpop.xlane.xlu0 %676
    %v678 = vsel %vm524, %v63, -inf
    %679 = vmax.xlane.f32.xlu0 %v678
    %v680 = vpop.xlane.xlu0 %679
    %v681 = vsel %vm524, %v64, -inf
    %682 = vmax.xlane.f32.xlu0 %v681
    %v683 = vpop.xlane.xlu0 %682
    %v684 = vsel %vm524, %v65, -inf
    %685 = vmax.xlane.f32.xlu0 %v684
    %v686 = vpop.xlane.xlu0 %685
    %v687 = vsel %vm524, %v66, -inf
    %688 = vmax.xlane.f32.xlu0 %v687
    %v689 = vpop.xlane.xlu0 %688
    %v690 = vsel %vm524, %v67, -inf
    %691 = vmax.xlane.f32.xlu0 %v690
    %v692 = vpop.xlane.xlu0 %691
    %v693 = vsel %vm524, %v68, -inf
    %694 = vmax.xlane.f32.xlu0 %v693
    %v695 = vpop.xlane.xlu0 %694
    %v696 = vsel %vm524, %v69, -inf
    %697 = vmax.xlane.f32.xlu0 %v696
    %v698 = vpop.xlane.xlu0 %697
    %v699 = vsel %vm524, %v70, -inf
    %700 = vmax.xlane.f32.xlu0 %v699
    %v701 = vpop.xlane.xlu0 %700
    %v702 = vsel %vm524, %v71, -inf
    %703 = vmax.xlane.f32.xlu0 %v702
    %v704 = vpop.xlane.xlu0 %703
    %v705 = vsel %vm524, %v72, -inf
    %706 = vmax.xlane.f32.xlu0 %v705
    %v707 = vpop.xlane.xlu0 %706
    %v708 = vsel %vm524, %v73, -inf
    %709 = vmax.xlane.f32.xlu0 %v708
    %v710 = vpop.xlane.xlu0 %709
    %v711 = vsel %vm524, %v74, -inf
    %712 = vmax.xlane.f32.xlu0 %v711
    %v713 = vpop.xlane.xlu0 %712
    %v714 = vsel %vm524, %v75, -inf
    %715 = vmax.xlane.f32.xlu0 %v714
    %v716 = vpop.xlane.xlu0 %715
    %v717 = vsel %vm524, %v76, -inf
    %718 = vmax.xlane.f32.xlu0 %v717
    %v719 = vpop.xlane.xlu0 %718
    %v720 = vsel %vm524, %v77, -inf
    %721 = vmax.xlane.f32.xlu0 %v720
    %v722 = vpop.xlane.xlu0 %721
    %v723 = vsel %vm524, %v78, -inf
    %724 = vmax.xlane.f32.xlu0 %v723
    %v725 = vpop.xlane.xlu0 %724
    %v726 = vsel %vm524, %v79, -inf
    %727 = vmax.xlane.f32.xlu0 %v726
    %v728 = vpop.xlane.xlu0 %727
    %v729 = vsel %vm524, %v80, -inf
    %730 = vmax.xlane.f32.xlu0 %v729
    %v731 = vpop.xlane.xlu0 %730
    %v732 = vsel %vm524, %v81, -inf
    %733 = vmax.xlane.f32.xlu0 %v732
    %v734 = vpop.xlane.xlu0 %733
    %v735 = vsel %vm524, %v82, -inf
    %736 = vmax.xlane.f32.xlu0 %v735
    %v737 = vpop.xlane.xlu0 %736
    %v738 = vsel %vm524, %v83, -inf
    %739 = vmax.xlane.f32.xlu0 %v738
    %v740 = vpop.xlane.xlu0 %739
    %v741 = vsel %vm524, %v84, -inf
    %742 = vmax.xlane.f32.xlu0 %v741
    %v743 = vpop.xlane.xlu0 %742
    %v744 = vsel %vm524, %v85, -inf
    %745 = vmax.xlane.f32.xlu0 %v744
    %v746 = vpop.xlane.xlu0 %745
    %v747 = vsel %vm524, %v86, -inf
    %748 = vmax.xlane.f32.xlu0 %v747
    %v749 = vpop.xlane.xlu0 %748
    %v750 = vsel %vm524, %v87, -inf
    %751 = vmax.xlane.f32.xlu0 %v750
    %v752 = vpop.xlane.xlu0 %751
    %v753 = vsel %vm524, %v88, -inf
    %754 = vmax.xlane.f32.xlu0 %v753
    %v755 = vpop.xlane.xlu0 %754
    %v756 = vsel %vm524, %v89, -inf
    %757 = vmax.xlane.f32.xlu0 %v756
    %v758 = vpop.xlane.xlu0 %757
    %v759 = vsel %vm524, %v90, -inf
    %760 = vmax.xlane.f32.xlu0 %v759
    %v761 = vpop.xlane.xlu0 %760
    %v762 = vsel %vm524, %v91, -inf
    %763 = vmax.xlane.f32.xlu0 %v762
    %v764 = vpop.xlane.xlu0 %763
    %v765 = vsel %vm524, %v92, -inf
    %766 = vmax.xlane.f32.xlu0 %v765
    %v767 = vpop.xlane.xlu0 %766
    %v768 = vsel %vm524, %v93, -inf
    %769 = vmax.xlane.f32.xlu0 %v768
    %v770 = vpop.xlane.xlu0 %769
    %v771 = vsel %vm524, %v94, -inf
    %772 = vmax.xlane.f32.xlu0 %v771
    %v773 = vpop.xlane.xlu0 %772
    %v774 = vsel %vm524, %v95, -inf
    %775 = vmax.xlane.f32.xlu0 %v774
    %v776 = vpop.xlane.xlu0 %775
    %v777 = vsel %vm524, %v96, -inf
    %778 = vmax.xlane.f32.xlu0 %v777
    %v779 = vpop.xlane.xlu0 %778
    %v780 = vsel %vm524, %v97, -inf
    %781 = vmax.xlane.f32.xlu0 %v780
    %v782 = vpop.xlane.xlu0 %781
    %v783 = vsel %vm524, %v98, -inf
    %784 = vmax.xlane.f32.xlu0 %v783
    %v785 = vpop.xlane.xlu0 %784
    %v786 = vsel %vm524, %v99, -inf
    %787 = vmax.xlane.f32.xlu0 %v786
    %v788 = vpop.xlane.xlu0 %787
    %v789 = vsel %vm524, %v100, -inf
    %790 = vmax.xlane.f32.xlu0 %v789
    %v791 = vpop.xlane.xlu0 %790
    %v792 = vsel %vm524, %v101, -inf
    %793 = vmax.xlane.f32.xlu0 %v792
    %v794 = vpop.xlane.xlu0 %793
    %v795 = vsel %vm524, %v102, -inf
    %796 = vmax.xlane.f32.xlu0 %v795
    %v797 = vpop.xlane.xlu0 %796
    %v798 = vsel %vm524, %v103, -inf
    %799 = vmax.xlane.f32.xlu0 %v798
    %v800 = vpop.xlane.xlu0 %799
    %v801 = vsel %vm524, %v104, -inf
    %802 = vmax.xlane.f32.xlu0 %v801
    %v803 = vpop.xlane.xlu0 %802
    %v804 = vsel %vm524, %v105, -inf
    %805 = vmax.xlane.f32.xlu0 %v804
    %v806 = vpop.xlane.xlu0 %805
    %v807 = vsel %vm524, %v106, -inf
    %808 = vmax.xlane.f32.xlu0 %v807
    %v809 = vpop.xlane.xlu0 %808
    %v810 = vsel %vm524, %v107, -inf
    %811 = vmax.xlane.f32.xlu0 %v810
    %v812 = vpop.xlane.xlu0 %811
    %v813 = vsel %vm524, %v108, -inf
    %814 = vmax.xlane.f32.xlu0 %v813
    %v815 = vpop.xlane.xlu0 %814
    %v816 = vsel %vm524, %v109, -inf
    %817 = vmax.xlane.f32.xlu0 %v816
    %v818 = vpop.xlane.xlu0 %817
    %v819 = vsel %vm524, %v110, -inf
    %820 = vmax.xlane.f32.xlu0 %v819
    %v821 = vpop.xlane.xlu0 %820
    %v822 = vsel %vm524, %v111, -inf
    %823 = vmax.xlane.f32.xlu0 %v822
    %v824 = vpop.xlane.xlu0 %823
    %v825 = vsel %vm524, %v112, -inf
    %826 = vmax.xlane.f32.xlu0 %v825
    %v827 = vpop.xlane.xlu0 %826
    %v828 = vsel %vm524, %v113, -inf
    %829 = vmax.xlane.f32.xlu0 %v828
    %v830 = vpop.xlane.xlu0 %829
    %v831 = vsel %vm524, %v114, -inf
    %832 = vmax.xlane.f32.xlu0 %v831
    %v833 = vpop.xlane.xlu0 %832
    %v834 = vsel %vm524, %v115, -inf
    %835 = vmax.xlane.f32.xlu0 %v834
    %v836 = vpop.xlane.xlu0 %835
    %v837 = vsel %vm524, %v116, -inf
    %838 = vmax.xlane.f32.xlu0 %v837
    %v839 = vpop.xlane.xlu0 %838
    %v840 = vsel %vm524, %v117, -inf
    %841 = vmax.xlane.f32.xlu0 %v840
    %v842 = vpop.xlane.xlu0 %841
    %v843 = vsel %vm524, %v118, -inf
    %844 = vmax.xlane.f32.xlu0 %v843
    %v845 = vpop.xlane.xlu0 %844
    %v846 = vsel %vm524, %v119, -inf
    %847 = vmax.xlane.f32.xlu0 %v846
    %v848 = vpop.xlane.xlu0 %847
    %v849 = vsel %vm524, %v120, -inf
    %850 = vmax.xlane.f32.xlu0 %v849
    %v851 = vpop.xlane.xlu0 %850
    %v852 = vsel %vm524, %v121, -inf
    %853 = vmax.xlane.f32.xlu0 %v852
    %v854 = vpop.xlane.xlu0 %853
    %v855 = vsel %vm524, %v122, -inf
    %856 = vmax.xlane.f32.xlu0 %v855
    %v857 = vpop.xlane.xlu0 %856
    %v858 = vsel %vm524, %v123, -inf
    %859 = vmax.xlane.f32.xlu0 %v858
    %v860 = vpop.xlane.xlu0 %859
    %v861 = vsel %vm524, %v124, -inf
    %862 = vmax.xlane.f32.xlu0 %v861
    %v863 = vpop.xlane.xlu0 %862
    %v864 = vsel %vm524, %v125, -inf
    %865 = vmax.xlane.f32.xlu0 %v864
    %v866 = vpop.xlane.xlu0 %865
    %v867 = vsel %vm524, %v126, -inf
    %868 = vmax.xlane.f32.xlu0 %v867
    %v869 = vpop.xlane.xlu0 %868
    %v870 = vsel %vm524, %v127, -inf
    %871 = vmax.xlane.f32.xlu0 %v870
    %v872 = vpop.xlane.xlu0 %871
    %v873 = vsel %vm524, %v128, -inf
    %874 = vmax.xlane.f32.xlu0 %v873
    %v875 = vpop.xlane.xlu0 %874
    %v876 = vsel %vm524, %v129, -inf
    %877 = vmax.xlane.f32.xlu0 %v876
    %v878 = vpop.xlane.xlu0 %877
    %v879 = vsel %vm524, %v130, -inf
    %880 = vmax.xlane.f32.xlu0 %v879
    %v881 = vpop.xlane.xlu0 %880
    %v882 = vsel %vm524, %v131, -inf
    %883 = vmax.xlane.f32.xlu0 %v882
    %v884 = vpop.xlane.xlu0 %883
    %v885 = vsel %vm524, %v132, -inf
    %886 = vmax.xlane.f32.xlu0 %v885
    %v887 = vpop.xlane.xlu0 %886
    %v888 = vsel %vm524, %v133, -inf
    %889 = vmax.xlane.f32.xlu0 %v888
    %v890 = vpop.xlane.xlu0 %889
    %v891 = vsel %vm524, %v134, -inf
    %892 = vmax.xlane.f32.xlu0 %v891
    %v893 = vpop.xlane.xlu0 %892
    %v894 = vsel %vm524, %v135, -inf
    %895 = vmax.xlane.f32.xlu0 %v894
    %v896 = vpop.xlane.xlu0 %895
    %v897 = vsel %vm524, %v136, -inf
    %898 = vmax.xlane.f32.xlu0 %v897
    %v899 = vpop.xlane.xlu0 %898
    %v900 = vsel %vm524, %v137, -inf
    %901 = vmax.xlane.f32.xlu0 %v900
    %v902 = vpop.xlane.xlu0 %901
    %v903 = vsel %vm524, %v138, -inf
    %904 = vmax.xlane.f32.xlu0 %v903
    %v905 = vpop.xlane.xlu0 %904
    %v906 = vsel %vm524, %v139, -inf
    %907 = vmax.xlane.f32.xlu0 %v906
    %v908 = vpop.xlane.xlu0 %907
    %v909 = vsel %vm524, %v140, -inf
    %910 = vmax.xlane.f32.xlu0 %v909
    %v911 = vpop.xlane.xlu0 %910
    %v912 = vsel %vm524, %v141, -inf
    %913 = vmax.xlane.f32.xlu0 %v912
    %v914 = vpop.xlane.xlu0 %913
    %v915 = vsel %vm524, %v142, -inf
    %916 = vmax.xlane.f32.xlu0 %v915
    %v917 = vpop.xlane.xlu0 %916
    %v918 = vsel %vm524, %v143, -inf
    %919 = vmax.xlane.f32.xlu0 %v918
    %v920 = vpop.xlane.xlu0 %919
    %v921 = vsel %vm524, %v144, -inf
    %922 = vmax.xlane.f32.xlu0 %v921
    %v923 = vpop.xlane.xlu0 %922
    %v924 = vsel %vm524, %v145, -inf
    %925 = vmax.xlane.f32.xlu0 %v924
    %v926 = vpop.xlane.xlu0 %925
    %v927 = vsel %vm524, %v146, -inf
    %928 = vmax.xlane.f32.xlu0 %v927
    %v929 = vpop.xlane.xlu0 %928
    %v930 = vsel %vm524, %v147, -inf
    %931 = vmax.xlane.f32.xlu0 %v930
    %v932 = vpop.xlane.xlu0 %931
    %v933 = vsel %vm524, %v148, -inf
    %934 = vmax.xlane.f32.xlu0 %v933
    %v935 = vpop.xlane.xlu0 %934
    %v936 = vsel %vm524, %v149, -inf
    %937 = vmax.xlane.f32.xlu0 %v936
    %v938 = vpop.xlane.xlu0 %937
    %v939 = vsel %vm524, %v150, -inf
    %940 = vmax.xlane.f32.xlu0 %v939
    %v941 = vpop.xlane.xlu0 %940
    %v942 = vsel %vm524, %v151, -inf
    %943 = vmax.xlane.f32.xlu0 %v942
    %v944 = vpop.xlane.xlu0 %943
    %v945 = vsel %vm524, %v152, -inf
    %946 = vmax.xlane.f32.xlu0 %v945
    %v947 = vpop.xlane.xlu0 %946
    %v948 = vsel %vm524, %v153, -inf
    %949 = vmax.xlane.f32.xlu0 %v948
    %v950 = vpop.xlane.xlu0 %949
    %v951 = vsel %vm524, %v154, -inf
    %952 = vmax.xlane.f32.xlu0 %v951
    %v953 = vpop.xlane.xlu0 %952
    %v954 = vsel %vm524, %v155, -inf
    %955 = vmax.xlane.f32.xlu0 %v954
    %v956 = vpop.xlane.xlu0 %955
    %v957 = vsel %vm524, %v156, -inf
    %958 = vmax.xlane.f32.xlu0 %v957
    %v959 = vpop.xlane.xlu0 %958
    %v960 = vsel %vm524, %v157, -inf
    %961 = vmax.xlane.f32.xlu0 %v960
    %v962 = vpop.xlane.xlu0 %961
    %v963 = vsel %vm524, %v158, -inf
    %964 = vmax.xlane.f32.xlu0 %v963
    %v965 = vpop.xlane.xlu0 %964
    %v966 = vsel %vm524, %v159, -inf
    %967 = vmax.xlane.f32.xlu0 %v966
    %v968 = vpop.xlane.xlu0 %967
    %v969 = vsel %vm524, %v160, -inf
    %970 = vmax.xlane.f32.xlu0 %v969
    %v971 = vpop.xlane.xlu0 %970
    %v972 = vsel %vm524, %v161, -inf
    %973 = vmax.xlane.f32.xlu0 %v972
    %v974 = vpop.xlane.xlu0 %973
    %v975 = vsel %vm524, %v162, -inf
    %976 = vmax.xlane.f32.xlu0 %v975
    %v977 = vpop.xlane.xlu0 %976
    %v978 = vsel %vm524, %v163, -inf
    %979 = vmax.xlane.f32.xlu0 %v978
    %v980 = vpop.xlane.xlu0 %979
    %v981 = vsel %vm524, %v164, -inf
    %982 = vmax.xlane.f32.xlu0 %v981
    %v983 = vpop.xlane.xlu0 %982
    %v984 = vsel %vm524, %v165, -inf
    %985 = vmax.xlane.f32.xlu0 %v984
    %v986 = vpop.xlane.xlu0 %985
    %v987 = vsel %vm524, %v166, -inf
    %988 = vmax.xlane.f32.xlu0 %v987
    %v989 = vpop.xlane.xlu0 %988
    %v990 = vsel %vm524, %v167, -inf
    %991 = vmax.xlane.f32.xlu0 %v990
    %v992 = vpop.xlane.xlu0 %991
    %v993 = vsel %vm524, %v168, -inf
    %994 = vmax.xlane.f32.xlu0 %v993
    %v995 = vpop.xlane.xlu0 %994
    %v996 = vsel %vm524, %v169, -inf
    %997 = vmax.xlane.f32.xlu0 %v996
    %v998 = vpop.xlane.xlu0 %997
    %v999 = vsel %vm524, %v170, -inf
    %1000 = vmax.xlane.f32.xlu0 %v999
    %v1001 = vpop.xlane.xlu0 %1000
    %v1002 = vsel %vm524, %v171, -inf
    %1003 = vmax.xlane.f32.xlu0 %v1002
    %v1004 = vpop.xlane.xlu0 %1003
    %v1005 = vsel %vm524, %v172, -inf
    %1006 = vmax.xlane.f32.xlu0 %v1005
    %v1007 = vpop.xlane.xlu0 %1006
    %v1008 = vsel %vm524, %v173, -inf
    %1009 = vmax.xlane.f32.xlu0 %v1008
    %v1010 = vpop.xlane.xlu0 %1009
    %v1011 = vsel %vm524, %v174, -inf
    %1012 = vmax.xlane.f32.xlu0 %v1011
    %v1013 = vpop.xlane.xlu0 %1012
    %v1014 = vsel %vm524, %v175, -inf
    %1015 = vmax.xlane.f32.xlu0 %v1014
    %v1016 = vpop.xlane.xlu0 %1015
    %v1017 = vsel %vm524, %v176, -inf
    %1018 = vmax.xlane.f32.xlu0 %v1017
    %v1019 = vpop.xlane.xlu0 %1018
    %v1020 = vsel %vm524, %v177, -inf
    %1021 = vmax.xlane.f32.xlu0 %v1020
    %v1022 = vpop.xlane.xlu0 %1021
    %v1023 = vsel %vm524, %v178, -inf
    %1024 = vmax.xlane.f32.xlu0 %v1023
    %v1025 = vpop.xlane.xlu0 %1024
    %v1026 = vsel %vm524, %v179, -inf
    %1027 = vmax.xlane.f32.xlu0 %v1026
    %v1028 = vpop.xlane.xlu0 %1027
    %v1029 = vsel %vm524, %v180, -inf
    %1030 = vmax.xlane.f32.xlu0 %v1029
    %v1031 = vpop.xlane.xlu0 %1030
    %v1032 = vsel %vm524, %v181, -inf
    %1033 = vmax.xlane.f32.xlu0 %v1032
    %v1034 = vpop.xlane.xlu0 %1033
    %v1035 = vsel %vm524, %v182, -inf
    %1036 = vmax.xlane.f32.xlu0 %v1035
    %v1037 = vpop.xlane.xlu0 %1036
    %v1038 = vsel %vm524, %v183, -inf
    %1039 = vmax.xlane.f32.xlu0 %v1038
    %v1040 = vpop.xlane.xlu0 %1039
    %v1041 = vsel %vm524, %v184, -inf
    %1042 = vmax.xlane.f32.xlu0 %v1041
    %v1043 = vpop.xlane.xlu0 %1042
    %v1044 = vsel %vm524, %v185, -inf
    %1045 = vmax.xlane.f32.xlu0 %v1044
    %v1046 = vpop.xlane.xlu0 %1045
    %v1047 = vsel %vm524, %v186, -inf
    %1048 = vmax.xlane.f32.xlu0 %v1047
    %v1049 = vpop.xlane.xlu0 %1048
    %v1050 = vsel %vm524, %v187, -inf
    %1051 = vmax.xlane.f32.xlu0 %v1050
    %v1052 = vpop.xlane.xlu0 %1051
    %v1053 = vsel %vm524, %v188, -inf
    %1054 = vmax.xlane.f32.xlu0 %v1053
    %v1055 = vpop.xlane.xlu0 %1054
    %v1056 = vsel %vm524, %v189, -inf
    %1057 = vmax.xlane.f32.xlu0 %v1056
    %v1058 = vpop.xlane.xlu0 %1057
    %v1059 = vsel %vm524, %v190, -inf
    %1060 = vmax.xlane.f32.xlu0 %v1059
    %v1061 = vpop.xlane.xlu0 %1060
    %v1062 = vsel %vm524, %v191, -inf
    %1063 = vmax.xlane.f32.xlu0 %v1062
    %v1064 = vpop.xlane.xlu0 %1063
    %v1065 = vsel %vm524, %v192, -inf
    %1066 = vmax.xlane.f32.xlu0 %v1065
    %v1067 = vpop.xlane.xlu0 %1066
    %v1068 = vsel %vm524, %v193, -inf
    %1069 = vmax.xlane.f32.xlu0 %v1068
    %v1070 = vpop.xlane.xlu0 %1069
    %v1071 = vsel %vm524, %v194, -inf
    %1072 = vmax.xlane.f32.xlu0 %v1071
    %v1073 = vpop.xlane.xlu0 %1072
    %v1074 = vsel %vm524, %v195, -inf
    %1075 = vmax.xlane.f32.xlu0 %v1074
    %v1076 = vpop.xlane.xlu0 %1075
    %v1077 = vsel %vm524, %v196, -inf
    %1078 = vmax.xlane.f32.xlu0 %v1077
    %v1079 = vpop.xlane.xlu0 %1078
    %v1080 = vsel %vm524, %v197, -inf
    %1081 = vmax.xlane.f32.xlu0 %v1080
    %v1082 = vpop.xlane.xlu0 %1081
    %v1083 = vsel %vm524, %v198, -inf
    %1084 = vmax.xlane.f32.xlu0 %v1083
    %v1085 = vpop.xlane.xlu0 %1084
    %v1086 = vsel %vm524, %v199, -inf
    %1087 = vmax.xlane.f32.xlu0 %v1086
    %v1088 = vpop.xlane.xlu0 %1087
    %v1089 = vsel %vm524, %v200, -inf
    %1090 = vmax.xlane.f32.xlu0 %v1089
    %v1091 = vpop.xlane.xlu0 %1090
    %v1092 = vsel %vm524, %v201, -inf
    %1093 = vmax.xlane.f32.xlu0 %v1092
    %v1094 = vpop.xlane.xlu0 %1093
    %v1095 = vsel %vm524, %v202, -inf
    %1096 = vmax.xlane.f32.xlu0 %v1095
    %v1097 = vpop.xlane.xlu0 %1096
    %v1098 = vsel %vm524, %v203, -inf
    %1099 = vmax.xlane.f32.xlu0 %v1098
    %v1100 = vpop.xlane.xlu0 %1099
    %v1101 = vsel %vm524, %v204, -inf
    %1102 = vmax.xlane.f32.xlu0 %v1101
    %v1103 = vpop.xlane.xlu0 %1102
    %v1104 = vsel %vm524, %v205, -inf
    %1105 = vmax.xlane.f32.xlu0 %v1104
    %v1106 = vpop.xlane.xlu0 %1105
    %v1107 = vsel %vm524, %v206, -inf
    %1108 = vmax.xlane.f32.xlu0 %v1107
    %v1109 = vpop.xlane.xlu0 %1108
    %v1110 = vsel %vm524, %v207, -inf
    %1111 = vmax.xlane.f32.xlu0 %v1110
    %v1112 = vpop.xlane.xlu0 %1111
    %v1113 = vsel %vm524, %v208, -inf
    %1114 = vmax.xlane.f32.xlu0 %v1113
    %v1115 = vpop.xlane.xlu0 %1114
    %v1116 = vsel %vm524, %v209, -inf
    %1117 = vmax.xlane.f32.xlu0 %v1116
    %v1118 = vpop.xlane.xlu0 %1117
    %v1119 = vsel %vm524, %v210, -inf
    %1120 = vmax.xlane.f32.xlu0 %v1119
    %v1121 = vpop.xlane.xlu0 %1120
    %v1122 = vsel %vm524, %v211, -inf
    %1123 = vmax.xlane.f32.xlu0 %v1122
    %v1124 = vpop.xlane.xlu0 %1123
    %v1125 = vsel %vm524, %v212, -inf
    %1126 = vmax.xlane.f32.xlu0 %v1125
    %v1127 = vpop.xlane.xlu0 %1126
    %v1128 = vsel %vm524, %v213, -inf
    %1129 = vmax.xlane.f32.xlu0 %v1128
    %v1130 = vpop.xlane.xlu0 %1129
    %v1131 = vsel %vm524, %v214, -inf
    %1132 = vmax.xlane.f32.xlu0 %v1131
    %v1133 = vpop.xlane.xlu0 %1132
    %v1134 = vsel %vm524, %v215, -inf
    %1135 = vmax.xlane.f32.xlu0 %v1134
    %v1136 = vpop.xlane.xlu0 %1135
    %v1137 = vsel %vm524, %v216, -inf
    %1138 = vmax.xlane.f32.xlu0 %v1137
    %v1139 = vpop.xlane.xlu0 %1138
    %v1140 = vsel %vm524, %v217, -inf
    %1141 = vmax.xlane.f32.xlu0 %v1140
    %v1142 = vpop.xlane.xlu0 %1141
    %v1143 = vsel %vm524, %v218, -inf
    %1144 = vmax.xlane.f32.xlu0 %v1143
    %v1145 = vpop.xlane.xlu0 %1144
    %v1146 = vsel %vm524, %v219, -inf
    %1147 = vmax.xlane.f32.xlu0 %v1146
    %v1148 = vpop.xlane.xlu0 %1147
    %v1149 = vsel %vm524, %v220, -inf
    %1150 = vmax.xlane.f32.xlu0 %v1149
    %v1151 = vpop.xlane.xlu0 %1150
    %v1152 = vsel %vm524, %v221, -inf
    %1153 = vmax.xlane.f32.xlu0 %v1152
    %v1154 = vpop.xlane.xlu0 %1153
    %v1155 = vsel %vm524, %v222, -inf
    %1156 = vmax.xlane.f32.xlu0 %v1155
    %v1157 = vpop.xlane.xlu0 %1156
    %v1158 = vsel %vm524, %v223, -inf
    %1159 = vmax.xlane.f32.xlu0 %v1158
    %v1160 = vpop.xlane.xlu0 %1159
    %v1161 = vsel %vm524, %v224, -inf
    %1162 = vmax.xlane.f32.xlu0 %v1161
    %v1163 = vpop.xlane.xlu0 %1162
    %v1164 = vsel %vm524, %v225, -inf
    %1165 = vmax.xlane.f32.xlu0 %v1164
    %v1166 = vpop.xlane.xlu0 %1165
    %v1167 = vsel %vm524, %v226, -inf
    %1168 = vmax.xlane.f32.xlu0 %v1167
    %v1169 = vpop.xlane.xlu0 %1168
    %v1170 = vsel %vm524, %v227, -inf
    %1171 = vmax.xlane.f32.xlu0 %v1170
    %v1172 = vpop.xlane.xlu0 %1171
    %v1173 = vsel %vm524, %v228, -inf
    %1174 = vmax.xlane.f32.xlu0 %v1173
    %v1175 = vpop.xlane.xlu0 %1174
    %v1176 = vsel %vm524, %v229, -inf
    %1177 = vmax.xlane.f32.xlu0 %v1176
    %v1178 = vpop.xlane.xlu0 %1177
    %v1179 = vsel %vm524, %v230, -inf
    %1180 = vmax.xlane.f32.xlu0 %v1179
    %v1181 = vpop.xlane.xlu0 %1180
    %v1182 = vsel %vm524, %v231, -inf
    %1183 = vmax.xlane.f32.xlu0 %v1182
    %v1184 = vpop.xlane.xlu0 %1183
    %v1185 = vsel %vm524, %v232, -inf
    %1186 = vmax.xlane.f32.xlu0 %v1185
    %v1187 = vpop.xlane.xlu0 %1186
    %v1188 = vsel %vm524, %v233, -inf
    %1189 = vmax.xlane.f32.xlu0 %v1188
    %v1190 = vpop.xlane.xlu0 %1189
    %v1191 = vsel %vm524, %v234, -inf
    %1192 = vmax.xlane.f32.xlu0 %v1191
    %v1193 = vpop.xlane.xlu0 %1192
    %v1194 = vsel %vm524, %v235, -inf
    %1195 = vmax.xlane.f32.xlu0 %v1194
    %v1196 = vpop.xlane.xlu0 %1195
    %v1197 = vsel %vm524, %v236, -inf
    %1198 = vmax.xlane.f32.xlu0 %v1197
    %v1199 = vpop.xlane.xlu0 %1198
    %v1200 = vsel %vm524, %v237, -inf
    %1201 = vmax.xlane.f32.xlu0 %v1200
    %v1202 = vpop.xlane.xlu0 %1201
    %v1203 = vsel %vm524, %v238, -inf
    %1204 = vmax.xlane.f32.xlu0 %v1203
    %v1205 = vpop.xlane.xlu0 %1204
    %v1206 = vsel %vm524, %v239, -inf
    %1207 = vmax.xlane.f32.xlu0 %v1206
    %v1208 = vpop.xlane.xlu0 %1207
    %v1209 = vsel %vm524, %v240, -inf
    %1210 = vmax.xlane.f32.xlu0 %v1209
    %v1211 = vpop.xlane.xlu0 %1210
    %v1212 = vsel %vm524, %v241, -inf
    %1213 = vmax.xlane.f32.xlu0 %v1212
    %v1214 = vpop.xlane.xlu0 %1213
    %v1215 = vsel %vm524, %v242, -inf
    %1216 = vmax.xlane.f32.xlu0 %v1215
    %v1217 = vpop.xlane.xlu0 %1216
    %v1218 = vsel %vm524, %v243, -inf
    %1219 = vmax.xlane.f32.xlu0 %v1218
    %v1220 = vpop.xlane.xlu0 %1219
    %v1221 = vsel %vm524, %v244, -inf
    %1222 = vmax.xlane.f32.xlu0 %v1221
    %v1223 = vpop.xlane.xlu0 %1222
    %v1224 = vsel %vm524, %v245, -inf
    %1225 = vmax.xlane.f32.xlu0 %v1224
    %v1226 = vpop.xlane.xlu0 %1225
    %v1227 = vsel %vm524, %v246, -inf
    %1228 = vmax.xlane.f32.xlu0 %v1227
    %v1229 = vpop.xlane.xlu0 %1228
    %v1230 = vsel %vm524, %v247, -inf
    %1231 = vmax.xlane.f32.xlu0 %v1230
    %v1232 = vpop.xlane.xlu0 %1231
    %v1233 = vsel %vm524, %v248, -inf
    %1234 = vmax.xlane.f32.xlu0 %v1233
    %v1235 = vpop.xlane.xlu0 %1234
    %v1236 = vsel %vm524, %v249, -inf
    %1237 = vmax.xlane.f32.xlu0 %v1236
    %v1238 = vpop.xlane.xlu0 %1237
    %v1239 = vsel %vm524, %v250, -inf
    %1240 = vmax.xlane.f32.xlu0 %v1239
    %v1241 = vpop.xlane.xlu0 %1240
    %v1242 = vsel %vm524, %v251, -inf
    %1243 = vmax.xlane.f32.xlu0 %v1242
    %v1244 = vpop.xlane.xlu0 %1243
    %v1245 = vsel %vm524, %v252, -inf
    %1246 = vmax.xlane.f32.xlu0 %v1245
    %v1247 = vpop.xlane.xlu0 %1246
    %v1248 = vsel %vm524, %v253, -inf
    %1249 = vmax.xlane.f32.xlu0 %v1248
    %v1250 = vpop.xlane.xlu0 %1249
    %v1251 = vsel %vm524, %v254, -inf
    %1252 = vmax.xlane.f32.xlu0 %v1251
    %v1253 = vpop.xlane.xlu0 %1252
    %v1254 = vsel %vm524, %v255, -inf
    %1255 = vmax.xlane.f32.xlu0 %v1254
    %v1256 = vpop.xlane.xlu0 %1255
    %v1257 = vsel %vm524, %v256, -inf
    %1258 = vmax.xlane.f32.xlu0 %v1257
    %v1259 = vpop.xlane.xlu0 %1258
    %v1260 = vsel %vm524, %v257, -inf
    %1261 = vmax.xlane.f32.xlu0 %v1260
    %v1262 = vpop.xlane.xlu0 %1261
    %v1263 = vsel %vm524, %v258, -inf
    %1264 = vmax.xlane.f32.xlu0 %v1263
    %v1265 = vpop.xlane.xlu0 %1264
    %v1266 = vsel %vm524, %v259, -inf
    %1267 = vmax.xlane.f32.xlu0 %v1266
    %v1268 = vpop.xlane.xlu0 %1267
    %v1269 = vsel %vm524, %v260, -inf
    %1270 = vmax.xlane.f32.xlu0 %v1269
    %v1271 = vpop.xlane.xlu0 %1270
    %v1272 = vsel %vm524, %v261, -inf
    %1273 = vmax.xlane.f32.xlu0 %v1272
    %v1274 = vpop.xlane.xlu0 %1273
    %v1275 = vsel %vm524, %v262, -inf
    %1276 = vmax.xlane.f32.xlu0 %v1275
    %v1277 = vpop.xlane.xlu0 %1276
    %v1278 = vsel %vm524, %v263, -inf
    %1279 = vmax.xlane.f32.xlu0 %v1278
    %v1280 = vpop.xlane.xlu0 %1279
    %v1281 = vsel %vm524, %v264, -inf
    %1282 = vmax.xlane.f32.xlu0 %v1281
    %v1283 = vpop.xlane.xlu0 %1282
    %v1284 = vsel %vm524, %v265, -inf
    %1285 = vmax.xlane.f32.xlu0 %v1284
    %v1286 = vpop.xlane.xlu0 %1285
    %v1287 = vsel %vm524, %v266, -inf
    %1288 = vmax.xlane.f32.xlu0 %v1287
    %v1289 = vpop.xlane.xlu0 %1288
    %v1290 = vsel %vm524, %v267, -inf
    %1291 = vmax.xlane.f32.xlu0 %v1290
    %v1292 = vpop.xlane.xlu0 %1291
    %v1293 = vsub.f32 %v12, %v527
    %v1294 = vsub.f32 %v13, %v530
    %v1295 = vsub.f32 %v14, %v533
    %v1296 = vsub.f32 %v15, %v536
    %v1297 = vsub.f32 %v16, %v539
    %v1298 = vsub.f32 %v17, %v542
    %v1299 = vsub.f32 %v18, %v545
    %v1300 = vsub.f32 %v19, %v548
    %v1301 = vsub.f32 %v20, %v551
    %v1302 = vsub.f32 %v21, %v554
    %v1303 = vsub.f32 %v22, %v557
    %v1304 = vsub.f32 %v23, %v560
    %v1305 = vsub.f32 %v24, %v563
    %v1306 = vsub.f32 %v25, %v566
    %v1307 = vsub.f32 %v26, %v569
    %v1308 = vsub.f32 %v27, %v572
    %v1309 = vsub.f32 %v28, %v575
    %v1310 = vsub.f32 %v29, %v578
    %v1311 = vsub.f32 %v30, %v581
    %v1312 = vsub.f32 %v31, %v584
    %v1313 = vsub.f32 %v32, %v587
    %v1314 = vsub.f32 %v33, %v590
    %v1315 = vsub.f32 %v34, %v593
    %v1316 = vsub.f32 %v35, %v596
    %v1317 = vsub.f32 %v36, %v599
    %v1318 = vsub.f32 %v37, %v602
    %v1319 = vsub.f32 %v38, %v605
    %v1320 = vsub.f32 %v39, %v608
    %v1321 = vsub.f32 %v40, %v611
    %v1322 = vsub.f32 %v41, %v614
    %v1323 = vsub.f32 %v42, %v617
    %v1324 = vsub.f32 %v43, %v620
    %v1325 = vsub.f32 %v44, %v623
    %v1326 = vsub.f32 %v45, %v626
    %v1327 = vsub.f32 %v46, %v629
    %v1328 = vsub.f32 %v47, %v632
    %v1329 = vsub.f32 %v48, %v635
    %v1330 = vsub.f32 %v49, %v638
    %v1331 = vsub.f32 %v50, %v641
    %v1332 = vsub.f32 %v51, %v644
    %v1333 = vsub.f32 %v52, %v647
    %v1334 = vsub.f32 %v53, %v650
    %v1335 = vsub.f32 %v54, %v653
    %v1336 = vsub.f32 %v55, %v656
    %v1337 = vsub.f32 %v56, %v659
    %v1338 = vsub.f32 %v57, %v662
    %v1339 = vsub.f32 %v58, %v665
    %v1340 = vsub.f32 %v59, %v668
    %v1341 = vsub.f32 %v60, %v671
    %v1342 = vsub.f32 %v61, %v674
    %v1343 = vsub.f32 %v62, %v677
    %v1344 = vsub.f32 %v63, %v680
    %v1345 = vsub.f32 %v64, %v683
    %v1346 = vsub.f32 %v65, %v686
    %v1347 = vsub.f32 %v66, %v689
    %v1348 = vsub.f32 %v67, %v692
    %v1349 = vsub.f32 %v68, %v695
    %v1350 = vsub.f32 %v69, %v698
    %v1351 = vsub.f32 %v70, %v701
    %v1352 = vsub.f32 %v71, %v704
    %v1353 = vsub.f32 %v72, %v707
    %v1354 = vsub.f32 %v73, %v710
    %v1355 = vsub.f32 %v74, %v713
    %v1356 = vsub.f32 %v75, %v716
    %v1357 = vsub.f32 %v76, %v719
    %v1358 = vsub.f32 %v77, %v722
    %v1359 = vsub.f32 %v78, %v725
    %v1360 = vsub.f32 %v79, %v728
    %v1361 = vsub.f32 %v80, %v731
    %v1362 = vsub.f32 %v81, %v734
    %v1363 = vsub.f32 %v82, %v737
    %v1364 = vsub.f32 %v83, %v740
    %v1365 = vsub.f32 %v84, %v743
    %v1366 = vsub.f32 %v85, %v746
    %v1367 = vsub.f32 %v86, %v749
    %v1368 = vsub.f32 %v87, %v752
    %v1369 = vsub.f32 %v88, %v755
    %v1370 = vsub.f32 %v89, %v758
    %v1371 = vsub.f32 %v90, %v761
    %v1372 = vsub.f32 %v91, %v764
    %v1373 = vsub.f32 %v92, %v767
    %v1374 = vsub.f32 %v93, %v770
    %v1375 = vsub.f32 %v94, %v773
    %v1376 = vsub.f32 %v95, %v776
    %v1377 = vsub.f32 %v96, %v779
    %v1378 = vsub.f32 %v97, %v782
    %v1379 = vsub.f32 %v98, %v785
    %v1380 = vsub.f32 %v99, %v788
    %v1381 = vsub.f32 %v100, %v791
    %v1382 = vsub.f32 %v101, %v794
    %v1383 = vsub.f32 %v102, %v797
    %v1384 = vsub.f32 %v103, %v800
    %v1385 = vsub.f32 %v104, %v803
    %v1386 = vsub.f32 %v105, %v806
    %v1387 = vsub.f32 %v106, %v809
    %v1388 = vsub.f32 %v107, %v812
    %v1389 = vsub.f32 %v108, %v815
    %v1390 = vsub.f32 %v109, %v818
    %v1391 = vsub.f32 %v110, %v821
    %v1392 = vsub.f32 %v111, %v824
    %v1393 = vsub.f32 %v112, %v827
    %v1394 = vsub.f32 %v113, %v830
    %v1395 = vsub.f32 %v114, %v833
    %v1396 = vsub.f32 %v115, %v836
    %v1397 = vsub.f32 %v116, %v839
    %v1398 = vsub.f32 %v117, %v842
    %v1399 = vsub.f32 %v118, %v845
    %v1400 = vsub.f32 %v119, %v848
    %v1401 = vsub.f32 %v120, %v851
    %v1402 = vsub.f32 %v121, %v854
    %v1403 = vsub.f32 %v122, %v857
    %v1404 = vsub.f32 %v123, %v860
    %v1405 = vsub.f32 %v124, %v863
    %v1406 = vsub.f32 %v125, %v866
    %v1407 = vsub.f32 %v126, %v869
    %v1408 = vsub.f32 %v127, %v872
    %v1409 = vsub.f32 %v128, %v875
    %v1410 = vsub.f32 %v129, %v878
    %v1411 = vsub.f32 %v130, %v881
    %v1412 = vsub.f32 %v131, %v884
    %v1413 = vsub.f32 %v132, %v887
    %v1414 = vsub.f32 %v133, %v890
    %v1415 = vsub.f32 %v134, %v893
    %v1416 = vsub.f32 %v135, %v896
    %v1417 = vsub.f32 %v136, %v899
    %v1418 = vsub.f32 %v137, %v902
    %v1419 = vsub.f32 %v138, %v905
    %v1420 = vsub.f32 %v139, %v908
    %v1421 = vsub.f32 %v140, %v911
    %v1422 = vsub.f32 %v141, %v914
    %v1423 = vsub.f32 %v142, %v917
    %v1424 = vsub.f32 %v143, %v920
    %v1425 = vsub.f32 %v144, %v923
    %v1426 = vsub.f32 %v145, %v926
    %v1427 = vsub.f32 %v146, %v929
    %v1428 = vsub.f32 %v147, %v932
    %v1429 = vsub.f32 %v148, %v935
    %v1430 = vsub.f32 %v149, %v938
    %v1431 = vsub.f32 %v150, %v941
    %v1432 = vsub.f32 %v151, %v944
    %v1433 = vsub.f32 %v152, %v947
    %v1434 = vsub.f32 %v153, %v950
    %v1435 = vsub.f32 %v154, %v953
    %v1436 = vsub.f32 %v155, %v956
    %v1437 = vsub.f32 %v156, %v959
    %v1438 = vsub.f32 %v157, %v962
    %v1439 = vsub.f32 %v158, %v965
    %v1440 = vsub.f32 %v159, %v968
    %v1441 = vsub.f32 %v160, %v971
    %v1442 = vsub.f32 %v161, %v974
    %v1443 = vsub.f32 %v162, %v977
    %v1444 = vsub.f32 %v163, %v980
    %v1445 = vsub.f32 %v164, %v983
    %v1446 = vsub.f32 %v165, %v986
    %v1447 = vsub.f32 %v166, %v989
    %v1448 = vsub.f32 %v167, %v992
    %v1449 = vsub.f32 %v168, %v995
    %v1450 = vsub.f32 %v169, %v998
    %v1451 = vsub.f32 %v170, %v1001
    %v1452 = vsub.f32 %v171, %v1004
    %v1453 = vsub.f32 %v172, %v1007
    %v1454 = vsub.f32 %v173, %v1010
    %v1455 = vsub.f32 %v174, %v1013
    %v1456 = vsub.f32 %v175, %v1016
    %v1457 = vsub.f32 %v176, %v1019
    %v1458 = vsub.f32 %v177, %v1022
    %v1459 = vsub.f32 %v178, %v1025
    %v1460 = vsub.f32 %v179, %v1028
    %v1461 = vsub.f32 %v180, %v1031
    %v1462 = vsub.f32 %v181, %v1034
    %v1463 = vsub.f32 %v182, %v1037
    %v1464 = vsub.f32 %v183, %v1040
    %v1465 = vsub.f32 %v184, %v1043
    %v1466 = vsub.f32 %v185, %v1046
    %v1467 = vsub.f32 %v186, %v1049
    %v1468 = vsub.f32 %v187, %v1052
    %v1469 = vsub.f32 %v188, %v1055
    %v1470 = vsub.f32 %v189, %v1058
    %v1471 = vsub.f32 %v190, %v1061
    %v1472 = vsub.f32 %v191, %v1064
    %v1473 = vsub.f32 %v192, %v1067
    %v1474 = vsub.f32 %v193, %v1070
    %v1475 = vsub.f32 %v194, %v1073
    %v1476 = vsub.f32 %v195, %v1076
    %v1477 = vsub.f32 %v196, %v1079
    %v1478 = vsub.f32 %v197, %v1082
    %v1479 = vsub.f32 %v198, %v1085
    %v1480 = vsub.f32 %v199, %v1088
    %v1481 = vsub.f32 %v200, %v1091
    %v1482 = vsub.f32 %v201, %v1094
    %v1483 = vsub.f32 %v202, %v1097
    %v1484 = vsub.f32 %v203, %v1100
    %v1485 = vsub.f32 %v204, %v1103
    %v1486 = vsub.f32 %v205, %v1106
    %v1487 = vsub.f32 %v206, %v1109
    %v1488 = vsub.f32 %v207, %v1112
    %v1489 = vsub.f32 %v208, %v1115
    %v1490 = vsub.f32 %v209, %v1118
    %v1491 = vsub.f32 %v210, %v1121
    %v1492 = vsub.f32 %v211, %v1124
    %v1493 = vsub.f32 %v212, %v1127
    %v1494 = vsub.f32 %v213, %v1130
    %v1495 = vsub.f32 %v214, %v1133
    %v1496 = vsub.f32 %v215, %v1136
    %v1497 = vsub.f32 %v216, %v1139
    %v1498 = vsub.f32 %v217, %v1142
    %v1499 = vsub.f32 %v218, %v1145
    %v1500 = vsub.f32 %v219, %v1148
    %v1501 = vsub.f32 %v220, %v1151
    %v1502 = vsub.f32 %v221, %v1154
    %v1503 = vsub.f32 %v222, %v1157
    %v1504 = vsub.f32 %v223, %v1160
    %v1505 = vsub.f32 %v224, %v1163
    %v1506 = vsub.f32 %v225, %v1166
    %v1507 = vsub.f32 %v226, %v1169
    %v1508 = vsub.f32 %v227, %v1172
    %v1509 = vsub.f32 %v228, %v1175
    %v1510 = vsub.f32 %v229, %v1178
    %v1511 = vsub.f32 %v230, %v1181
    %v1512 = vsub.f32 %v231, %v1184
    %v1513 = vsub.f32 %v232, %v1187
    %v1514 = vsub.f32 %v233, %v1190
    %v1515 = vsub.f32 %v234, %v1193
    %v1516 = vsub.f32 %v235, %v1196
    %v1517 = vsub.f32 %v236, %v1199
    %v1518 = vsub.f32 %v237, %v1202
    %v1519 = vsub.f32 %v238, %v1205
    %v1520 = vsub.f32 %v239, %v1208
    %v1521 = vsub.f32 %v240, %v1211
    %v1522 = vsub.f32 %v241, %v1214
    %v1523 = vsub.f32 %v242, %v1217
    %v1524 = vsub.f32 %v243, %v1220
    %v1525 = vsub.f32 %v244, %v1223
    %v1526 = vsub.f32 %v245, %v1226
    %v1527 = vsub.f32 %v246, %v1229
    %v1528 = vsub.f32 %v247, %v1232
    %v1529 = vsub.f32 %v248, %v1235
    %v1530 = vsub.f32 %v249, %v1238
    %v1531 = vsub.f32 %v250, %v1241
    %v1532 = vsub.f32 %v251, %v1244
    %v1533 = vsub.f32 %v252, %v1247
    %v1534 = vsub.f32 %v253, %v1250
    %v1535 = vsub.f32 %v254, %v1253
    %v1536 = vsub.f32 %v255, %v1256
    %v1537 = vsub.f32 %v256, %v1259
    %v1538 = vsub.f32 %v257, %v1262
    %v1539 = vsub.f32 %v258, %v1265
    %v1540 = vsub.f32 %v259, %v1268
    %v1541 = vsub.f32 %v260, %v1271
    %v1542 = vsub.f32 %v261, %v1274
    %v1543 = vsub.f32 %v262, %v1277
    %v1544 = vsub.f32 %v263, %v1280
    %v1545 = vsub.f32 %v264, %v1283
    %v1546 = vsub.f32 %v265, %v1286
    %v1547 = vsub.f32 %v266, %v1289
    %v1548 = vsub.f32 %v267, %v1292
    %v1549 = vmul.f32 %v1293, 1.442695
    %v1550 = vpow.pop %v1549
    %v1551 = vmul.f32 %v1294, 1.442695
    %v1552 = vpow.pop %v1551
    %v1553 = vmul.f32 %v1295, 1.442695
    %v1554 = vpow.pop %v1553
    %v1555 = vmul.f32 %v1296, 1.442695
    %v1556 = vpow.pop %v1555
    %v1557 = vmul.f32 %v1297, 1.442695
    %v1558 = vpow.pop %v1557
    %v1559 = vmul.f32 %v1298, 1.442695
    %v1560 = vpow.pop %v1559
    %v1561 = vmul.f32 %v1299, 1.442695
    %v1562 = vpow.pop %v1561
    %v1563 = vmul.f32 %v1300, 1.442695
    %v1564 = vpow.pop %v1563
    %v1565 = vmul.f32 %v1301, 1.442695
    %v1566 = vpow.pop %v1565
    %v1567 = vmul.f32 %v1302, 1.442695
    %v1568 = vpow.pop %v1567
    %v1569 = vmul.f32 %v1303, 1.442695
    %v1570 = vpow.pop %v1569
    %v1571 = vmul.f32 %v1304, 1.442695
    %v1572 = vpow.pop %v1571
    %v1573 = vmul.f32 %v1305, 1.442695
    %v1574 = vpow.pop %v1573
    %v1575 = vmul.f32 %v1306, 1.442695
    %v1576 = vpow.pop %v1575
    %v1577 = vmul.f32 %v1307, 1.442695
    %v1578 = vpow.pop %v1577
    %v1579 = vmul.f32 %v1308, 1.442695
    %v1580 = vpow.pop %v1579
    %v1581 = vmul.f32 %v1309, 1.442695
    %v1582 = vpow.pop %v1581
    %v1583 = vmul.f32 %v1310, 1.442695
    %v1584 = vpow.pop %v1583
    %v1585 = vmul.f32 %v1311, 1.442695
    %v1586 = vpow.pop %v1585
    %v1587 = vmul.f32 %v1312, 1.442695
    %v1588 = vpow.pop %v1587
    %v1589 = vmul.f32 %v1313, 1.442695
    %v1590 = vpow.pop %v1589
    %v1591 = vmul.f32 %v1314, 1.442695
    %v1592 = vpow.pop %v1591
    %v1593 = vmul.f32 %v1315, 1.442695
    %v1594 = vpow.pop %v1593
    %v1595 = vmul.f32 %v1316, 1.442695
    %v1596 = vpow.pop %v1595
    %v1597 = vmul.f32 %v1317, 1.442695
    %v1598 = vpow.pop %v1597
    %v1599 = vmul.f32 %v1318, 1.442695
    %v1600 = vpow.pop %v1599
    %v1601 = vmul.f32 %v1319, 1.442695
    %v1602 = vpow.pop %v1601
    %v1603 = vmul.f32 %v1320, 1.442695
    %v1604 = vpow.pop %v1603
    %v1605 = vmul.f32 %v1321, 1.442695
    %v1606 = vpow.pop %v1605
    %v1607 = vmul.f32 %v1322, 1.442695
    %v1608 = vpow.pop %v1607
    %v1609 = vmul.f32 %v1323, 1.442695
    %v1610 = vpow.pop %v1609
    %v1611 = vmul.f32 %v1324, 1.442695
    %v1612 = vpow.pop %v1611
    %v1613 = vmul.f32 %v1325, 1.442695
    %v1614 = vpow.pop %v1613
    %v1615 = vmul.f32 %v1326, 1.442695
    %v1616 = vpow.pop %v1615
    %v1617 = vmul.f32 %v1327, 1.442695
    %v1618 = vpow.pop %v1617
    %v1619 = vmul.f32 %v1328, 1.442695
    %v1620 = vpow.pop %v1619
    %v1621 = vmul.f32 %v1329, 1.442695
    %v1622 = vpow.pop %v1621
    %v1623 = vmul.f32 %v1330, 1.442695
    %v1624 = vpow.pop %v1623
    %v1625 = vmul.f32 %v1331, 1.442695
    %v1626 = vpow.pop %v1625
    %v1627 = vmul.f32 %v1332, 1.442695
    %v1628 = vpow.pop %v1627
    %v1629 = vmul.f32 %v1333, 1.442695
    %v1630 = vpow.pop %v1629
    %v1631 = vmul.f32 %v1334, 1.442695
    %v1632 = vpow.pop %v1631
    %v1633 = vmul.f32 %v1335, 1.442695
    %v1634 = vpow.pop %v1633
    %v1635 = vmul.f32 %v1336, 1.442695
    %v1636 = vpow.pop %v1635
    %v1637 = vmul.f32 %v1337, 1.442695
    %v1638 = vpow.pop %v1637
    %v1639 = vmul.f32 %v1338, 1.442695
    %v1640 = vpow.pop %v1639
    %v1641 = vmul.f32 %v1339, 1.442695
    %v1642 = vpow.pop %v1641
    %v1643 = vmul.f32 %v1340, 1.442695
    %v1644 = vpow.pop %v1643
    %v1645 = vmul.f32 %v1341, 1.442695
    %v1646 = vpow.pop %v1645
    %v1647 = vmul.f32 %v1342, 1.442695
    %v1648 = vpow.pop %v1647
    %v1649 = vmul.f32 %v1343, 1.442695
    %v1650 = vpow.pop %v1649
    %v1651 = vmul.f32 %v1344, 1.442695
    %v1652 = vpow.pop %v1651
    %v1653 = vmul.f32 %v1345, 1.442695
    %v1654 = vpow.pop %v1653
    %v1655 = vmul.f32 %v1346, 1.442695
    %v1656 = vpow.pop %v1655
    %v1657 = vmul.f32 %v1347, 1.442695
    %v1658 = vpow.pop %v1657
    %v1659 = vmul.f32 %v1348, 1.442695
    %v1660 = vpow.pop %v1659
    %v1661 = vmul.f32 %v1349, 1.442695
    %v1662 = vpow.pop %v1661
    %v1663 = vmul.f32 %v1350, 1.442695
    %v1664 = vpow.pop %v1663
    %v1665 = vmul.f32 %v1351, 1.442695
    %v1666 = vpow.pop %v1665
    %v1667 = vmul.f32 %v1352, 1.442695
    %v1668 = vpow.pop %v1667
    %v1669 = vmul.f32 %v1353, 1.442695
    %v1670 = vpow.pop %v1669
    %v1671 = vmul.f32 %v1354, 1.442695
    %v1672 = vpow.pop %v1671
    %v1673 = vmul.f32 %v1355, 1.442695
    %v1674 = vpow.pop %v1673
    %v1675 = vmul.f32 %v1356, 1.442695
    %v1676 = vpow.pop %v1675
    %v1677 = vmul.f32 %v1357, 1.442695
    %v1678 = vpow.pop %v1677
    %v1679 = vmul.f32 %v1358, 1.442695
    %v1680 = vpow.pop %v1679
    %v1681 = vmul.f32 %v1359, 1.442695
    %v1682 = vpow.pop %v1681
    %v1683 = vmul.f32 %v1360, 1.442695
    %v1684 = vpow.pop %v1683
    %v1685 = vmul.f32 %v1361, 1.442695
    %v1686 = vpow.pop %v1685
    %v1687 = vmul.f32 %v1362, 1.442695
    %v1688 = vpow.pop %v1687
    %v1689 = vmul.f32 %v1363, 1.442695
    %v1690 = vpow.pop %v1689
    %v1691 = vmul.f32 %v1364, 1.442695
    %v1692 = vpow.pop %v1691
    %v1693 = vmul.f32 %v1365, 1.442695
    %v1694 = vpow.pop %v1693
    %v1695 = vmul.f32 %v1366, 1.442695
    %v1696 = vpow.pop %v1695
    %v1697 = vmul.f32 %v1367, 1.442695
    %v1698 = vpow.pop %v1697
    %v1699 = vmul.f32 %v1368, 1.442695
    %v1700 = vpow.pop %v1699
    %v1701 = vmul.f32 %v1369, 1.442695
    %v1702 = vpow.pop %v1701
    %v1703 = vmul.f32 %v1370, 1.442695
    %v1704 = vpow.pop %v1703
    %v1705 = vmul.f32 %v1371, 1.442695
    %v1706 = vpow.pop %v1705
    %v1707 = vmul.f32 %v1372, 1.442695
    %v1708 = vpow.pop %v1707
    %v1709 = vmul.f32 %v1373, 1.442695
    %v1710 = vpow.pop %v1709
    %v1711 = vmul.f32 %v1374, 1.442695
    %v1712 = vpow.pop %v1711
    %v1713 = vmul.f32 %v1375, 1.442695
    %v1714 = vpow.pop %v1713
    %v1715 = vmul.f32 %v1376, 1.442695
    %v1716 = vpow.pop %v1715
    %v1717 = vmul.f32 %v1377, 1.442695
    %v1718 = vpow.pop %v1717
    %v1719 = vmul.f32 %v1378, 1.442695
    %v1720 = vpow.pop %v1719
    %v1721 = vmul.f32 %v1379, 1.442695
    %v1722 = vpow.pop %v1721
    %v1723 = vmul.f32 %v1380, 1.442695
    %v1724 = vpow.pop %v1723
    %v1725 = vmul.f32 %v1381, 1.442695
    %v1726 = vpow.pop %v1725
    %v1727 = vmul.f32 %v1382, 1.442695
    %v1728 = vpow.pop %v1727
    %v1729 = vmul.f32 %v1383, 1.442695
    %v1730 = vpow.pop %v1729
    %v1731 = vmul.f32 %v1384, 1.442695
    %v1732 = vpow.pop %v1731
    %v1733 = vmul.f32 %v1385, 1.442695
    %v1734 = vpow.pop %v1733
    %v1735 = vmul.f32 %v1386, 1.442695
    %v1736 = vpow.pop %v1735
    %v1737 = vmul.f32 %v1387, 1.442695
    %v1738 = vpow.pop %v1737
    %v1739 = vmul.f32 %v1388, 1.442695
    %v1740 = vpow.pop %v1739
    %v1741 = vmul.f32 %v1389, 1.442695
    %v1742 = vpow.pop %v1741
    %v1743 = vmul.f32 %v1390, 1.442695
    %v1744 = vpow.pop %v1743
    %v1745 = vmul.f32 %v1391, 1.442695
    %v1746 = vpow.pop %v1745
    %v1747 = vmul.f32 %v1392, 1.442695
    %v1748 = vpow.pop %v1747
    %v1749 = vmul.f32 %v1393, 1.442695
    %v1750 = vpow.pop %v1749
    %v1751 = vmul.f32 %v1394, 1.442695
    %v1752 = vpow.pop %v1751
    %v1753 = vmul.f32 %v1395, 1.442695
    %v1754 = vpow.pop %v1753
    %v1755 = vmul.f32 %v1396, 1.442695
    %v1756 = vpow.pop %v1755
    %v1757 = vmul.f32 %v1397, 1.442695
    %v1758 = vpow.pop %v1757
    %v1759 = vmul.f32 %v1398, 1.442695
    %v1760 = vpow.pop %v1759
    %v1761 = vmul.f32 %v1399, 1.442695
    %v1762 = vpow.pop %v1761
    %v1763 = vmul.f32 %v1400, 1.442695
    %v1764 = vpow.pop %v1763
    %v1765 = vmul.f32 %v1401, 1.442695
    %v1766 = vpow.pop %v1765
    %v1767 = vmul.f32 %v1402, 1.442695
    %v1768 = vpow.pop %v1767
    %v1769 = vmul.f32 %v1403, 1.442695
    %v1770 = vpow.pop %v1769
    %v1771 = vmul.f32 %v1404, 1.442695
    %v1772 = vpow.pop %v1771
    %v1773 = vmul.f32 %v1405, 1.442695
    %v1774 = vpow.pop %v1773
    %v1775 = vmul.f32 %v1406, 1.442695
    %v1776 = vpow.pop %v1775
    %v1777 = vmul.f32 %v1407, 1.442695
    %v1778 = vpow.pop %v1777
    %v1779 = vmul.f32 %v1408, 1.442695
    %v1780 = vpow.pop %v1779
    %v1781 = vmul.f32 %v1409, 1.442695
    %v1782 = vpow.pop %v1781
    %v1783 = vmul.f32 %v1410, 1.442695
    %v1784 = vpow.pop %v1783
    %v1785 = vmul.f32 %v1411, 1.442695
    %v1786 = vpow.pop %v1785
    %v1787 = vmul.f32 %v1412, 1.442695
    %v1788 = vpow.pop %v1787
    %v1789 = vmul.f32 %v1413, 1.442695
    %v1790 = vpow.pop %v1789
    %v1791 = vmul.f32 %v1414, 1.442695
    %v1792 = vpow.pop %v1791
    %v1793 = vmul.f32 %v1415, 1.442695
    %v1794 = vpow.pop %v1793
    %v1795 = vmul.f32 %v1416, 1.442695
    %v1796 = vpow.pop %v1795
    %v1797 = vmul.f32 %v1417, 1.442695
    %v1798 = vpow.pop %v1797
    %v1799 = vmul.f32 %v1418, 1.442695
    %v1800 = vpow.pop %v1799
    %v1801 = vmul.f32 %v1419, 1.442695
    %v1802 = vpow.pop %v1801
    %v1803 = vmul.f32 %v1420, 1.442695
    %v1804 = vpow.pop %v1803
    %v1805 = vmul.f32 %v1421, 1.442695
    %v1806 = vpow.pop %v1805
    %v1807 = vmul.f32 %v1422, 1.442695
    %v1808 = vpow.pop %v1807
    %v1809 = vmul.f32 %v1423, 1.442695
    %v1810 = vpow.pop %v1809
    %v1811 = vmul.f32 %v1424, 1.442695
    %v1812 = vpow.pop %v1811
    %v1813 = vmul.f32 %v1425, 1.442695
    %v1814 = vpow.pop %v1813
    %v1815 = vmul.f32 %v1426, 1.442695
    %v1816 = vpow.pop %v1815
    %v1817 = vmul.f32 %v1427, 1.442695
    %v1818 = vpow.pop %v1817
    %v1819 = vmul.f32 %v1428, 1.442695
    %v1820 = vpow.pop %v1819
    %v1821 = vmul.f32 %v1429, 1.442695
    %v1822 = vpow.pop %v1821
    %v1823 = vmul.f32 %v1430, 1.442695
    %v1824 = vpow.pop %v1823
    %v1825 = vmul.f32 %v1431, 1.442695
    %v1826 = vpow.pop %v1825
    %v1827 = vmul.f32 %v1432, 1.442695
    %v1828 = vpow.pop %v1827
    %v1829 = vmul.f32 %v1433, 1.442695
    %v1830 = vpow.pop %v1829
    %v1831 = vmul.f32 %v1434, 1.442695
    %v1832 = vpow.pop %v1831
    %v1833 = vmul.f32 %v1435, 1.442695
    %v1834 = vpow.pop %v1833
    %v1835 = vmul.f32 %v1436, 1.442695
    %v1836 = vpow.pop %v1835
    %v1837 = vmul.f32 %v1437, 1.442695
    %v1838 = vpow.pop %v1837
    %v1839 = vmul.f32 %v1438, 1.442695
    %v1840 = vpow.pop %v1839
    %v1841 = vmul.f32 %v1439, 1.442695
    %v1842 = vpow.pop %v1841
    %v1843 = vmul.f32 %v1440, 1.442695
    %v1844 = vpow.pop %v1843
    %v1845 = vmul.f32 %v1441, 1.442695
    %v1846 = vpow.pop %v1845
    %v1847 = vmul.f32 %v1442, 1.442695
    %v1848 = vpow.pop %v1847
    %v1849 = vmul.f32 %v1443, 1.442695
    %v1850 = vpow.pop %v1849
    %v1851 = vmul.f32 %v1444, 1.442695
    %v1852 = vpow.pop %v1851
    %v1853 = vmul.f32 %v1445, 1.442695
    %v1854 = vpow.pop %v1853
    %v1855 = vmul.f32 %v1446, 1.442695
    %v1856 = vpow.pop %v1855
    %v1857 = vmul.f32 %v1447, 1.442695
    %v1858 = vpow.pop %v1857
    %v1859 = vmul.f32 %v1448, 1.442695
    %v1860 = vpow.pop %v1859
    %v1861 = vmul.f32 %v1449, 1.442695
    %v1862 = vpow.pop %v1861
    %v1863 = vmul.f32 %v1450, 1.442695
    %v1864 = vpow.pop %v1863
    %v1865 = vmul.f32 %v1451, 1.442695
    %v1866 = vpow.pop %v1865
    %v1867 = vmul.f32 %v1452, 1.442695
    %v1868 = vpow.pop %v1867
    %v1869 = vmul.f32 %v1453, 1.442695
    %v1870 = vpow.pop %v1869
    %v1871 = vmul.f32 %v1454, 1.442695
    %v1872 = vpow.pop %v1871
    %v1873 = vmul.f32 %v1455, 1.442695
    %v1874 = vpow.pop %v1873
    %v1875 = vmul.f32 %v1456, 1.442695
    %v1876 = vpow.pop %v1875
    %v1877 = vmul.f32 %v1457, 1.442695
    %v1878 = vpow.pop %v1877
    %v1879 = vmul.f32 %v1458, 1.442695
    %v1880 = vpow.pop %v1879
    %v1881 = vmul.f32 %v1459, 1.442695
    %v1882 = vpow.pop %v1881
    %v1883 = vmul.f32 %v1460, 1.442695
    %v1884 = vpow.pop %v1883
    %v1885 = vmul.f32 %v1461, 1.442695
    %v1886 = vpow.pop %v1885
    %v1887 = vmul.f32 %v1462, 1.442695
    %v1888 = vpow.pop %v1887
    %v1889 = vmul.f32 %v1463, 1.442695
    %v1890 = vpow.pop %v1889
    %v1891 = vmul.f32 %v1464, 1.442695
    %v1892 = vpow.pop %v1891
    %v1893 = vmul.f32 %v1465, 1.442695
    %v1894 = vpow.pop %v1893
    %v1895 = vmul.f32 %v1466, 1.442695
    %v1896 = vpow.pop %v1895
    %v1897 = vmul.f32 %v1467, 1.442695
    %v1898 = vpow.pop %v1897
    %v1899 = vmul.f32 %v1468, 1.442695
    %v1900 = vpow.pop %v1899
    %v1901 = vmul.f32 %v1469, 1.442695
    %v1902 = vpow.pop %v1901
    %v1903 = vmul.f32 %v1470, 1.442695
    %v1904 = vpow.pop %v1903
    %v1905 = vmul.f32 %v1471, 1.442695
    %v1906 = vpow.pop %v1905
    %v1907 = vmul.f32 %v1472, 1.442695
    %v1908 = vpow.pop %v1907
    %v1909 = vmul.f32 %v1473, 1.442695
    %v1910 = vpow.pop %v1909
    %v1911 = vmul.f32 %v1474, 1.442695
    %v1912 = vpow.pop %v1911
    %v1913 = vmul.f32 %v1475, 1.442695
    %v1914 = vpow.pop %v1913
    %v1915 = vmul.f32 %v1476, 1.442695
    %v1916 = vpow.pop %v1915
    %v1917 = vmul.f32 %v1477, 1.442695
    %v1918 = vpow.pop %v1917
    %v1919 = vmul.f32 %v1478, 1.442695
    %v1920 = vpow.pop %v1919
    %v1921 = vmul.f32 %v1479, 1.442695
    %v1922 = vpow.pop %v1921
    %v1923 = vmul.f32 %v1480, 1.442695
    %v1924 = vpow.pop %v1923
    %v1925 = vmul.f32 %v1481, 1.442695
    %v1926 = vpow.pop %v1925
    %v1927 = vmul.f32 %v1482, 1.442695
    %v1928 = vpow.pop %v1927
    %v1929 = vmul.f32 %v1483, 1.442695
    %v1930 = vpow.pop %v1929
    %v1931 = vmul.f32 %v1484, 1.442695
    %v1932 = vpow.pop %v1931
    %v1933 = vmul.f32 %v1485, 1.442695
    %v1934 = vpow.pop %v1933
    %v1935 = vmul.f32 %v1486, 1.442695
    %v1936 = vpow.pop %v1935
    %v1937 = vmul.f32 %v1487, 1.442695
    %v1938 = vpow.pop %v1937
    %v1939 = vmul.f32 %v1488, 1.442695
    %v1940 = vpow.pop %v1939
    %v1941 = vmul.f32 %v1489, 1.442695
    %v1942 = vpow.pop %v1941
    %v1943 = vmul.f32 %v1490, 1.442695
    %v1944 = vpow.pop %v1943
    %v1945 = vmul.f32 %v1491, 1.442695
    %v1946 = vpow.pop %v1945
    %v1947 = vmul.f32 %v1492, 1.442695
    %v1948 = vpow.pop %v1947
    %v1949 = vmul.f32 %v1493, 1.442695
    %v1950 = vpow.pop %v1949
    %v1951 = vmul.f32 %v1494, 1.442695
    %v1952 = vpow.pop %v1951
    %v1953 = vmul.f32 %v1495, 1.442695
    %v1954 = vpow.pop %v1953
    %v1955 = vmul.f32 %v1496, 1.442695
    %v1956 = vpow.pop %v1955
    %v1957 = vmul.f32 %v1497, 1.442695
    %v1958 = vpow.pop %v1957
    %v1959 = vmul.f32 %v1498, 1.442695
    %v1960 = vpow.pop %v1959
    %v1961 = vmul.f32 %v1499, 1.442695
    %v1962 = vpow.pop %v1961
    %v1963 = vmul.f32 %v1500, 1.442695
    %v1964 = vpow.pop %v1963
    %v1965 = vmul.f32 %v1501, 1.442695
    %v1966 = vpow.pop %v1965
    %v1967 = vmul.f32 %v1502, 1.442695
    %v1968 = vpow.pop %v1967
    %v1969 = vmul.f32 %v1503, 1.442695
    %v1970 = vpow.pop %v1969
    %v1971 = vmul.f32 %v1504, 1.442695
    %v1972 = vpow.pop %v1971
    %v1973 = vmul.f32 %v1505, 1.442695
    %v1974 = vpow.pop %v1973
    %v1975 = vmul.f32 %v1506, 1.442695
    %v1976 = vpow.pop %v1975
    %v1977 = vmul.f32 %v1507, 1.442695
    %v1978 = vpow.pop %v1977
    %v1979 = vmul.f32 %v1508, 1.442695
    %v1980 = vpow.pop %v1979
    %v1981 = vmul.f32 %v1509, 1.442695
    %v1982 = vpow.pop %v1981
    %v1983 = vmul.f32 %v1510, 1.442695
    %v1984 = vpow.pop %v1983
    %v1985 = vmul.f32 %v1511, 1.442695
    %v1986 = vpow.pop %v1985
    %v1987 = vmul.f32 %v1512, 1.442695
    %v1988 = vpow.pop %v1987
    %v1989 = vmul.f32 %v1513, 1.442695
    %v1990 = vpow.pop %v1989
    %v1991 = vmul.f32 %v1514, 1.442695
    %v1992 = vpow.pop %v1991
    %v1993 = vmul.f32 %v1515, 1.442695
    %v1994 = vpow.pop %v1993
    %v1995 = vmul.f32 %v1516, 1.442695
    %v1996 = vpow.pop %v1995
    %v1997 = vmul.f32 %v1517, 1.442695
    %v1998 = vpow.pop %v1997
    %v1999 = vmul.f32 %v1518, 1.442695
    %v2000 = vpow.pop %v1999
    %v2001 = vmul.f32 %v1519, 1.442695
    %v2002 = vpow.pop %v2001
    %v2003 = vmul.f32 %v1520, 1.442695
    %v2004 = vpow.pop %v2003
    %v2005 = vmul.f32 %v1521, 1.442695
    %v2006 = vpow.pop %v2005
    %v2007 = vmul.f32 %v1522, 1.442695
    %v2008 = vpow.pop %v2007
    %v2009 = vmul.f32 %v1523, 1.442695
    %v2010 = vpow.pop %v2009
    %v2011 = vmul.f32 %v1524, 1.442695
    %v2012 = vpow.pop %v2011
    %v2013 = vmul.f32 %v1525, 1.442695
    %v2014 = vpow.pop %v2013
    %v2015 = vmul.f32 %v1526, 1.442695
    %v2016 = vpow.pop %v2015
    %v2017 = vmul.f32 %v1527, 1.442695
    %v2018 = vpow.pop %v2017
    %v2019 = vmul.f32 %v1528, 1.442695
    %v2020 = vpow.pop %v2019
    %v2021 = vmul.f32 %v1529, 1.442695
    %v2022 = vpow.pop %v2021
    %v2023 = vmul.f32 %v1530, 1.442695
    %v2024 = vpow.pop %v2023
    %v2025 = vmul.f32 %v1531, 1.442695
    %v2026 = vpow.pop %v2025
    %v2027 = vmul.f32 %v1532, 1.442695
    %v2028 = vpow.pop %v2027
    %v2029 = vmul.f32 %v1533, 1.442695
    %v2030 = vpow.pop %v2029
    %v2031 = vmul.f32 %v1534, 1.442695
    %v2032 = vpow.pop %v2031
    %v2033 = vmul.f32 %v1535, 1.442695
    %v2034 = vpow.pop %v2033
    %v2035 = vmul.f32 %v1536, 1.442695
    %v2036 = vpow.pop %v2035
    %v2037 = vmul.f32 %v1537, 1.442695
    %v2038 = vpow.pop %v2037
    %v2039 = vmul.f32 %v1538, 1.442695
    %v2040 = vpow.pop %v2039
    %v2041 = vmul.f32 %v1539, 1.442695
    %v2042 = vpow.pop %v2041
    %v2043 = vmul.f32 %v1540, 1.442695
    %v2044 = vpow.pop %v2043
    %v2045 = vmul.f32 %v1541, 1.442695
    %v2046 = vpow.pop %v2045
    %v2047 = vmul.f32 %v1542, 1.442695
    %v2048 = vpow.pop %v2047
    %v2049 = vmul.f32 %v1543, 1.442695
    %v2050 = vpow.pop %v2049
    %v2051 = vmul.f32 %v1544, 1.442695
    %v2052 = vpow.pop %v2051
    %v2053 = vmul.f32 %v1545, 1.442695
    %v2054 = vpow.pop %v2053
    %v2055 = vmul.f32 %v1546, 1.442695
    %v2056 = vpow.pop %v2055
    %v2057 = vmul.f32 %v1547, 1.442695
    %v2058 = vpow.pop %v2057
    %v2059 = vmul.f32 %v1548, 1.442695
    %v2060 = vpow.pop %v2059
    %v2061 = vsel %vm524, %v1550, 0.0
    %2062 = vadd.xlane.f32.xlu0 %v2061
    %v2063 = vpop.xlane.xlu0 %2062
    %v2064 = vsel %vm524, %v1552, 0.0
    %2065 = vadd.xlane.f32.xlu0 %v2064
    %v2066 = vpop.xlane.xlu0 %2065
    %v2067 = vsel %vm524, %v1554, 0.0
    %2068 = vadd.xlane.f32.xlu0 %v2067
    %v2069 = vpop.xlane.xlu0 %2068
    %v2070 = vsel %vm524, %v1556, 0.0
    %2071 = vadd.xlane.f32.xlu0 %v2070
    %v2072 = vpop.xlane.xlu0 %2071
    %v2073 = vsel %vm524, %v1558, 0.0
    %2074 = vadd.xlane.f32.xlu0 %v2073
    %v2075 = vpop.xlane.xlu0 %2074
    %v2076 = vsel %vm524, %v1560, 0.0
    %2077 = vadd.xlane.f32.xlu0 %v2076
    %v2078 = vpop.xlane.xlu0 %2077
    %v2079 = vsel %vm524, %v1562, 0.0
    %2080 = vadd.xlane.f32.xlu0 %v2079
    %v2081 = vpop.xlane.xlu0 %2080
    %v2082 = vsel %vm524, %v1564, 0.0
    %2083 = vadd.xlane.f32.xlu0 %v2082
    %v2084 = vpop.xlane.xlu0 %2083
    %v2085 = vsel %vm524, %v1566, 0.0
    %2086 = vadd.xlane.f32.xlu0 %v2085
    %v2087 = vpop.xlane.xlu0 %2086
    %v2088 = vsel %vm524, %v1568, 0.0
    %2089 = vadd.xlane.f32.xlu0 %v2088
    %v2090 = vpop.xlane.xlu0 %2089
    %v2091 = vsel %vm524, %v1570, 0.0
    %2092 = vadd.xlane.f32.xlu0 %v2091
    %v2093 = vpop.xlane.xlu0 %2092
    %v2094 = vsel %vm524, %v1572, 0.0
    %2095 = vadd.xlane.f32.xlu0 %v2094
    %v2096 = vpop.xlane.xlu0 %2095
    %v2097 = vsel %vm524, %v1574, 0.0
    %2098 = vadd.xlane.f32.xlu0 %v2097
    %v2099 = vpop.xlane.xlu0 %2098
    %v2100 = vsel %vm524, %v1576, 0.0
    %2101 = vadd.xlane.f32.xlu0 %v2100
    %v2102 = vpop.xlane.xlu0 %2101
    %v2103 = vsel %vm524, %v1578, 0.0
    %2104 = vadd.xlane.f32.xlu0 %v2103
    %v2105 = vpop.xlane.xlu0 %2104
    %v2106 = vsel %vm524, %v1580, 0.0
    %2107 = vadd.xlane.f32.xlu0 %v2106
    %v2108 = vpop.xlane.xlu0 %2107
    %v2109 = vsel %vm524, %v1582, 0.0
    %2110 = vadd.xlane.f32.xlu0 %v2109
    %v2111 = vpop.xlane.xlu0 %2110
    %v2112 = vsel %vm524, %v1584, 0.0
    %2113 = vadd.xlane.f32.xlu0 %v2112
    %v2114 = vpop.xlane.xlu0 %2113
    %v2115 = vsel %vm524, %v1586, 0.0
    %2116 = vadd.xlane.f32.xlu0 %v2115
    %v2117 = vpop.xlane.xlu0 %2116
    %v2118 = vsel %vm524, %v1588, 0.0
    %2119 = vadd.xlane.f32.xlu0 %v2118
    %v2120 = vpop.xlane.xlu0 %2119
    %v2121 = vsel %vm524, %v1590, 0.0
    %2122 = vadd.xlane.f32.xlu0 %v2121
    %v2123 = vpop.xlane.xlu0 %2122
    %v2124 = vsel %vm524, %v1592, 0.0
    %2125 = vadd.xlane.f32.xlu0 %v2124
    %v2126 = vpop.xlane.xlu0 %2125
    %v2127 = vsel %vm524, %v1594, 0.0
    %2128 = vadd.xlane.f32.xlu0 %v2127
    %v2129 = vpop.xlane.xlu0 %2128
    %v2130 = vsel %vm524, %v1596, 0.0
    %2131 = vadd.xlane.f32.xlu0 %v2130
    %v2132 = vpop.xlane.xlu0 %2131
    %v2133 = vsel %vm524, %v1598, 0.0
    %2134 = vadd.xlane.f32.xlu0 %v2133
    %v2135 = vpop.xlane.xlu0 %2134
    %v2136 = vsel %vm524, %v1600, 0.0
    %2137 = vadd.xlane.f32.xlu0 %v2136
    %v2138 = vpop.xlane.xlu0 %2137
    %v2139 = vsel %vm524, %v1602, 0.0
    %2140 = vadd.xlane.f32.xlu0 %v2139
    %v2141 = vpop.xlane.xlu0 %2140
    %v2142 = vsel %vm524, %v1604, 0.0
    %2143 = vadd.xlane.f32.xlu0 %v2142
    %v2144 = vpop.xlane.xlu0 %2143
    %v2145 = vsel %vm524, %v1606, 0.0
    %2146 = vadd.xlane.f32.xlu0 %v2145
    %v2147 = vpop.xlane.xlu0 %2146
    %v2148 = vsel %vm524, %v1608, 0.0
    %2149 = vadd.xlane.f32.xlu0 %v2148
    %v2150 = vpop.xlane.xlu0 %2149
    %v2151 = vsel %vm524, %v1610, 0.0
    %2152 = vadd.xlane.f32.xlu0 %v2151
    %v2153 = vpop.xlane.xlu0 %2152
    %v2154 = vsel %vm524, %v1612, 0.0
    %2155 = vadd.xlane.f32.xlu0 %v2154
    %v2156 = vpop.xlane.xlu0 %2155
    %v2157 = vsel %vm524, %v1614, 0.0
    %2158 = vadd.xlane.f32.xlu0 %v2157
    %v2159 = vpop.xlane.xlu0 %2158
    %v2160 = vsel %vm524, %v1616, 0.0
    %2161 = vadd.xlane.f32.xlu0 %v2160
    %v2162 = vpop.xlane.xlu0 %2161
    %v2163 = vsel %vm524, %v1618, 0.0
    %2164 = vadd.xlane.f32.xlu0 %v2163
    %v2165 = vpop.xlane.xlu0 %2164
    %v2166 = vsel %vm524, %v1620, 0.0
    %2167 = vadd.xlane.f32.xlu0 %v2166
    %v2168 = vpop.xlane.xlu0 %2167
    %v2169 = vsel %vm524, %v1622, 0.0
    %2170 = vadd.xlane.f32.xlu0 %v2169
    %v2171 = vpop.xlane.xlu0 %2170
    %v2172 = vsel %vm524, %v1624, 0.0
    %2173 = vadd.xlane.f32.xlu0 %v2172
    %v2174 = vpop.xlane.xlu0 %2173
    %v2175 = vsel %vm524, %v1626, 0.0
    %2176 = vadd.xlane.f32.xlu0 %v2175
    %v2177 = vpop.xlane.xlu0 %2176
    %v2178 = vsel %vm524, %v1628, 0.0
    %2179 = vadd.xlane.f32.xlu0 %v2178
    %v2180 = vpop.xlane.xlu0 %2179
    %v2181 = vsel %vm524, %v1630, 0.0
    %2182 = vadd.xlane.f32.xlu0 %v2181
    %v2183 = vpop.xlane.xlu0 %2182
    %v2184 = vsel %vm524, %v1632, 0.0
    %2185 = vadd.xlane.f32.xlu0 %v2184
    %v2186 = vpop.xlane.xlu0 %2185
    %v2187 = vsel %vm524, %v1634, 0.0
    %2188 = vadd.xlane.f32.xlu0 %v2187
    %v2189 = vpop.xlane.xlu0 %2188
    %v2190 = vsel %vm524, %v1636, 0.0
    %2191 = vadd.xlane.f32.xlu0 %v2190
    %v2192 = vpop.xlane.xlu0 %2191
    %v2193 = vsel %vm524, %v1638, 0.0
    %2194 = vadd.xlane.f32.xlu0 %v2193
    %v2195 = vpop.xlane.xlu0 %2194
    %v2196 = vsel %vm524, %v1640, 0.0
    %2197 = vadd.xlane.f32.xlu0 %v2196
    %v2198 = vpop.xlane.xlu0 %2197
    %v2199 = vsel %vm524, %v1642, 0.0
    %2200 = vadd.xlane.f32.xlu0 %v2199
    %v2201 = vpop.xlane.xlu0 %2200
    %v2202 = vsel %vm524, %v1644, 0.0
    %2203 = vadd.xlane.f32.xlu0 %v2202
    %v2204 = vpop.xlane.xlu0 %2203
    %v2205 = vsel %vm524, %v1646, 0.0
    %2206 = vadd.xlane.f32.xlu0 %v2205
    %v2207 = vpop.xlane.xlu0 %2206
    %v2208 = vsel %vm524, %v1648, 0.0
    %2209 = vadd.xlane.f32.xlu0 %v2208
    %v2210 = vpop.xlane.xlu0 %2209
    %v2211 = vsel %vm524, %v1650, 0.0
    %2212 = vadd.xlane.f32.xlu0 %v2211
    %v2213 = vpop.xlane.xlu0 %2212
    %v2214 = vsel %vm524, %v1652, 0.0
    %2215 = vadd.xlane.f32.xlu0 %v2214
    %v2216 = vpop.xlane.xlu0 %2215
    %v2217 = vsel %vm524, %v1654, 0.0
    %2218 = vadd.xlane.f32.xlu0 %v2217
    %v2219 = vpop.xlane.xlu0 %2218
    %v2220 = vsel %vm524, %v1656, 0.0
    %2221 = vadd.xlane.f32.xlu0 %v2220
    %v2222 = vpop.xlane.xlu0 %2221
    %v2223 = vsel %vm524, %v1658, 0.0
    %2224 = vadd.xlane.f32.xlu0 %v2223
    %v2225 = vpop.xlane.xlu0 %2224
    %v2226 = vsel %vm524, %v1660, 0.0
    %2227 = vadd.xlane.f32.xlu0 %v2226
    %v2228 = vpop.xlane.xlu0 %2227
    %v2229 = vsel %vm524, %v1662, 0.0
    %2230 = vadd.xlane.f32.xlu0 %v2229
    %v2231 = vpop.xlane.xlu0 %2230
    %v2232 = vsel %vm524, %v1664, 0.0
    %2233 = vadd.xlane.f32.xlu0 %v2232
    %v2234 = vpop.xlane.xlu0 %2233
    %v2235 = vsel %vm524, %v1666, 0.0
    %2236 = vadd.xlane.f32.xlu0 %v2235
    %v2237 = vpop.xlane.xlu0 %2236
    %v2238 = vsel %vm524, %v1668, 0.0
    %2239 = vadd.xlane.f32.xlu0 %v2238
    %v2240 = vpop.xlane.xlu0 %2239
    %v2241 = vsel %vm524, %v1670, 0.0
    %2242 = vadd.xlane.f32.xlu0 %v2241
    %v2243 = vpop.xlane.xlu0 %2242
    %v2244 = vsel %vm524, %v1672, 0.0
    %2245 = vadd.xlane.f32.xlu0 %v2244
    %v2246 = vpop.xlane.xlu0 %2245
    %v2247 = vsel %vm524, %v1674, 0.0
    %2248 = vadd.xlane.f32.xlu0 %v2247
    %v2249 = vpop.xlane.xlu0 %2248
    %v2250 = vsel %vm524, %v1676, 0.0
    %2251 = vadd.xlane.f32.xlu0 %v2250
    %v2252 = vpop.xlane.xlu0 %2251
    %v2253 = vsel %vm524, %v1678, 0.0
    %2254 = vadd.xlane.f32.xlu0 %v2253
    %v2255 = vpop.xlane.xlu0 %2254
    %v2256 = vsel %vm524, %v1680, 0.0
    %2257 = vadd.xlane.f32.xlu0 %v2256
    %v2258 = vpop.xlane.xlu0 %2257
    %v2259 = vsel %vm524, %v1682, 0.0
    %2260 = vadd.xlane.f32.xlu0 %v2259
    %v2261 = vpop.xlane.xlu0 %2260
    %v2262 = vsel %vm524, %v1684, 0.0
    %2263 = vadd.xlane.f32.xlu0 %v2262
    %v2264 = vpop.xlane.xlu0 %2263
    %v2265 = vsel %vm524, %v1686, 0.0
    %2266 = vadd.xlane.f32.xlu0 %v2265
    %v2267 = vpop.xlane.xlu0 %2266
    %v2268 = vsel %vm524, %v1688, 0.0
    %2269 = vadd.xlane.f32.xlu0 %v2268
    %v2270 = vpop.xlane.xlu0 %2269
    %v2271 = vsel %vm524, %v1690, 0.0
    %2272 = vadd.xlane.f32.xlu0 %v2271
    %v2273 = vpop.xlane.xlu0 %2272
    %v2274 = vsel %vm524, %v1692, 0.0
    %2275 = vadd.xlane.f32.xlu0 %v2274
    %v2276 = vpop.xlane.xlu0 %2275
    %v2277 = vsel %vm524, %v1694, 0.0
    %2278 = vadd.xlane.f32.xlu0 %v2277
    %v2279 = vpop.xlane.xlu0 %2278
    %v2280 = vsel %vm524, %v1696, 0.0
    %2281 = vadd.xlane.f32.xlu0 %v2280
    %v2282 = vpop.xlane.xlu0 %2281
    %v2283 = vsel %vm524, %v1698, 0.0
    %2284 = vadd.xlane.f32.xlu0 %v2283
    %v2285 = vpop.xlane.xlu0 %2284
    %v2286 = vsel %vm524, %v1700, 0.0
    %2287 = vadd.xlane.f32.xlu0 %v2286
    %v2288 = vpop.xlane.xlu0 %2287
    %v2289 = vsel %vm524, %v1702, 0.0
    %2290 = vadd.xlane.f32.xlu0 %v2289
    %v2291 = vpop.xlane.xlu0 %2290
    %v2292 = vsel %vm524, %v1704, 0.0
    %2293 = vadd.xlane.f32.xlu0 %v2292
    %v2294 = vpop.xlane.xlu0 %2293
    %v2295 = vsel %vm524, %v1706, 0.0
    %2296 = vadd.xlane.f32.xlu0 %v2295
    %v2297 = vpop.xlane.xlu0 %2296
    %v2298 = vsel %vm524, %v1708, 0.0
    %2299 = vadd.xlane.f32.xlu0 %v2298
    %v2300 = vpop.xlane.xlu0 %2299
    %v2301 = vsel %vm524, %v1710, 0.0
    %2302 = vadd.xlane.f32.xlu0 %v2301
    %v2303 = vpop.xlane.xlu0 %2302
    %v2304 = vsel %vm524, %v1712, 0.0
    %2305 = vadd.xlane.f32.xlu0 %v2304
    %v2306 = vpop.xlane.xlu0 %2305
    %v2307 = vsel %vm524, %v1714, 0.0
    %2308 = vadd.xlane.f32.xlu0 %v2307
    %v2309 = vpop.xlane.xlu0 %2308
    %v2310 = vsel %vm524, %v1716, 0.0
    %2311 = vadd.xlane.f32.xlu0 %v2310
    %v2312 = vpop.xlane.xlu0 %2311
    %v2313 = vsel %vm524, %v1718, 0.0
    %2314 = vadd.xlane.f32.xlu0 %v2313
    %v2315 = vpop.xlane.xlu0 %2314
    %v2316 = vsel %vm524, %v1720, 0.0
    %2317 = vadd.xlane.f32.xlu0 %v2316
    %v2318 = vpop.xlane.xlu0 %2317
    %v2319 = vsel %vm524, %v1722, 0.0
    %2320 = vadd.xlane.f32.xlu0 %v2319
    %v2321 = vpop.xlane.xlu0 %2320
    %v2322 = vsel %vm524, %v1724, 0.0
    %2323 = vadd.xlane.f32.xlu0 %v2322
    %v2324 = vpop.xlane.xlu0 %2323
    %v2325 = vsel %vm524, %v1726, 0.0
    %2326 = vadd.xlane.f32.xlu0 %v2325
    %v2327 = vpop.xlane.xlu0 %2326
    %v2328 = vsel %vm524, %v1728, 0.0
    %2329 = vadd.xlane.f32.xlu0 %v2328
    %v2330 = vpop.xlane.xlu0 %2329
    %v2331 = vsel %vm524, %v1730, 0.0
    %2332 = vadd.xlane.f32.xlu0 %v2331
    %v2333 = vpop.xlane.xlu0 %2332
    %v2334 = vsel %vm524, %v1732, 0.0
    %2335 = vadd.xlane.f32.xlu0 %v2334
    %v2336 = vpop.xlane.xlu0 %2335
    %v2337 = vsel %vm524, %v1734, 0.0
    %2338 = vadd.xlane.f32.xlu0 %v2337
    %v2339 = vpop.xlane.xlu0 %2338
    %v2340 = vsel %vm524, %v1736, 0.0
    %2341 = vadd.xlane.f32.xlu0 %v2340
    %v2342 = vpop.xlane.xlu0 %2341
    %v2343 = vsel %vm524, %v1738, 0.0
    %2344 = vadd.xlane.f32.xlu0 %v2343
    %v2345 = vpop.xlane.xlu0 %2344
    %v2346 = vsel %vm524, %v1740, 0.0
    %2347 = vadd.xlane.f32.xlu0 %v2346
    %v2348 = vpop.xlane.xlu0 %2347
    %v2349 = vsel %vm524, %v1742, 0.0
    %2350 = vadd.xlane.f32.xlu0 %v2349
    %v2351 = vpop.xlane.xlu0 %2350
    %v2352 = vsel %vm524, %v1744, 0.0
    %2353 = vadd.xlane.f32.xlu0 %v2352
    %v2354 = vpop.xlane.xlu0 %2353
    %v2355 = vsel %vm524, %v1746, 0.0
    %2356 = vadd.xlane.f32.xlu0 %v2355
    %v2357 = vpop.xlane.xlu0 %2356
    %v2358 = vsel %vm524, %v1748, 0.0
    %2359 = vadd.xlane.f32.xlu0 %v2358
    %v2360 = vpop.xlane.xlu0 %2359
    %v2361 = vsel %vm524, %v1750, 0.0
    %2362 = vadd.xlane.f32.xlu0 %v2361
    %v2363 = vpop.xlane.xlu0 %2362
    %v2364 = vsel %vm524, %v1752, 0.0
    %2365 = vadd.xlane.f32.xlu0 %v2364
    %v2366 = vpop.xlane.xlu0 %2365
    %v2367 = vsel %vm524, %v1754, 0.0
    %2368 = vadd.xlane.f32.xlu0 %v2367
    %v2369 = vpop.xlane.xlu0 %2368
    %v2370 = vsel %vm524, %v1756, 0.0
    %2371 = vadd.xlane.f32.xlu0 %v2370
    %v2372 = vpop.xlane.xlu0 %2371
    %v2373 = vsel %vm524, %v1758, 0.0
    %2374 = vadd.xlane.f32.xlu0 %v2373
    %v2375 = vpop.xlane.xlu0 %2374
    %v2376 = vsel %vm524, %v1760, 0.0
    %2377 = vadd.xlane.f32.xlu0 %v2376
    %v2378 = vpop.xlane.xlu0 %2377
    %v2379 = vsel %vm524, %v1762, 0.0
    %2380 = vadd.xlane.f32.xlu0 %v2379
    %v2381 = vpop.xlane.xlu0 %2380
    %v2382 = vsel %vm524, %v1764, 0.0
    %2383 = vadd.xlane.f32.xlu0 %v2382
    %v2384 = vpop.xlane.xlu0 %2383
    %v2385 = vsel %vm524, %v1766, 0.0
    %2386 = vadd.xlane.f32.xlu0 %v2385
    %v2387 = vpop.xlane.xlu0 %2386
    %v2388 = vsel %vm524, %v1768, 0.0
    %2389 = vadd.xlane.f32.xlu0 %v2388
    %v2390 = vpop.xlane.xlu0 %2389
    %v2391 = vsel %vm524, %v1770, 0.0
    %2392 = vadd.xlane.f32.xlu0 %v2391
    %v2393 = vpop.xlane.xlu0 %2392
    %v2394 = vsel %vm524, %v1772, 0.0
    %2395 = vadd.xlane.f32.xlu0 %v2394
    %v2396 = vpop.xlane.xlu0 %2395
    %v2397 = vsel %vm524, %v1774, 0.0
    %2398 = vadd.xlane.f32.xlu0 %v2397
    %v2399 = vpop.xlane.xlu0 %2398
    %v2400 = vsel %vm524, %v1776, 0.0
    %2401 = vadd.xlane.f32.xlu0 %v2400
    %v2402 = vpop.xlane.xlu0 %2401
    %v2403 = vsel %vm524, %v1778, 0.0
    %2404 = vadd.xlane.f32.xlu0 %v2403
    %v2405 = vpop.xlane.xlu0 %2404
    %v2406 = vsel %vm524, %v1780, 0.0
    %2407 = vadd.xlane.f32.xlu0 %v2406
    %v2408 = vpop.xlane.xlu0 %2407
    %v2409 = vsel %vm524, %v1782, 0.0
    %2410 = vadd.xlane.f32.xlu0 %v2409
    %v2411 = vpop.xlane.xlu0 %2410
    %v2412 = vsel %vm524, %v1784, 0.0
    %2413 = vadd.xlane.f32.xlu0 %v2412
    %v2414 = vpop.xlane.xlu0 %2413
    %v2415 = vsel %vm524, %v1786, 0.0
    %2416 = vadd.xlane.f32.xlu0 %v2415
    %v2417 = vpop.xlane.xlu0 %2416
    %v2418 = vsel %vm524, %v1788, 0.0
    %2419 = vadd.xlane.f32.xlu0 %v2418
    %v2420 = vpop.xlane.xlu0 %2419
    %v2421 = vsel %vm524, %v1790, 0.0
    %2422 = vadd.xlane.f32.xlu0 %v2421
    %v2423 = vpop.xlane.xlu0 %2422
    %v2424 = vsel %vm524, %v1792, 0.0
    %2425 = vadd.xlane.f32.xlu0 %v2424
    %v2426 = vpop.xlane.xlu0 %2425
    %v2427 = vsel %vm524, %v1794, 0.0
    %2428 = vadd.xlane.f32.xlu0 %v2427
    %v2429 = vpop.xlane.xlu0 %2428
    %v2430 = vsel %vm524, %v1796, 0.0
    %2431 = vadd.xlane.f32.xlu0 %v2430
    %v2432 = vpop.xlane.xlu0 %2431
    %v2433 = vsel %vm524, %v1798, 0.0
    %2434 = vadd.xlane.f32.xlu0 %v2433
    %v2435 = vpop.xlane.xlu0 %2434
    %v2436 = vsel %vm524, %v1800, 0.0
    %2437 = vadd.xlane.f32.xlu0 %v2436
    %v2438 = vpop.xlane.xlu0 %2437
    %v2439 = vsel %vm524, %v1802, 0.0
    %2440 = vadd.xlane.f32.xlu0 %v2439
    %v2441 = vpop.xlane.xlu0 %2440
    %v2442 = vsel %vm524, %v1804, 0.0
    %2443 = vadd.xlane.f32.xlu0 %v2442
    %v2444 = vpop.xlane.xlu0 %2443
    %v2445 = vsel %vm524, %v1806, 0.0
    %2446 = vadd.xlane.f32.xlu0 %v2445
    %v2447 = vpop.xlane.xlu0 %2446
    %v2448 = vsel %vm524, %v1808, 0.0
    %2449 = vadd.xlane.f32.xlu0 %v2448
    %v2450 = vpop.xlane.xlu0 %2449
    %v2451 = vsel %vm524, %v1810, 0.0
    %2452 = vadd.xlane.f32.xlu0 %v2451
    %v2453 = vpop.xlane.xlu0 %2452
    %v2454 = vsel %vm524, %v1812, 0.0
    %2455 = vadd.xlane.f32.xlu0 %v2454
    %v2456 = vpop.xlane.xlu0 %2455
    %v2457 = vsel %vm524, %v1814, 0.0
    %2458 = vadd.xlane.f32.xlu0 %v2457
    %v2459 = vpop.xlane.xlu0 %2458
    %v2460 = vsel %vm524, %v1816, 0.0
    %2461 = vadd.xlane.f32.xlu0 %v2460
    %v2462 = vpop.xlane.xlu0 %2461
    %v2463 = vsel %vm524, %v1818, 0.0
    %2464 = vadd.xlane.f32.xlu0 %v2463
    %v2465 = vpop.xlane.xlu0 %2464
    %v2466 = vsel %vm524, %v1820, 0.0
    %2467 = vadd.xlane.f32.xlu0 %v2466
    %v2468 = vpop.xlane.xlu0 %2467
    %v2469 = vsel %vm524, %v1822, 0.0
    %2470 = vadd.xlane.f32.xlu0 %v2469
    %v2471 = vpop.xlane.xlu0 %2470
    %v2472 = vsel %vm524, %v1824, 0.0
    %2473 = vadd.xlane.f32.xlu0 %v2472
    %v2474 = vpop.xlane.xlu0 %2473
    %v2475 = vsel %vm524, %v1826, 0.0
    %2476 = vadd.xlane.f32.xlu0 %v2475
    %v2477 = vpop.xlane.xlu0 %2476
    %v2478 = vsel %vm524, %v1828, 0.0
    %2479 = vadd.xlane.f32.xlu0 %v2478
    %v2480 = vpop.xlane.xlu0 %2479
    %v2481 = vsel %vm524, %v1830, 0.0
    %2482 = vadd.xlane.f32.xlu0 %v2481
    %v2483 = vpop.xlane.xlu0 %2482
    %v2484 = vsel %vm524, %v1832, 0.0
    %2485 = vadd.xlane.f32.xlu0 %v2484
    %v2486 = vpop.xlane.xlu0 %2485
    %v2487 = vsel %vm524, %v1834, 0.0
    %2488 = vadd.xlane.f32.xlu0 %v2487
    %v2489 = vpop.xlane.xlu0 %2488
    %v2490 = vsel %vm524, %v1836, 0.0
    %2491 = vadd.xlane.f32.xlu0 %v2490
    %v2492 = vpop.xlane.xlu0 %2491
    %v2493 = vsel %vm524, %v1838, 0.0
    %2494 = vadd.xlane.f32.xlu0 %v2493
    %v2495 = vpop.xlane.xlu0 %2494
    %v2496 = vsel %vm524, %v1840, 0.0
    %2497 = vadd.xlane.f32.xlu0 %v2496
    %v2498 = vpop.xlane.xlu0 %2497
    %v2499 = vsel %vm524, %v1842, 0.0
    %2500 = vadd.xlane.f32.xlu0 %v2499
    %v2501 = vpop.xlane.xlu0 %2500
    %v2502 = vsel %vm524, %v1844, 0.0
    %2503 = vadd.xlane.f32.xlu0 %v2502
    %v2504 = vpop.xlane.xlu0 %2503
    %v2505 = vsel %vm524, %v1846, 0.0
    %2506 = vadd.xlane.f32.xlu0 %v2505
    %v2507 = vpop.xlane.xlu0 %2506
    %v2508 = vsel %vm524, %v1848, 0.0
    %2509 = vadd.xlane.f32.xlu0 %v2508
    %v2510 = vpop.xlane.xlu0 %2509
    %v2511 = vsel %vm524, %v1850, 0.0
    %2512 = vadd.xlane.f32.xlu0 %v2511
    %v2513 = vpop.xlane.xlu0 %2512
    %v2514 = vsel %vm524, %v1852, 0.0
    %2515 = vadd.xlane.f32.xlu0 %v2514
    %v2516 = vpop.xlane.xlu0 %2515
    %v2517 = vsel %vm524, %v1854, 0.0
    %2518 = vadd.xlane.f32.xlu0 %v2517
    %v2519 = vpop.xlane.xlu0 %2518
    %v2520 = vsel %vm524, %v1856, 0.0
    %2521 = vadd.xlane.f32.xlu0 %v2520
    %v2522 = vpop.xlane.xlu0 %2521
    %v2523 = vsel %vm524, %v1858, 0.0
    %2524 = vadd.xlane.f32.xlu0 %v2523
    %v2525 = vpop.xlane.xlu0 %2524
    %v2526 = vsel %vm524, %v1860, 0.0
    %2527 = vadd.xlane.f32.xlu0 %v2526
    %v2528 = vpop.xlane.xlu0 %2527
    %v2529 = vsel %vm524, %v1862, 0.0
    %2530 = vadd.xlane.f32.xlu0 %v2529
    %v2531 = vpop.xlane.xlu0 %2530
    %v2532 = vsel %vm524, %v1864, 0.0
    %2533 = vadd.xlane.f32.xlu0 %v2532
    %v2534 = vpop.xlane.xlu0 %2533
    %v2535 = vsel %vm524, %v1866, 0.0
    %2536 = vadd.xlane.f32.xlu0 %v2535
    %v2537 = vpop.xlane.xlu0 %2536
    %v2538 = vsel %vm524, %v1868, 0.0
    %2539 = vadd.xlane.f32.xlu0 %v2538
    %v2540 = vpop.xlane.xlu0 %2539
    %v2541 = vsel %vm524, %v1870, 0.0
    %2542 = vadd.xlane.f32.xlu0 %v2541
    %v2543 = vpop.xlane.xlu0 %2542
    %v2544 = vsel %vm524, %v1872, 0.0
    %2545 = vadd.xlane.f32.xlu0 %v2544
    %v2546 = vpop.xlane.xlu0 %2545
    %v2547 = vsel %vm524, %v1874, 0.0
    %2548 = vadd.xlane.f32.xlu0 %v2547
    %v2549 = vpop.xlane.xlu0 %2548
    %v2550 = vsel %vm524, %v1876, 0.0
    %2551 = vadd.xlane.f32.xlu0 %v2550
    %v2552 = vpop.xlane.xlu0 %2551
    %v2553 = vsel %vm524, %v1878, 0.0
    %2554 = vadd.xlane.f32.xlu0 %v2553
    %v2555 = vpop.xlane.xlu0 %2554
    %v2556 = vsel %vm524, %v1880, 0.0
    %2557 = vadd.xlane.f32.xlu0 %v2556
    %v2558 = vpop.xlane.xlu0 %2557
    %v2559 = vsel %vm524, %v1882, 0.0
    %2560 = vadd.xlane.f32.xlu0 %v2559
    %v2561 = vpop.xlane.xlu0 %2560
    %v2562 = vsel %vm524, %v1884, 0.0
    %2563 = vadd.xlane.f32.xlu0 %v2562
    %v2564 = vpop.xlane.xlu0 %2563
    %v2565 = vsel %vm524, %v1886, 0.0
    %2566 = vadd.xlane.f32.xlu0 %v2565
    %v2567 = vpop.xlane.xlu0 %2566
    %v2568 = vsel %vm524, %v1888, 0.0
    %2569 = vadd.xlane.f32.xlu0 %v2568
    %v2570 = vpop.xlane.xlu0 %2569
    %v2571 = vsel %vm524, %v1890, 0.0
    %2572 = vadd.xlane.f32.xlu0 %v2571
    %v2573 = vpop.xlane.xlu0 %2572
    %v2574 = vsel %vm524, %v1892, 0.0
    %2575 = vadd.xlane.f32.xlu0 %v2574
    %v2576 = vpop.xlane.xlu0 %2575
    %v2577 = vsel %vm524, %v1894, 0.0
    %2578 = vadd.xlane.f32.xlu0 %v2577
    %v2579 = vpop.xlane.xlu0 %2578
    %v2580 = vsel %vm524, %v1896, 0.0
    %2581 = vadd.xlane.f32.xlu0 %v2580
    %v2582 = vpop.xlane.xlu0 %2581
    %v2583 = vsel %vm524, %v1898, 0.0
    %2584 = vadd.xlane.f32.xlu0 %v2583
    %v2585 = vpop.xlane.xlu0 %2584
    %v2586 = vsel %vm524, %v1900, 0.0
    %2587 = vadd.xlane.f32.xlu0 %v2586
    %v2588 = vpop.xlane.xlu0 %2587
    %v2589 = vsel %vm524, %v1902, 0.0
    %2590 = vadd.xlane.f32.xlu0 %v2589
    %v2591 = vpop.xlane.xlu0 %2590
    %v2592 = vsel %vm524, %v1904, 0.0
    %2593 = vadd.xlane.f32.xlu0 %v2592
    %v2594 = vpop.xlane.xlu0 %2593
    %v2595 = vsel %vm524, %v1906, 0.0
    %2596 = vadd.xlane.f32.xlu0 %v2595
    %v2597 = vpop.xlane.xlu0 %2596
    %v2598 = vsel %vm524, %v1908, 0.0
    %2599 = vadd.xlane.f32.xlu0 %v2598
    %v2600 = vpop.xlane.xlu0 %2599
    %v2601 = vsel %vm524, %v1910, 0.0
    %2602 = vadd.xlane.f32.xlu0 %v2601
    %v2603 = vpop.xlane.xlu0 %2602
    %v2604 = vsel %vm524, %v1912, 0.0
    %2605 = vadd.xlane.f32.xlu0 %v2604
    %v2606 = vpop.xlane.xlu0 %2605
    %v2607 = vsel %vm524, %v1914, 0.0
    %2608 = vadd.xlane.f32.xlu0 %v2607
    %v2609 = vpop.xlane.xlu0 %2608
    %v2610 = vsel %vm524, %v1916, 0.0
    %2611 = vadd.xlane.f32.xlu0 %v2610
    %v2612 = vpop.xlane.xlu0 %2611
    %v2613 = vsel %vm524, %v1918, 0.0
    %2614 = vadd.xlane.f32.xlu0 %v2613
    %v2615 = vpop.xlane.xlu0 %2614
    %v2616 = vsel %vm524, %v1920, 0.0
    %2617 = vadd.xlane.f32.xlu0 %v2616
    %v2618 = vpop.xlane.xlu0 %2617
    %v2619 = vsel %vm524, %v1922, 0.0
    %2620 = vadd.xlane.f32.xlu0 %v2619
    %v2621 = vpop.xlane.xlu0 %2620
    %v2622 = vsel %vm524, %v1924, 0.0
    %2623 = vadd.xlane.f32.xlu0 %v2622
    %v2624 = vpop.xlane.xlu0 %2623
    %v2625 = vsel %vm524, %v1926, 0.0
    %2626 = vadd.xlane.f32.xlu0 %v2625
    %v2627 = vpop.xlane.xlu0 %2626
    %v2628 = vsel %vm524, %v1928, 0.0
    %2629 = vadd.xlane.f32.xlu0 %v2628
    %v2630 = vpop.xlane.xlu0 %2629
    %v2631 = vsel %vm524, %v1930, 0.0
    %2632 = vadd.xlane.f32.xlu0 %v2631
    %v2633 = vpop.xlane.xlu0 %2632
    %v2634 = vsel %vm524, %v1932, 0.0
    %2635 = vadd.xlane.f32.xlu0 %v2634
    %v2636 = vpop.xlane.xlu0 %2635
    %v2637 = vsel %vm524, %v1934, 0.0
    %2638 = vadd.xlane.f32.xlu0 %v2637
    %v2639 = vpop.xlane.xlu0 %2638
    %v2640 = vsel %vm524, %v1936, 0.0
    %2641 = vadd.xlane.f32.xlu0 %v2640
    %v2642 = vpop.xlane.xlu0 %2641
    %v2643 = vsel %vm524, %v1938, 0.0
    %2644 = vadd.xlane.f32.xlu0 %v2643
    %v2645 = vpop.xlane.xlu0 %2644
    %v2646 = vsel %vm524, %v1940, 0.0
    %2647 = vadd.xlane.f32.xlu0 %v2646
    %v2648 = vpop.xlane.xlu0 %2647
    %v2649 = vsel %vm524, %v1942, 0.0
    %2650 = vadd.xlane.f32.xlu0 %v2649
    %v2651 = vpop.xlane.xlu0 %2650
    %v2652 = vsel %vm524, %v1944, 0.0
    %2653 = vadd.xlane.f32.xlu0 %v2652
    %v2654 = vpop.xlane.xlu0 %2653
    %v2655 = vsel %vm524, %v1946, 0.0
    %2656 = vadd.xlane.f32.xlu0 %v2655
    %v2657 = vpop.xlane.xlu0 %2656
    %v2658 = vsel %vm524, %v1948, 0.0
    %2659 = vadd.xlane.f32.xlu0 %v2658
    %v2660 = vpop.xlane.xlu0 %2659
    %v2661 = vsel %vm524, %v1950, 0.0
    %2662 = vadd.xlane.f32.xlu0 %v2661
    %v2663 = vpop.xlane.xlu0 %2662
    %v2664 = vsel %vm524, %v1952, 0.0
    %2665 = vadd.xlane.f32.xlu0 %v2664
    %v2666 = vpop.xlane.xlu0 %2665
    %v2667 = vsel %vm524, %v1954, 0.0
    %2668 = vadd.xlane.f32.xlu0 %v2667
    %v2669 = vpop.xlane.xlu0 %2668
    %v2670 = vsel %vm524, %v1956, 0.0
    %2671 = vadd.xlane.f32.xlu0 %v2670
    %v2672 = vpop.xlane.xlu0 %2671
    %v2673 = vsel %vm524, %v1958, 0.0
    %2674 = vadd.xlane.f32.xlu0 %v2673
    %v2675 = vpop.xlane.xlu0 %2674
    %v2676 = vsel %vm524, %v1960, 0.0
    %2677 = vadd.xlane.f32.xlu0 %v2676
    %v2678 = vpop.xlane.xlu0 %2677
    %v2679 = vsel %vm524, %v1962, 0.0
    %2680 = vadd.xlane.f32.xlu0 %v2679
    %v2681 = vpop.xlane.xlu0 %2680
    %v2682 = vsel %vm524, %v1964, 0.0
    %2683 = vadd.xlane.f32.xlu0 %v2682
    %v2684 = vpop.xlane.xlu0 %2683
    %v2685 = vsel %vm524, %v1966, 0.0
    %2686 = vadd.xlane.f32.xlu0 %v2685
    %v2687 = vpop.xlane.xlu0 %2686
    %v2688 = vsel %vm524, %v1968, 0.0
    %2689 = vadd.xlane.f32.xlu0 %v2688
    %v2690 = vpop.xlane.xlu0 %2689
    %v2691 = vsel %vm524, %v1970, 0.0
    %2692 = vadd.xlane.f32.xlu0 %v2691
    %v2693 = vpop.xlane.xlu0 %2692
    %v2694 = vsel %vm524, %v1972, 0.0
    %2695 = vadd.xlane.f32.xlu0 %v2694
    %v2696 = vpop.xlane.xlu0 %2695
    %v2697 = vsel %vm524, %v1974, 0.0
    %2698 = vadd.xlane.f32.xlu0 %v2697
    %v2699 = vpop.xlane.xlu0 %2698
    %v2700 = vsel %vm524, %v1976, 0.0
    %2701 = vadd.xlane.f32.xlu0 %v2700
    %v2702 = vpop.xlane.xlu0 %2701
    %v2703 = vsel %vm524, %v1978, 0.0
    %2704 = vadd.xlane.f32.xlu0 %v2703
    %v2705 = vpop.xlane.xlu0 %2704
    %v2706 = vsel %vm524, %v1980, 0.0
    %2707 = vadd.xlane.f32.xlu0 %v2706
    %v2708 = vpop.xlane.xlu0 %2707
    %v2709 = vsel %vm524, %v1982, 0.0
    %2710 = vadd.xlane.f32.xlu0 %v2709
    %v2711 = vpop.xlane.xlu0 %2710
    %v2712 = vsel %vm524, %v1984, 0.0
    %2713 = vadd.xlane.f32.xlu0 %v2712
    %v2714 = vpop.xlane.xlu0 %2713
    %v2715 = vsel %vm524, %v1986, 0.0
    %2716 = vadd.xlane.f32.xlu0 %v2715
    %v2717 = vpop.xlane.xlu0 %2716
    %v2718 = vsel %vm524, %v1988, 0.0
    %2719 = vadd.xlane.f32.xlu0 %v2718
    %v2720 = vpop.xlane.xlu0 %2719
    %v2721 = vsel %vm524, %v1990, 0.0
    %2722 = vadd.xlane.f32.xlu0 %v2721
    %v2723 = vpop.xlane.xlu0 %2722
    %v2724 = vsel %vm524, %v1992, 0.0
    %2725 = vadd.xlane.f32.xlu0 %v2724
    %v2726 = vpop.xlane.xlu0 %2725
    %v2727 = vsel %vm524, %v1994, 0.0
    %2728 = vadd.xlane.f32.xlu0 %v2727
    %v2729 = vpop.xlane.xlu0 %2728
    %v2730 = vsel %vm524, %v1996, 0.0
    %2731 = vadd.xlane.f32.xlu0 %v2730
    %v2732 = vpop.xlane.xlu0 %2731
    %v2733 = vsel %vm524, %v1998, 0.0
    %2734 = vadd.xlane.f32.xlu0 %v2733
    %v2735 = vpop.xlane.xlu0 %2734
    %v2736 = vsel %vm524, %v2000, 0.0
    %2737 = vadd.xlane.f32.xlu0 %v2736
    %v2738 = vpop.xlane.xlu0 %2737
    %v2739 = vsel %vm524, %v2002, 0.0
    %2740 = vadd.xlane.f32.xlu0 %v2739
    %v2741 = vpop.xlane.xlu0 %2740
    %v2742 = vsel %vm524, %v2004, 0.0
    %2743 = vadd.xlane.f32.xlu0 %v2742
    %v2744 = vpop.xlane.xlu0 %2743
    %v2745 = vsel %vm524, %v2006, 0.0
    %2746 = vadd.xlane.f32.xlu0 %v2745
    %v2747 = vpop.xlane.xlu0 %2746
    %v2748 = vsel %vm524, %v2008, 0.0
    %2749 = vadd.xlane.f32.xlu0 %v2748
    %v2750 = vpop.xlane.xlu0 %2749
    %v2751 = vsel %vm524, %v2010, 0.0
    %2752 = vadd.xlane.f32.xlu0 %v2751
    %v2753 = vpop.xlane.xlu0 %2752
    %v2754 = vsel %vm524, %v2012, 0.0
    %2755 = vadd.xlane.f32.xlu0 %v2754
    %v2756 = vpop.xlane.xlu0 %2755
    %v2757 = vsel %vm524, %v2014, 0.0
    %2758 = vadd.xlane.f32.xlu0 %v2757
    %v2759 = vpop.xlane.xlu0 %2758
    %v2760 = vsel %vm524, %v2016, 0.0
    %2761 = vadd.xlane.f32.xlu0 %v2760
    %v2762 = vpop.xlane.xlu0 %2761
    %v2763 = vsel %vm524, %v2018, 0.0
    %2764 = vadd.xlane.f32.xlu0 %v2763
    %v2765 = vpop.xlane.xlu0 %2764
    %v2766 = vsel %vm524, %v2020, 0.0
    %2767 = vadd.xlane.f32.xlu0 %v2766
    %v2768 = vpop.xlane.xlu0 %2767
    %v2769 = vsel %vm524, %v2022, 0.0
    %2770 = vadd.xlane.f32.xlu0 %v2769
    %v2771 = vpop.xlane.xlu0 %2770
    %v2772 = vsel %vm524, %v2024, 0.0
    %2773 = vadd.xlane.f32.xlu0 %v2772
    %v2774 = vpop.xlane.xlu0 %2773
    %v2775 = vsel %vm524, %v2026, 0.0
    %2776 = vadd.xlane.f32.xlu0 %v2775
    %v2777 = vpop.xlane.xlu0 %2776
    %v2778 = vsel %vm524, %v2028, 0.0
    %2779 = vadd.xlane.f32.xlu0 %v2778
    %v2780 = vpop.xlane.xlu0 %2779
    %v2781 = vsel %vm524, %v2030, 0.0
    %2782 = vadd.xlane.f32.xlu0 %v2781
    %v2783 = vpop.xlane.xlu0 %2782
    %v2784 = vsel %vm524, %v2032, 0.0
    %2785 = vadd.xlane.f32.xlu0 %v2784
    %v2786 = vpop.xlane.xlu0 %2785
    %v2787 = vsel %vm524, %v2034, 0.0
    %2788 = vadd.xlane.f32.xlu0 %v2787
    %v2789 = vpop.xlane.xlu0 %2788
    %v2790 = vsel %vm524, %v2036, 0.0
    %2791 = vadd.xlane.f32.xlu0 %v2790
    %v2792 = vpop.xlane.xlu0 %2791
    %v2793 = vsel %vm524, %v2038, 0.0
    %2794 = vadd.xlane.f32.xlu0 %v2793
    %v2795 = vpop.xlane.xlu0 %2794
    %v2796 = vsel %vm524, %v2040, 0.0
    %2797 = vadd.xlane.f32.xlu0 %v2796
    %v2798 = vpop.xlane.xlu0 %2797
    %v2799 = vsel %vm524, %v2042, 0.0
    %2800 = vadd.xlane.f32.xlu0 %v2799
    %v2801 = vpop.xlane.xlu0 %2800
    %v2802 = vsel %vm524, %v2044, 0.0
    %2803 = vadd.xlane.f32.xlu0 %v2802
    %v2804 = vpop.xlane.xlu0 %2803
    %v2805 = vsel %vm524, %v2046, 0.0
    %2806 = vadd.xlane.f32.xlu0 %v2805
    %v2807 = vpop.xlane.xlu0 %2806
    %v2808 = vsel %vm524, %v2048, 0.0
    %2809 = vadd.xlane.f32.xlu0 %v2808
    %v2810 = vpop.xlane.xlu0 %2809
    %v2811 = vsel %vm524, %v2050, 0.0
    %2812 = vadd.xlane.f32.xlu0 %v2811
    %v2813 = vpop.xlane.xlu0 %2812
    %v2814 = vsel %vm524, %v2052, 0.0
    %2815 = vadd.xlane.f32.xlu0 %v2814
    %v2816 = vpop.xlane.xlu0 %2815
    %v2817 = vsel %vm524, %v2054, 0.0
    %2818 = vadd.xlane.f32.xlu0 %v2817
    %v2819 = vpop.xlane.xlu0 %2818
    %v2820 = vsel %vm524, %v2056, 0.0
    %2821 = vadd.xlane.f32.xlu0 %v2820
    %v2822 = vpop.xlane.xlu0 %2821
    %v2823 = vsel %vm524, %v2058, 0.0
    %2824 = vadd.xlane.f32.xlu0 %v2823
    %v2825 = vpop.xlane.xlu0 %2824
    %v2826 = vsel %vm524, %v2060, 0.0
    %2827 = vadd.xlane.f32.xlu0 %v2826
    %v2828 = vpop.xlane.xlu0 %2827
    %vm2829 = vcmp.ge.s32.totalorder %v268, 0
    %vm2830 = vcmp.ge.s32.totalorder %v269, 0
    %vm2831 = vcmp.ge.s32.totalorder %v270, 0
    %vm2832 = vcmp.ge.s32.totalorder %v271, 0
    %vm2833 = vcmp.ge.s32.totalorder %v272, 0
    %vm2834 = vcmp.ge.s32.totalorder %v273, 0
    %vm2835 = vcmp.ge.s32.totalorder %v274, 0
    %vm2836 = vcmp.ge.s32.totalorder %v275, 0
    %vm2837 = vcmp.ge.s32.totalorder %v276, 0
    %vm2838 = vcmp.ge.s32.totalorder %v277, 0
    %vm2839 = vcmp.ge.s32.totalorder %v278, 0
    %vm2840 = vcmp.ge.s32.totalorder %v279, 0
    %vm2841 = vcmp.ge.s32.totalorder %v280, 0
    %vm2842 = vcmp.ge.s32.totalorder %v281, 0
    %vm2843 = vcmp.ge.s32.totalorder %v282, 0
    %vm2844 = vcmp.ge.s32.totalorder %v283, 0
    %vm2845 = vcmp.ge.s32.totalorder %v284, 0
    %vm2846 = vcmp.ge.s32.totalorder %v285, 0
    %vm2847 = vcmp.ge.s32.totalorder %v286, 0
    %vm2848 = vcmp.ge.s32.totalorder %v287, 0
    %vm2849 = vcmp.ge.s32.totalorder %v288, 0
    %vm2850 = vcmp.ge.s32.totalorder %v289, 0
    %vm2851 = vcmp.ge.s32.totalorder %v290, 0
    %vm2852 = vcmp.ge.s32.totalorder %v291, 0
    %vm2853 = vcmp.ge.s32.totalorder %v292, 0
    %vm2854 = vcmp.ge.s32.totalorder %v293, 0
    %vm2855 = vcmp.ge.s32.totalorder %v294, 0
    %vm2856 = vcmp.ge.s32.totalorder %v295, 0
    %vm2857 = vcmp.ge.s32.totalorder %v296, 0
    %vm2858 = vcmp.ge.s32.totalorder %v297, 0
    %vm2859 = vcmp.ge.s32.totalorder %v298, 0
    %vm2860 = vcmp.ge.s32.totalorder %v299, 0
    %vm2861 = vcmp.ge.s32.totalorder %v300, 0
    %vm2862 = vcmp.ge.s32.totalorder %v301, 0
    %vm2863 = vcmp.ge.s32.totalorder %v302, 0
    %vm2864 = vcmp.ge.s32.totalorder %v303, 0
    %vm2865 = vcmp.ge.s32.totalorder %v304, 0
    %vm2866 = vcmp.ge.s32.totalorder %v305, 0
    %vm2867 = vcmp.ge.s32.totalorder %v306, 0
    %vm2868 = vcmp.ge.s32.totalorder %v307, 0
    %vm2869 = vcmp.ge.s32.totalorder %v308, 0
    %vm2870 = vcmp.ge.s32.totalorder %v309, 0
    %vm2871 = vcmp.ge.s32.totalorder %v310, 0
    %vm2872 = vcmp.ge.s32.totalorder %v311, 0
    %vm2873 = vcmp.ge.s32.totalorder %v312, 0
    %vm2874 = vcmp.ge.s32.totalorder %v313, 0
    %vm2875 = vcmp.ge.s32.totalorder %v314, 0
    %vm2876 = vcmp.ge.s32.totalorder %v315, 0
    %vm2877 = vcmp.ge.s32.totalorder %v316, 0
    %vm2878 = vcmp.ge.s32.totalorder %v317, 0
    %vm2879 = vcmp.ge.s32.totalorder %v318, 0
    %vm2880 = vcmp.ge.s32.totalorder %v319, 0
    %vm2881 = vcmp.ge.s32.totalorder %v320, 0
    %vm2882 = vcmp.ge.s32.totalorder %v321, 0
    %vm2883 = vcmp.ge.s32.totalorder %v322, 0
    %vm2884 = vcmp.ge.s32.totalorder %v323, 0
    %vm2885 = vcmp.ge.s32.totalorder %v324, 0
    %vm2886 = vcmp.ge.s32.totalorder %v325, 0
    %vm2887 = vcmp.ge.s32.totalorder %v326, 0
    %vm2888 = vcmp.ge.s32.totalorder %v327, 0
    %vm2889 = vcmp.ge.s32.totalorder %v328, 0
    %vm2890 = vcmp.ge.s32.totalorder %v329, 0
    %vm2891 = vcmp.ge.s32.totalorder %v330, 0
    %vm2892 = vcmp.ge.s32.totalorder %v331, 0
    %vm2893 = vcmp.ge.s32.totalorder %v332, 0
    %vm2894 = vcmp.ge.s32.totalorder %v333, 0
    %vm2895 = vcmp.ge.s32.totalorder %v334, 0
    %vm2896 = vcmp.ge.s32.totalorder %v335, 0
    %vm2897 = vcmp.ge.s32.totalorder %v336, 0
    %vm2898 = vcmp.ge.s32.totalorder %v337, 0
    %vm2899 = vcmp.ge.s32.totalorder %v338, 0
    %vm2900 = vcmp.ge.s32.totalorder %v339, 0
    %vm2901 = vcmp.ge.s32.totalorder %v340, 0
    %vm2902 = vcmp.ge.s32.totalorder %v341, 0
    %vm2903 = vcmp.ge.s32.totalorder %v342, 0
    %vm2904 = vcmp.ge.s32.totalorder %v343, 0
    %vm2905 = vcmp.ge.s32.totalorder %v344, 0
    %vm2906 = vcmp.ge.s32.totalorder %v345, 0
    %vm2907 = vcmp.ge.s32.totalorder %v346, 0
    %vm2908 = vcmp.ge.s32.totalorder %v347, 0
    %vm2909 = vcmp.ge.s32.totalorder %v348, 0
    %vm2910 = vcmp.ge.s32.totalorder %v349, 0
    %vm2911 = vcmp.ge.s32.totalorder %v350, 0
    %vm2912 = vcmp.ge.s32.totalorder %v351, 0
    %vm2913 = vcmp.ge.s32.totalorder %v352, 0
    %vm2914 = vcmp.ge.s32.totalorder %v353, 0
    %vm2915 = vcmp.ge.s32.totalorder %v354, 0
    %vm2916 = vcmp.ge.s32.totalorder %v355, 0
    %vm2917 = vcmp.ge.s32.totalorder %v356, 0
    %vm2918 = vcmp.ge.s32.totalorder %v357, 0
    %vm2919 = vcmp.ge.s32.totalorder %v358, 0
    %vm2920 = vcmp.ge.s32.totalorder %v359, 0
    %vm2921 = vcmp.ge.s32.totalorder %v360, 0
    %vm2922 = vcmp.ge.s32.totalorder %v361, 0
    %vm2923 = vcmp.ge.s32.totalorder %v362, 0
    %vm2924 = vcmp.ge.s32.totalorder %v363, 0
    %vm2925 = vcmp.ge.s32.totalorder %v364, 0
    %vm2926 = vcmp.ge.s32.totalorder %v365, 0
    %vm2927 = vcmp.ge.s32.totalorder %v366, 0
    %vm2928 = vcmp.ge.s32.totalorder %v367, 0
    %vm2929 = vcmp.ge.s32.totalorder %v368, 0
    %vm2930 = vcmp.ge.s32.totalorder %v369, 0
    %vm2931 = vcmp.ge.s32.totalorder %v370, 0
    %vm2932 = vcmp.ge.s32.totalorder %v371, 0
    %vm2933 = vcmp.ge.s32.totalorder %v372, 0
    %vm2934 = vcmp.ge.s32.totalorder %v373, 0
    %vm2935 = vcmp.ge.s32.totalorder %v374, 0
    %vm2936 = vcmp.ge.s32.totalorder %v375, 0
    %vm2937 = vcmp.ge.s32.totalorder %v376, 0
    %vm2938 = vcmp.ge.s32.totalorder %v377, 0
    %vm2939 = vcmp.ge.s32.totalorder %v378, 0
    %vm2940 = vcmp.ge.s32.totalorder %v379, 0
    %vm2941 = vcmp.ge.s32.totalorder %v380, 0
    %vm2942 = vcmp.ge.s32.totalorder %v381, 0
    %vm2943 = vcmp.ge.s32.totalorder %v382, 0
    %vm2944 = vcmp.ge.s32.totalorder %v383, 0
    %vm2945 = vcmp.ge.s32.totalorder %v384, 0
    %vm2946 = vcmp.ge.s32.totalorder %v385, 0
    %vm2947 = vcmp.ge.s32.totalorder %v386, 0
    %vm2948 = vcmp.ge.s32.totalorder %v387, 0
    %vm2949 = vcmp.ge.s32.totalorder %v388, 0
    %vm2950 = vcmp.ge.s32.totalorder %v389, 0
    %vm2951 = vcmp.ge.s32.totalorder %v390, 0
    %vm2952 = vcmp.ge.s32.totalorder %v391, 0
    %vm2953 = vcmp.ge.s32.totalorder %v392, 0
    %vm2954 = vcmp.ge.s32.totalorder %v393, 0
    %vm2955 = vcmp.ge.s32.totalorder %v394, 0
    %vm2956 = vcmp.ge.s32.totalorder %v395, 0
    %vm2957 = vcmp.ge.s32.totalorder %v396, 0
    %vm2958 = vcmp.ge.s32.totalorder %v397, 0
    %vm2959 = vcmp.ge.s32.totalorder %v398, 0
    %vm2960 = vcmp.ge.s32.totalorder %v399, 0
    %vm2961 = vcmp.ge.s32.totalorder %v400, 0
    %vm2962 = vcmp.ge.s32.totalorder %v401, 0
    %vm2963 = vcmp.ge.s32.totalorder %v402, 0
    %vm2964 = vcmp.ge.s32.totalorder %v403, 0
    %vm2965 = vcmp.ge.s32.totalorder %v404, 0
    %vm2966 = vcmp.ge.s32.totalorder %v405, 0
    %vm2967 = vcmp.ge.s32.totalorder %v406, 0
    %vm2968 = vcmp.ge.s32.totalorder %v407, 0
    %vm2969 = vcmp.ge.s32.totalorder %v408, 0
    %vm2970 = vcmp.ge.s32.totalorder %v409, 0
    %vm2971 = vcmp.ge.s32.totalorder %v410, 0
    %vm2972 = vcmp.ge.s32.totalorder %v411, 0
    %vm2973 = vcmp.ge.s32.totalorder %v412, 0
    %vm2974 = vcmp.ge.s32.totalorder %v413, 0
    %vm2975 = vcmp.ge.s32.totalorder %v414, 0
    %vm2976 = vcmp.ge.s32.totalorder %v415, 0
    %vm2977 = vcmp.ge.s32.totalorder %v416, 0
    %vm2978 = vcmp.ge.s32.totalorder %v417, 0
    %vm2979 = vcmp.ge.s32.totalorder %v418, 0
    %vm2980 = vcmp.ge.s32.totalorder %v419, 0
    %vm2981 = vcmp.ge.s32.totalorder %v420, 0
    %vm2982 = vcmp.ge.s32.totalorder %v421, 0
    %vm2983 = vcmp.ge.s32.totalorder %v422, 0
    %vm2984 = vcmp.ge.s32.totalorder %v423, 0
    %vm2985 = vcmp.ge.s32.totalorder %v424, 0
    %vm2986 = vcmp.ge.s32.totalorder %v425, 0
    %vm2987 = vcmp.ge.s32.totalorder %v426, 0
    %vm2988 = vcmp.ge.s32.totalorder %v427, 0
    %vm2989 = vcmp.ge.s32.totalorder %v428, 0
    %vm2990 = vcmp.ge.s32.totalorder %v429, 0
    %vm2991 = vcmp.ge.s32.totalorder %v430, 0
    %vm2992 = vcmp.ge.s32.totalorder %v431, 0
    %vm2993 = vcmp.ge.s32.totalorder %v432, 0
    %vm2994 = vcmp.ge.s32.totalorder %v433, 0
    %vm2995 = vcmp.ge.s32.totalorder %v434, 0
    %vm2996 = vcmp.ge.s32.totalorder %v435, 0
    %vm2997 = vcmp.ge.s32.totalorder %v436, 0
    %vm2998 = vcmp.ge.s32.totalorder %v437, 0
    %vm2999 = vcmp.ge.s32.totalorder %v438, 0
    %vm3000 = vcmp.ge.s32.totalorder %v439, 0
    %vm3001 = vcmp.ge.s32.totalorder %v440, 0
    %vm3002 = vcmp.ge.s32.totalorder %v441, 0
    %vm3003 = vcmp.ge.s32.totalorder %v442, 0
    %vm3004 = vcmp.ge.s32.totalorder %v443, 0
    %vm3005 = vcmp.ge.s32.totalorder %v444, 0
    %vm3006 = vcmp.ge.s32.totalorder %v445, 0
    %vm3007 = vcmp.ge.s32.totalorder %v446, 0
    %vm3008 = vcmp.ge.s32.totalorder %v447, 0
    %vm3009 = vcmp.ge.s32.totalorder %v448, 0
    %vm3010 = vcmp.ge.s32.totalorder %v449, 0
    %vm3011 = vcmp.ge.s32.totalorder %v450, 0
    %vm3012 = vcmp.ge.s32.totalorder %v451, 0
    %vm3013 = vcmp.ge.s32.totalorder %v452, 0
    %vm3014 = vcmp.ge.s32.totalorder %v453, 0
    %vm3015 = vcmp.ge.s32.totalorder %v454, 0
    %vm3016 = vcmp.ge.s32.totalorder %v455, 0
    %vm3017 = vcmp.ge.s32.totalorder %v456, 0
    %vm3018 = vcmp.ge.s32.totalorder %v457, 0
    %vm3019 = vcmp.ge.s32.totalorder %v458, 0
    %vm3020 = vcmp.ge.s32.totalorder %v459, 0
    %vm3021 = vcmp.ge.s32.totalorder %v460, 0
    %vm3022 = vcmp.ge.s32.totalorder %v461, 0
    %vm3023 = vcmp.ge.s32.totalorder %v462, 0
    %vm3024 = vcmp.ge.s32.totalorder %v463, 0
    %vm3025 = vcmp.ge.s32.totalorder %v464, 0
    %vm3026 = vcmp.ge.s32.totalorder %v465, 0
    %vm3027 = vcmp.ge.s32.totalorder %v466, 0
    %vm3028 = vcmp.ge.s32.totalorder %v467, 0
    %vm3029 = vcmp.ge.s32.totalorder %v468, 0
    %vm3030 = vcmp.ge.s32.totalorder %v469, 0
    %vm3031 = vcmp.ge.s32.totalorder %v470, 0
    %vm3032 = vcmp.ge.s32.totalorder %v471, 0
    %vm3033 = vcmp.ge.s32.totalorder %v472, 0
    %vm3034 = vcmp.ge.s32.totalorder %v473, 0
    %vm3035 = vcmp.ge.s32.totalorder %v474, 0
    %vm3036 = vcmp.ge.s32.totalorder %v475, 0
    %vm3037 = vcmp.ge.s32.totalorder %v476, 0
    %vm3038 = vcmp.ge.s32.totalorder %v477, 0
    %vm3039 = vcmp.ge.s32.totalorder %v478, 0
    %vm3040 = vcmp.ge.s32.totalorder %v479, 0
    %vm3041 = vcmp.ge.s32.totalorder %v480, 0
    %vm3042 = vcmp.ge.s32.totalorder %v481, 0
    %vm3043 = vcmp.ge.s32.totalorder %v482, 0
    %vm3044 = vcmp.ge.s32.totalorder %v483, 0
    %vm3045 = vcmp.ge.s32.totalorder %v484, 0
    %vm3046 = vcmp.ge.s32.totalorder %v485, 0
    %vm3047 = vcmp.ge.s32.totalorder %v486, 0
    %vm3048 = vcmp.ge.s32.totalorder %v487, 0
    %vm3049 = vcmp.ge.s32.totalorder %v488, 0
    %vm3050 = vcmp.ge.s32.totalorder %v489, 0
    %vm3051 = vcmp.ge.s32.totalorder %v490, 0
    %vm3052 = vcmp.ge.s32.totalorder %v491, 0
    %vm3053 = vcmp.ge.s32.totalorder %v492, 0
    %vm3054 = vcmp.ge.s32.totalorder %v493, 0
    %vm3055 = vcmp.ge.s32.totalorder %v494, 0
    %vm3056 = vcmp.ge.s32.totalorder %v495, 0
    %vm3057 = vcmp.ge.s32.totalorder %v496, 0
    %vm3058 = vcmp.ge.s32.totalorder %v497, 0
    %vm3059 = vcmp.ge.s32.totalorder %v498, 0
    %vm3060 = vcmp.ge.s32.totalorder %v499, 0
    %vm3061 = vcmp.ge.s32.totalorder %v500, 0
    %vm3062 = vcmp.ge.s32.totalorder %v501, 0
    %vm3063 = vcmp.ge.s32.totalorder %v502, 0
    %vm3064 = vcmp.ge.s32.totalorder %v503, 0
    %vm3065 = vcmp.ge.s32.totalorder %v504, 0
    %vm3066 = vcmp.ge.s32.totalorder %v505, 0
    %vm3067 = vcmp.ge.s32.totalorder %v506, 0
    %vm3068 = vcmp.ge.s32.totalorder %v507, 0
    %vm3069 = vcmp.ge.s32.totalorder %v508, 0
    %vm3070 = vcmp.ge.s32.totalorder %v509, 0
    %vm3071 = vcmp.ge.s32.totalorder %v510, 0
    %vm3072 = vcmp.ge.s32.totalorder %v511, 0
    %vm3073 = vcmp.ge.s32.totalorder %v512, 0
    %vm3074 = vcmp.ge.s32.totalorder %v513, 0
    %vm3075 = vcmp.ge.s32.totalorder %v514, 0
    %vm3076 = vcmp.ge.s32.totalorder %v515, 0
    %vm3077 = vcmp.ge.s32.totalorder %v516, 0
    %vm3078 = vcmp.ge.s32.totalorder %v517, 0
    %vm3079 = vcmp.ge.s32.totalorder %v518, 0
    %vm3080 = vcmp.ge.s32.totalorder %v519, 0
    %vm3081 = vcmp.ge.s32.totalorder %v520, 0
    %vm3082 = vcmp.ge.s32.totalorder %v521, 0
    %vm3083 = vcmp.ge.s32.totalorder %v522, 0
    %vm3084 = vcmp.ge.s32.totalorder %v523, 0
    %v3085 = vlog2.pop %v2063
    %v3086 = vmul.f32 %v3085, 0.6931472
    %v3087 = vlog2.pop %v2066
    %v3088 = vmul.f32 %v3087, 0.6931472
    %v3089 = vlog2.pop %v2069
    %v3090 = vmul.f32 %v3089, 0.6931472
    %v3091 = vlog2.pop %v2072
    %v3092 = vmul.f32 %v3091, 0.6931472
    %v3093 = vlog2.pop %v2075
    %v3094 = vmul.f32 %v3093, 0.6931472
    %v3095 = vlog2.pop %v2078
    %v3096 = vmul.f32 %v3095, 0.6931472
    %v3097 = vlog2.pop %v2081
    %v3098 = vmul.f32 %v3097, 0.6931472
    %v3099 = vlog2.pop %v2084
    %v3100 = vmul.f32 %v3099, 0.6931472
    %v3101 = vlog2.pop %v2087
    %v3102 = vmul.f32 %v3101, 0.6931472
    %v3103 = vlog2.pop %v2090
    %v3104 = vmul.f32 %v3103, 0.6931472
    %v3105 = vlog2.pop %v2093
    %v3106 = vmul.f32 %v3105, 0.6931472
    %v3107 = vlog2.pop %v2096
    %v3108 = vmul.f32 %v3107, 0.6931472
    %v3109 = vlog2.pop %v2099
    %v3110 = vmul.f32 %v3109, 0.6931472
    %v3111 = vlog2.pop %v2102
    %v3112 = vmul.f32 %v3111, 0.6931472
    %v3113 = vlog2.pop %v2105
    %v3114 = vmul.f32 %v3113, 0.6931472
    %v3115 = vlog2.pop %v2108
    %v3116 = vmul.f32 %v3115, 0.6931472
    %v3117 = vlog2.pop %v2111
    %v3118 = vmul.f32 %v3117, 0.6931472
    %v3119 = vlog2.pop %v2114
    %v3120 = vmul.f32 %v3119, 0.6931472
    %v3121 = vlog2.pop %v2117
    %v3122 = vmul.f32 %v3121, 0.6931472
    %v3123 = vlog2.pop %v2120
    %v3124 = vmul.f32 %v3123, 0.6931472
    %v3125 = vlog2.pop %v2123
    %v3126 = vmul.f32 %v3125, 0.6931472
    %v3127 = vlog2.pop %v2126
    %v3128 = vmul.f32 %v3127, 0.6931472
    %v3129 = vlog2.pop %v2129
    %v3130 = vmul.f32 %v3129, 0.6931472
    %v3131 = vlog2.pop %v2132
    %v3132 = vmul.f32 %v3131, 0.6931472
    %v3133 = vlog2.pop %v2135
    %v3134 = vmul.f32 %v3133, 0.6931472
    %v3135 = vlog2.pop %v2138
    %v3136 = vmul.f32 %v3135, 0.6931472
    %v3137 = vlog2.pop %v2141
    %v3138 = vmul.f32 %v3137, 0.6931472
    %v3139 = vlog2.pop %v2144
    %v3140 = vmul.f32 %v3139, 0.6931472
    %v3141 = vlog2.pop %v2147
    %v3142 = vmul.f32 %v3141, 0.6931472
    %v3143 = vlog2.pop %v2150
    %v3144 = vmul.f32 %v3143, 0.6931472
    %v3145 = vlog2.pop %v2153
    %v3146 = vmul.f32 %v3145, 0.6931472
    %v3147 = vlog2.pop %v2156
    %v3148 = vmul.f32 %v3147, 0.6931472
    %v3149 = vlog2.pop %v2159
    %v3150 = vmul.f32 %v3149, 0.6931472
    %v3151 = vlog2.pop %v2162
    %v3152 = vmul.f32 %v3151, 0.6931472
    %v3153 = vlog2.pop %v2165
    %v3154 = vmul.f32 %v3153, 0.6931472
    %v3155 = vlog2.pop %v2168
    %v3156 = vmul.f32 %v3155, 0.6931472
    %v3157 = vlog2.pop %v2171
    %v3158 = vmul.f32 %v3157, 0.6931472
    %v3159 = vlog2.pop %v2174
    %v3160 = vmul.f32 %v3159, 0.6931472
    %v3161 = vlog2.pop %v2177
    %v3162 = vmul.f32 %v3161, 0.6931472
    %v3163 = vlog2.pop %v2180
    %v3164 = vmul.f32 %v3163, 0.6931472
    %v3165 = vlog2.pop %v2183
    %v3166 = vmul.f32 %v3165, 0.6931472
    %v3167 = vlog2.pop %v2186
    %v3168 = vmul.f32 %v3167, 0.6931472
    %v3169 = vlog2.pop %v2189
    %v3170 = vmul.f32 %v3169, 0.6931472
    %v3171 = vlog2.pop %v2192
    %v3172 = vmul.f32 %v3171, 0.6931472
    %v3173 = vlog2.pop %v2195
    %v3174 = vmul.f32 %v3173, 0.6931472
    %v3175 = vlog2.pop %v2198
    %v3176 = vmul.f32 %v3175, 0.6931472
    %v3177 = vlog2.pop %v2201
    %v3178 = vmul.f32 %v3177, 0.6931472
    %v3179 = vlog2.pop %v2204
    %v3180 = vmul.f32 %v3179, 0.6931472
    %v3181 = vlog2.pop %v2207
    %v3182 = vmul.f32 %v3181, 0.6931472
    %v3183 = vlog2.pop %v2210
    %v3184 = vmul.f32 %v3183, 0.6931472
    %v3185 = vlog2.pop %v2213
    %v3186 = vmul.f32 %v3185, 0.6931472
    %v3187 = vlog2.pop %v2216
    %v3188 = vmul.f32 %v3187, 0.6931472
    %v3189 = vlog2.pop %v2219
    %v3190 = vmul.f32 %v3189, 0.6931472
    %v3191 = vlog2.pop %v2222
    %v3192 = vmul.f32 %v3191, 0.6931472
    %v3193 = vlog2.pop %v2225
    %v3194 = vmul.f32 %v3193, 0.6931472
    %v3195 = vlog2.pop %v2228
    %v3196 = vmul.f32 %v3195, 0.6931472
    %v3197 = vlog2.pop %v2231
    %v3198 = vmul.f32 %v3197, 0.6931472
    %v3199 = vlog2.pop %v2234
    %v3200 = vmul.f32 %v3199, 0.6931472
    %v3201 = vlog2.pop %v2237
    %v3202 = vmul.f32 %v3201, 0.6931472
    %v3203 = vlog2.pop %v2240
    %v3204 = vmul.f32 %v3203, 0.6931472
    %v3205 = vlog2.pop %v2243
    %v3206 = vmul.f32 %v3205, 0.6931472
    %v3207 = vlog2.pop %v2246
    %v3208 = vmul.f32 %v3207, 0.6931472
    %v3209 = vlog2.pop %v2249
    %v3210 = vmul.f32 %v3209, 0.6931472
    %v3211 = vlog2.pop %v2252
    %v3212 = vmul.f32 %v3211, 0.6931472
    %v3213 = vlog2.pop %v2255
    %v3214 = vmul.f32 %v3213, 0.6931472
    %v3215 = vlog2.pop %v2258
    %v3216 = vmul.f32 %v3215, 0.6931472
    %v3217 = vlog2.pop %v2261
    %v3218 = vmul.f32 %v3217, 0.6931472
    %v3219 = vlog2.pop %v2264
    %v3220 = vmul.f32 %v3219, 0.6931472
    %v3221 = vlog2.pop %v2267
    %v3222 = vmul.f32 %v3221, 0.6931472
    %v3223 = vlog2.pop %v2270
    %v3224 = vmul.f32 %v3223, 0.6931472
    %v3225 = vlog2.pop %v2273
    %v3226 = vmul.f32 %v3225, 0.6931472
    %v3227 = vlog2.pop %v2276
    %v3228 = vmul.f32 %v3227, 0.6931472
    %v3229 = vlog2.pop %v2279
    %v3230 = vmul.f32 %v3229, 0.6931472
    %v3231 = vlog2.pop %v2282
    %v3232 = vmul.f32 %v3231, 0.6931472
    %v3233 = vlog2.pop %v2285
    %v3234 = vmul.f32 %v3233, 0.6931472
    %v3235 = vlog2.pop %v2288
    %v3236 = vmul.f32 %v3235, 0.6931472
    %v3237 = vlog2.pop %v2291
    %v3238 = vmul.f32 %v3237, 0.6931472
    %v3239 = vlog2.pop %v2294
    %v3240 = vmul.f32 %v3239, 0.6931472
    %v3241 = vlog2.pop %v2297
    %v3242 = vmul.f32 %v3241, 0.6931472
    %v3243 = vlog2.pop %v2300
    %v3244 = vmul.f32 %v3243, 0.6931472
    %v3245 = vlog2.pop %v2303
    %v3246 = vmul.f32 %v3245, 0.6931472
    %v3247 = vlog2.pop %v2306
    %v3248 = vmul.f32 %v3247, 0.6931472
    %v3249 = vlog2.pop %v2309
    %v3250 = vmul.f32 %v3249, 0.6931472
    %v3251 = vlog2.pop %v2312
    %v3252 = vmul.f32 %v3251, 0.6931472
    %v3253 = vlog2.pop %v2315
    %v3254 = vmul.f32 %v3253, 0.6931472
    %v3255 = vlog2.pop %v2318
    %v3256 = vmul.f32 %v3255, 0.6931472
    %v3257 = vlog2.pop %v2321
    %v3258 = vmul.f32 %v3257, 0.6931472
    %v3259 = vlog2.pop %v2324
    %v3260 = vmul.f32 %v3259, 0.6931472
    %v3261 = vlog2.pop %v2327
    %v3262 = vmul.f32 %v3261, 0.6931472
    %v3263 = vlog2.pop %v2330
    %v3264 = vmul.f32 %v3263, 0.6931472
    %v3265 = vlog2.pop %v2333
    %v3266 = vmul.f32 %v3265, 0.6931472
    %v3267 = vlog2.pop %v2336
    %v3268 = vmul.f32 %v3267, 0.6931472
    %v3269 = vlog2.pop %v2339
    %v3270 = vmul.f32 %v3269, 0.6931472
    %v3271 = vlog2.pop %v2342
    %v3272 = vmul.f32 %v3271, 0.6931472
    %v3273 = vlog2.pop %v2345
    %v3274 = vmul.f32 %v3273, 0.6931472
    %v3275 = vlog2.pop %v2348
    %v3276 = vmul.f32 %v3275, 0.6931472
    %v3277 = vlog2.pop %v2351
    %v3278 = vmul.f32 %v3277, 0.6931472
    %v3279 = vlog2.pop %v2354
    %v3280 = vmul.f32 %v3279, 0.6931472
    %v3281 = vlog2.pop %v2357
    %v3282 = vmul.f32 %v3281, 0.6931472
    %v3283 = vlog2.pop %v2360
    %v3284 = vmul.f32 %v3283, 0.6931472
    %v3285 = vlog2.pop %v2363
    %v3286 = vmul.f32 %v3285, 0.6931472
    %v3287 = vlog2.pop %v2366
    %v3288 = vmul.f32 %v3287, 0.6931472
    %v3289 = vlog2.pop %v2369
    %v3290 = vmul.f32 %v3289, 0.6931472
    %v3291 = vlog2.pop %v2372
    %v3292 = vmul.f32 %v3291, 0.6931472
    %v3293 = vlog2.pop %v2375
    %v3294 = vmul.f32 %v3293, 0.6931472
    %v3295 = vlog2.pop %v2378
    %v3296 = vmul.f32 %v3295, 0.6931472
    %v3297 = vlog2.pop %v2381
    %v3298 = vmul.f32 %v3297, 0.6931472
    %v3299 = vlog2.pop %v2384
    %v3300 = vmul.f32 %v3299, 0.6931472
    %v3301 = vlog2.pop %v2387
    %v3302 = vmul.f32 %v3301, 0.6931472
    %v3303 = vlog2.pop %v2390
    %v3304 = vmul.f32 %v3303, 0.6931472
    %v3305 = vlog2.pop %v2393
    %v3306 = vmul.f32 %v3305, 0.6931472
    %v3307 = vlog2.pop %v2396
    %v3308 = vmul.f32 %v3307, 0.6931472
    %v3309 = vlog2.pop %v2399
    %v3310 = vmul.f32 %v3309, 0.6931472
    %v3311 = vlog2.pop %v2402
    %v3312 = vmul.f32 %v3311, 0.6931472
    %v3313 = vlog2.pop %v2405
    %v3314 = vmul.f32 %v3313, 0.6931472
    %v3315 = vlog2.pop %v2408
    %v3316 = vmul.f32 %v3315, 0.6931472
    %v3317 = vlog2.pop %v2411
    %v3318 = vmul.f32 %v3317, 0.6931472
    %v3319 = vlog2.pop %v2414
    %v3320 = vmul.f32 %v3319, 0.6931472
    %v3321 = vlog2.pop %v2417
    %v3322 = vmul.f32 %v3321, 0.6931472
    %v3323 = vlog2.pop %v2420
    %v3324 = vmul.f32 %v3323, 0.6931472
    %v3325 = vlog2.pop %v2423
    %v3326 = vmul.f32 %v3325, 0.6931472
    %v3327 = vlog2.pop %v2426
    %v3328 = vmul.f32 %v3327, 0.6931472
    %v3329 = vlog2.pop %v2429
    %v3330 = vmul.f32 %v3329, 0.6931472
    %v3331 = vlog2.pop %v2432
    %v3332 = vmul.f32 %v3331, 0.6931472
    %v3333 = vlog2.pop %v2435
    %v3334 = vmul.f32 %v3333, 0.6931472
    %v3335 = vlog2.pop %v2438
    %v3336 = vmul.f32 %v3335, 0.6931472
    %v3337 = vlog2.pop %v2441
    %v3338 = vmul.f32 %v3337, 0.6931472
    %v3339 = vlog2.pop %v2444
    %v3340 = vmul.f32 %v3339, 0.6931472
    %v3341 = vlog2.pop %v2447
    %v3342 = vmul.f32 %v3341, 0.6931472
    %v3343 = vlog2.pop %v2450
    %v3344 = vmul.f32 %v3343, 0.6931472
    %v3345 = vlog2.pop %v2453
    %v3346 = vmul.f32 %v3345, 0.6931472
    %v3347 = vlog2.pop %v2456
    %v3348 = vmul.f32 %v3347, 0.6931472
    %v3349 = vlog2.pop %v2459
    %v3350 = vmul.f32 %v3349, 0.6931472
    %v3351 = vlog2.pop %v2462
    %v3352 = vmul.f32 %v3351, 0.6931472
    %v3353 = vlog2.pop %v2465
    %v3354 = vmul.f32 %v3353, 0.6931472
    %v3355 = vlog2.pop %v2468
    %v3356 = vmul.f32 %v3355, 0.6931472
    %v3357 = vlog2.pop %v2471
    %v3358 = vmul.f32 %v3357, 0.6931472
    %v3359 = vlog2.pop %v2474
    %v3360 = vmul.f32 %v3359, 0.6931472
    %v3361 = vlog2.pop %v2477
    %v3362 = vmul.f32 %v3361, 0.6931472
    %v3363 = vlog2.pop %v2480
    %v3364 = vmul.f32 %v3363, 0.6931472
    %v3365 = vlog2.pop %v2483
    %v3366 = vmul.f32 %v3365, 0.6931472
    %v3367 = vlog2.pop %v2486
    %v3368 = vmul.f32 %v3367, 0.6931472
    %v3369 = vlog2.pop %v2489
    %v3370 = vmul.f32 %v3369, 0.6931472
    %v3371 = vlog2.pop %v2492
    %v3372 = vmul.f32 %v3371, 0.6931472
    %v3373 = vlog2.pop %v2495
    %v3374 = vmul.f32 %v3373, 0.6931472
    %v3375 = vlog2.pop %v2498
    %v3376 = vmul.f32 %v3375, 0.6931472
    %v3377 = vlog2.pop %v2501
    %v3378 = vmul.f32 %v3377, 0.6931472
    %v3379 = vlog2.pop %v2504
    %v3380 = vmul.f32 %v3379, 0.6931472
    %v3381 = vlog2.pop %v2507
    %v3382 = vmul.f32 %v3381, 0.6931472
    %v3383 = vlog2.pop %v2510
    %v3384 = vmul.f32 %v3383, 0.6931472
    %v3385 = vlog2.pop %v2513
    %v3386 = vmul.f32 %v3385, 0.6931472
    %v3387 = vlog2.pop %v2516
    %v3388 = vmul.f32 %v3387, 0.6931472
    %v3389 = vlog2.pop %v2519
    %v3390 = vmul.f32 %v3389, 0.6931472
    %v3391 = vlog2.pop %v2522
    %v3392 = vmul.f32 %v3391, 0.6931472
    %v3393 = vlog2.pop %v2525
    %v3394 = vmul.f32 %v3393, 0.6931472
    %v3395 = vlog2.pop %v2528
    %v3396 = vmul.f32 %v3395, 0.6931472
    %v3397 = vlog2.pop %v2531
    %v3398 = vmul.f32 %v3397, 0.6931472
    %v3399 = vlog2.pop %v2534
    %v3400 = vmul.f32 %v3399, 0.6931472
    %v3401 = vlog2.pop %v2537
    %v3402 = vmul.f32 %v3401, 0.6931472
    %v3403 = vlog2.pop %v2540
    %v3404 = vmul.f32 %v3403, 0.6931472
    %v3405 = vlog2.pop %v2543
    %v3406 = vmul.f32 %v3405, 0.6931472
    %v3407 = vlog2.pop %v2546
    %v3408 = vmul.f32 %v3407, 0.6931472
    %v3409 = vlog2.pop %v2549
    %v3410 = vmul.f32 %v3409, 0.6931472
    %v3411 = vlog2.pop %v2552
    %v3412 = vmul.f32 %v3411, 0.6931472
    %v3413 = vlog2.pop %v2555
    %v3414 = vmul.f32 %v3413, 0.6931472
    %v3415 = vlog2.pop %v2558
    %v3416 = vmul.f32 %v3415, 0.6931472
    %v3417 = vlog2.pop %v2561
    %v3418 = vmul.f32 %v3417, 0.6931472
    %v3419 = vlog2.pop %v2564
    %v3420 = vmul.f32 %v3419, 0.6931472
    %v3421 = vlog2.pop %v2567
    %v3422 = vmul.f32 %v3421, 0.6931472
    %v3423 = vlog2.pop %v2570
    %v3424 = vmul.f32 %v3423, 0.6931472
    %v3425 = vlog2.pop %v2573
    %v3426 = vmul.f32 %v3425, 0.6931472
    %v3427 = vlog2.pop %v2576
    %v3428 = vmul.f32 %v3427, 0.6931472
    %v3429 = vlog2.pop %v2579
    %v3430 = vmul.f32 %v3429, 0.6931472
    %v3431 = vlog2.pop %v2582
    %v3432 = vmul.f32 %v3431, 0.6931472
    %v3433 = vlog2.pop %v2585
    %v3434 = vmul.f32 %v3433, 0.6931472
    %v3435 = vlog2.pop %v2588
    %v3436 = vmul.f32 %v3435, 0.6931472
    %v3437 = vlog2.pop %v2591
    %v3438 = vmul.f32 %v3437, 0.6931472
    %v3439 = vlog2.pop %v2594
    %v3440 = vmul.f32 %v3439, 0.6931472
    %v3441 = vlog2.pop %v2597
    %v3442 = vmul.f32 %v3441, 0.6931472
    %v3443 = vlog2.pop %v2600
    %v3444 = vmul.f32 %v3443, 0.6931472
    %v3445 = vlog2.pop %v2603
    %v3446 = vmul.f32 %v3445, 0.6931472
    %v3447 = vlog2.pop %v2606
    %v3448 = vmul.f32 %v3447, 0.6931472
    %v3449 = vlog2.pop %v2609
    %v3450 = vmul.f32 %v3449, 0.6931472
    %v3451 = vlog2.pop %v2612
    %v3452 = vmul.f32 %v3451, 0.6931472
    %v3453 = vlog2.pop %v2615
    %v3454 = vmul.f32 %v3453, 0.6931472
    %v3455 = vlog2.pop %v2618
    %v3456 = vmul.f32 %v3455, 0.6931472
    %v3457 = vlog2.pop %v2621
    %v3458 = vmul.f32 %v3457, 0.6931472
    %v3459 = vlog2.pop %v2624
    %v3460 = vmul.f32 %v3459, 0.6931472
    %v3461 = vlog2.pop %v2627
    %v3462 = vmul.f32 %v3461, 0.6931472
    %v3463 = vlog2.pop %v2630
    %v3464 = vmul.f32 %v3463, 0.6931472
    %v3465 = vlog2.pop %v2633
    %v3466 = vmul.f32 %v3465, 0.6931472
    %v3467 = vlog2.pop %v2636
    %v3468 = vmul.f32 %v3467, 0.6931472
    %v3469 = vlog2.pop %v2639
    %v3470 = vmul.f32 %v3469, 0.6931472
    %v3471 = vlog2.pop %v2642
    %v3472 = vmul.f32 %v3471, 0.6931472
    %v3473 = vlog2.pop %v2645
    %v3474 = vmul.f32 %v3473, 0.6931472
    %v3475 = vlog2.pop %v2648
    %v3476 = vmul.f32 %v3475, 0.6931472
    %v3477 = vlog2.pop %v2651
    %v3478 = vmul.f32 %v3477, 0.6931472
    %v3479 = vlog2.pop %v2654
    %v3480 = vmul.f32 %v3479, 0.6931472
    %v3481 = vlog2.pop %v2657
    %v3482 = vmul.f32 %v3481, 0.6931472
    %v3483 = vlog2.pop %v2660
    %v3484 = vmul.f32 %v3483, 0.6931472
    %v3485 = vlog2.pop %v2663
    %v3486 = vmul.f32 %v3485, 0.6931472
    %v3487 = vlog2.pop %v2666
    %v3488 = vmul.f32 %v3487, 0.6931472
    %v3489 = vlog2.pop %v2669
    %v3490 = vmul.f32 %v3489, 0.6931472
    %v3491 = vlog2.pop %v2672
    %v3492 = vmul.f32 %v3491, 0.6931472
    %v3493 = vlog2.pop %v2675
    %v3494 = vmul.f32 %v3493, 0.6931472
    %v3495 = vlog2.pop %v2678
    %v3496 = vmul.f32 %v3495, 0.6931472
    %v3497 = vlog2.pop %v2681
    %v3498 = vmul.f32 %v3497, 0.6931472
    %v3499 = vlog2.pop %v2684
    %v3500 = vmul.f32 %v3499, 0.6931472
    %v3501 = vlog2.pop %v2687
    %v3502 = vmul.f32 %v3501, 0.6931472
    %v3503 = vlog2.pop %v2690
    %v3504 = vmul.f32 %v3503, 0.6931472
    %v3505 = vlog2.pop %v2693
    %v3506 = vmul.f32 %v3505, 0.6931472
    %v3507 = vlog2.pop %v2696
    %v3508 = vmul.f32 %v3507, 0.6931472
    %v3509 = vlog2.pop %v2699
    %v3510 = vmul.f32 %v3509, 0.6931472
    %v3511 = vlog2.pop %v2702
    %v3512 = vmul.f32 %v3511, 0.6931472
    %v3513 = vlog2.pop %v2705
    %v3514 = vmul.f32 %v3513, 0.6931472
    %v3515 = vlog2.pop %v2708
    %v3516 = vmul.f32 %v3515, 0.6931472
    %v3517 = vlog2.pop %v2711
    %v3518 = vmul.f32 %v3517, 0.6931472
    %v3519 = vlog2.pop %v2714
    %v3520 = vmul.f32 %v3519, 0.6931472
    %v3521 = vlog2.pop %v2717
    %v3522 = vmul.f32 %v3521, 0.6931472
    %v3523 = vlog2.pop %v2720
    %v3524 = vmul.f32 %v3523, 0.6931472
    %v3525 = vlog2.pop %v2723
    %v3526 = vmul.f32 %v3525, 0.6931472
    %v3527 = vlog2.pop %v2726
    %v3528 = vmul.f32 %v3527, 0.6931472
    %v3529 = vlog2.pop %v2729
    %v3530 = vmul.f32 %v3529, 0.6931472
    %v3531 = vlog2.pop %v2732
    %v3532 = vmul.f32 %v3531, 0.6931472
    %v3533 = vlog2.pop %v2735
    %v3534 = vmul.f32 %v3533, 0.6931472
    %v3535 = vlog2.pop %v2738
    %v3536 = vmul.f32 %v3535, 0.6931472
    %v3537 = vlog2.pop %v2741
    %v3538 = vmul.f32 %v3537, 0.6931472
    %v3539 = vlog2.pop %v2744
    %v3540 = vmul.f32 %v3539, 0.6931472
    %v3541 = vlog2.pop %v2747
    %v3542 = vmul.f32 %v3541, 0.6931472
    %v3543 = vlog2.pop %v2750
    %v3544 = vmul.f32 %v3543, 0.6931472
    %v3545 = vlog2.pop %v2753
    %v3546 = vmul.f32 %v3545, 0.6931472
    %v3547 = vlog2.pop %v2756
    %v3548 = vmul.f32 %v3547, 0.6931472
    %v3549 = vlog2.pop %v2759
    %v3550 = vmul.f32 %v3549, 0.6931472
    %v3551 = vlog2.pop %v2762
    %v3552 = vmul.f32 %v3551, 0.6931472
    %v3553 = vlog2.pop %v2765
    %v3554 = vmul.f32 %v3553, 0.6931472
    %v3555 = vlog2.pop %v2768
    %v3556 = vmul.f32 %v3555, 0.6931472
    %v3557 = vlog2.pop %v2771
    %v3558 = vmul.f32 %v3557, 0.6931472
    %v3559 = vlog2.pop %v2774
    %v3560 = vmul.f32 %v3559, 0.6931472
    %v3561 = vlog2.pop %v2777
    %v3562 = vmul.f32 %v3561, 0.6931472
    %v3563 = vlog2.pop %v2780
    %v3564 = vmul.f32 %v3563, 0.6931472
    %v3565 = vlog2.pop %v2783
    %v3566 = vmul.f32 %v3565, 0.6931472
    %v3567 = vlog2.pop %v2786
    %v3568 = vmul.f32 %v3567, 0.6931472
    %v3569 = vlog2.pop %v2789
    %v3570 = vmul.f32 %v3569, 0.6931472
    %v3571 = vlog2.pop %v2792
    %v3572 = vmul.f32 %v3571, 0.6931472
    %v3573 = vlog2.pop %v2795
    %v3574 = vmul.f32 %v3573, 0.6931472
    %v3575 = vlog2.pop %v2798
    %v3576 = vmul.f32 %v3575, 0.6931472
    %v3577 = vlog2.pop %v2801
    %v3578 = vmul.f32 %v3577, 0.6931472
    %v3579 = vlog2.pop %v2804
    %v3580 = vmul.f32 %v3579, 0.6931472
    %v3581 = vlog2.pop %v2807
    %v3582 = vmul.f32 %v3581, 0.6931472
    %v3583 = vlog2.pop %v2810
    %v3584 = vmul.f32 %v3583, 0.6931472
    %v3585 = vlog2.pop %v2813
    %v3586 = vmul.f32 %v3585, 0.6931472
    %v3587 = vlog2.pop %v2816
    %v3588 = vmul.f32 %v3587, 0.6931472
    %v3589 = vlog2.pop %v2819
    %v3590 = vmul.f32 %v3589, 0.6931472
    %v3591 = vlog2.pop %v2822
    %v3592 = vmul.f32 %v3591, 0.6931472
    %v3593 = vlog2.pop %v2825
    %v3594 = vmul.f32 %v3593, 0.6931472
    %v3595 = vlog2.pop %v2828
    %v3596 = vmul.f32 %v3595, 0.6931472
    %v3597 = vsel %vm2829, %v3086, 0.0
    %v3598 = vsel %vm2830, %v3088, 0.0
    %v3599 = vsel %vm2831, %v3090, 0.0
    %v3600 = vsel %vm2832, %v3092, 0.0
    %v3601 = vsel %vm2833, %v3094, 0.0
    %v3602 = vsel %vm2834, %v3096, 0.0
    %v3603 = vsel %vm2835, %v3098, 0.0
    %v3604 = vsel %vm2836, %v3100, 0.0
    %v3605 = vsel %vm2837, %v3102, 0.0
    %v3606 = vsel %vm2838, %v3104, 0.0
    %v3607 = vsel %vm2839, %v3106, 0.0
    %v3608 = vsel %vm2840, %v3108, 0.0
    %v3609 = vsel %vm2841, %v3110, 0.0
    %v3610 = vsel %vm2842, %v3112, 0.0
    %v3611 = vsel %vm2843, %v3114, 0.0
    %v3612 = vsel %vm2844, %v3116, 0.0
    %v3613 = vsel %vm2845, %v3118, 0.0
    %v3614 = vsel %vm2846, %v3120, 0.0
    %v3615 = vsel %vm2847, %v3122, 0.0
    %v3616 = vsel %vm2848, %v3124, 0.0
    %v3617 = vsel %vm2849, %v3126, 0.0
    %v3618 = vsel %vm2850, %v3128, 0.0
    %v3619 = vsel %vm2851, %v3130, 0.0
    %v3620 = vsel %vm2852, %v3132, 0.0
    %v3621 = vsel %vm2853, %v3134, 0.0
    %v3622 = vsel %vm2854, %v3136, 0.0
    %v3623 = vsel %vm2855, %v3138, 0.0
    %v3624 = vsel %vm2856, %v3140, 0.0
    %v3625 = vsel %vm2857, %v3142, 0.0
    %v3626 = vsel %vm2858, %v3144, 0.0
    %v3627 = vsel %vm2859, %v3146, 0.0
    %v3628 = vsel %vm2860, %v3148, 0.0
    %v3629 = vsel %vm2861, %v3150, 0.0
    %v3630 = vsel %vm2862, %v3152, 0.0
    %v3631 = vsel %vm2863, %v3154, 0.0
    %v3632 = vsel %vm2864, %v3156, 0.0
    %v3633 = vsel %vm2865, %v3158, 0.0
    %v3634 = vsel %vm2866, %v3160, 0.0
    %v3635 = vsel %vm2867, %v3162, 0.0
    %v3636 = vsel %vm2868, %v3164, 0.0
    %v3637 = vsel %vm2869, %v3166, 0.0
    %v3638 = vsel %vm2870, %v3168, 0.0
    %v3639 = vsel %vm2871, %v3170, 0.0
    %v3640 = vsel %vm2872, %v3172, 0.0
    %v3641 = vsel %vm2873, %v3174, 0.0
    %v3642 = vsel %vm2874, %v3176, 0.0
    %v3643 = vsel %vm2875, %v3178, 0.0
    %v3644 = vsel %vm2876, %v3180, 0.0
    %v3645 = vsel %vm2877, %v3182, 0.0
    %v3646 = vsel %vm2878, %v3184, 0.0
    %v3647 = vsel %vm2879, %v3186, 0.0
    %v3648 = vsel %vm2880, %v3188, 0.0
    %v3649 = vsel %vm2881, %v3190, 0.0
    %v3650 = vsel %vm2882, %v3192, 0.0
    %v3651 = vsel %vm2883, %v3194, 0.0
    %v3652 = vsel %vm2884, %v3196, 0.0
    %v3653 = vsel %vm2885, %v3198, 0.0
    %v3654 = vsel %vm2886, %v3200, 0.0
    %v3655 = vsel %vm2887, %v3202, 0.0
    %v3656 = vsel %vm2888, %v3204, 0.0
    %v3657 = vsel %vm2889, %v3206, 0.0
    %v3658 = vsel %vm2890, %v3208, 0.0
    %v3659 = vsel %vm2891, %v3210, 0.0
    %v3660 = vsel %vm2892, %v3212, 0.0
    %v3661 = vsel %vm2893, %v3214, 0.0
    %v3662 = vsel %vm2894, %v3216, 0.0
    %v3663 = vsel %vm2895, %v3218, 0.0
    %v3664 = vsel %vm2896, %v3220, 0.0
    %v3665 = vsel %vm2897, %v3222, 0.0
    %v3666 = vsel %vm2898, %v3224, 0.0
    %v3667 = vsel %vm2899, %v3226, 0.0
    %v3668 = vsel %vm2900, %v3228, 0.0
    %v3669 = vsel %vm2901, %v3230, 0.0
    %v3670 = vsel %vm2902, %v3232, 0.0
    %v3671 = vsel %vm2903, %v3234, 0.0
    %v3672 = vsel %vm2904, %v3236, 0.0
    %v3673 = vsel %vm2905, %v3238, 0.0
    %v3674 = vsel %vm2906, %v3240, 0.0
    %v3675 = vsel %vm2907, %v3242, 0.0
    %v3676 = vsel %vm2908, %v3244, 0.0
    %v3677 = vsel %vm2909, %v3246, 0.0
    %v3678 = vsel %vm2910, %v3248, 0.0
    %v3679 = vsel %vm2911, %v3250, 0.0
    %v3680 = vsel %vm2912, %v3252, 0.0
    %v3681 = vsel %vm2913, %v3254, 0.0
    %v3682 = vsel %vm2914, %v3256, 0.0
    %v3683 = vsel %vm2915, %v3258, 0.0
    %v3684 = vsel %vm2916, %v3260, 0.0
    %v3685 = vsel %vm2917, %v3262, 0.0
    %v3686 = vsel %vm2918, %v3264, 0.0
    %v3687 = vsel %vm2919, %v3266, 0.0
    %v3688 = vsel %vm2920, %v3268, 0.0
    %v3689 = vsel %vm2921, %v3270, 0.0
    %v3690 = vsel %vm2922, %v3272, 0.0
    %v3691 = vsel %vm2923, %v3274, 0.0
    %v3692 = vsel %vm2924, %v3276, 0.0
    %v3693 = vsel %vm2925, %v3278, 0.0
    %v3694 = vsel %vm2926, %v3280, 0.0
    %v3695 = vsel %vm2927, %v3282, 0.0
    %v3696 = vsel %vm2928, %v3284, 0.0
    %v3697 = vsel %vm2929, %v3286, 0.0
    %v3698 = vsel %vm2930, %v3288, 0.0
    %v3699 = vsel %vm2931, %v3290, 0.0
    %v3700 = vsel %vm2932, %v3292, 0.0
    %v3701 = vsel %vm2933, %v3294, 0.0
    %v3702 = vsel %vm2934, %v3296, 0.0
    %v3703 = vsel %vm2935, %v3298, 0.0
    %v3704 = vsel %vm2936, %v3300, 0.0
    %v3705 = vsel %vm2937, %v3302, 0.0
    %v3706 = vsel %vm2938, %v3304, 0.0
    %v3707 = vsel %vm2939, %v3306, 0.0
    %v3708 = vsel %vm2940, %v3308, 0.0
    %v3709 = vsel %vm2941, %v3310, 0.0
    %v3710 = vsel %vm2942, %v3312, 0.0
    %v3711 = vsel %vm2943, %v3314, 0.0
    %v3712 = vsel %vm2944, %v3316, 0.0
    %v3713 = vsel %vm2945, %v3318, 0.0
    %v3714 = vsel %vm2946, %v3320, 0.0
    %v3715 = vsel %vm2947, %v3322, 0.0
    %v3716 = vsel %vm2948, %v3324, 0.0
    %v3717 = vsel %vm2949, %v3326, 0.0
    %v3718 = vsel %vm2950, %v3328, 0.0
    %v3719 = vsel %vm2951, %v3330, 0.0
    %v3720 = vsel %vm2952, %v3332, 0.0
    %v3721 = vsel %vm2953, %v3334, 0.0
    %v3722 = vsel %vm2954, %v3336, 0.0
    %v3723 = vsel %vm2955, %v3338, 0.0
    %v3724 = vsel %vm2956, %v3340, 0.0
    %v3725 = vsel %vm2957, %v3342, 0.0
    %v3726 = vsel %vm2958, %v3344, 0.0
    %v3727 = vsel %vm2959, %v3346, 0.0
    %v3728 = vsel %vm2960, %v3348, 0.0
    %v3729 = vsel %vm2961, %v3350, 0.0
    %v3730 = vsel %vm2962, %v3352, 0.0
    %v3731 = vsel %vm2963, %v3354, 0.0
    %v3732 = vsel %vm2964, %v3356, 0.0
    %v3733 = vsel %vm2965, %v3358, 0.0
    %v3734 = vsel %vm2966, %v3360, 0.0
    %v3735 = vsel %vm2967, %v3362, 0.0
    %v3736 = vsel %vm2968, %v3364, 0.0
    %v3737 = vsel %vm2969, %v3366, 0.0
    %v3738 = vsel %vm2970, %v3368, 0.0
    %v3739 = vsel %vm2971, %v3370, 0.0
    %v3740 = vsel %vm2972, %v3372, 0.0
    %v3741 = vsel %vm2973, %v3374, 0.0
    %v3742 = vsel %vm2974, %v3376, 0.0
    %v3743 = vsel %vm2975, %v3378, 0.0
    %v3744 = vsel %vm2976, %v3380, 0.0
    %v3745 = vsel %vm2977, %v3382, 0.0
    %v3746 = vsel %vm2978, %v3384, 0.0
    %v3747 = vsel %vm2979, %v3386, 0.0
    %v3748 = vsel %vm2980, %v3388, 0.0
    %v3749 = vsel %vm2981, %v3390, 0.0
    %v3750 = vsel %vm2982, %v3392, 0.0
    %v3751 = vsel %vm2983, %v3394, 0.0
    %v3752 = vsel %vm2984, %v3396, 0.0
    %v3753 = vsel %vm2985, %v3398, 0.0
    %v3754 = vsel %vm2986, %v3400, 0.0
    %v3755 = vsel %vm2987, %v3402, 0.0
    %v3756 = vsel %vm2988, %v3404, 0.0
    %v3757 = vsel %vm2989, %v3406, 0.0
    %v3758 = vsel %vm2990, %v3408, 0.0
    %v3759 = vsel %vm2991, %v3410, 0.0
    %v3760 = vsel %vm2992, %v3412, 0.0
    %v3761 = vsel %vm2993, %v3414, 0.0
    %v3762 = vsel %vm2994, %v3416, 0.0
    %v3763 = vsel %vm2995, %v3418, 0.0
    %v3764 = vsel %vm2996, %v3420, 0.0
    %v3765 = vsel %vm2997, %v3422, 0.0
    %v3766 = vsel %vm2998, %v3424, 0.0
    %v3767 = vsel %vm2999, %v3426, 0.0
    %v3768 = vsel %vm3000, %v3428, 0.0
    %v3769 = vsel %vm3001, %v3430, 0.0
    %v3770 = vsel %vm3002, %v3432, 0.0
    %v3771 = vsel %vm3003, %v3434, 0.0
    %v3772 = vsel %vm3004, %v3436, 0.0
    %v3773 = vsel %vm3005, %v3438, 0.0
    %v3774 = vsel %vm3006, %v3440, 0.0
    %v3775 = vsel %vm3007, %v3442, 0.0
    %v3776 = vsel %vm3008, %v3444, 0.0
    %v3777 = vsel %vm3009, %v3446, 0.0
    %v3778 = vsel %vm3010, %v3448, 0.0
    %v3779 = vsel %vm3011, %v3450, 0.0
    %v3780 = vsel %vm3012, %v3452, 0.0
    %v3781 = vsel %vm3013, %v3454, 0.0
    %v3782 = vsel %vm3014, %v3456, 0.0
    %v3783 = vsel %vm3015, %v3458, 0.0
    %v3784 = vsel %vm3016, %v3460, 0.0
    %v3785 = vsel %vm3017, %v3462, 0.0
    %v3786 = vsel %vm3018, %v3464, 0.0
    %v3787 = vsel %vm3019, %v3466, 0.0
    %v3788 = vsel %vm3020, %v3468, 0.0
    %v3789 = vsel %vm3021, %v3470, 0.0
    %v3790 = vsel %vm3022, %v3472, 0.0
    %v3791 = vsel %vm3023, %v3474, 0.0
    %v3792 = vsel %vm3024, %v3476, 0.0
    %v3793 = vsel %vm3025, %v3478, 0.0
    %v3794 = vsel %vm3026, %v3480, 0.0
    %v3795 = vsel %vm3027, %v3482, 0.0
    %v3796 = vsel %vm3028, %v3484, 0.0
    %v3797 = vsel %vm3029, %v3486, 0.0
    %v3798 = vsel %vm3030, %v3488, 0.0
    %v3799 = vsel %vm3031, %v3490, 0.0
    %v3800 = vsel %vm3032, %v3492, 0.0
    %v3801 = vsel %vm3033, %v3494, 0.0
    %v3802 = vsel %vm3034, %v3496, 0.0
    %v3803 = vsel %vm3035, %v3498, 0.0
    %v3804 = vsel %vm3036, %v3500, 0.0
    %v3805 = vsel %vm3037, %v3502, 0.0
    %v3806 = vsel %vm3038, %v3504, 0.0
    %v3807 = vsel %vm3039, %v3506, 0.0
    %v3808 = vsel %vm3040, %v3508, 0.0
    %v3809 = vsel %vm3041, %v3510, 0.0
    %v3810 = vsel %vm3042, %v3512, 0.0
    %v3811 = vsel %vm3043, %v3514, 0.0
    %v3812 = vsel %vm3044, %v3516, 0.0
    %v3813 = vsel %vm3045, %v3518, 0.0
    %v3814 = vsel %vm3046, %v3520, 0.0
    %v3815 = vsel %vm3047, %v3522, 0.0
    %v3816 = vsel %vm3048, %v3524, 0.0
    %v3817 = vsel %vm3049, %v3526, 0.0
    %v3818 = vsel %vm3050, %v3528, 0.0
    %v3819 = vsel %vm3051, %v3530, 0.0
    %v3820 = vsel %vm3052, %v3532, 0.0
    %v3821 = vsel %vm3053, %v3534, 0.0
    %v3822 = vsel %vm3054, %v3536, 0.0
    %v3823 = vsel %vm3055, %v3538, 0.0
    %v3824 = vsel %vm3056, %v3540, 0.0
    %v3825 = vsel %vm3057, %v3542, 0.0
    %v3826 = vsel %vm3058, %v3544, 0.0
    %v3827 = vsel %vm3059, %v3546, 0.0
    %v3828 = vsel %vm3060, %v3548, 0.0
    %v3829 = vsel %vm3061, %v3550, 0.0
    %v3830 = vsel %vm3062, %v3552, 0.0
    %v3831 = vsel %vm3063, %v3554, 0.0
    %v3832 = vsel %vm3064, %v3556, 0.0
    %v3833 = vsel %vm3065, %v3558, 0.0
    %v3834 = vsel %vm3066, %v3560, 0.0
    %v3835 = vsel %vm3067, %v3562, 0.0
    %v3836 = vsel %vm3068, %v3564, 0.0
    %v3837 = vsel %vm3069, %v3566, 0.0
    %v3838 = vsel %vm3070, %v3568, 0.0
    %v3839 = vsel %vm3071, %v3570, 0.0
    %v3840 = vsel %vm3072, %v3572, 0.0
    %v3841 = vsel %vm3073, %v3574, 0.0
    %v3842 = vsel %vm3074, %v3576, 0.0
    %v3843 = vsel %vm3075, %v3578, 0.0
    %v3844 = vsel %vm3076, %v3580, 0.0
    %v3845 = vsel %vm3077, %v3582, 0.0
    %v3846 = vsel %vm3078, %v3584, 0.0
    %v3847 = vsel %vm3079, %v3586, 0.0
    %v3848 = vsel %vm3080, %v3588, 0.0
    %v3849 = vsel %vm3081, %v3590, 0.0
    %v3850 = vsel %vm3082, %v3592, 0.0
    %v3851 = vsel %vm3083, %v3594, 0.0
    %v3852 = vsel %vm3084, %v3596, 0.0
    %v3853 = vlaneseq
    %v3854 = vand.u32 %v3853, 127
    %3855 = vset.pattern.permute.xlu0 0
    %3856 = vperm.xlu0 %3855, %v268
    %v3857 = vpop.permute.xlu0 %3856
    %3858 = vset.pattern.permute.xlu0 0
    %3859 = vperm.xlu0 %3858, %v269
    %v3860 = vpop.permute.xlu0 %3859
    %3861 = vset.pattern.permute.xlu0 0
    %3862 = vperm.xlu0 %3861, %v270
    %v3863 = vpop.permute.xlu0 %3862
    %3864 = vset.pattern.permute.xlu0 0
    %3865 = vperm.xlu0 %3864, %v271
    %v3866 = vpop.permute.xlu0 %3865
    %3867 = vset.pattern.permute.xlu0 0
    %3868 = vperm.xlu0 %3867, %v272
    %v3869 = vpop.permute.xlu0 %3868
    %3870 = vset.pattern.permute.xlu0 0
    %3871 = vperm.xlu0 %3870, %v273
    %v3872 = vpop.permute.xlu0 %3871
    %3873 = vset.pattern.permute.xlu0 0
    %3874 = vperm.xlu0 %3873, %v274
    %v3875 = vpop.permute.xlu0 %3874
    %3876 = vset.pattern.permute.xlu0 0
    %3877 = vperm.xlu0 %3876, %v275
    %v3878 = vpop.permute.xlu0 %3877
    %3879 = vset.pattern.permute.xlu0 0
    %3880 = vperm.xlu0 %3879, %v276
    %v3881 = vpop.permute.xlu0 %3880
    %3882 = vset.pattern.permute.xlu0 0
    %3883 = vperm.xlu0 %3882, %v277
    %v3884 = vpop.permute.xlu0 %3883
    %3885 = vset.pattern.permute.xlu0 0
    %3886 = vperm.xlu0 %3885, %v278
    %v3887 = vpop.permute.xlu0 %3886
    %3888 = vset.pattern.permute.xlu0 0
    %3889 = vperm.xlu0 %3888, %v279
    %v3890 = vpop.permute.xlu0 %3889
    %3891 = vset.pattern.permute.xlu0 0
    %3892 = vperm.xlu0 %3891, %v280
    %v3893 = vpop.permute.xlu0 %3892
    %3894 = vset.pattern.permute.xlu0 0
    %3895 = vperm.xlu0 %3894, %v281
    %v3896 = vpop.permute.xlu0 %3895
    %3897 = vset.pattern.permute.xlu0 0
    %3898 = vperm.xlu0 %3897, %v282
    %v3899 = vpop.permute.xlu0 %3898
    %3900 = vset.pattern.permute.xlu0 0
    %3901 = vperm.xlu0 %3900, %v283
    %v3902 = vpop.permute.xlu0 %3901
    %3903 = vset.pattern.permute.xlu0 0
    %3904 = vperm.xlu0 %3903, %v284
    %v3905 = vpop.permute.xlu0 %3904
    %3906 = vset.pattern.permute.xlu0 0
    %3907 = vperm.xlu0 %3906, %v285
    %v3908 = vpop.permute.xlu0 %3907
    %3909 = vset.pattern.permute.xlu0 0
    %3910 = vperm.xlu0 %3909, %v286
    %v3911 = vpop.permute.xlu0 %3910
    %3912 = vset.pattern.permute.xlu0 0
    %3913 = vperm.xlu0 %3912, %v287
    %v3914 = vpop.permute.xlu0 %3913
    %3915 = vset.pattern.permute.xlu0 0
    %3916 = vperm.xlu0 %3915, %v288
    %v3917 = vpop.permute.xlu0 %3916
    %3918 = vset.pattern.permute.xlu0 0
    %3919 = vperm.xlu0 %3918, %v289
    %v3920 = vpop.permute.xlu0 %3919
    %3921 = vset.pattern.permute.xlu0 0
    %3922 = vperm.xlu0 %3921, %v290
    %v3923 = vpop.permute.xlu0 %3922
    %3924 = vset.pattern.permute.xlu0 0
    %3925 = vperm.xlu0 %3924, %v291
    %v3926 = vpop.permute.xlu0 %3925
    %3927 = vset.pattern.permute.xlu0 0
    %3928 = vperm.xlu0 %3927, %v292
    %v3929 = vpop.permute.xlu0 %3928
    %3930 = vset.pattern.permute.xlu0 0
    %3931 = vperm.xlu0 %3930, %v293
    %v3932 = vpop.permute.xlu0 %3931
    %3933 = vset.pattern.permute.xlu0 0
    %3934 = vperm.xlu0 %3933, %v294
    %v3935 = vpop.permute.xlu0 %3934
    %3936 = vset.pattern.permute.xlu0 0
    %3937 = vperm.xlu0 %3936, %v295
    %v3938 = vpop.permute.xlu0 %3937
    %3939 = vset.pattern.permute.xlu0 0
    %3940 = vperm.xlu0 %3939, %v296
    %v3941 = vpop.permute.xlu0 %3940
    %3942 = vset.pattern.permute.xlu0 0
    %3943 = vperm.xlu0 %3942, %v297
    %v3944 = vpop.permute.xlu0 %3943
    %3945 = vset.pattern.permute.xlu0 0
    %3946 = vperm.xlu0 %3945, %v298
    %v3947 = vpop.permute.xlu0 %3946
    %3948 = vset.pattern.permute.xlu0 0
    %3949 = vperm.xlu0 %3948, %v299
    %v3950 = vpop.permute.xlu0 %3949
    %3951 = vset.pattern.permute.xlu0 0
    %3952 = vperm.xlu0 %3951, %v300
    %v3953 = vpop.permute.xlu0 %3952
    %3954 = vset.pattern.permute.xlu0 0
    %3955 = vperm.xlu0 %3954, %v301
    %v3956 = vpop.permute.xlu0 %3955
    %3957 = vset.pattern.permute.xlu0 0
    %3958 = vperm.xlu0 %3957, %v302
    %v3959 = vpop.permute.xlu0 %3958
    %3960 = vset.pattern.permute.xlu0 0
    %3961 = vperm.xlu0 %3960, %v303
    %v3962 = vpop.permute.xlu0 %3961
    %3963 = vset.pattern.permute.xlu0 0
    %3964 = vperm.xlu0 %3963, %v304
    %v3965 = vpop.permute.xlu0 %3964
    %3966 = vset.pattern.permute.xlu0 0
    %3967 = vperm.xlu0 %3966, %v305
    %v3968 = vpop.permute.xlu0 %3967
    %3969 = vset.pattern.permute.xlu0 0
    %3970 = vperm.xlu0 %3969, %v306
    %v3971 = vpop.permute.xlu0 %3970
    %3972 = vset.pattern.permute.xlu0 0
    %3973 = vperm.xlu0 %3972, %v307
    %v3974 = vpop.permute.xlu0 %3973
    %3975 = vset.pattern.permute.xlu0 0
    %3976 = vperm.xlu0 %3975, %v308
    %v3977 = vpop.permute.xlu0 %3976
    %3978 = vset.pattern.permute.xlu0 0
    %3979 = vperm.xlu0 %3978, %v309
    %v3980 = vpop.permute.xlu0 %3979
    %3981 = vset.pattern.permute.xlu0 0
    %3982 = vperm.xlu0 %3981, %v310
    %v3983 = vpop.permute.xlu0 %3982
    %3984 = vset.pattern.permute.xlu0 0
    %3985 = vperm.xlu0 %3984, %v311
    %v3986 = vpop.permute.xlu0 %3985
    %3987 = vset.pattern.permute.xlu0 0
    %3988 = vperm.xlu0 %3987, %v312
    %v3989 = vpop.permute.xlu0 %3988
    %3990 = vset.pattern.permute.xlu0 0
    %3991 = vperm.xlu0 %3990, %v313
    %v3992 = vpop.permute.xlu0 %3991
    %3993 = vset.pattern.permute.xlu0 0
    %3994 = vperm.xlu0 %3993, %v314
    %v3995 = vpop.permute.xlu0 %3994
    %3996 = vset.pattern.permute.xlu0 0
    %3997 = vperm.xlu0 %3996, %v315
    %v3998 = vpop.permute.xlu0 %3997
    %3999 = vset.pattern.permute.xlu0 0
    %4000 = vperm.xlu0 %3999, %v316
    %v4001 = vpop.permute.xlu0 %4000
    %4002 = vset.pattern.permute.xlu0 0
    %4003 = vperm.xlu0 %4002, %v317
    %v4004 = vpop.permute.xlu0 %4003
    %4005 = vset.pattern.permute.xlu0 0
    %4006 = vperm.xlu0 %4005, %v318
    %v4007 = vpop.permute.xlu0 %4006
    %4008 = vset.pattern.permute.xlu0 0
    %4009 = vperm.xlu0 %4008, %v319
    %v4010 = vpop.permute.xlu0 %4009
    %4011 = vset.pattern.permute.xlu0 0
    %4012 = vperm.xlu0 %4011, %v320
    %v4013 = vpop.permute.xlu0 %4012
    %4014 = vset.pattern.permute.xlu0 0
    %4015 = vperm.xlu0 %4014, %v321
    %v4016 = vpop.permute.xlu0 %4015
    %4017 = vset.pattern.permute.xlu0 0
    %4018 = vperm.xlu0 %4017, %v322
    %v4019 = vpop.permute.xlu0 %4018
    %4020 = vset.pattern.permute.xlu0 0
    %4021 = vperm.xlu0 %4020, %v323
    %v4022 = vpop.permute.xlu0 %4021
    %4023 = vset.pattern.permute.xlu0 0
    %4024 = vperm.xlu0 %4023, %v324
    %v4025 = vpop.permute.xlu0 %4024
    %4026 = vset.pattern.permute.xlu0 0
    %4027 = vperm.xlu0 %4026, %v325
    %v4028 = vpop.permute.xlu0 %4027
    %4029 = vset.pattern.permute.xlu0 0
    %4030 = vperm.xlu0 %4029, %v326
    %v4031 = vpop.permute.xlu0 %4030
    %4032 = vset.pattern.permute.xlu0 0
    %4033 = vperm.xlu0 %4032, %v327
    %v4034 = vpop.permute.xlu0 %4033
    %4035 = vset.pattern.permute.xlu0 0
    %4036 = vperm.xlu0 %4035, %v328
    %v4037 = vpop.permute.xlu0 %4036
    %4038 = vset.pattern.permute.xlu0 0
    %4039 = vperm.xlu0 %4038, %v329
    %v4040 = vpop.permute.xlu0 %4039
    %4041 = vset.pattern.permute.xlu0 0
    %4042 = vperm.xlu0 %4041, %v330
    %v4043 = vpop.permute.xlu0 %4042
    %4044 = vset.pattern.permute.xlu0 0
    %4045 = vperm.xlu0 %4044, %v331
    %v4046 = vpop.permute.xlu0 %4045
    %4047 = vset.pattern.permute.xlu0 0
    %4048 = vperm.xlu0 %4047, %v332
    %v4049 = vpop.permute.xlu0 %4048
    %4050 = vset.pattern.permute.xlu0 0
    %4051 = vperm.xlu0 %4050, %v333
    %v4052 = vpop.permute.xlu0 %4051
    %4053 = vset.pattern.permute.xlu0 0
    %4054 = vperm.xlu0 %4053, %v334
    %v4055 = vpop.permute.xlu0 %4054
    %4056 = vset.pattern.permute.xlu0 0
    %4057 = vperm.xlu0 %4056, %v335
    %v4058 = vpop.permute.xlu0 %4057
    %4059 = vset.pattern.permute.xlu0 0
    %4060 = vperm.xlu0 %4059, %v336
    %v4061 = vpop.permute.xlu0 %4060
    %4062 = vset.pattern.permute.xlu0 0
    %4063 = vperm.xlu0 %4062, %v337
    %v4064 = vpop.permute.xlu0 %4063
    %4065 = vset.pattern.permute.xlu0 0
    %4066 = vperm.xlu0 %4065, %v338
    %v4067 = vpop.permute.xlu0 %4066
    %4068 = vset.pattern.permute.xlu0 0
    %4069 = vperm.xlu0 %4068, %v339
    %v4070 = vpop.permute.xlu0 %4069
    %4071 = vset.pattern.permute.xlu0 0
    %4072 = vperm.xlu0 %4071, %v340
    %v4073 = vpop.permute.xlu0 %4072
    %4074 = vset.pattern.permute.xlu0 0
    %4075 = vperm.xlu0 %4074, %v341
    %v4076 = vpop.permute.xlu0 %4075
    %4077 = vset.pattern.permute.xlu0 0
    %4078 = vperm.xlu0 %4077, %v342
    %v4079 = vpop.permute.xlu0 %4078
    %4080 = vset.pattern.permute.xlu0 0
    %4081 = vperm.xlu0 %4080, %v343
    %v4082 = vpop.permute.xlu0 %4081
    %4083 = vset.pattern.permute.xlu0 0
    %4084 = vperm.xlu0 %4083, %v344
    %v4085 = vpop.permute.xlu0 %4084
    %4086 = vset.pattern.permute.xlu0 0
    %4087 = vperm.xlu0 %4086, %v345
    %v4088 = vpop.permute.xlu0 %4087
    %4089 = vset.pattern.permute.xlu0 0
    %4090 = vperm.xlu0 %4089, %v346
    %v4091 = vpop.permute.xlu0 %4090
    %4092 = vset.pattern.permute.xlu0 0
    %4093 = vperm.xlu0 %4092, %v347
    %v4094 = vpop.permute.xlu0 %4093
    %4095 = vset.pattern.permute.xlu0 0
    %4096 = vperm.xlu0 %4095, %v348
    %v4097 = vpop.permute.xlu0 %4096
    %4098 = vset.pattern.permute.xlu0 0
    %4099 = vperm.xlu0 %4098, %v349
    %v4100 = vpop.permute.xlu0 %4099
    %4101 = vset.pattern.permute.xlu0 0
    %4102 = vperm.xlu0 %4101, %v350
    %v4103 = vpop.permute.xlu0 %4102
    %4104 = vset.pattern.permute.xlu0 0
    %4105 = vperm.xlu0 %4104, %v351
    %v4106 = vpop.permute.xlu0 %4105
    %4107 = vset.pattern.permute.xlu0 0
    %4108 = vperm.xlu0 %4107, %v352
    %v4109 = vpop.permute.xlu0 %4108
    %4110 = vset.pattern.permute.xlu0 0
    %4111 = vperm.xlu0 %4110, %v353
    %v4112 = vpop.permute.xlu0 %4111
    %4113 = vset.pattern.permute.xlu0 0
    %4114 = vperm.xlu0 %4113, %v354
    %v4115 = vpop.permute.xlu0 %4114
    %4116 = vset.pattern.permute.xlu0 0
    %4117 = vperm.xlu0 %4116, %v355
    %v4118 = vpop.permute.xlu0 %4117
    %4119 = vset.pattern.permute.xlu0 0
    %4120 = vperm.xlu0 %4119, %v356
    %v4121 = vpop.permute.xlu0 %4120
    %4122 = vset.pattern.permute.xlu0 0
    %4123 = vperm.xlu0 %4122, %v357
    %v4124 = vpop.permute.xlu0 %4123
    %4125 = vset.pattern.permute.xlu0 0
    %4126 = vperm.xlu0 %4125, %v358
    %v4127 = vpop.permute.xlu0 %4126
    %4128 = vset.pattern.permute.xlu0 0
    %4129 = vperm.xlu0 %4128, %v359
    %v4130 = vpop.permute.xlu0 %4129
    %4131 = vset.pattern.permute.xlu0 0
    %4132 = vperm.xlu0 %4131, %v360
    %v4133 = vpop.permute.xlu0 %4132
    %4134 = vset.pattern.permute.xlu0 0
    %4135 = vperm.xlu0 %4134, %v361
    %v4136 = vpop.permute.xlu0 %4135
    %4137 = vset.pattern.permute.xlu0 0
    %4138 = vperm.xlu0 %4137, %v362
    %v4139 = vpop.permute.xlu0 %4138
    %4140 = vset.pattern.permute.xlu0 0
    %4141 = vperm.xlu0 %4140, %v363
    %v4142 = vpop.permute.xlu0 %4141
    %4143 = vset.pattern.permute.xlu0 0
    %4144 = vperm.xlu0 %4143, %v364
    %v4145 = vpop.permute.xlu0 %4144
    %4146 = vset.pattern.permute.xlu0 0
    %4147 = vperm.xlu0 %4146, %v365
    %v4148 = vpop.permute.xlu0 %4147
    %4149 = vset.pattern.permute.xlu0 0
    %4150 = vperm.xlu0 %4149, %v366
    %v4151 = vpop.permute.xlu0 %4150
    %4152 = vset.pattern.permute.xlu0 0
    %4153 = vperm.xlu0 %4152, %v367
    %v4154 = vpop.permute.xlu0 %4153
    %4155 = vset.pattern.permute.xlu0 0
    %4156 = vperm.xlu0 %4155, %v368
    %v4157 = vpop.permute.xlu0 %4156
    %4158 = vset.pattern.permute.xlu0 0
    %4159 = vperm.xlu0 %4158, %v369
    %v4160 = vpop.permute.xlu0 %4159
    %4161 = vset.pattern.permute.xlu0 0
    %4162 = vperm.xlu0 %4161, %v370
    %v4163 = vpop.permute.xlu0 %4162
    %4164 = vset.pattern.permute.xlu0 0
    %4165 = vperm.xlu0 %4164, %v371
    %v4166 = vpop.permute.xlu0 %4165
    %4167 = vset.pattern.permute.xlu0 0
    %4168 = vperm.xlu0 %4167, %v372
    %v4169 = vpop.permute.xlu0 %4168
    %4170 = vset.pattern.permute.xlu0 0
    %4171 = vperm.xlu0 %4170, %v373
    %v4172 = vpop.permute.xlu0 %4171
    %4173 = vset.pattern.permute.xlu0 0
    %4174 = vperm.xlu0 %4173, %v374
    %v4175 = vpop.permute.xlu0 %4174
    %4176 = vset.pattern.permute.xlu0 0
    %4177 = vperm.xlu0 %4176, %v375
    %v4178 = vpop.permute.xlu0 %4177
    %4179 = vset.pattern.permute.xlu0 0
    %4180 = vperm.xlu0 %4179, %v376
    %v4181 = vpop.permute.xlu0 %4180
    %4182 = vset.pattern.permute.xlu0 0
    %4183 = vperm.xlu0 %4182, %v377
    %v4184 = vpop.permute.xlu0 %4183
    %4185 = vset.pattern.permute.xlu0 0
    %4186 = vperm.xlu0 %4185, %v378
    %v4187 = vpop.permute.xlu0 %4186
    %4188 = vset.pattern.permute.xlu0 0
    %4189 = vperm.xlu0 %4188, %v379
    %v4190 = vpop.permute.xlu0 %4189
    %4191 = vset.pattern.permute.xlu0 0
    %4192 = vperm.xlu0 %4191, %v380
    %v4193 = vpop.permute.xlu0 %4192
    %4194 = vset.pattern.permute.xlu0 0
    %4195 = vperm.xlu0 %4194, %v381
    %v4196 = vpop.permute.xlu0 %4195
    %4197 = vset.pattern.permute.xlu0 0
    %4198 = vperm.xlu0 %4197, %v382
    %v4199 = vpop.permute.xlu0 %4198
    %4200 = vset.pattern.permute.xlu0 0
    %4201 = vperm.xlu0 %4200, %v383
    %v4202 = vpop.permute.xlu0 %4201
    %4203 = vset.pattern.permute.xlu0 0
    %4204 = vperm.xlu0 %4203, %v384
    %v4205 = vpop.permute.xlu0 %4204
    %4206 = vset.pattern.permute.xlu0 0
    %4207 = vperm.xlu0 %4206, %v385
    %v4208 = vpop.permute.xlu0 %4207
    %4209 = vset.pattern.permute.xlu0 0
    %4210 = vperm.xlu0 %4209, %v386
    %v4211 = vpop.permute.xlu0 %4210
    %4212 = vset.pattern.permute.xlu0 0
    %4213 = vperm.xlu0 %4212, %v387
    %v4214 = vpop.permute.xlu0 %4213
    %4215 = vset.pattern.permute.xlu0 0
    %4216 = vperm.xlu0 %4215, %v388
    %v4217 = vpop.permute.xlu0 %4216
    %4218 = vset.pattern.permute.xlu0 0
    %4219 = vperm.xlu0 %4218, %v389
    %v4220 = vpop.permute.xlu0 %4219
    %4221 = vset.pattern.permute.xlu0 0
    %4222 = vperm.xlu0 %4221, %v390
    %v4223 = vpop.permute.xlu0 %4222
    %4224 = vset.pattern.permute.xlu0 0
    %4225 = vperm.xlu0 %4224, %v391
    %v4226 = vpop.permute.xlu0 %4225
    %4227 = vset.pattern.permute.xlu0 0
    %4228 = vperm.xlu0 %4227, %v392
    %v4229 = vpop.permute.xlu0 %4228
    %4230 = vset.pattern.permute.xlu0 0
    %4231 = vperm.xlu0 %4230, %v393
    %v4232 = vpop.permute.xlu0 %4231
    %4233 = vset.pattern.permute.xlu0 0
    %4234 = vperm.xlu0 %4233, %v394
    %v4235 = vpop.permute.xlu0 %4234
    %4236 = vset.pattern.permute.xlu0 0
    %4237 = vperm.xlu0 %4236, %v395
    %v4238 = vpop.permute.xlu0 %4237
    %4239 = vset.pattern.permute.xlu0 0
    %4240 = vperm.xlu0 %4239, %v396
    %v4241 = vpop.permute.xlu0 %4240
    %4242 = vset.pattern.permute.xlu0 0
    %4243 = vperm.xlu0 %4242, %v397
    %v4244 = vpop.permute.xlu0 %4243
    %4245 = vset.pattern.permute.xlu0 0
    %4246 = vperm.xlu0 %4245, %v398
    %v4247 = vpop.permute.xlu0 %4246
    %4248 = vset.pattern.permute.xlu0 0
    %4249 = vperm.xlu0 %4248, %v399
    %v4250 = vpop.permute.xlu0 %4249
    %4251 = vset.pattern.permute.xlu0 0
    %4252 = vperm.xlu0 %4251, %v400
    %v4253 = vpop.permute.xlu0 %4252
    %4254 = vset.pattern.permute.xlu0 0
    %4255 = vperm.xlu0 %4254, %v401
    %v4256 = vpop.permute.xlu0 %4255
    %4257 = vset.pattern.permute.xlu0 0
    %4258 = vperm.xlu0 %4257, %v402
    %v4259 = vpop.permute.xlu0 %4258
    %4260 = vset.pattern.permute.xlu0 0
    %4261 = vperm.xlu0 %4260, %v403
    %v4262 = vpop.permute.xlu0 %4261
    %4263 = vset.pattern.permute.xlu0 0
    %4264 = vperm.xlu0 %4263, %v404
    %v4265 = vpop.permute.xlu0 %4264
    %4266 = vset.pattern.permute.xlu0 0
    %4267 = vperm.xlu0 %4266, %v405
    %v4268 = vpop.permute.xlu0 %4267
    %4269 = vset.pattern.permute.xlu0 0
    %4270 = vperm.xlu0 %4269, %v406
    %v4271 = vpop.permute.xlu0 %4270
    %4272 = vset.pattern.permute.xlu0 0
    %4273 = vperm.xlu0 %4272, %v407
    %v4274 = vpop.permute.xlu0 %4273
    %4275 = vset.pattern.permute.xlu0 0
    %4276 = vperm.xlu0 %4275, %v408
    %v4277 = vpop.permute.xlu0 %4276
    %4278 = vset.pattern.permute.xlu0 0
    %4279 = vperm.xlu0 %4278, %v409
    %v4280 = vpop.permute.xlu0 %4279
    %4281 = vset.pattern.permute.xlu0 0
    %4282 = vperm.xlu0 %4281, %v410
    %v4283 = vpop.permute.xlu0 %4282
    %4284 = vset.pattern.permute.xlu0 0
    %4285 = vperm.xlu0 %4284, %v411
    %v4286 = vpop.permute.xlu0 %4285
    %4287 = vset.pattern.permute.xlu0 0
    %4288 = vperm.xlu0 %4287, %v412
    %v4289 = vpop.permute.xlu0 %4288
    %4290 = vset.pattern.permute.xlu0 0
    %4291 = vperm.xlu0 %4290, %v413
    %v4292 = vpop.permute.xlu0 %4291
    %4293 = vset.pattern.permute.xlu0 0
    %4294 = vperm.xlu0 %4293, %v414
    %v4295 = vpop.permute.xlu0 %4294
    %4296 = vset.pattern.permute.xlu0 0
    %4297 = vperm.xlu0 %4296, %v415
    %v4298 = vpop.permute.xlu0 %4297
    %4299 = vset.pattern.permute.xlu0 0
    %4300 = vperm.xlu0 %4299, %v416
    %v4301 = vpop.permute.xlu0 %4300
    %4302 = vset.pattern.permute.xlu0 0
    %4303 = vperm.xlu0 %4302, %v417
    %v4304 = vpop.permute.xlu0 %4303
    %4305 = vset.pattern.permute.xlu0 0
    %4306 = vperm.xlu0 %4305, %v418
    %v4307 = vpop.permute.xlu0 %4306
    %4308 = vset.pattern.permute.xlu0 0
    %4309 = vperm.xlu0 %4308, %v419
    %v4310 = vpop.permute.xlu0 %4309
    %4311 = vset.pattern.permute.xlu0 0
    %4312 = vperm.xlu0 %4311, %v420
    %v4313 = vpop.permute.xlu0 %4312
    %4314 = vset.pattern.permute.xlu0 0
    %4315 = vperm.xlu0 %4314, %v421
    %v4316 = vpop.permute.xlu0 %4315
    %4317 = vset.pattern.permute.xlu0 0
    %4318 = vperm.xlu0 %4317, %v422
    %v4319 = vpop.permute.xlu0 %4318
    %4320 = vset.pattern.permute.xlu0 0
    %4321 = vperm.xlu0 %4320, %v423
    %v4322 = vpop.permute.xlu0 %4321
    %4323 = vset.pattern.permute.xlu0 0
    %4324 = vperm.xlu0 %4323, %v424
    %v4325 = vpop.permute.xlu0 %4324
    %4326 = vset.pattern.permute.xlu0 0
    %4327 = vperm.xlu0 %4326, %v425
    %v4328 = vpop.permute.xlu0 %4327
    %4329 = vset.pattern.permute.xlu0 0
    %4330 = vperm.xlu0 %4329, %v426
    %v4331 = vpop.permute.xlu0 %4330
    %4332 = vset.pattern.permute.xlu0 0
    %4333 = vperm.xlu0 %4332, %v427
    %v4334 = vpop.permute.xlu0 %4333
    %4335 = vset.pattern.permute.xlu0 0
    %4336 = vperm.xlu0 %4335, %v428
    %v4337 = vpop.permute.xlu0 %4336
    %4338 = vset.pattern.permute.xlu0 0
    %4339 = vperm.xlu0 %4338, %v429
    %v4340 = vpop.permute.xlu0 %4339
    %4341 = vset.pattern.permute.xlu0 0
    %4342 = vperm.xlu0 %4341, %v430
    %v4343 = vpop.permute.xlu0 %4342
    %4344 = vset.pattern.permute.xlu0 0
    %4345 = vperm.xlu0 %4344, %v431
    %v4346 = vpop.permute.xlu0 %4345
    %4347 = vset.pattern.permute.xlu0 0
    %4348 = vperm.xlu0 %4347, %v432
    %v4349 = vpop.permute.xlu0 %4348
    %4350 = vset.pattern.permute.xlu0 0
    %4351 = vperm.xlu0 %4350, %v433
    %v4352 = vpop.permute.xlu0 %4351
    %4353 = vset.pattern.permute.xlu0 0
    %4354 = vperm.xlu0 %4353, %v434
    %v4355 = vpop.permute.xlu0 %4354
    %4356 = vset.pattern.permute.xlu0 0
    %4357 = vperm.xlu0 %4356, %v435
    %v4358 = vpop.permute.xlu0 %4357
    %4359 = vset.pattern.permute.xlu0 0
    %4360 = vperm.xlu0 %4359, %v436
    %v4361 = vpop.permute.xlu0 %4360
    %4362 = vset.pattern.permute.xlu0 0
    %4363 = vperm.xlu0 %4362, %v437
    %v4364 = vpop.permute.xlu0 %4363
    %4365 = vset.pattern.permute.xlu0 0
    %4366 = vperm.xlu0 %4365, %v438
    %v4367 = vpop.permute.xlu0 %4366
    %4368 = vset.pattern.permute.xlu0 0
    %4369 = vperm.xlu0 %4368, %v439
    %v4370 = vpop.permute.xlu0 %4369
    %4371 = vset.pattern.permute.xlu0 0
    %4372 = vperm.xlu0 %4371, %v440
    %v4373 = vpop.permute.xlu0 %4372
    %4374 = vset.pattern.permute.xlu0 0
    %4375 = vperm.xlu0 %4374, %v441
    %v4376 = vpop.permute.xlu0 %4375
    %4377 = vset.pattern.permute.xlu0 0
    %4378 = vperm.xlu0 %4377, %v442
    %v4379 = vpop.permute.xlu0 %4378
    %4380 = vset.pattern.permute.xlu0 0
    %4381 = vperm.xlu0 %4380, %v443
    %v4382 = vpop.permute.xlu0 %4381
    %4383 = vset.pattern.permute.xlu0 0
    %4384 = vperm.xlu0 %4383, %v444
    %v4385 = vpop.permute.xlu0 %4384
    %4386 = vset.pattern.permute.xlu0 0
    %4387 = vperm.xlu0 %4386, %v445
    %v4388 = vpop.permute.xlu0 %4387
    %4389 = vset.pattern.permute.xlu0 0
    %4390 = vperm.xlu0 %4389, %v446
    %v4391 = vpop.permute.xlu0 %4390
    %4392 = vset.pattern.permute.xlu0 0
    %4393 = vperm.xlu0 %4392, %v447
    %v4394 = vpop.permute.xlu0 %4393
    %4395 = vset.pattern.permute.xlu0 0
    %4396 = vperm.xlu0 %4395, %v448
    %v4397 = vpop.permute.xlu0 %4396
    %4398 = vset.pattern.permute.xlu0 0
    %4399 = vperm.xlu0 %4398, %v449
    %v4400 = vpop.permute.xlu0 %4399
    %4401 = vset.pattern.permute.xlu0 0
    %4402 = vperm.xlu0 %4401, %v450
    %v4403 = vpop.permute.xlu0 %4402
    %4404 = vset.pattern.permute.xlu0 0
    %4405 = vperm.xlu0 %4404, %v451
    %v4406 = vpop.permute.xlu0 %4405
    %4407 = vset.pattern.permute.xlu0 0
    %4408 = vperm.xlu0 %4407, %v452
    %v4409 = vpop.permute.xlu0 %4408
    %4410 = vset.pattern.permute.xlu0 0
    %4411 = vperm.xlu0 %4410, %v453
    %v4412 = vpop.permute.xlu0 %4411
    %4413 = vset.pattern.permute.xlu0 0
    %4414 = vperm.xlu0 %4413, %v454
    %v4415 = vpop.permute.xlu0 %4414
    %4416 = vset.pattern.permute.xlu0 0
    %4417 = vperm.xlu0 %4416, %v455
    %v4418 = vpop.permute.xlu0 %4417
    %4419 = vset.pattern.permute.xlu0 0
    %4420 = vperm.xlu0 %4419, %v456
    %v4421 = vpop.permute.xlu0 %4420
    %4422 = vset.pattern.permute.xlu0 0
    %4423 = vperm.xlu0 %4422, %v457
    %v4424 = vpop.permute.xlu0 %4423
    %4425 = vset.pattern.permute.xlu0 0
    %4426 = vperm.xlu0 %4425, %v458
    %v4427 = vpop.permute.xlu0 %4426
    %4428 = vset.pattern.permute.xlu0 0
    %4429 = vperm.xlu0 %4428, %v459
    %v4430 = vpop.permute.xlu0 %4429
    %4431 = vset.pattern.permute.xlu0 0
    %4432 = vperm.xlu0 %4431, %v460
    %v4433 = vpop.permute.xlu0 %4432
    %4434 = vset.pattern.permute.xlu0 0
    %4435 = vperm.xlu0 %4434, %v461
    %v4436 = vpop.permute.xlu0 %4435
    %4437 = vset.pattern.permute.xlu0 0
    %4438 = vperm.xlu0 %4437, %v462
    %v4439 = vpop.permute.xlu0 %4438
    %4440 = vset.pattern.permute.xlu0 0
    %4441 = vperm.xlu0 %4440, %v463
    %v4442 = vpop.permute.xlu0 %4441
    %4443 = vset.pattern.permute.xlu0 0
    %4444 = vperm.xlu0 %4443, %v464
    %v4445 = vpop.permute.xlu0 %4444
    %4446 = vset.pattern.permute.xlu0 0
    %4447 = vperm.xlu0 %4446, %v465
    %v4448 = vpop.permute.xlu0 %4447
    %4449 = vset.pattern.permute.xlu0 0
    %4450 = vperm.xlu0 %4449, %v466
    %v4451 = vpop.permute.xlu0 %4450
    %4452 = vset.pattern.permute.xlu0 0
    %4453 = vperm.xlu0 %4452, %v467
    %v4454 = vpop.permute.xlu0 %4453
    %4455 = vset.pattern.permute.xlu0 0
    %4456 = vperm.xlu0 %4455, %v468
    %v4457 = vpop.permute.xlu0 %4456
    %4458 = vset.pattern.permute.xlu0 0
    %4459 = vperm.xlu0 %4458, %v469
    %v4460 = vpop.permute.xlu0 %4459
    %4461 = vset.pattern.permute.xlu0 0
    %4462 = vperm.xlu0 %4461, %v470
    %v4463 = vpop.permute.xlu0 %4462
    %4464 = vset.pattern.permute.xlu0 0
    %4465 = vperm.xlu0 %4464, %v471
    %v4466 = vpop.permute.xlu0 %4465
    %4467 = vset.pattern.permute.xlu0 0
    %4468 = vperm.xlu0 %4467, %v472
    %v4469 = vpop.permute.xlu0 %4468
    %4470 = vset.pattern.permute.xlu0 0
    %4471 = vperm.xlu0 %4470, %v473
    %v4472 = vpop.permute.xlu0 %4471
    %4473 = vset.pattern.permute.xlu0 0
    %4474 = vperm.xlu0 %4473, %v474
    %v4475 = vpop.permute.xlu0 %4474
    %4476 = vset.pattern.permute.xlu0 0
    %4477 = vperm.xlu0 %4476, %v475
    %v4478 = vpop.permute.xlu0 %4477
    %4479 = vset.pattern.permute.xlu0 0
    %4480 = vperm.xlu0 %4479, %v476
    %v4481 = vpop.permute.xlu0 %4480
    %4482 = vset.pattern.permute.xlu0 0
    %4483 = vperm.xlu0 %4482, %v477
    %v4484 = vpop.permute.xlu0 %4483
    %4485 = vset.pattern.permute.xlu0 0
    %4486 = vperm.xlu0 %4485, %v478
    %v4487 = vpop.permute.xlu0 %4486
    %4488 = vset.pattern.permute.xlu0 0
    %4489 = vperm.xlu0 %4488, %v479
    %v4490 = vpop.permute.xlu0 %4489
    %4491 = vset.pattern.permute.xlu0 0
    %4492 = vperm.xlu0 %4491, %v480
    %v4493 = vpop.permute.xlu0 %4492
    %4494 = vset.pattern.permute.xlu0 0
    %4495 = vperm.xlu0 %4494, %v481
    %v4496 = vpop.permute.xlu0 %4495
    %4497 = vset.pattern.permute.xlu0 0
    %4498 = vperm.xlu0 %4497, %v482
    %v4499 = vpop.permute.xlu0 %4498
    %4500 = vset.pattern.permute.xlu0 0
    %4501 = vperm.xlu0 %4500, %v483
    %v4502 = vpop.permute.xlu0 %4501
    %4503 = vset.pattern.permute.xlu0 0
    %4504 = vperm.xlu0 %4503, %v484
    %v4505 = vpop.permute.xlu0 %4504
    %4506 = vset.pattern.permute.xlu0 0
    %4507 = vperm.xlu0 %4506, %v485
    %v4508 = vpop.permute.xlu0 %4507
    %4509 = vset.pattern.permute.xlu0 0
    %4510 = vperm.xlu0 %4509, %v486
    %v4511 = vpop.permute.xlu0 %4510
    %4512 = vset.pattern.permute.xlu0 0
    %4513 = vperm.xlu0 %4512, %v487
    %v4514 = vpop.permute.xlu0 %4513
    %4515 = vset.pattern.permute.xlu0 0
    %4516 = vperm.xlu0 %4515, %v488
    %v4517 = vpop.permute.xlu0 %4516
    %4518 = vset.pattern.permute.xlu0 0
    %4519 = vperm.xlu0 %4518, %v489
    %v4520 = vpop.permute.xlu0 %4519
    %4521 = vset.pattern.permute.xlu0 0
    %4522 = vperm.xlu0 %4521, %v490
    %v4523 = vpop.permute.xlu0 %4522
    %4524 = vset.pattern.permute.xlu0 0
    %4525 = vperm.xlu0 %4524, %v491
    %v4526 = vpop.permute.xlu0 %4525
    %4527 = vset.pattern.permute.xlu0 0
    %4528 = vperm.xlu0 %4527, %v492
    %v4529 = vpop.permute.xlu0 %4528
    %4530 = vset.pattern.permute.xlu0 0
    %4531 = vperm.xlu0 %4530, %v493
    %v4532 = vpop.permute.xlu0 %4531
    %4533 = vset.pattern.permute.xlu0 0
    %4534 = vperm.xlu0 %4533, %v494
    %v4535 = vpop.permute.xlu0 %4534
    %4536 = vset.pattern.permute.xlu0 0
    %4537 = vperm.xlu0 %4536, %v495
    %v4538 = vpop.permute.xlu0 %4537
    %4539 = vset.pattern.permute.xlu0 0
    %4540 = vperm.xlu0 %4539, %v496
    %v4541 = vpop.permute.xlu0 %4540
    %4542 = vset.pattern.permute.xlu0 0
    %4543 = vperm.xlu0 %4542, %v497
    %v4544 = vpop.permute.xlu0 %4543
    %4545 = vset.pattern.permute.xlu0 0
    %4546 = vperm.xlu0 %4545, %v498
    %v4547 = vpop.permute.xlu0 %4546
    %4548 = vset.pattern.permute.xlu0 0
    %4549 = vperm.xlu0 %4548, %v499
    %v4550 = vpop.permute.xlu0 %4549
    %4551 = vset.pattern.permute.xlu0 0
    %4552 = vperm.xlu0 %4551, %v500
    %v4553 = vpop.permute.xlu0 %4552
    %4554 = vset.pattern.permute.xlu0 0
    %4555 = vperm.xlu0 %4554, %v501
    %v4556 = vpop.permute.xlu0 %4555
    %4557 = vset.pattern.permute.xlu0 0
    %4558 = vperm.xlu0 %4557, %v502
    %v4559 = vpop.permute.xlu0 %4558
    %4560 = vset.pattern.permute.xlu0 0
    %4561 = vperm.xlu0 %4560, %v503
    %v4562 = vpop.permute.xlu0 %4561
    %4563 = vset.pattern.permute.xlu0 0
    %4564 = vperm.xlu0 %4563, %v504
    %v4565 = vpop.permute.xlu0 %4564
    %4566 = vset.pattern.permute.xlu0 0
    %4567 = vperm.xlu0 %4566, %v505
    %v4568 = vpop.permute.xlu0 %4567
    %4569 = vset.pattern.permute.xlu0 0
    %4570 = vperm.xlu0 %4569, %v506
    %v4571 = vpop.permute.xlu0 %4570
    %4572 = vset.pattern.permute.xlu0 0
    %4573 = vperm.xlu0 %4572, %v507
    %v4574 = vpop.permute.xlu0 %4573
    %4575 = vset.pattern.permute.xlu0 0
    %4576 = vperm.xlu0 %4575, %v508
    %v4577 = vpop.permute.xlu0 %4576
    %4578 = vset.pattern.permute.xlu0 0
    %4579 = vperm.xlu0 %4578, %v509
    %v4580 = vpop.permute.xlu0 %4579
    %4581 = vset.pattern.permute.xlu0 0
    %4582 = vperm.xlu0 %4581, %v510
    %v4583 = vpop.permute.xlu0 %4582
    %4584 = vset.pattern.permute.xlu0 0
    %4585 = vperm.xlu0 %4584, %v511
    %v4586 = vpop.permute.xlu0 %4585
    %4587 = vset.pattern.permute.xlu0 0
    %4588 = vperm.xlu0 %4587, %v512
    %v4589 = vpop.permute.xlu0 %4588
    %4590 = vset.pattern.permute.xlu0 0
    %4591 = vperm.xlu0 %4590, %v513
    %v4592 = vpop.permute.xlu0 %4591
    %4593 = vset.pattern.permute.xlu0 0
    %4594 = vperm.xlu0 %4593, %v514
    %v4595 = vpop.permute.xlu0 %4594
    %4596 = vset.pattern.permute.xlu0 0
    %4597 = vperm.xlu0 %4596, %v515
    %v4598 = vpop.permute.xlu0 %4597
    %4599 = vset.pattern.permute.xlu0 0
    %4600 = vperm.xlu0 %4599, %v516
    %v4601 = vpop.permute.xlu0 %4600
    %4602 = vset.pattern.permute.xlu0 0
    %4603 = vperm.xlu0 %4602, %v517
    %v4604 = vpop.permute.xlu0 %4603
    %4605 = vset.pattern.permute.xlu0 0
    %4606 = vperm.xlu0 %4605, %v518
    %v4607 = vpop.permute.xlu0 %4606
    %4608 = vset.pattern.permute.xlu0 0
    %4609 = vperm.xlu0 %4608, %v519
    %v4610 = vpop.permute.xlu0 %4609
    %4611 = vset.pattern.permute.xlu0 0
    %4612 = vperm.xlu0 %4611, %v520
    %v4613 = vpop.permute.xlu0 %4612
    %4614 = vset.pattern.permute.xlu0 0
    %4615 = vperm.xlu0 %4614, %v521
    %v4616 = vpop.permute.xlu0 %4615
    %4617 = vset.pattern.permute.xlu0 0
    %4618 = vperm.xlu0 %4617, %v522
    %v4619 = vpop.permute.xlu0 %4618
    %4620 = vset.pattern.permute.xlu0 0
    %4621 = vperm.xlu0 %4620, %v523
    %v4622 = vpop.permute.xlu0 %4621
    %vm4623 = vcmp.eq.s32.totalorder %v3854, %v3857
    %vm4624 = vcmp.eq.s32.totalorder %v3854, %v3860
    %vm4625 = vcmp.eq.s32.totalorder %v3854, %v3863
    %vm4626 = vcmp.eq.s32.totalorder %v3854, %v3866
    %vm4627 = vcmp.eq.s32.totalorder %v3854, %v3869
    %vm4628 = vcmp.eq.s32.totalorder %v3854, %v3872
    %vm4629 = vcmp.eq.s32.totalorder %v3854, %v3875
    %vm4630 = vcmp.eq.s32.totalorder %v3854, %v3878
    %vm4631 = vcmp.eq.s32.totalorder %v3854, %v3881
    %vm4632 = vcmp.eq.s32.totalorder %v3854, %v3884
    %vm4633 = vcmp.eq.s32.totalorder %v3854, %v3887
    %vm4634 = vcmp.eq.s32.totalorder %v3854, %v3890
    %vm4635 = vcmp.eq.s32.totalorder %v3854, %v3893
    %vm4636 = vcmp.eq.s32.totalorder %v3854, %v3896
    %vm4637 = vcmp.eq.s32.totalorder %v3854, %v3899
    %vm4638 = vcmp.eq.s32.totalorder %v3854, %v3902
    %vm4639 = vcmp.eq.s32.totalorder %v3854, %v3905
    %vm4640 = vcmp.eq.s32.totalorder %v3854, %v3908
    %vm4641 = vcmp.eq.s32.totalorder %v3854, %v3911
    %vm4642 = vcmp.eq.s32.totalorder %v3854, %v3914
    %vm4643 = vcmp.eq.s32.totalorder %v3854, %v3917
    %vm4644 = vcmp.eq.s32.totalorder %v3854, %v3920
    %vm4645 = vcmp.eq.s32.totalorder %v3854, %v3923
    %vm4646 = vcmp.eq.s32.totalorder %v3854, %v3926
    %vm4647 = vcmp.eq.s32.totalorder %v3854, %v3929
    %vm4648 = vcmp.eq.s32.totalorder %v3854, %v3932
    %vm4649 = vcmp.eq.s32.totalorder %v3854, %v3935
    %vm4650 = vcmp.eq.s32.totalorder %v3854, %v3938
    %vm4651 = vcmp.eq.s32.totalorder %v3854, %v3941
    %vm4652 = vcmp.eq.s32.totalorder %v3854, %v3944
    %vm4653 = vcmp.eq.s32.totalorder %v3854, %v3947
    %vm4654 = vcmp.eq.s32.totalorder %v3854, %v3950
    %vm4655 = vcmp.eq.s32.totalorder %v3854, %v3953
    %vm4656 = vcmp.eq.s32.totalorder %v3854, %v3956
    %vm4657 = vcmp.eq.s32.totalorder %v3854, %v3959
    %vm4658 = vcmp.eq.s32.totalorder %v3854, %v3962
    %vm4659 = vcmp.eq.s32.totalorder %v3854, %v3965
    %vm4660 = vcmp.eq.s32.totalorder %v3854, %v3968
    %vm4661 = vcmp.eq.s32.totalorder %v3854, %v3971
    %vm4662 = vcmp.eq.s32.totalorder %v3854, %v3974
    %vm4663 = vcmp.eq.s32.totalorder %v3854, %v3977
    %vm4664 = vcmp.eq.s32.totalorder %v3854, %v3980
    %vm4665 = vcmp.eq.s32.totalorder %v3854, %v3983
    %vm4666 = vcmp.eq.s32.totalorder %v3854, %v3986
    %vm4667 = vcmp.eq.s32.totalorder %v3854, %v3989
    %vm4668 = vcmp.eq.s32.totalorder %v3854, %v3992
    %vm4669 = vcmp.eq.s32.totalorder %v3854, %v3995
    %vm4670 = vcmp.eq.s32.totalorder %v3854, %v3998
    %vm4671 = vcmp.eq.s32.totalorder %v3854, %v4001
    %vm4672 = vcmp.eq.s32.totalorder %v3854, %v4004
    %vm4673 = vcmp.eq.s32.totalorder %v3854, %v4007
    %vm4674 = vcmp.eq.s32.totalorder %v3854, %v4010
    %vm4675 = vcmp.eq.s32.totalorder %v3854, %v4013
    %vm4676 = vcmp.eq.s32.totalorder %v3854, %v4016
    %vm4677 = vcmp.eq.s32.totalorder %v3854, %v4019
    %vm4678 = vcmp.eq.s32.totalorder %v3854, %v4022
    %vm4679 = vcmp.eq.s32.totalorder %v3854, %v4025
    %vm4680 = vcmp.eq.s32.totalorder %v3854, %v4028
    %vm4681 = vcmp.eq.s32.totalorder %v3854, %v4031
    %vm4682 = vcmp.eq.s32.totalorder %v3854, %v4034
    %vm4683 = vcmp.eq.s32.totalorder %v3854, %v4037
    %vm4684 = vcmp.eq.s32.totalorder %v3854, %v4040
    %vm4685 = vcmp.eq.s32.totalorder %v3854, %v4043
    %vm4686 = vcmp.eq.s32.totalorder %v3854, %v4046
    %vm4687 = vcmp.eq.s32.totalorder %v3854, %v4049
    %vm4688 = vcmp.eq.s32.totalorder %v3854, %v4052
    %vm4689 = vcmp.eq.s32.totalorder %v3854, %v4055
    %vm4690 = vcmp.eq.s32.totalorder %v3854, %v4058
    %vm4691 = vcmp.eq.s32.totalorder %v3854, %v4061
    %vm4692 = vcmp.eq.s32.totalorder %v3854, %v4064
    %vm4693 = vcmp.eq.s32.totalorder %v3854, %v4067
    %vm4694 = vcmp.eq.s32.totalorder %v3854, %v4070
    %vm4695 = vcmp.eq.s32.totalorder %v3854, %v4073
    %vm4696 = vcmp.eq.s32.totalorder %v3854, %v4076
    %vm4697 = vcmp.eq.s32.totalorder %v3854, %v4079
    %vm4698 = vcmp.eq.s32.totalorder %v3854, %v4082
    %vm4699 = vcmp.eq.s32.totalorder %v3854, %v4085
    %vm4700 = vcmp.eq.s32.totalorder %v3854, %v4088
    %vm4701 = vcmp.eq.s32.totalorder %v3854, %v4091
    %vm4702 = vcmp.eq.s32.totalorder %v3854, %v4094
    %vm4703 = vcmp.eq.s32.totalorder %v3854, %v4097
    %vm4704 = vcmp.eq.s32.totalorder %v3854, %v4100
    %vm4705 = vcmp.eq.s32.totalorder %v3854, %v4103
    %vm4706 = vcmp.eq.s32.totalorder %v3854, %v4106
    %vm4707 = vcmp.eq.s32.totalorder %v3854, %v4109
    %vm4708 = vcmp.eq.s32.totalorder %v3854, %v4112
    %vm4709 = vcmp.eq.s32.totalorder %v3854, %v4115
    %vm4710 = vcmp.eq.s32.totalorder %v3854, %v4118
    %vm4711 = vcmp.eq.s32.totalorder %v3854, %v4121
    %vm4712 = vcmp.eq.s32.totalorder %v3854, %v4124
    %vm4713 = vcmp.eq.s32.totalorder %v3854, %v4127
    %vm4714 = vcmp.eq.s32.totalorder %v3854, %v4130
    %vm4715 = vcmp.eq.s32.totalorder %v3854, %v4133
    %vm4716 = vcmp.eq.s32.totalorder %v3854, %v4136
    %vm4717 = vcmp.eq.s32.totalorder %v3854, %v4139
    %vm4718 = vcmp.eq.s32.totalorder %v3854, %v4142
    %vm4719 = vcmp.eq.s32.totalorder %v3854, %v4145
    %vm4720 = vcmp.eq.s32.totalorder %v3854, %v4148
    %vm4721 = vcmp.eq.s32.totalorder %v3854, %v4151
    %vm4722 = vcmp.eq.s32.totalorder %v3854, %v4154
    %vm4723 = vcmp.eq.s32.totalorder %v3854, %v4157
    %vm4724 = vcmp.eq.s32.totalorder %v3854, %v4160
    %vm4725 = vcmp.eq.s32.totalorder %v3854, %v4163
    %vm4726 = vcmp.eq.s32.totalorder %v3854, %v4166
    %vm4727 = vcmp.eq.s32.totalorder %v3854, %v4169
    %vm4728 = vcmp.eq.s32.totalorder %v3854, %v4172
    %vm4729 = vcmp.eq.s32.totalorder %v3854, %v4175
    %vm4730 = vcmp.eq.s32.totalorder %v3854, %v4178
    %vm4731 = vcmp.eq.s32.totalorder %v3854, %v4181
    %vm4732 = vcmp.eq.s32.totalorder %v3854, %v4184
    %vm4733 = vcmp.eq.s32.totalorder %v3854, %v4187
    %vm4734 = vcmp.eq.s32.totalorder %v3854, %v4190
    %vm4735 = vcmp.eq.s32.totalorder %v3854, %v4193
    %vm4736 = vcmp.eq.s32.totalorder %v3854, %v4196
    %vm4737 = vcmp.eq.s32.totalorder %v3854, %v4199
    %vm4738 = vcmp.eq.s32.totalorder %v3854, %v4202
    %vm4739 = vcmp.eq.s32.totalorder %v3854, %v4205
    %vm4740 = vcmp.eq.s32.totalorder %v3854, %v4208
    %vm4741 = vcmp.eq.s32.totalorder %v3854, %v4211
    %vm4742 = vcmp.eq.s32.totalorder %v3854, %v4214
    %vm4743 = vcmp.eq.s32.totalorder %v3854, %v4217
    %vm4744 = vcmp.eq.s32.totalorder %v3854, %v4220
    %vm4745 = vcmp.eq.s32.totalorder %v3854, %v4223
    %vm4746 = vcmp.eq.s32.totalorder %v3854, %v4226
    %vm4747 = vcmp.eq.s32.totalorder %v3854, %v4229
    %vm4748 = vcmp.eq.s32.totalorder %v3854, %v4232
    %vm4749 = vcmp.eq.s32.totalorder %v3854, %v4235
    %vm4750 = vcmp.eq.s32.totalorder %v3854, %v4238
    %vm4751 = vcmp.eq.s32.totalorder %v3854, %v4241
    %vm4752 = vcmp.eq.s32.totalorder %v3854, %v4244
    %vm4753 = vcmp.eq.s32.totalorder %v3854, %v4247
    %vm4754 = vcmp.eq.s32.totalorder %v3854, %v4250
    %vm4755 = vcmp.eq.s32.totalorder %v3854, %v4253
    %vm4756 = vcmp.eq.s32.totalorder %v3854, %v4256
    %vm4757 = vcmp.eq.s32.totalorder %v3854, %v4259
    %vm4758 = vcmp.eq.s32.totalorder %v3854, %v4262
    %vm4759 = vcmp.eq.s32.totalorder %v3854, %v4265
    %vm4760 = vcmp.eq.s32.totalorder %v3854, %v4268
    %vm4761 = vcmp.eq.s32.totalorder %v3854, %v4271
    %vm4762 = vcmp.eq.s32.totalorder %v3854, %v4274
    %vm4763 = vcmp.eq.s32.totalorder %v3854, %v4277
    %vm4764 = vcmp.eq.s32.totalorder %v3854, %v4280
    %vm4765 = vcmp.eq.s32.totalorder %v3854, %v4283
    %vm4766 = vcmp.eq.s32.totalorder %v3854, %v4286
    %vm4767 = vcmp.eq.s32.totalorder %v3854, %v4289
    %vm4768 = vcmp.eq.s32.totalorder %v3854, %v4292
    %vm4769 = vcmp.eq.s32.totalorder %v3854, %v4295
    %vm4770 = vcmp.eq.s32.totalorder %v3854, %v4298
    %vm4771 = vcmp.eq.s32.totalorder %v3854, %v4301
    %vm4772 = vcmp.eq.s32.totalorder %v3854, %v4304
    %vm4773 = vcmp.eq.s32.totalorder %v3854, %v4307
    %vm4774 = vcmp.eq.s32.totalorder %v3854, %v4310
    %vm4775 = vcmp.eq.s32.totalorder %v3854, %v4313
    %vm4776 = vcmp.eq.s32.totalorder %v3854, %v4316
    %vm4777 = vcmp.eq.s32.totalorder %v3854, %v4319
    %vm4778 = vcmp.eq.s32.totalorder %v3854, %v4322
    %vm4779 = vcmp.eq.s32.totalorder %v3854, %v4325
    %vm4780 = vcmp.eq.s32.totalorder %v3854, %v4328
    %vm4781 = vcmp.eq.s32.totalorder %v3854, %v4331
    %vm4782 = vcmp.eq.s32.totalorder %v3854, %v4334
    %vm4783 = vcmp.eq.s32.totalorder %v3854, %v4337
    %vm4784 = vcmp.eq.s32.totalorder %v3854, %v4340
    %vm4785 = vcmp.eq.s32.totalorder %v3854, %v4343
    %vm4786 = vcmp.eq.s32.totalorder %v3854, %v4346
    %vm4787 = vcmp.eq.s32.totalorder %v3854, %v4349
    %vm4788 = vcmp.eq.s32.totalorder %v3854, %v4352
    %vm4789 = vcmp.eq.s32.totalorder %v3854, %v4355
    %vm4790 = vcmp.eq.s32.totalorder %v3854, %v4358
    %vm4791 = vcmp.eq.s32.totalorder %v3854, %v4361
    %vm4792 = vcmp.eq.s32.totalorder %v3854, %v4364
    %vm4793 = vcmp.eq.s32.totalorder %v3854, %v4367
    %vm4794 = vcmp.eq.s32.totalorder %v3854, %v4370
    %vm4795 = vcmp.eq.s32.totalorder %v3854, %v4373
    %vm4796 = vcmp.eq.s32.totalorder %v3854, %v4376
    %vm4797 = vcmp.eq.s32.totalorder %v3854, %v4379
    %vm4798 = vcmp.eq.s32.totalorder %v3854, %v4382
    %vm4799 = vcmp.eq.s32.totalorder %v3854, %v4385
    %vm4800 = vcmp.eq.s32.totalorder %v3854, %v4388
    %vm4801 = vcmp.eq.s32.totalorder %v3854, %v4391
    %vm4802 = vcmp.eq.s32.totalorder %v3854, %v4394
    %vm4803 = vcmp.eq.s32.totalorder %v3854, %v4397
    %vm4804 = vcmp.eq.s32.totalorder %v3854, %v4400
    %vm4805 = vcmp.eq.s32.totalorder %v3854, %v4403
    %vm4806 = vcmp.eq.s32.totalorder %v3854, %v4406
    %vm4807 = vcmp.eq.s32.totalorder %v3854, %v4409
    %vm4808 = vcmp.eq.s32.totalorder %v3854, %v4412
    %vm4809 = vcmp.eq.s32.totalorder %v3854, %v4415
    %vm4810 = vcmp.eq.s32.totalorder %v3854, %v4418
    %vm4811 = vcmp.eq.s32.totalorder %v3854, %v4421
    %vm4812 = vcmp.eq.s32.totalorder %v3854, %v4424
    %vm4813 = vcmp.eq.s32.totalorder %v3854, %v4427
    %vm4814 = vcmp.eq.s32.totalorder %v3854, %v4430
    %vm4815 = vcmp.eq.s32.totalorder %v3854, %v4433
    %vm4816 = vcmp.eq.s32.totalorder %v3854, %v4436
    %vm4817 = vcmp.eq.s32.totalorder %v3854, %v4439
    %vm4818 = vcmp.eq.s32.totalorder %v3854, %v4442
    %vm4819 = vcmp.eq.s32.totalorder %v3854, %v4445
    %vm4820 = vcmp.eq.s32.totalorder %v3854, %v4448
    %vm4821 = vcmp.eq.s32.totalorder %v3854, %v4451
    %vm4822 = vcmp.eq.s32.totalorder %v3854, %v4454
    %vm4823 = vcmp.eq.s32.totalorder %v3854, %v4457
    %vm4824 = vcmp.eq.s32.totalorder %v3854, %v4460
    %vm4825 = vcmp.eq.s32.totalorder %v3854, %v4463
    %vm4826 = vcmp.eq.s32.totalorder %v3854, %v4466
    %vm4827 = vcmp.eq.s32.totalorder %v3854, %v4469
    %vm4828 = vcmp.eq.s32.totalorder %v3854, %v4472
    %vm4829 = vcmp.eq.s32.totalorder %v3854, %v4475
    %vm4830 = vcmp.eq.s32.totalorder %v3854, %v4478
    %vm4831 = vcmp.eq.s32.totalorder %v3854, %v4481
    %vm4832 = vcmp.eq.s32.totalorder %v3854, %v4484
    %vm4833 = vcmp.eq.s32.totalorder %v3854, %v4487
    %vm4834 = vcmp.eq.s32.totalorder %v3854, %v4490
    %vm4835 = vcmp.eq.s32.totalorder %v3854, %v4493
    %vm4836 = vcmp.eq.s32.totalorder %v3854, %v4496
    %vm4837 = vcmp.eq.s32.totalorder %v3854, %v4499
    %vm4838 = vcmp.eq.s32.totalorder %v3854, %v4502
    %vm4839 = vcmp.eq.s32.totalorder %v3854, %v4505
    %vm4840 = vcmp.eq.s32.totalorder %v3854, %v4508
    %vm4841 = vcmp.eq.s32.totalorder %v3854, %v4511
    %vm4842 = vcmp.eq.s32.totalorder %v3854, %v4514
    %vm4843 = vcmp.eq.s32.totalorder %v3854, %v4517
    %vm4844 = vcmp.eq.s32.totalorder %v3854, %v4520
    %vm4845 = vcmp.eq.s32.totalorder %v3854, %v4523
    %vm4846 = vcmp.eq.s32.totalorder %v3854, %v4526
    %vm4847 = vcmp.eq.s32.totalorder %v3854, %v4529
    %vm4848 = vcmp.eq.s32.totalorder %v3854, %v4532
    %vm4849 = vcmp.eq.s32.totalorder %v3854, %v4535
    %vm4850 = vcmp.eq.s32.totalorder %v3854, %v4538
    %vm4851 = vcmp.eq.s32.totalorder %v3854, %v4541
    %vm4852 = vcmp.eq.s32.totalorder %v3854, %v4544
    %vm4853 = vcmp.eq.s32.totalorder %v3854, %v4547
    %vm4854 = vcmp.eq.s32.totalorder %v3854, %v4550
    %vm4855 = vcmp.eq.s32.totalorder %v3854, %v4553
    %vm4856 = vcmp.eq.s32.totalorder %v3854, %v4556
    %vm4857 = vcmp.eq.s32.totalorder %v3854, %v4559
    %vm4858 = vcmp.eq.s32.totalorder %v3854, %v4562
    %vm4859 = vcmp.eq.s32.totalorder %v3854, %v4565
    %vm4860 = vcmp.eq.s32.totalorder %v3854, %v4568
    %vm4861 = vcmp.eq.s32.totalorder %v3854, %v4571
    %vm4862 = vcmp.eq.s32.totalorder %v3854, %v4574
    %vm4863 = vcmp.eq.s32.totalorder %v3854, %v4577
    %vm4864 = vcmp.eq.s32.totalorder %v3854, %v4580
    %vm4865 = vcmp.eq.s32.totalorder %v3854, %v4583
    %vm4866 = vcmp.eq.s32.totalorder %v3854, %v4586
    %vm4867 = vcmp.eq.s32.totalorder %v3854, %v4589
    %vm4868 = vcmp.eq.s32.totalorder %v3854, %v4592
    %vm4869 = vcmp.eq.s32.totalorder %v3854, %v4595
    %vm4870 = vcmp.eq.s32.totalorder %v3854, %v4598
    %vm4871 = vcmp.eq.s32.totalorder %v3854, %v4601
    %vm4872 = vcmp.eq.s32.totalorder %v3854, %v4604
    %vm4873 = vcmp.eq.s32.totalorder %v3854, %v4607
    %vm4874 = vcmp.eq.s32.totalorder %v3854, %v4610
    %vm4875 = vcmp.eq.s32.totalorder %v3854, %v4613
    %vm4876 = vcmp.eq.s32.totalorder %v3854, %v4616
    %vm4877 = vcmp.eq.s32.totalorder %v3854, %v4619
    %vm4878 = vcmp.eq.s32.totalorder %v3854, %v4622
    %v4879 = vsel %vm4623, %v1293, 0.0
    %v4880 = vsel %vm4624, %v1294, 0.0
    %v4881 = vsel %vm4625, %v1295, 0.0
    %v4882 = vsel %vm4626, %v1296, 0.0
    %v4883 = vsel %vm4627, %v1297, 0.0
    %v4884 = vsel %vm4628, %v1298, 0.0
    %v4885 = vsel %vm4629, %v1299, 0.0
    %v4886 = vsel %vm4630, %v1300, 0.0
    %v4887 = vsel %vm4631, %v1301, 0.0
    %v4888 = vsel %vm4632, %v1302, 0.0
    %v4889 = vsel %vm4633, %v1303, 0.0
    %v4890 = vsel %vm4634, %v1304, 0.0
    %v4891 = vsel %vm4635, %v1305, 0.0
    %v4892 = vsel %vm4636, %v1306, 0.0
    %v4893 = vsel %vm4637, %v1307, 0.0
    %v4894 = vsel %vm4638, %v1308, 0.0
    %v4895 = vsel %vm4639, %v1309, 0.0
    %v4896 = vsel %vm4640, %v1310, 0.0
    %v4897 = vsel %vm4641, %v1311, 0.0
    %v4898 = vsel %vm4642, %v1312, 0.0
    %v4899 = vsel %vm4643, %v1313, 0.0
    %v4900 = vsel %vm4644, %v1314, 0.0
    %v4901 = vsel %vm4645, %v1315, 0.0
    %v4902 = vsel %vm4646, %v1316, 0.0
    %v4903 = vsel %vm4647, %v1317, 0.0
    %v4904 = vsel %vm4648, %v1318, 0.0
    %v4905 = vsel %vm4649, %v1319, 0.0
    %v4906 = vsel %vm4650, %v1320, 0.0
    %v4907 = vsel %vm4651, %v1321, 0.0
    %v4908 = vsel %vm4652, %v1322, 0.0
    %v4909 = vsel %vm4653, %v1323, 0.0
    %v4910 = vsel %vm4654, %v1324, 0.0
    %v4911 = vsel %vm4655, %v1325, 0.0
    %v4912 = vsel %vm4656, %v1326, 0.0
    %v4913 = vsel %vm4657, %v1327, 0.0
    %v4914 = vsel %vm4658, %v1328, 0.0
    %v4915 = vsel %vm4659, %v1329, 0.0
    %v4916 = vsel %vm4660, %v1330, 0.0
    %v4917 = vsel %vm4661, %v1331, 0.0
    %v4918 = vsel %vm4662, %v1332, 0.0
    %v4919 = vsel %vm4663, %v1333, 0.0
    %v4920 = vsel %vm4664, %v1334, 0.0
    %v4921 = vsel %vm4665, %v1335, 0.0
    %v4922 = vsel %vm4666, %v1336, 0.0
    %v4923 = vsel %vm4667, %v1337, 0.0
    %v4924 = vsel %vm4668, %v1338, 0.0
    %v4925 = vsel %vm4669, %v1339, 0.0
    %v4926 = vsel %vm4670, %v1340, 0.0
    %v4927 = vsel %vm4671, %v1341, 0.0
    %v4928 = vsel %vm4672, %v1342, 0.0
    %v4929 = vsel %vm4673, %v1343, 0.0
    %v4930 = vsel %vm4674, %v1344, 0.0
    %v4931 = vsel %vm4675, %v1345, 0.0
    %v4932 = vsel %vm4676, %v1346, 0.0
    %v4933 = vsel %vm4677, %v1347, 0.0
    %v4934 = vsel %vm4678, %v1348, 0.0
    %v4935 = vsel %vm4679, %v1349, 0.0
    %v4936 = vsel %vm4680, %v1350, 0.0
    %v4937 = vsel %vm4681, %v1351, 0.0
    %v4938 = vsel %vm4682, %v1352, 0.0
    %v4939 = vsel %vm4683, %v1353, 0.0
    %v4940 = vsel %vm4684, %v1354, 0.0
    %v4941 = vsel %vm4685, %v1355, 0.0
    %v4942 = vsel %vm4686, %v1356, 0.0
    %v4943 = vsel %vm4687, %v1357, 0.0
    %v4944 = vsel %vm4688, %v1358, 0.0
    %v4945 = vsel %vm4689, %v1359, 0.0
    %v4946 = vsel %vm4690, %v1360, 0.0
    %v4947 = vsel %vm4691, %v1361, 0.0
    %v4948 = vsel %vm4692, %v1362, 0.0
    %v4949 = vsel %vm4693, %v1363, 0.0
    %v4950 = vsel %vm4694, %v1364, 0.0
    %v4951 = vsel %vm4695, %v1365, 0.0
    %v4952 = vsel %vm4696, %v1366, 0.0
    %v4953 = vsel %vm4697, %v1367, 0.0
    %v4954 = vsel %vm4698, %v1368, 0.0
    %v4955 = vsel %vm4699, %v1369, 0.0
    %v4956 = vsel %vm4700, %v1370, 0.0
    %v4957 = vsel %vm4701, %v1371, 0.0
    %v4958 = vsel %vm4702, %v1372, 0.0
    %v4959 = vsel %vm4703, %v1373, 0.0
    %v4960 = vsel %vm4704, %v1374, 0.0
    %v4961 = vsel %vm4705, %v1375, 0.0
    %v4962 = vsel %vm4706, %v1376, 0.0
    %v4963 = vsel %vm4707, %v1377, 0.0
    %v4964 = vsel %vm4708, %v1378, 0.0
    %v4965 = vsel %vm4709, %v1379, 0.0
    %v4966 = vsel %vm4710, %v1380, 0.0
    %v4967 = vsel %vm4711, %v1381, 0.0
    %v4968 = vsel %vm4712, %v1382, 0.0
    %v4969 = vsel %vm4713, %v1383, 0.0
    %v4970 = vsel %vm4714, %v1384, 0.0
    %v4971 = vsel %vm4715, %v1385, 0.0
    %v4972 = vsel %vm4716, %v1386, 0.0
    %v4973 = vsel %vm4717, %v1387, 0.0
    %v4974 = vsel %vm4718, %v1388, 0.0
    %v4975 = vsel %vm4719, %v1389, 0.0
    %v4976 = vsel %vm4720, %v1390, 0.0
    %v4977 = vsel %vm4721, %v1391, 0.0
    %v4978 = vsel %vm4722, %v1392, 0.0
    %v4979 = vsel %vm4723, %v1393, 0.0
    %v4980 = vsel %vm4724, %v1394, 0.0
    %v4981 = vsel %vm4725, %v1395, 0.0
    %v4982 = vsel %vm4726, %v1396, 0.0
    %v4983 = vsel %vm4727, %v1397, 0.0
    %v4984 = vsel %vm4728, %v1398, 0.0
    %v4985 = vsel %vm4729, %v1399, 0.0
    %v4986 = vsel %vm4730, %v1400, 0.0
    %v4987 = vsel %vm4731, %v1401, 0.0
    %v4988 = vsel %vm4732, %v1402, 0.0
    %v4989 = vsel %vm4733, %v1403, 0.0
    %v4990 = vsel %vm4734, %v1404, 0.0
    %v4991 = vsel %vm4735, %v1405, 0.0
    %v4992 = vsel %vm4736, %v1406, 0.0
    %v4993 = vsel %vm4737, %v1407, 0.0
    %v4994 = vsel %vm4738, %v1408, 0.0
    %v4995 = vsel %vm4739, %v1409, 0.0
    %v4996 = vsel %vm4740, %v1410, 0.0
    %v4997 = vsel %vm4741, %v1411, 0.0
    %v4998 = vsel %vm4742, %v1412, 0.0
    %v4999 = vsel %vm4743, %v1413, 0.0
    %v5000 = vsel %vm4744, %v1414, 0.0
    %v5001 = vsel %vm4745, %v1415, 0.0
    %v5002 = vsel %vm4746, %v1416, 0.0
    %v5003 = vsel %vm4747, %v1417, 0.0
    %v5004 = vsel %vm4748, %v1418, 0.0
    %v5005 = vsel %vm4749, %v1419, 0.0
    %v5006 = vsel %vm4750, %v1420, 0.0
    %v5007 = vsel %vm4751, %v1421, 0.0
    %v5008 = vsel %vm4752, %v1422, 0.0
    %v5009 = vsel %vm4753, %v1423, 0.0
    %v5010 = vsel %vm4754, %v1424, 0.0
    %v5011 = vsel %vm4755, %v1425, 0.0
    %v5012 = vsel %vm4756, %v1426, 0.0
    %v5013 = vsel %vm4757, %v1427, 0.0
    %v5014 = vsel %vm4758, %v1428, 0.0
    %v5015 = vsel %vm4759, %v1429, 0.0
    %v5016 = vsel %vm4760, %v1430, 0.0
    %v5017 = vsel %vm4761, %v1431, 0.0
    %v5018 = vsel %vm4762, %v1432, 0.0
    %v5019 = vsel %vm4763, %v1433, 0.0
    %v5020 = vsel %vm4764, %v1434, 0.0
    %v5021 = vsel %vm4765, %v1435, 0.0
    %v5022 = vsel %vm4766, %v1436, 0.0
    %v5023 = vsel %vm4767, %v1437, 0.0
    %v5024 = vsel %vm4768, %v1438, 0.0
    %v5025 = vsel %vm4769, %v1439, 0.0
    %v5026 = vsel %vm4770, %v1440, 0.0
    %v5027 = vsel %vm4771, %v1441, 0.0
    %v5028 = vsel %vm4772, %v1442, 0.0
    %v5029 = vsel %vm4773, %v1443, 0.0
    %v5030 = vsel %vm4774, %v1444, 0.0
    %v5031 = vsel %vm4775, %v1445, 0.0
    %v5032 = vsel %vm4776, %v1446, 0.0
    %v5033 = vsel %vm4777, %v1447, 0.0
    %v5034 = vsel %vm4778, %v1448, 0.0
    %v5035 = vsel %vm4779, %v1449, 0.0
    %v5036 = vsel %vm4780, %v1450, 0.0
    %v5037 = vsel %vm4781, %v1451, 0.0
    %v5038 = vsel %vm4782, %v1452, 0.0
    %v5039 = vsel %vm4783, %v1453, 0.0
    %v5040 = vsel %vm4784, %v1454, 0.0
    %v5041 = vsel %vm4785, %v1455, 0.0
    %v5042 = vsel %vm4786, %v1456, 0.0
    %v5043 = vsel %vm4787, %v1457, 0.0
    %v5044 = vsel %vm4788, %v1458, 0.0
    %v5045 = vsel %vm4789, %v1459, 0.0
    %v5046 = vsel %vm4790, %v1460, 0.0
    %v5047 = vsel %vm4791, %v1461, 0.0
    %v5048 = vsel %vm4792, %v1462, 0.0
    %v5049 = vsel %vm4793, %v1463, 0.0
    %v5050 = vsel %vm4794, %v1464, 0.0
    %v5051 = vsel %vm4795, %v1465, 0.0
    %v5052 = vsel %vm4796, %v1466, 0.0
    %v5053 = vsel %vm4797, %v1467, 0.0
    %v5054 = vsel %vm4798, %v1468, 0.0
    %v5055 = vsel %vm4799, %v1469, 0.0
    %v5056 = vsel %vm4800, %v1470, 0.0
    %v5057 = vsel %vm4801, %v1471, 0.0
    %v5058 = vsel %vm4802, %v1472, 0.0
    %v5059 = vsel %vm4803, %v1473, 0.0
    %v5060 = vsel %vm4804, %v1474, 0.0
    %v5061 = vsel %vm4805, %v1475, 0.0
    %v5062 = vsel %vm4806, %v1476, 0.0
    %v5063 = vsel %vm4807, %v1477, 0.0
    %v5064 = vsel %vm4808, %v1478, 0.0
    %v5065 = vsel %vm4809, %v1479, 0.0
    %v5066 = vsel %vm4810, %v1480, 0.0
    %v5067 = vsel %vm4811, %v1481, 0.0
    %v5068 = vsel %vm4812, %v1482, 0.0
    %v5069 = vsel %vm4813, %v1483, 0.0
    %v5070 = vsel %vm4814, %v1484, 0.0
    %v5071 = vsel %vm4815, %v1485, 0.0
    %v5072 = vsel %vm4816, %v1486, 0.0
    %v5073 = vsel %vm4817, %v1487, 0.0
    %v5074 = vsel %vm4818, %v1488, 0.0
    %v5075 = vsel %vm4819, %v1489, 0.0
    %v5076 = vsel %vm4820, %v1490, 0.0
    %v5077 = vsel %vm4821, %v1491, 0.0
    %v5078 = vsel %vm4822, %v1492, 0.0
    %v5079 = vsel %vm4823, %v1493, 0.0
    %v5080 = vsel %vm4824, %v1494, 0.0
    %v5081 = vsel %vm4825, %v1495, 0.0
    %v5082 = vsel %vm4826, %v1496, 0.0
    %v5083 = vsel %vm4827, %v1497, 0.0
    %v5084 = vsel %vm4828, %v1498, 0.0
    %v5085 = vsel %vm4829, %v1499, 0.0
    %v5086 = vsel %vm4830, %v1500, 0.0
    %v5087 = vsel %vm4831, %v1501, 0.0
    %v5088 = vsel %vm4832, %v1502, 0.0
    %v5089 = vsel %vm4833, %v1503, 0.0
    %v5090 = vsel %vm4834, %v1504, 0.0
    %v5091 = vsel %vm4835, %v1505, 0.0
    %v5092 = vsel %vm4836, %v1506, 0.0
    %v5093 = vsel %vm4837, %v1507, 0.0
    %v5094 = vsel %vm4838, %v1508, 0.0
    %v5095 = vsel %vm4839, %v1509, 0.0
    %v5096 = vsel %vm4840, %v1510, 0.0
    %v5097 = vsel %vm4841, %v1511, 0.0
    %v5098 = vsel %vm4842, %v1512, 0.0
    %v5099 = vsel %vm4843, %v1513, 0.0
    %v5100 = vsel %vm4844, %v1514, 0.0
    %v5101 = vsel %vm4845, %v1515, 0.0
    %v5102 = vsel %vm4846, %v1516, 0.0
    %v5103 = vsel %vm4847, %v1517, 0.0
    %v5104 = vsel %vm4848, %v1518, 0.0
    %v5105 = vsel %vm4849, %v1519, 0.0
    %v5106 = vsel %vm4850, %v1520, 0.0
    %v5107 = vsel %vm4851, %v1521, 0.0
    %v5108 = vsel %vm4852, %v1522, 0.0
    %v5109 = vsel %vm4853, %v1523, 0.0
    %v5110 = vsel %vm4854, %v1524, 0.0
    %v5111 = vsel %vm4855, %v1525, 0.0
    %v5112 = vsel %vm4856, %v1526, 0.0
    %v5113 = vsel %vm4857, %v1527, 0.0
    %v5114 = vsel %vm4858, %v1528, 0.0
    %v5115 = vsel %vm4859, %v1529, 0.0
    %v5116 = vsel %vm4860, %v1530, 0.0
    %v5117 = vsel %vm4861, %v1531, 0.0
    %v5118 = vsel %vm4862, %v1532, 0.0
    %v5119 = vsel %vm4863, %v1533, 0.0
    %v5120 = vsel %vm4864, %v1534, 0.0
    %v5121 = vsel %vm4865, %v1535, 0.0
    %v5122 = vsel %vm4866, %v1536, 0.0
    %v5123 = vsel %vm4867, %v1537, 0.0
    %v5124 = vsel %vm4868, %v1538, 0.0
    %v5125 = vsel %vm4869, %v1539, 0.0
    %v5126 = vsel %vm4870, %v1540, 0.0
    %v5127 = vsel %vm4871, %v1541, 0.0
    %v5128 = vsel %vm4872, %v1542, 0.0
    %v5129 = vsel %vm4873, %v1543, 0.0
    %v5130 = vsel %vm4874, %v1544, 0.0
    %v5131 = vsel %vm4875, %v1545, 0.0
    %v5132 = vsel %vm4876, %v1546, 0.0
    %v5133 = vsel %vm4877, %v1547, 0.0
    %v5134 = vsel %vm4878, %v1548, 0.0
    %v5135 = vsel %vm524, %v4879, 0.0
    %v5136 = vsel %vm524, %v4880, 0.0
    %v5137 = vadd.f32 %v5135, %v5136
    %v5138 = vsel %vm524, %v4881, 0.0
    %v5139 = vadd.f32 %v5137, %v5138
    %v5140 = vsel %vm524, %v4882, 0.0
    %v5141 = vadd.f32 %v5139, %v5140
    %v5142 = vsel %vm524, %v4883, 0.0
    %v5143 = vadd.f32 %v5141, %v5142
    %v5144 = vsel %vm524, %v4884, 0.0
    %v5145 = vadd.f32 %v5143, %v5144
    %v5146 = vsel %vm524, %v4885, 0.0
    %v5147 = vadd.f32 %v5145, %v5146
    %v5148 = vsel %vm524, %v4886, 0.0
    %v5149 = vadd.f32 %v5147, %v5148
    %v5150 = vsel %vm524, %v4887, 0.0
    %v5151 = vadd.f32 %v5149, %v5150
    %v5152 = vsel %vm524, %v4888, 0.0
    %v5153 = vadd.f32 %v5151, %v5152
    %v5154 = vsel %vm524, %v4889, 0.0
    %v5155 = vadd.f32 %v5153, %v5154
    %v5156 = vsel %vm524, %v4890, 0.0
    %v5157 = vadd.f32 %v5155, %v5156
    %v5158 = vsel %vm524, %v4891, 0.0
    %v5159 = vadd.f32 %v5157, %v5158
    %v5160 = vsel %vm524, %v4892, 0.0
    %v5161 = vadd.f32 %v5159, %v5160
    %v5162 = vsel %vm524, %v4893, 0.0
    %v5163 = vadd.f32 %v5161, %v5162
    %v5164 = vsel %vm524, %v4894, 0.0
    %v5165 = vadd.f32 %v5163, %v5164
    %v5166 = vsel %vm524, %v4895, 0.0
    %v5167 = vadd.f32 %v5165, %v5166
    %v5168 = vsel %vm524, %v4896, 0.0
    %v5169 = vadd.f32 %v5167, %v5168
    %v5170 = vsel %vm524, %v4897, 0.0
    %v5171 = vadd.f32 %v5169, %v5170
    %v5172 = vsel %vm524, %v4898, 0.0
    %v5173 = vadd.f32 %v5171, %v5172
    %v5174 = vsel %vm524, %v4899, 0.0
    %v5175 = vadd.f32 %v5173, %v5174
    %v5176 = vsel %vm524, %v4900, 0.0
    %v5177 = vadd.f32 %v5175, %v5176
    %v5178 = vsel %vm524, %v4901, 0.0
    %v5179 = vadd.f32 %v5177, %v5178
    %v5180 = vsel %vm524, %v4902, 0.0
    %v5181 = vadd.f32 %v5179, %v5180
    %v5182 = vsel %vm524, %v4903, 0.0
    %v5183 = vadd.f32 %v5181, %v5182
    %v5184 = vsel %vm524, %v4904, 0.0
    %v5185 = vadd.f32 %v5183, %v5184
    %v5186 = vsel %vm524, %v4905, 0.0
    %v5187 = vadd.f32 %v5185, %v5186
    %v5188 = vsel %vm524, %v4906, 0.0
    %v5189 = vadd.f32 %v5187, %v5188
    %v5190 = vsel %vm524, %v4907, 0.0
    %v5191 = vadd.f32 %v5189, %v5190
    %v5192 = vsel %vm524, %v4908, 0.0
    %v5193 = vadd.f32 %v5191, %v5192
    %v5194 = vsel %vm524, %v4909, 0.0
    %v5195 = vadd.f32 %v5193, %v5194
    %v5196 = vsel %vm524, %v4910, 0.0
    %v5197 = vadd.f32 %v5195, %v5196
    %v5198 = vsel %vm524, %v4911, 0.0
    %v5199 = vadd.f32 %v5197, %v5198
    %v5200 = vsel %vm524, %v4912, 0.0
    %v5201 = vadd.f32 %v5199, %v5200
    %v5202 = vsel %vm524, %v4913, 0.0
    %v5203 = vadd.f32 %v5201, %v5202
    %v5204 = vsel %vm524, %v4914, 0.0
    %v5205 = vadd.f32 %v5203, %v5204
    %v5206 = vsel %vm524, %v4915, 0.0
    %v5207 = vadd.f32 %v5205, %v5206
    %v5208 = vsel %vm524, %v4916, 0.0
    %v5209 = vadd.f32 %v5207, %v5208
    %v5210 = vsel %vm524, %v4917, 0.0
    %v5211 = vadd.f32 %v5209, %v5210
    %v5212 = vsel %vm524, %v4918, 0.0
    %v5213 = vadd.f32 %v5211, %v5212
    %v5214 = vsel %vm524, %v4919, 0.0
    %v5215 = vadd.f32 %v5213, %v5214
    %v5216 = vsel %vm524, %v4920, 0.0
    %v5217 = vadd.f32 %v5215, %v5216
    %v5218 = vsel %vm524, %v4921, 0.0
    %v5219 = vadd.f32 %v5217, %v5218
    %v5220 = vsel %vm524, %v4922, 0.0
    %v5221 = vadd.f32 %v5219, %v5220
    %v5222 = vsel %vm524, %v4923, 0.0
    %v5223 = vadd.f32 %v5221, %v5222
    %v5224 = vsel %vm524, %v4924, 0.0
    %v5225 = vadd.f32 %v5223, %v5224
    %v5226 = vsel %vm524, %v4925, 0.0
    %v5227 = vadd.f32 %v5225, %v5226
    %v5228 = vsel %vm524, %v4926, 0.0
    %v5229 = vadd.f32 %v5227, %v5228
    %v5230 = vsel %vm524, %v4927, 0.0
    %v5231 = vadd.f32 %v5229, %v5230
    %v5232 = vsel %vm524, %v4928, 0.0
    %v5233 = vadd.f32 %v5231, %v5232
    %v5234 = vsel %vm524, %v4929, 0.0
    %v5235 = vadd.f32 %v5233, %v5234
    %v5236 = vsel %vm524, %v4930, 0.0
    %v5237 = vadd.f32 %v5235, %v5236
    %v5238 = vsel %vm524, %v4931, 0.0
    %v5239 = vadd.f32 %v5237, %v5238
    %v5240 = vsel %vm524, %v4932, 0.0
    %v5241 = vadd.f32 %v5239, %v5240
    %v5242 = vsel %vm524, %v4933, 0.0
    %v5243 = vadd.f32 %v5241, %v5242
    %v5244 = vsel %vm524, %v4934, 0.0
    %v5245 = vadd.f32 %v5243, %v5244
    %v5246 = vsel %vm524, %v4935, 0.0
    %v5247 = vadd.f32 %v5245, %v5246
    %v5248 = vsel %vm524, %v4936, 0.0
    %v5249 = vadd.f32 %v5247, %v5248
    %v5250 = vsel %vm524, %v4937, 0.0
    %v5251 = vadd.f32 %v5249, %v5250
    %v5252 = vsel %vm524, %v4938, 0.0
    %v5253 = vadd.f32 %v5251, %v5252
    %v5254 = vsel %vm524, %v4939, 0.0
    %v5255 = vadd.f32 %v5253, %v5254
    %v5256 = vsel %vm524, %v4940, 0.0
    %v5257 = vadd.f32 %v5255, %v5256
    %v5258 = vsel %vm524, %v4941, 0.0
    %v5259 = vadd.f32 %v5257, %v5258
    %v5260 = vsel %vm524, %v4942, 0.0
    %v5261 = vadd.f32 %v5259, %v5260
    %v5262 = vsel %vm524, %v4943, 0.0
    %v5263 = vadd.f32 %v5261, %v5262
    %v5264 = vsel %vm524, %v4944, 0.0
    %v5265 = vadd.f32 %v5263, %v5264
    %v5266 = vsel %vm524, %v4945, 0.0
    %v5267 = vadd.f32 %v5265, %v5266
    %v5268 = vsel %vm524, %v4946, 0.0
    %v5269 = vadd.f32 %v5267, %v5268
    %v5270 = vsel %vm524, %v4947, 0.0
    %v5271 = vadd.f32 %v5269, %v5270
    %v5272 = vsel %vm524, %v4948, 0.0
    %v5273 = vadd.f32 %v5271, %v5272
    %v5274 = vsel %vm524, %v4949, 0.0
    %v5275 = vadd.f32 %v5273, %v5274
    %v5276 = vsel %vm524, %v4950, 0.0
    %v5277 = vadd.f32 %v5275, %v5276
    %v5278 = vsel %vm524, %v4951, 0.0
    %v5279 = vadd.f32 %v5277, %v5278
    %v5280 = vsel %vm524, %v4952, 0.0
    %v5281 = vadd.f32 %v5279, %v5280
    %v5282 = vsel %vm524, %v4953, 0.0
    %v5283 = vadd.f32 %v5281, %v5282
    %v5284 = vsel %vm524, %v4954, 0.0
    %v5285 = vadd.f32 %v5283, %v5284
    %v5286 = vsel %vm524, %v4955, 0.0
    %v5287 = vadd.f32 %v5285, %v5286
    %v5288 = vsel %vm524, %v4956, 0.0
    %v5289 = vadd.f32 %v5287, %v5288
    %v5290 = vsel %vm524, %v4957, 0.0
    %v5291 = vadd.f32 %v5289, %v5290
    %v5292 = vsel %vm524, %v4958, 0.0
    %v5293 = vadd.f32 %v5291, %v5292
    %v5294 = vsel %vm524, %v4959, 0.0
    %v5295 = vadd.f32 %v5293, %v5294
    %v5296 = vsel %vm524, %v4960, 0.0
    %v5297 = vadd.f32 %v5295, %v5296
    %v5298 = vsel %vm524, %v4961, 0.0
    %v5299 = vadd.f32 %v5297, %v5298
    %v5300 = vsel %vm524, %v4962, 0.0
    %v5301 = vadd.f32 %v5299, %v5300
    %v5302 = vsel %vm524, %v4963, 0.0
    %v5303 = vadd.f32 %v5301, %v5302
    %v5304 = vsel %vm524, %v4964, 0.0
    %v5305 = vadd.f32 %v5303, %v5304
    %v5306 = vsel %vm524, %v4965, 0.0
    %v5307 = vadd.f32 %v5305, %v5306
    %v5308 = vsel %vm524, %v4966, 0.0
    %v5309 = vadd.f32 %v5307, %v5308
    %v5310 = vsel %vm524, %v4967, 0.0
    %v5311 = vadd.f32 %v5309, %v5310
    %v5312 = vsel %vm524, %v4968, 0.0
    %v5313 = vadd.f32 %v5311, %v5312
    %v5314 = vsel %vm524, %v4969, 0.0
    %v5315 = vadd.f32 %v5313, %v5314
    %v5316 = vsel %vm524, %v4970, 0.0
    %v5317 = vadd.f32 %v5315, %v5316
    %v5318 = vsel %vm524, %v4971, 0.0
    %v5319 = vadd.f32 %v5317, %v5318
    %v5320 = vsel %vm524, %v4972, 0.0
    %v5321 = vadd.f32 %v5319, %v5320
    %v5322 = vsel %vm524, %v4973, 0.0
    %v5323 = vadd.f32 %v5321, %v5322
    %v5324 = vsel %vm524, %v4974, 0.0
    %v5325 = vadd.f32 %v5323, %v5324
    %v5326 = vsel %vm524, %v4975, 0.0
    %v5327 = vadd.f32 %v5325, %v5326
    %v5328 = vsel %vm524, %v4976, 0.0
    %v5329 = vadd.f32 %v5327, %v5328
    %v5330 = vsel %vm524, %v4977, 0.0
    %v5331 = vadd.f32 %v5329, %v5330
    %v5332 = vsel %vm524, %v4978, 0.0
    %v5333 = vadd.f32 %v5331, %v5332
    %v5334 = vsel %vm524, %v4979, 0.0
    %v5335 = vadd.f32 %v5333, %v5334
    %v5336 = vsel %vm524, %v4980, 0.0
    %v5337 = vadd.f32 %v5335, %v5336
    %v5338 = vsel %vm524, %v4981, 0.0
    %v5339 = vadd.f32 %v5337, %v5338
    %v5340 = vsel %vm524, %v4982, 0.0
    %v5341 = vadd.f32 %v5339, %v5340
    %v5342 = vsel %vm524, %v4983, 0.0
    %v5343 = vadd.f32 %v5341, %v5342
    %v5344 = vsel %vm524, %v4984, 0.0
    %v5345 = vadd.f32 %v5343, %v5344
    %v5346 = vsel %vm524, %v4985, 0.0
    %v5347 = vadd.f32 %v5345, %v5346
    %v5348 = vsel %vm524, %v4986, 0.0
    %v5349 = vadd.f32 %v5347, %v5348
    %v5350 = vsel %vm524, %v4987, 0.0
    %v5351 = vadd.f32 %v5349, %v5350
    %v5352 = vsel %vm524, %v4988, 0.0
    %v5353 = vadd.f32 %v5351, %v5352
    %v5354 = vsel %vm524, %v4989, 0.0
    %v5355 = vadd.f32 %v5353, %v5354
    %v5356 = vsel %vm524, %v4990, 0.0
    %v5357 = vadd.f32 %v5355, %v5356
    %v5358 = vsel %vm524, %v4991, 0.0
    %v5359 = vadd.f32 %v5357, %v5358
    %v5360 = vsel %vm524, %v4992, 0.0
    %v5361 = vadd.f32 %v5359, %v5360
    %v5362 = vsel %vm524, %v4993, 0.0
    %v5363 = vadd.f32 %v5361, %v5362
    %v5364 = vsel %vm524, %v4994, 0.0
    %v5365 = vadd.f32 %v5363, %v5364
    %v5366 = vsel %vm524, %v4995, 0.0
    %v5367 = vadd.f32 %v5365, %v5366
    %v5368 = vsel %vm524, %v4996, 0.0
    %v5369 = vadd.f32 %v5367, %v5368
    %v5370 = vsel %vm524, %v4997, 0.0
    %v5371 = vadd.f32 %v5369, %v5370
    %v5372 = vsel %vm524, %v4998, 0.0
    %v5373 = vadd.f32 %v5371, %v5372
    %v5374 = vsel %vm524, %v4999, 0.0
    %v5375 = vadd.f32 %v5373, %v5374
    %v5376 = vsel %vm524, %v5000, 0.0
    %v5377 = vadd.f32 %v5375, %v5376
    %v5378 = vsel %vm524, %v5001, 0.0
    %v5379 = vadd.f32 %v5377, %v5378
    %v5380 = vsel %vm524, %v5002, 0.0
    %v5381 = vadd.f32 %v5379, %v5380
    %v5382 = vsel %vm524, %v5003, 0.0
    %v5383 = vadd.f32 %v5381, %v5382
    %v5384 = vsel %vm524, %v5004, 0.0
    %v5385 = vadd.f32 %v5383, %v5384
    %v5386 = vsel %vm524, %v5005, 0.0
    %v5387 = vadd.f32 %v5385, %v5386
    %v5388 = vsel %vm524, %v5006, 0.0
    %v5389 = vadd.f32 %v5387, %v5388
    %v5390 = vsel %vm524, %v5007, 0.0
    %v5391 = vadd.f32 %v5389, %v5390
    %v5392 = vsel %vm524, %v5008, 0.0
    %v5393 = vadd.f32 %v5391, %v5392
    %v5394 = vsel %vm524, %v5009, 0.0
    %v5395 = vadd.f32 %v5393, %v5394
    %v5396 = vsel %vm524, %v5010, 0.0
    %v5397 = vadd.f32 %v5395, %v5396
    %v5398 = vsel %vm524, %v5011, 0.0
    %v5399 = vadd.f32 %v5397, %v5398
    %v5400 = vsel %vm524, %v5012, 0.0
    %v5401 = vadd.f32 %v5399, %v5400
    %v5402 = vsel %vm524, %v5013, 0.0
    %v5403 = vadd.f32 %v5401, %v5402
    %v5404 = vsel %vm524, %v5014, 0.0
    %v5405 = vadd.f32 %v5403, %v5404
    %v5406 = vsel %vm524, %v5015, 0.0
    %v5407 = vadd.f32 %v5405, %v5406
    %v5408 = vsel %vm524, %v5016, 0.0
    %v5409 = vadd.f32 %v5407, %v5408
    %v5410 = vsel %vm524, %v5017, 0.0
    %v5411 = vadd.f32 %v5409, %v5410
    %v5412 = vsel %vm524, %v5018, 0.0
    %v5413 = vadd.f32 %v5411, %v5412
    %v5414 = vsel %vm524, %v5019, 0.0
    %v5415 = vadd.f32 %v5413, %v5414
    %v5416 = vsel %vm524, %v5020, 0.0
    %v5417 = vadd.f32 %v5415, %v5416
    %v5418 = vsel %vm524, %v5021, 0.0
    %v5419 = vadd.f32 %v5417, %v5418
    %v5420 = vsel %vm524, %v5022, 0.0
    %v5421 = vadd.f32 %v5419, %v5420
    %v5422 = vsel %vm524, %v5023, 0.0
    %v5423 = vadd.f32 %v5421, %v5422
    %v5424 = vsel %vm524, %v5024, 0.0
    %v5425 = vadd.f32 %v5423, %v5424
    %v5426 = vsel %vm524, %v5025, 0.0
    %v5427 = vadd.f32 %v5425, %v5426
    %v5428 = vsel %vm524, %v5026, 0.0
    %v5429 = vadd.f32 %v5427, %v5428
    %v5430 = vsel %vm524, %v5027, 0.0
    %v5431 = vadd.f32 %v5429, %v5430
    %v5432 = vsel %vm524, %v5028, 0.0
    %v5433 = vadd.f32 %v5431, %v5432
    %v5434 = vsel %vm524, %v5029, 0.0
    %v5435 = vadd.f32 %v5433, %v5434
    %v5436 = vsel %vm524, %v5030, 0.0
    %v5437 = vadd.f32 %v5435, %v5436
    %v5438 = vsel %vm524, %v5031, 0.0
    %v5439 = vadd.f32 %v5437, %v5438
    %v5440 = vsel %vm524, %v5032, 0.0
    %v5441 = vadd.f32 %v5439, %v5440
    %v5442 = vsel %vm524, %v5033, 0.0
    %v5443 = vadd.f32 %v5441, %v5442
    %v5444 = vsel %vm524, %v5034, 0.0
    %v5445 = vadd.f32 %v5443, %v5444
    %v5446 = vsel %vm524, %v5035, 0.0
    %v5447 = vadd.f32 %v5445, %v5446
    %v5448 = vsel %vm524, %v5036, 0.0
    %v5449 = vadd.f32 %v5447, %v5448
    %v5450 = vsel %vm524, %v5037, 0.0
    %v5451 = vadd.f32 %v5449, %v5450
    %v5452 = vsel %vm524, %v5038, 0.0
    %v5453 = vadd.f32 %v5451, %v5452
    %v5454 = vsel %vm524, %v5039, 0.0
    %v5455 = vadd.f32 %v5453, %v5454
    %v5456 = vsel %vm524, %v5040, 0.0
    %v5457 = vadd.f32 %v5455, %v5456
    %v5458 = vsel %vm524, %v5041, 0.0
    %v5459 = vadd.f32 %v5457, %v5458
    %v5460 = vsel %vm524, %v5042, 0.0
    %v5461 = vadd.f32 %v5459, %v5460
    %v5462 = vsel %vm524, %v5043, 0.0
    %v5463 = vadd.f32 %v5461, %v5462
    %v5464 = vsel %vm524, %v5044, 0.0
    %v5465 = vadd.f32 %v5463, %v5464
    %v5466 = vsel %vm524, %v5045, 0.0
    %v5467 = vadd.f32 %v5465, %v5466
    %v5468 = vsel %vm524, %v5046, 0.0
    %v5469 = vadd.f32 %v5467, %v5468
    %v5470 = vsel %vm524, %v5047, 0.0
    %v5471 = vadd.f32 %v5469, %v5470
    %v5472 = vsel %vm524, %v5048, 0.0
    %v5473 = vadd.f32 %v5471, %v5472
    %v5474 = vsel %vm524, %v5049, 0.0
    %v5475 = vadd.f32 %v5473, %v5474
    %v5476 = vsel %vm524, %v5050, 0.0
    %v5477 = vadd.f32 %v5475, %v5476
    %v5478 = vsel %vm524, %v5051, 0.0
    %v5479 = vadd.f32 %v5477, %v5478
    %v5480 = vsel %vm524, %v5052, 0.0
    %v5481 = vadd.f32 %v5479, %v5480
    %v5482 = vsel %vm524, %v5053, 0.0
    %v5483 = vadd.f32 %v5481, %v5482
    %v5484 = vsel %vm524, %v5054, 0.0
    %v5485 = vadd.f32 %v5483, %v5484
    %v5486 = vsel %vm524, %v5055, 0.0
    %v5487 = vadd.f32 %v5485, %v5486
    %v5488 = vsel %vm524, %v5056, 0.0
    %v5489 = vadd.f32 %v5487, %v5488
    %v5490 = vsel %vm524, %v5057, 0.0
    %v5491 = vadd.f32 %v5489, %v5490
    %v5492 = vsel %vm524, %v5058, 0.0
    %v5493 = vadd.f32 %v5491, %v5492
    %v5494 = vsel %vm524, %v5059, 0.0
    %v5495 = vadd.f32 %v5493, %v5494
    %v5496 = vsel %vm524, %v5060, 0.0
    %v5497 = vadd.f32 %v5495, %v5496
    %v5498 = vsel %vm524, %v5061, 0.0
    %v5499 = vadd.f32 %v5497, %v5498
    %v5500 = vsel %vm524, %v5062, 0.0
    %v5501 = vadd.f32 %v5499, %v5500
    %v5502 = vsel %vm524, %v5063, 0.0
    %v5503 = vadd.f32 %v5501, %v5502
    %v5504 = vsel %vm524, %v5064, 0.0
    %v5505 = vadd.f32 %v5503, %v5504
    %v5506 = vsel %vm524, %v5065, 0.0
    %v5507 = vadd.f32 %v5505, %v5506
    %v5508 = vsel %vm524, %v5066, 0.0
    %v5509 = vadd.f32 %v5507, %v5508
    %v5510 = vsel %vm524, %v5067, 0.0
    %v5511 = vadd.f32 %v5509, %v5510
    %v5512 = vsel %vm524, %v5068, 0.0
    %v5513 = vadd.f32 %v5511, %v5512
    %v5514 = vsel %vm524, %v5069, 0.0
    %v5515 = vadd.f32 %v5513, %v5514
    %v5516 = vsel %vm524, %v5070, 0.0
    %v5517 = vadd.f32 %v5515, %v5516
    %v5518 = vsel %vm524, %v5071, 0.0
    %v5519 = vadd.f32 %v5517, %v5518
    %v5520 = vsel %vm524, %v5072, 0.0
    %v5521 = vadd.f32 %v5519, %v5520
    %v5522 = vsel %vm524, %v5073, 0.0
    %v5523 = vadd.f32 %v5521, %v5522
    %v5524 = vsel %vm524, %v5074, 0.0
    %v5525 = vadd.f32 %v5523, %v5524
    %v5526 = vsel %vm524, %v5075, 0.0
    %v5527 = vadd.f32 %v5525, %v5526
    %v5528 = vsel %vm524, %v5076, 0.0
    %v5529 = vadd.f32 %v5527, %v5528
    %v5530 = vsel %vm524, %v5077, 0.0
    %v5531 = vadd.f32 %v5529, %v5530
    %v5532 = vsel %vm524, %v5078, 0.0
    %v5533 = vadd.f32 %v5531, %v5532
    %v5534 = vsel %vm524, %v5079, 0.0
    %v5535 = vadd.f32 %v5533, %v5534
    %v5536 = vsel %vm524, %v5080, 0.0
    %v5537 = vadd.f32 %v5535, %v5536
    %v5538 = vsel %vm524, %v5081, 0.0
    %v5539 = vadd.f32 %v5537, %v5538
    %v5540 = vsel %vm524, %v5082, 0.0
    %v5541 = vadd.f32 %v5539, %v5540
    %v5542 = vsel %vm524, %v5083, 0.0
    %v5543 = vadd.f32 %v5541, %v5542
    %v5544 = vsel %vm524, %v5084, 0.0
    %v5545 = vadd.f32 %v5543, %v5544
    %v5546 = vsel %vm524, %v5085, 0.0
    %v5547 = vadd.f32 %v5545, %v5546
    %v5548 = vsel %vm524, %v5086, 0.0
    %v5549 = vadd.f32 %v5547, %v5548
    %v5550 = vsel %vm524, %v5087, 0.0
    %v5551 = vadd.f32 %v5549, %v5550
    %v5552 = vsel %vm524, %v5088, 0.0
    %v5553 = vadd.f32 %v5551, %v5552
    %v5554 = vsel %vm524, %v5089, 0.0
    %v5555 = vadd.f32 %v5553, %v5554
    %v5556 = vsel %vm524, %v5090, 0.0
    %v5557 = vadd.f32 %v5555, %v5556
    %v5558 = vsel %vm524, %v5091, 0.0
    %v5559 = vadd.f32 %v5557, %v5558
    %v5560 = vsel %vm524, %v5092, 0.0
    %v5561 = vadd.f32 %v5559, %v5560
    %v5562 = vsel %vm524, %v5093, 0.0
    %v5563 = vadd.f32 %v5561, %v5562
    %v5564 = vsel %vm524, %v5094, 0.0
    %v5565 = vadd.f32 %v5563, %v5564
    %v5566 = vsel %vm524, %v5095, 0.0
    %v5567 = vadd.f32 %v5565, %v5566
    %v5568 = vsel %vm524, %v5096, 0.0
    %v5569 = vadd.f32 %v5567, %v5568
    %v5570 = vsel %vm524, %v5097, 0.0
    %v5571 = vadd.f32 %v5569, %v5570
    %v5572 = vsel %vm524, %v5098, 0.0
    %v5573 = vadd.f32 %v5571, %v5572
    %v5574 = vsel %vm524, %v5099, 0.0
    %v5575 = vadd.f32 %v5573, %v5574
    %v5576 = vsel %vm524, %v5100, 0.0
    %v5577 = vadd.f32 %v5575, %v5576
    %v5578 = vsel %vm524, %v5101, 0.0
    %v5579 = vadd.f32 %v5577, %v5578
    %v5580 = vsel %vm524, %v5102, 0.0
    %v5581 = vadd.f32 %v5579, %v5580
    %v5582 = vsel %vm524, %v5103, 0.0
    %v5583 = vadd.f32 %v5581, %v5582
    %v5584 = vsel %vm524, %v5104, 0.0
    %v5585 = vadd.f32 %v5583, %v5584
    %v5586 = vsel %vm524, %v5105, 0.0
    %v5587 = vadd.f32 %v5585, %v5586
    %v5588 = vsel %vm524, %v5106, 0.0
    %v5589 = vadd.f32 %v5587, %v5588
    %v5590 = vsel %vm524, %v5107, 0.0
    %v5591 = vadd.f32 %v5589, %v5590
    %v5592 = vsel %vm524, %v5108, 0.0
    %v5593 = vadd.f32 %v5591, %v5592
    %v5594 = vsel %vm524, %v5109, 0.0
    %v5595 = vadd.f32 %v5593, %v5594
    %v5596 = vsel %vm524, %v5110, 0.0
    %v5597 = vadd.f32 %v5595, %v5596
    %v5598 = vsel %vm524, %v5111, 0.0
    %v5599 = vadd.f32 %v5597, %v5598
    %v5600 = vsel %vm524, %v5112, 0.0
    %v5601 = vadd.f32 %v5599, %v5600
    %v5602 = vsel %vm524, %v5113, 0.0
    %v5603 = vadd.f32 %v5601, %v5602
    %v5604 = vsel %vm524, %v5114, 0.0
    %v5605 = vadd.f32 %v5603, %v5604
    %v5606 = vsel %vm524, %v5115, 0.0
    %v5607 = vadd.f32 %v5605, %v5606
    %v5608 = vsel %vm524, %v5116, 0.0
    %v5609 = vadd.f32 %v5607, %v5608
    %v5610 = vsel %vm524, %v5117, 0.0
    %v5611 = vadd.f32 %v5609, %v5610
    %v5612 = vsel %vm524, %v5118, 0.0
    %v5613 = vadd.f32 %v5611, %v5612
    %v5614 = vsel %vm524, %v5119, 0.0
    %v5615 = vadd.f32 %v5613, %v5614
    %v5616 = vsel %vm524, %v5120, 0.0
    %v5617 = vadd.f32 %v5615, %v5616
    %v5618 = vsel %vm524, %v5121, 0.0
    %v5619 = vadd.f32 %v5617, %v5618
    %v5620 = vsel %vm524, %v5122, 0.0
    %v5621 = vadd.f32 %v5619, %v5620
    %v5622 = vsel %vm524, %v5123, 0.0
    %v5623 = vadd.f32 %v5621, %v5622
    %v5624 = vsel %vm524, %v5124, 0.0
    %v5625 = vadd.f32 %v5623, %v5624
    %v5626 = vsel %vm524, %v5125, 0.0
    %v5627 = vadd.f32 %v5625, %v5626
    %v5628 = vsel %vm524, %v5126, 0.0
    %v5629 = vadd.f32 %v5627, %v5628
    %v5630 = vsel %vm524, %v5127, 0.0
    %v5631 = vadd.f32 %v5629, %v5630
    %v5632 = vsel %vm524, %v5128, 0.0
    %v5633 = vadd.f32 %v5631, %v5632
    %v5634 = vsel %vm524, %v5129, 0.0
    %v5635 = vadd.f32 %v5633, %v5634
    %v5636 = vsel %vm524, %v5130, 0.0
    %v5637 = vadd.f32 %v5635, %v5636
    %v5638 = vsel %vm524, %v5131, 0.0
    %v5639 = vadd.f32 %v5637, %v5638
    %v5640 = vsel %vm524, %v5132, 0.0
    %v5641 = vadd.f32 %v5639, %v5640
    %v5642 = vsel %vm524, %v5133, 0.0
    %v5643 = vadd.f32 %v5641, %v5642
    %v5644 = vsel %vm524, %v5134, 0.0
    %v5645 = vadd.f32 %v5643, %v5644
    %5646 = vadd.xlane.f32.xlu0 %v5645
    %v5647 = vpop.xlane.xlu0 %5646
    %v5648 = vrot.slane %v5647, 4
    %v5649 = vadd.f32 %v5647, %v5648
    %v5650 = vrot.slane %v5649, 2
    %v5651 = vadd.f32 %v5649, %v5650
    %v5652 = vrot.slane %v5651, 1
    %v5653 = vadd.f32 %v5651, %v5652
    %s5654 = vtos %v5653
    %vm5655 = vcmask 7168
    %v5656 = vsel %vm5655, %v3597, 0.0
    %v5657 = vsel %vm5655, %v3598, 0.0
    %v5658 = vadd.f32 %v5656, %v5657
    %v5659 = vsel %vm5655, %v3599, 0.0
    %v5660 = vadd.f32 %v5658, %v5659
    %v5661 = vsel %vm5655, %v3600, 0.0
    %v5662 = vadd.f32 %v5660, %v5661
    %v5663 = vsel %vm5655, %v3601, 0.0
    %v5664 = vadd.f32 %v5662, %v5663
    %v5665 = vsel %vm5655, %v3602, 0.0
    %v5666 = vadd.f32 %v5664, %v5665
    %v5667 = vsel %vm5655, %v3603, 0.0
    %v5668 = vadd.f32 %v5666, %v5667
    %v5669 = vsel %vm5655, %v3604, 0.0
    %v5670 = vadd.f32 %v5668, %v5669
    %v5671 = vsel %vm5655, %v3605, 0.0
    %v5672 = vadd.f32 %v5670, %v5671
    %v5673 = vsel %vm5655, %v3606, 0.0
    %v5674 = vadd.f32 %v5672, %v5673
    %v5675 = vsel %vm5655, %v3607, 0.0
    %v5676 = vadd.f32 %v5674, %v5675
    %v5677 = vsel %vm5655, %v3608, 0.0
    %v5678 = vadd.f32 %v5676, %v5677
    %v5679 = vsel %vm5655, %v3609, 0.0
    %v5680 = vadd.f32 %v5678, %v5679
    %v5681 = vsel %vm5655, %v3610, 0.0
    %v5682 = vadd.f32 %v5680, %v5681
    %v5683 = vsel %vm5655, %v3611, 0.0
    %v5684 = vadd.f32 %v5682, %v5683
    %v5685 = vsel %vm5655, %v3612, 0.0
    %v5686 = vadd.f32 %v5684, %v5685
    %v5687 = vsel %vm5655, %v3613, 0.0
    %v5688 = vadd.f32 %v5686, %v5687
    %v5689 = vsel %vm5655, %v3614, 0.0
    %v5690 = vadd.f32 %v5688, %v5689
    %v5691 = vsel %vm5655, %v3615, 0.0
    %v5692 = vadd.f32 %v5690, %v5691
    %v5693 = vsel %vm5655, %v3616, 0.0
    %v5694 = vadd.f32 %v5692, %v5693
    %v5695 = vsel %vm5655, %v3617, 0.0
    %v5696 = vadd.f32 %v5694, %v5695
    %v5697 = vsel %vm5655, %v3618, 0.0
    %v5698 = vadd.f32 %v5696, %v5697
    %v5699 = vsel %vm5655, %v3619, 0.0
    %v5700 = vadd.f32 %v5698, %v5699
    %v5701 = vsel %vm5655, %v3620, 0.0
    %v5702 = vadd.f32 %v5700, %v5701
    %v5703 = vsel %vm5655, %v3621, 0.0
    %v5704 = vadd.f32 %v5702, %v5703
    %v5705 = vsel %vm5655, %v3622, 0.0
    %v5706 = vadd.f32 %v5704, %v5705
    %v5707 = vsel %vm5655, %v3623, 0.0
    %v5708 = vadd.f32 %v5706, %v5707
    %v5709 = vsel %vm5655, %v3624, 0.0
    %v5710 = vadd.f32 %v5708, %v5709
    %v5711 = vsel %vm5655, %v3625, 0.0
    %v5712 = vadd.f32 %v5710, %v5711
    %v5713 = vsel %vm5655, %v3626, 0.0
    %v5714 = vadd.f32 %v5712, %v5713
    %v5715 = vsel %vm5655, %v3627, 0.0
    %v5716 = vadd.f32 %v5714, %v5715
    %v5717 = vsel %vm5655, %v3628, 0.0
    %v5718 = vadd.f32 %v5716, %v5717
    %v5719 = vsel %vm5655, %v3629, 0.0
    %v5720 = vadd.f32 %v5718, %v5719
    %v5721 = vsel %vm5655, %v3630, 0.0
    %v5722 = vadd.f32 %v5720, %v5721
    %v5723 = vsel %vm5655, %v3631, 0.0
    %v5724 = vadd.f32 %v5722, %v5723
    %v5725 = vsel %vm5655, %v3632, 0.0
    %v5726 = vadd.f32 %v5724, %v5725
    %v5727 = vsel %vm5655, %v3633, 0.0
    %v5728 = vadd.f32 %v5726, %v5727
    %v5729 = vsel %vm5655, %v3634, 0.0
    %v5730 = vadd.f32 %v5728, %v5729
    %v5731 = vsel %vm5655, %v3635, 0.0
    %v5732 = vadd.f32 %v5730, %v5731
    %v5733 = vsel %vm5655, %v3636, 0.0
    %v5734 = vadd.f32 %v5732, %v5733
    %v5735 = vsel %vm5655, %v3637, 0.0
    %v5736 = vadd.f32 %v5734, %v5735
    %v5737 = vsel %vm5655, %v3638, 0.0
    %v5738 = vadd.f32 %v5736, %v5737
    %v5739 = vsel %vm5655, %v3639, 0.0
    %v5740 = vadd.f32 %v5738, %v5739
    %v5741 = vsel %vm5655, %v3640, 0.0
    %v5742 = vadd.f32 %v5740, %v5741
    %v5743 = vsel %vm5655, %v3641, 0.0
    %v5744 = vadd.f32 %v5742, %v5743
    %v5745 = vsel %vm5655, %v3642, 0.0
    %v5746 = vadd.f32 %v5744, %v5745
    %v5747 = vsel %vm5655, %v3643, 0.0
    %v5748 = vadd.f32 %v5746, %v5747
    %v5749 = vsel %vm5655, %v3644, 0.0
    %v5750 = vadd.f32 %v5748, %v5749
    %v5751 = vsel %vm5655, %v3645, 0.0
    %v5752 = vadd.f32 %v5750, %v5751
    %v5753 = vsel %vm5655, %v3646, 0.0
    %v5754 = vadd.f32 %v5752, %v5753
    %v5755 = vsel %vm5655, %v3647, 0.0
    %v5756 = vadd.f32 %v5754, %v5755
    %v5757 = vsel %vm5655, %v3648, 0.0
    %v5758 = vadd.f32 %v5756, %v5757
    %v5759 = vsel %vm5655, %v3649, 0.0
    %v5760 = vadd.f32 %v5758, %v5759
    %v5761 = vsel %vm5655, %v3650, 0.0
    %v5762 = vadd.f32 %v5760, %v5761
    %v5763 = vsel %vm5655, %v3651, 0.0
    %v5764 = vadd.f32 %v5762, %v5763
    %v5765 = vsel %vm5655, %v3652, 0.0
    %v5766 = vadd.f32 %v5764, %v5765
    %v5767 = vsel %vm5655, %v3653, 0.0
    %v5768 = vadd.f32 %v5766, %v5767
    %v5769 = vsel %vm5655, %v3654, 0.0
    %v5770 = vadd.f32 %v5768, %v5769
    %v5771 = vsel %vm5655, %v3655, 0.0
    %v5772 = vadd.f32 %v5770, %v5771
    %v5773 = vsel %vm5655, %v3656, 0.0
    %v5774 = vadd.f32 %v5772, %v5773
    %v5775 = vsel %vm5655, %v3657, 0.0
    %v5776 = vadd.f32 %v5774, %v5775
    %v5777 = vsel %vm5655, %v3658, 0.0
    %v5778 = vadd.f32 %v5776, %v5777
    %v5779 = vsel %vm5655, %v3659, 0.0
    %v5780 = vadd.f32 %v5778, %v5779
    %v5781 = vsel %vm5655, %v3660, 0.0
    %v5782 = vadd.f32 %v5780, %v5781
    %v5783 = vsel %vm5655, %v3661, 0.0
    %v5784 = vadd.f32 %v5782, %v5783
    %v5785 = vsel %vm5655, %v3662, 0.0
    %v5786 = vadd.f32 %v5784, %v5785
    %v5787 = vsel %vm5655, %v3663, 0.0
    %v5788 = vadd.f32 %v5786, %v5787
    %v5789 = vsel %vm5655, %v3664, 0.0
    %v5790 = vadd.f32 %v5788, %v5789
    %v5791 = vsel %vm5655, %v3665, 0.0
    %v5792 = vadd.f32 %v5790, %v5791
    %v5793 = vsel %vm5655, %v3666, 0.0
    %v5794 = vadd.f32 %v5792, %v5793
    %v5795 = vsel %vm5655, %v3667, 0.0
    %v5796 = vadd.f32 %v5794, %v5795
    %v5797 = vsel %vm5655, %v3668, 0.0
    %v5798 = vadd.f32 %v5796, %v5797
    %v5799 = vsel %vm5655, %v3669, 0.0
    %v5800 = vadd.f32 %v5798, %v5799
    %v5801 = vsel %vm5655, %v3670, 0.0
    %v5802 = vadd.f32 %v5800, %v5801
    %v5803 = vsel %vm5655, %v3671, 0.0
    %v5804 = vadd.f32 %v5802, %v5803
    %v5805 = vsel %vm5655, %v3672, 0.0
    %v5806 = vadd.f32 %v5804, %v5805
    %v5807 = vsel %vm5655, %v3673, 0.0
    %v5808 = vadd.f32 %v5806, %v5807
    %v5809 = vsel %vm5655, %v3674, 0.0
    %v5810 = vadd.f32 %v5808, %v5809
    %v5811 = vsel %vm5655, %v3675, 0.0
    %v5812 = vadd.f32 %v5810, %v5811
    %v5813 = vsel %vm5655, %v3676, 0.0
    %v5814 = vadd.f32 %v5812, %v5813
    %v5815 = vsel %vm5655, %v3677, 0.0
    %v5816 = vadd.f32 %v5814, %v5815
    %v5817 = vsel %vm5655, %v3678, 0.0
    %v5818 = vadd.f32 %v5816, %v5817
    %v5819 = vsel %vm5655, %v3679, 0.0
    %v5820 = vadd.f32 %v5818, %v5819
    %v5821 = vsel %vm5655, %v3680, 0.0
    %v5822 = vadd.f32 %v5820, %v5821
    %v5823 = vsel %vm5655, %v3681, 0.0
    %v5824 = vadd.f32 %v5822, %v5823
    %v5825 = vsel %vm5655, %v3682, 0.0
    %v5826 = vadd.f32 %v5824, %v5825
    %v5827 = vsel %vm5655, %v3683, 0.0
    %v5828 = vadd.f32 %v5826, %v5827
    %v5829 = vsel %vm5655, %v3684, 0.0
    %v5830 = vadd.f32 %v5828, %v5829
    %v5831 = vsel %vm5655, %v3685, 0.0
    %v5832 = vadd.f32 %v5830, %v5831
    %v5833 = vsel %vm5655, %v3686, 0.0
    %v5834 = vadd.f32 %v5832, %v5833
    %v5835 = vsel %vm5655, %v3687, 0.0
    %v5836 = vadd.f32 %v5834, %v5835
    %v5837 = vsel %vm5655, %v3688, 0.0
    %v5838 = vadd.f32 %v5836, %v5837
    %v5839 = vsel %vm5655, %v3689, 0.0
    %v5840 = vadd.f32 %v5838, %v5839
    %v5841 = vsel %vm5655, %v3690, 0.0
    %v5842 = vadd.f32 %v5840, %v5841
    %v5843 = vsel %vm5655, %v3691, 0.0
    %v5844 = vadd.f32 %v5842, %v5843
    %v5845 = vsel %vm5655, %v3692, 0.0
    %v5846 = vadd.f32 %v5844, %v5845
    %v5847 = vsel %vm5655, %v3693, 0.0
    %v5848 = vadd.f32 %v5846, %v5847
    %v5849 = vsel %vm5655, %v3694, 0.0
    %v5850 = vadd.f32 %v5848, %v5849
    %v5851 = vsel %vm5655, %v3695, 0.0
    %v5852 = vadd.f32 %v5850, %v5851
    %v5853 = vsel %vm5655, %v3696, 0.0
    %v5854 = vadd.f32 %v5852, %v5853
    %v5855 = vsel %vm5655, %v3697, 0.0
    %v5856 = vadd.f32 %v5854, %v5855
    %v5857 = vsel %vm5655, %v3698, 0.0
    %v5858 = vadd.f32 %v5856, %v5857
    %v5859 = vsel %vm5655, %v3699, 0.0
    %v5860 = vadd.f32 %v5858, %v5859
    %v5861 = vsel %vm5655, %v3700, 0.0
    %v5862 = vadd.f32 %v5860, %v5861
    %v5863 = vsel %vm5655, %v3701, 0.0
    %v5864 = vadd.f32 %v5862, %v5863
    %v5865 = vsel %vm5655, %v3702, 0.0
    %v5866 = vadd.f32 %v5864, %v5865
    %v5867 = vsel %vm5655, %v3703, 0.0
    %v5868 = vadd.f32 %v5866, %v5867
    %v5869 = vsel %vm5655, %v3704, 0.0
    %v5870 = vadd.f32 %v5868, %v5869
    %v5871 = vsel %vm5655, %v3705, 0.0
    %v5872 = vadd.f32 %v5870, %v5871
    %v5873 = vsel %vm5655, %v3706, 0.0
    %v5874 = vadd.f32 %v5872, %v5873
    %v5875 = vsel %vm5655, %v3707, 0.0
    %v5876 = vadd.f32 %v5874, %v5875
    %v5877 = vsel %vm5655, %v3708, 0.0
    %v5878 = vadd.f32 %v5876, %v5877
    %v5879 = vsel %vm5655, %v3709, 0.0
    %v5880 = vadd.f32 %v5878, %v5879
    %v5881 = vsel %vm5655, %v3710, 0.0
    %v5882 = vadd.f32 %v5880, %v5881
    %v5883 = vsel %vm5655, %v3711, 0.0
    %v5884 = vadd.f32 %v5882, %v5883
    %v5885 = vsel %vm5655, %v3712, 0.0
    %v5886 = vadd.f32 %v5884, %v5885
    %v5887 = vsel %vm5655, %v3713, 0.0
    %v5888 = vadd.f32 %v5886, %v5887
    %v5889 = vsel %vm5655, %v3714, 0.0
    %v5890 = vadd.f32 %v5888, %v5889
    %v5891 = vsel %vm5655, %v3715, 0.0
    %v5892 = vadd.f32 %v5890, %v5891
    %v5893 = vsel %vm5655, %v3716, 0.0
    %v5894 = vadd.f32 %v5892, %v5893
    %v5895 = vsel %vm5655, %v3717, 0.0
    %v5896 = vadd.f32 %v5894, %v5895
    %v5897 = vsel %vm5655, %v3718, 0.0
    %v5898 = vadd.f32 %v5896, %v5897
    %v5899 = vsel %vm5655, %v3719, 0.0
    %v5900 = vadd.f32 %v5898, %v5899
    %v5901 = vsel %vm5655, %v3720, 0.0
    %v5902 = vadd.f32 %v5900, %v5901
    %v5903 = vsel %vm5655, %v3721, 0.0
    %v5904 = vadd.f32 %v5902, %v5903
    %v5905 = vsel %vm5655, %v3722, 0.0
    %v5906 = vadd.f32 %v5904, %v5905
    %v5907 = vsel %vm5655, %v3723, 0.0
    %v5908 = vadd.f32 %v5906, %v5907
    %v5909 = vsel %vm5655, %v3724, 0.0
    %v5910 = vadd.f32 %v5908, %v5909
    %v5911 = vsel %vm5655, %v3725, 0.0
    %v5912 = vadd.f32 %v5910, %v5911
    %v5913 = vsel %vm5655, %v3726, 0.0
    %v5914 = vadd.f32 %v5912, %v5913
    %v5915 = vsel %vm5655, %v3727, 0.0
    %v5916 = vadd.f32 %v5914, %v5915
    %v5917 = vsel %vm5655, %v3728, 0.0
    %v5918 = vadd.f32 %v5916, %v5917
    %v5919 = vsel %vm5655, %v3729, 0.0
    %v5920 = vadd.f32 %v5918, %v5919
    %v5921 = vsel %vm5655, %v3730, 0.0
    %v5922 = vadd.f32 %v5920, %v5921
    %v5923 = vsel %vm5655, %v3731, 0.0
    %v5924 = vadd.f32 %v5922, %v5923
    %v5925 = vsel %vm5655, %v3732, 0.0
    %v5926 = vadd.f32 %v5924, %v5925
    %v5927 = vsel %vm5655, %v3733, 0.0
    %v5928 = vadd.f32 %v5926, %v5927
    %v5929 = vsel %vm5655, %v3734, 0.0
    %v5930 = vadd.f32 %v5928, %v5929
    %v5931 = vsel %vm5655, %v3735, 0.0
    %v5932 = vadd.f32 %v5930, %v5931
    %v5933 = vsel %vm5655, %v3736, 0.0
    %v5934 = vadd.f32 %v5932, %v5933
    %v5935 = vsel %vm5655, %v3737, 0.0
    %v5936 = vadd.f32 %v5934, %v5935
    %v5937 = vsel %vm5655, %v3738, 0.0
    %v5938 = vadd.f32 %v5936, %v5937
    %v5939 = vsel %vm5655, %v3739, 0.0
    %v5940 = vadd.f32 %v5938, %v5939
    %v5941 = vsel %vm5655, %v3740, 0.0
    %v5942 = vadd.f32 %v5940, %v5941
    %v5943 = vsel %vm5655, %v3741, 0.0
    %v5944 = vadd.f32 %v5942, %v5943
    %v5945 = vsel %vm5655, %v3742, 0.0
    %v5946 = vadd.f32 %v5944, %v5945
    %v5947 = vsel %vm5655, %v3743, 0.0
    %v5948 = vadd.f32 %v5946, %v5947
    %v5949 = vsel %vm5655, %v3744, 0.0
    %v5950 = vadd.f32 %v5948, %v5949
    %v5951 = vsel %vm5655, %v3745, 0.0
    %v5952 = vadd.f32 %v5950, %v5951
    %v5953 = vsel %vm5655, %v3746, 0.0
    %v5954 = vadd.f32 %v5952, %v5953
    %v5955 = vsel %vm5655, %v3747, 0.0
    %v5956 = vadd.f32 %v5954, %v5955
    %v5957 = vsel %vm5655, %v3748, 0.0
    %v5958 = vadd.f32 %v5956, %v5957
    %v5959 = vsel %vm5655, %v3749, 0.0
    %v5960 = vadd.f32 %v5958, %v5959
    %v5961 = vsel %vm5655, %v3750, 0.0
    %v5962 = vadd.f32 %v5960, %v5961
    %v5963 = vsel %vm5655, %v3751, 0.0
    %v5964 = vadd.f32 %v5962, %v5963
    %v5965 = vsel %vm5655, %v3752, 0.0
    %v5966 = vadd.f32 %v5964, %v5965
    %v5967 = vsel %vm5655, %v3753, 0.0
    %v5968 = vadd.f32 %v5966, %v5967
    %v5969 = vsel %vm5655, %v3754, 0.0
    %v5970 = vadd.f32 %v5968, %v5969
    %v5971 = vsel %vm5655, %v3755, 0.0
    %v5972 = vadd.f32 %v5970, %v5971
    %v5973 = vsel %vm5655, %v3756, 0.0
    %v5974 = vadd.f32 %v5972, %v5973
    %v5975 = vsel %vm5655, %v3757, 0.0
    %v5976 = vadd.f32 %v5974, %v5975
    %v5977 = vsel %vm5655, %v3758, 0.0
    %v5978 = vadd.f32 %v5976, %v5977
    %v5979 = vsel %vm5655, %v3759, 0.0
    %v5980 = vadd.f32 %v5978, %v5979
    %v5981 = vsel %vm5655, %v3760, 0.0
    %v5982 = vadd.f32 %v5980, %v5981
    %v5983 = vsel %vm5655, %v3761, 0.0
    %v5984 = vadd.f32 %v5982, %v5983
    %v5985 = vsel %vm5655, %v3762, 0.0
    %v5986 = vadd.f32 %v5984, %v5985
    %v5987 = vsel %vm5655, %v3763, 0.0
    %v5988 = vadd.f32 %v5986, %v5987
    %v5989 = vsel %vm5655, %v3764, 0.0
    %v5990 = vadd.f32 %v5988, %v5989
    %v5991 = vsel %vm5655, %v3765, 0.0
    %v5992 = vadd.f32 %v5990, %v5991
    %v5993 = vsel %vm5655, %v3766, 0.0
    %v5994 = vadd.f32 %v5992, %v5993
    %v5995 = vsel %vm5655, %v3767, 0.0
    %v5996 = vadd.f32 %v5994, %v5995
    %v5997 = vsel %vm5655, %v3768, 0.0
    %v5998 = vadd.f32 %v5996, %v5997
    %v5999 = vsel %vm5655, %v3769, 0.0
    %v6000 = vadd.f32 %v5998, %v5999
    %v6001 = vsel %vm5655, %v3770, 0.0
    %v6002 = vadd.f32 %v6000, %v6001
    %v6003 = vsel %vm5655, %v3771, 0.0
    %v6004 = vadd.f32 %v6002, %v6003
    %v6005 = vsel %vm5655, %v3772, 0.0
    %v6006 = vadd.f32 %v6004, %v6005
    %v6007 = vsel %vm5655, %v3773, 0.0
    %v6008 = vadd.f32 %v6006, %v6007
    %v6009 = vsel %vm5655, %v3774, 0.0
    %v6010 = vadd.f32 %v6008, %v6009
    %v6011 = vsel %vm5655, %v3775, 0.0
    %v6012 = vadd.f32 %v6010, %v6011
    %v6013 = vsel %vm5655, %v3776, 0.0
    %v6014 = vadd.f32 %v6012, %v6013
    %v6015 = vsel %vm5655, %v3777, 0.0
    %v6016 = vadd.f32 %v6014, %v6015
    %v6017 = vsel %vm5655, %v3778, 0.0
    %v6018 = vadd.f32 %v6016, %v6017
    %v6019 = vsel %vm5655, %v3779, 0.0
    %v6020 = vadd.f32 %v6018, %v6019
    %v6021 = vsel %vm5655, %v3780, 0.0
    %v6022 = vadd.f32 %v6020, %v6021
    %v6023 = vsel %vm5655, %v3781, 0.0
    %v6024 = vadd.f32 %v6022, %v6023
    %v6025 = vsel %vm5655, %v3782, 0.0
    %v6026 = vadd.f32 %v6024, %v6025
    %v6027 = vsel %vm5655, %v3783, 0.0
    %v6028 = vadd.f32 %v6026, %v6027
    %v6029 = vsel %vm5655, %v3784, 0.0
    %v6030 = vadd.f32 %v6028, %v6029
    %v6031 = vsel %vm5655, %v3785, 0.0
    %v6032 = vadd.f32 %v6030, %v6031
    %v6033 = vsel %vm5655, %v3786, 0.0
    %v6034 = vadd.f32 %v6032, %v6033
    %v6035 = vsel %vm5655, %v3787, 0.0
    %v6036 = vadd.f32 %v6034, %v6035
    %v6037 = vsel %vm5655, %v3788, 0.0
    %v6038 = vadd.f32 %v6036, %v6037
    %v6039 = vsel %vm5655, %v3789, 0.0
    %v6040 = vadd.f32 %v6038, %v6039
    %v6041 = vsel %vm5655, %v3790, 0.0
    %v6042 = vadd.f32 %v6040, %v6041
    %v6043 = vsel %vm5655, %v3791, 0.0
    %v6044 = vadd.f32 %v6042, %v6043
    %v6045 = vsel %vm5655, %v3792, 0.0
    %v6046 = vadd.f32 %v6044, %v6045
    %v6047 = vsel %vm5655, %v3793, 0.0
    %v6048 = vadd.f32 %v6046, %v6047
    %v6049 = vsel %vm5655, %v3794, 0.0
    %v6050 = vadd.f32 %v6048, %v6049
    %v6051 = vsel %vm5655, %v3795, 0.0
    %v6052 = vadd.f32 %v6050, %v6051
    %v6053 = vsel %vm5655, %v3796, 0.0
    %v6054 = vadd.f32 %v6052, %v6053
    %v6055 = vsel %vm5655, %v3797, 0.0
    %v6056 = vadd.f32 %v6054, %v6055
    %v6057 = vsel %vm5655, %v3798, 0.0
    %v6058 = vadd.f32 %v6056, %v6057
    %v6059 = vsel %vm5655, %v3799, 0.0
    %v6060 = vadd.f32 %v6058, %v6059
    %v6061 = vsel %vm5655, %v3800, 0.0
    %v6062 = vadd.f32 %v6060, %v6061
    %v6063 = vsel %vm5655, %v3801, 0.0
    %v6064 = vadd.f32 %v6062, %v6063
    %v6065 = vsel %vm5655, %v3802, 0.0
    %v6066 = vadd.f32 %v6064, %v6065
    %v6067 = vsel %vm5655, %v3803, 0.0
    %v6068 = vadd.f32 %v6066, %v6067
    %v6069 = vsel %vm5655, %v3804, 0.0
    %v6070 = vadd.f32 %v6068, %v6069
    %v6071 = vsel %vm5655, %v3805, 0.0
    %v6072 = vadd.f32 %v6070, %v6071
    %v6073 = vsel %vm5655, %v3806, 0.0
    %v6074 = vadd.f32 %v6072, %v6073
    %v6075 = vsel %vm5655, %v3807, 0.0
    %v6076 = vadd.f32 %v6074, %v6075
    %v6077 = vsel %vm5655, %v3808, 0.0
    %v6078 = vadd.f32 %v6076, %v6077
    %v6079 = vsel %vm5655, %v3809, 0.0
    %v6080 = vadd.f32 %v6078, %v6079
    %v6081 = vsel %vm5655, %v3810, 0.0
    %v6082 = vadd.f32 %v6080, %v6081
    %v6083 = vsel %vm5655, %v3811, 0.0
    %v6084 = vadd.f32 %v6082, %v6083
    %v6085 = vsel %vm5655, %v3812, 0.0
    %v6086 = vadd.f32 %v6084, %v6085
    %v6087 = vsel %vm5655, %v3813, 0.0
    %v6088 = vadd.f32 %v6086, %v6087
    %v6089 = vsel %vm5655, %v3814, 0.0
    %v6090 = vadd.f32 %v6088, %v6089
    %v6091 = vsel %vm5655, %v3815, 0.0
    %v6092 = vadd.f32 %v6090, %v6091
    %v6093 = vsel %vm5655, %v3816, 0.0
    %v6094 = vadd.f32 %v6092, %v6093
    %v6095 = vsel %vm5655, %v3817, 0.0
    %v6096 = vadd.f32 %v6094, %v6095
    %v6097 = vsel %vm5655, %v3818, 0.0
    %v6098 = vadd.f32 %v6096, %v6097
    %v6099 = vsel %vm5655, %v3819, 0.0
    %v6100 = vadd.f32 %v6098, %v6099
    %v6101 = vsel %vm5655, %v3820, 0.0
    %v6102 = vadd.f32 %v6100, %v6101
    %v6103 = vsel %vm5655, %v3821, 0.0
    %v6104 = vadd.f32 %v6102, %v6103
    %v6105 = vsel %vm5655, %v3822, 0.0
    %v6106 = vadd.f32 %v6104, %v6105
    %v6107 = vsel %vm5655, %v3823, 0.0
    %v6108 = vadd.f32 %v6106, %v6107
    %v6109 = vsel %vm5655, %v3824, 0.0
    %v6110 = vadd.f32 %v6108, %v6109
    %v6111 = vsel %vm5655, %v3825, 0.0
    %v6112 = vadd.f32 %v6110, %v6111
    %v6113 = vsel %vm5655, %v3826, 0.0
    %v6114 = vadd.f32 %v6112, %v6113
    %v6115 = vsel %vm5655, %v3827, 0.0
    %v6116 = vadd.f32 %v6114, %v6115
    %v6117 = vsel %vm5655, %v3828, 0.0
    %v6118 = vadd.f32 %v6116, %v6117
    %v6119 = vsel %vm5655, %v3829, 0.0
    %v6120 = vadd.f32 %v6118, %v6119
    %v6121 = vsel %vm5655, %v3830, 0.0
    %v6122 = vadd.f32 %v6120, %v6121
    %v6123 = vsel %vm5655, %v3831, 0.0
    %v6124 = vadd.f32 %v6122, %v6123
    %v6125 = vsel %vm5655, %v3832, 0.0
    %v6126 = vadd.f32 %v6124, %v6125
    %v6127 = vsel %vm5655, %v3833, 0.0
    %v6128 = vadd.f32 %v6126, %v6127
    %v6129 = vsel %vm5655, %v3834, 0.0
    %v6130 = vadd.f32 %v6128, %v6129
    %v6131 = vsel %vm5655, %v3835, 0.0
    %v6132 = vadd.f32 %v6130, %v6131
    %v6133 = vsel %vm5655, %v3836, 0.0
    %v6134 = vadd.f32 %v6132, %v6133
    %v6135 = vsel %vm5655, %v3837, 0.0
    %v6136 = vadd.f32 %v6134, %v6135
    %v6137 = vsel %vm5655, %v3838, 0.0
    %v6138 = vadd.f32 %v6136, %v6137
    %v6139 = vsel %vm5655, %v3839, 0.0
    %v6140 = vadd.f32 %v6138, %v6139
    %v6141 = vsel %vm5655, %v3840, 0.0
    %v6142 = vadd.f32 %v6140, %v6141
    %v6143 = vsel %vm5655, %v3841, 0.0
    %v6144 = vadd.f32 %v6142, %v6143
    %v6145 = vsel %vm5655, %v3842, 0.0
    %v6146 = vadd.f32 %v6144, %v6145
    %v6147 = vsel %vm5655, %v3843, 0.0
    %v6148 = vadd.f32 %v6146, %v6147
    %v6149 = vsel %vm5655, %v3844, 0.0
    %v6150 = vadd.f32 %v6148, %v6149
    %v6151 = vsel %vm5655, %v3845, 0.0
    %v6152 = vadd.f32 %v6150, %v6151
    %v6153 = vsel %vm5655, %v3846, 0.0
    %v6154 = vadd.f32 %v6152, %v6153
    %v6155 = vsel %vm5655, %v3847, 0.0
    %v6156 = vadd.f32 %v6154, %v6155
    %v6157 = vsel %vm5655, %v3848, 0.0
    %v6158 = vadd.f32 %v6156, %v6157
    %v6159 = vsel %vm5655, %v3849, 0.0
    %v6160 = vadd.f32 %v6158, %v6159
    %v6161 = vsel %vm5655, %v3850, 0.0
    %v6162 = vadd.f32 %v6160, %v6161
    %v6163 = vsel %vm5655, %v3851, 0.0
    %v6164 = vadd.f32 %v6162, %v6163
    %v6165 = vsel %vm5655, %v3852, 0.0
    %v6166 = vadd.f32 %v6164, %v6165
    %6167 = vadd.xlane.f32.xlu0 %v6166
    %v6168 = vpop.xlane.xlu0 %6167
    %v6169 = vrot.slane %v6168, 4
    %v6170 = vadd.f32 %v6168, %v6169
    %v6171 = vrot.slane %v6170, 2
    %v6172 = vadd.f32 %v6170, %v6171
    %v6173 = vrot.slane %v6172, 1
    %v6174 = vadd.f32 %v6172, %v6173
    %s6175 = vtos %v6174
    %s6176 = ssub.f32 %s6175, %s5654
    %v6177 = vsel %vm2829, 1, 0
    %v6178 = vsel %vm2830, 1, 0
    %v6179 = vsel %vm2831, 1, 0
    %v6180 = vsel %vm2832, 1, 0
    %v6181 = vsel %vm2833, 1, 0
    %v6182 = vsel %vm2834, 1, 0
    %v6183 = vsel %vm2835, 1, 0
    %v6184 = vsel %vm2836, 1, 0
    %v6185 = vsel %vm2837, 1, 0
    %v6186 = vsel %vm2838, 1, 0
    %v6187 = vsel %vm2839, 1, 0
    %v6188 = vsel %vm2840, 1, 0
    %v6189 = vsel %vm2841, 1, 0
    %v6190 = vsel %vm2842, 1, 0
    %v6191 = vsel %vm2843, 1, 0
    %v6192 = vsel %vm2844, 1, 0
    %v6193 = vsel %vm2845, 1, 0
    %v6194 = vsel %vm2846, 1, 0
    %v6195 = vsel %vm2847, 1, 0
    %v6196 = vsel %vm2848, 1, 0
    %v6197 = vsel %vm2849, 1, 0
    %v6198 = vsel %vm2850, 1, 0
    %v6199 = vsel %vm2851, 1, 0
    %v6200 = vsel %vm2852, 1, 0
    %v6201 = vsel %vm2853, 1, 0
    %v6202 = vsel %vm2854, 1, 0
    %v6203 = vsel %vm2855, 1, 0
    %v6204 = vsel %vm2856, 1, 0
    %v6205 = vsel %vm2857, 1, 0
    %v6206 = vsel %vm2858, 1, 0
    %v6207 = vsel %vm2859, 1, 0
    %v6208 = vsel %vm2860, 1, 0
    %v6209 = vsel %vm2861, 1, 0
    %v6210 = vsel %vm2862, 1, 0
    %v6211 = vsel %vm2863, 1, 0
    %v6212 = vsel %vm2864, 1, 0
    %v6213 = vsel %vm2865, 1, 0
    %v6214 = vsel %vm2866, 1, 0
    %v6215 = vsel %vm2867, 1, 0
    %v6216 = vsel %vm2868, 1, 0
    %v6217 = vsel %vm2869, 1, 0
    %v6218 = vsel %vm2870, 1, 0
    %v6219 = vsel %vm2871, 1, 0
    %v6220 = vsel %vm2872, 1, 0
    %v6221 = vsel %vm2873, 1, 0
    %v6222 = vsel %vm2874, 1, 0
    %v6223 = vsel %vm2875, 1, 0
    %v6224 = vsel %vm2876, 1, 0
    %v6225 = vsel %vm2877, 1, 0
    %v6226 = vsel %vm2878, 1, 0
    %v6227 = vsel %vm2879, 1, 0
    %v6228 = vsel %vm2880, 1, 0
    %v6229 = vsel %vm2881, 1, 0
    %v6230 = vsel %vm2882, 1, 0
    %v6231 = vsel %vm2883, 1, 0
    %v6232 = vsel %vm2884, 1, 0
    %v6233 = vsel %vm2885, 1, 0
    %v6234 = vsel %vm2886, 1, 0
    %v6235 = vsel %vm2887, 1, 0
    %v6236 = vsel %vm2888, 1, 0
    %v6237 = vsel %vm2889, 1, 0
    %v6238 = vsel %vm2890, 1, 0
    %v6239 = vsel %vm2891, 1, 0
    %v6240 = vsel %vm2892, 1, 0
    %v6241 = vsel %vm2893, 1, 0
    %v6242 = vsel %vm2894, 1, 0
    %v6243 = vsel %vm2895, 1, 0
    %v6244 = vsel %vm2896, 1, 0
    %v6245 = vsel %vm2897, 1, 0
    %v6246 = vsel %vm2898, 1, 0
    %v6247 = vsel %vm2899, 1, 0
    %v6248 = vsel %vm2900, 1, 0
    %v6249 = vsel %vm2901, 1, 0
    %v6250 = vsel %vm2902, 1, 0
    %v6251 = vsel %vm2903, 1, 0
    %v6252 = vsel %vm2904, 1, 0
    %v6253 = vsel %vm2905, 1, 0
    %v6254 = vsel %vm2906, 1, 0
    %v6255 = vsel %vm2907, 1, 0
    %v6256 = vsel %vm2908, 1, 0
    %v6257 = vsel %vm2909, 1, 0
    %v6258 = vsel %vm2910, 1, 0
    %v6259 = vsel %vm2911, 1, 0
    %v6260 = vsel %vm2912, 1, 0
    %v6261 = vsel %vm2913, 1, 0
    %v6262 = vsel %vm2914, 1, 0
    %v6263 = vsel %vm2915, 1, 0
    %v6264 = vsel %vm2916, 1, 0
    %v6265 = vsel %vm2917, 1, 0
    %v6266 = vsel %vm2918, 1, 0
    %v6267 = vsel %vm2919, 1, 0
    %v6268 = vsel %vm2920, 1, 0
    %v6269 = vsel %vm2921, 1, 0
    %v6270 = vsel %vm2922, 1, 0
    %v6271 = vsel %vm2923, 1, 0
    %v6272 = vsel %vm2924, 1, 0
    %v6273 = vsel %vm2925, 1, 0
    %v6274 = vsel %vm2926, 1, 0
    %v6275 = vsel %vm2927, 1, 0
    %v6276 = vsel %vm2928, 1, 0
    %v6277 = vsel %vm2929, 1, 0
    %v6278 = vsel %vm2930, 1, 0
    %v6279 = vsel %vm2931, 1, 0
    %v6280 = vsel %vm2932, 1, 0
    %v6281 = vsel %vm2933, 1, 0
    %v6282 = vsel %vm2934, 1, 0
    %v6283 = vsel %vm2935, 1, 0
    %v6284 = vsel %vm2936, 1, 0
    %v6285 = vsel %vm2937, 1, 0
    %v6286 = vsel %vm2938, 1, 0
    %v6287 = vsel %vm2939, 1, 0
    %v6288 = vsel %vm2940, 1, 0
    %v6289 = vsel %vm2941, 1, 0
    %v6290 = vsel %vm2942, 1, 0
    %v6291 = vsel %vm2943, 1, 0
    %v6292 = vsel %vm2944, 1, 0
    %v6293 = vsel %vm2945, 1, 0
    %v6294 = vsel %vm2946, 1, 0
    %v6295 = vsel %vm2947, 1, 0
    %v6296 = vsel %vm2948, 1, 0
    %v6297 = vsel %vm2949, 1, 0
    %v6298 = vsel %vm2950, 1, 0
    %v6299 = vsel %vm2951, 1, 0
    %v6300 = vsel %vm2952, 1, 0
    %v6301 = vsel %vm2953, 1, 0
    %v6302 = vsel %vm2954, 1, 0
    %v6303 = vsel %vm2955, 1, 0
    %v6304 = vsel %vm2956, 1, 0
    %v6305 = vsel %vm2957, 1, 0
    %v6306 = vsel %vm2958, 1, 0
    %v6307 = vsel %vm2959, 1, 0
    %v6308 = vsel %vm2960, 1, 0
    %v6309 = vsel %vm2961, 1, 0
    %v6310 = vsel %vm2962, 1, 0
    %v6311 = vsel %vm2963, 1, 0
    %v6312 = vsel %vm2964, 1, 0
    %v6313 = vsel %vm2965, 1, 0
    %v6314 = vsel %vm2966, 1, 0
    %v6315 = vsel %vm2967, 1, 0
    %v6316 = vsel %vm2968, 1, 0
    %v6317 = vsel %vm2969, 1, 0
    %v6318 = vsel %vm2970, 1, 0
    %v6319 = vsel %vm2971, 1, 0
    %v6320 = vsel %vm2972, 1, 0
    %v6321 = vsel %vm2973, 1, 0
    %v6322 = vsel %vm2974, 1, 0
    %v6323 = vsel %vm2975, 1, 0
    %v6324 = vsel %vm2976, 1, 0
    %v6325 = vsel %vm2977, 1, 0
    %v6326 = vsel %vm2978, 1, 0
    %v6327 = vsel %vm2979, 1, 0
    %v6328 = vsel %vm2980, 1, 0
    %v6329 = vsel %vm2981, 1, 0
    %v6330 = vsel %vm2982, 1, 0
    %v6331 = vsel %vm2983, 1, 0
    %v6332 = vsel %vm2984, 1, 0
    %v6333 = vsel %vm2985, 1, 0
    %v6334 = vsel %vm2986, 1, 0
    %v6335 = vsel %vm2987, 1, 0
    %v6336 = vsel %vm2988, 1, 0
    %v6337 = vsel %vm2989, 1, 0
    %v6338 = vsel %vm2990, 1, 0
    %v6339 = vsel %vm2991, 1, 0
    %v6340 = vsel %vm2992, 1, 0
    %v6341 = vsel %vm2993, 1, 0
    %v6342 = vsel %vm2994, 1, 0
    %v6343 = vsel %vm2995, 1, 0
    %v6344 = vsel %vm2996, 1, 0
    %v6345 = vsel %vm2997, 1, 0
    %v6346 = vsel %vm2998, 1, 0
    %v6347 = vsel %vm2999, 1, 0
    %v6348 = vsel %vm3000, 1, 0
    %v6349 = vsel %vm3001, 1, 0
    %v6350 = vsel %vm3002, 1, 0
    %v6351 = vsel %vm3003, 1, 0
    %v6352 = vsel %vm3004, 1, 0
    %v6353 = vsel %vm3005, 1, 0
    %v6354 = vsel %vm3006, 1, 0
    %v6355 = vsel %vm3007, 1, 0
    %v6356 = vsel %vm3008, 1, 0
    %v6357 = vsel %vm3009, 1, 0
    %v6358 = vsel %vm3010, 1, 0
    %v6359 = vsel %vm3011, 1, 0
    %v6360 = vsel %vm3012, 1, 0
    %v6361 = vsel %vm3013, 1, 0
    %v6362 = vsel %vm3014, 1, 0
    %v6363 = vsel %vm3015, 1, 0
    %v6364 = vsel %vm3016, 1, 0
    %v6365 = vsel %vm3017, 1, 0
    %v6366 = vsel %vm3018, 1, 0
    %v6367 = vsel %vm3019, 1, 0
    %v6368 = vsel %vm3020, 1, 0
    %v6369 = vsel %vm3021, 1, 0
    %v6370 = vsel %vm3022, 1, 0
    %v6371 = vsel %vm3023, 1, 0
    %v6372 = vsel %vm3024, 1, 0
    %v6373 = vsel %vm3025, 1, 0
    %v6374 = vsel %vm3026, 1, 0
    %v6375 = vsel %vm3027, 1, 0
    %v6376 = vsel %vm3028, 1, 0
    %v6377 = vsel %vm3029, 1, 0
    %v6378 = vsel %vm3030, 1, 0
    %v6379 = vsel %vm3031, 1, 0
    %v6380 = vsel %vm3032, 1, 0
    %v6381 = vsel %vm3033, 1, 0
    %v6382 = vsel %vm3034, 1, 0
    %v6383 = vsel %vm3035, 1, 0
    %v6384 = vsel %vm3036, 1, 0
    %v6385 = vsel %vm3037, 1, 0
    %v6386 = vsel %vm3038, 1, 0
    %v6387 = vsel %vm3039, 1, 0
    %v6388 = vsel %vm3040, 1, 0
    %v6389 = vsel %vm3041, 1, 0
    %v6390 = vsel %vm3042, 1, 0
    %v6391 = vsel %vm3043, 1, 0
    %v6392 = vsel %vm3044, 1, 0
    %v6393 = vsel %vm3045, 1, 0
    %v6394 = vsel %vm3046, 1, 0
    %v6395 = vsel %vm3047, 1, 0
    %v6396 = vsel %vm3048, 1, 0
    %v6397 = vsel %vm3049, 1, 0
    %v6398 = vsel %vm3050, 1, 0
    %v6399 = vsel %vm3051, 1, 0
    %v6400 = vsel %vm3052, 1, 0
    %v6401 = vsel %vm3053, 1, 0
    %v6402 = vsel %vm3054, 1, 0
    %v6403 = vsel %vm3055, 1, 0
    %v6404 = vsel %vm3056, 1, 0
    %v6405 = vsel %vm3057, 1, 0
    %v6406 = vsel %vm3058, 1, 0
    %v6407 = vsel %vm3059, 1, 0
    %v6408 = vsel %vm3060, 1, 0
    %v6409 = vsel %vm3061, 1, 0
    %v6410 = vsel %vm3062, 1, 0
    %v6411 = vsel %vm3063, 1, 0
    %v6412 = vsel %vm3064, 1, 0
    %v6413 = vsel %vm3065, 1, 0
    %v6414 = vsel %vm3066, 1, 0
    %v6415 = vsel %vm3067, 1, 0
    %v6416 = vsel %vm3068, 1, 0
    %v6417 = vsel %vm3069, 1, 0
    %v6418 = vsel %vm3070, 1, 0
    %v6419 = vsel %vm3071, 1, 0
    %v6420 = vsel %vm3072, 1, 0
    %v6421 = vsel %vm3073, 1, 0
    %v6422 = vsel %vm3074, 1, 0
    %v6423 = vsel %vm3075, 1, 0
    %v6424 = vsel %vm3076, 1, 0
    %v6425 = vsel %vm3077, 1, 0
    %v6426 = vsel %vm3078, 1, 0
    %v6427 = vsel %vm3079, 1, 0
    %v6428 = vsel %vm3080, 1, 0
    %v6429 = vsel %vm3081, 1, 0
    %v6430 = vsel %vm3082, 1, 0
    %v6431 = vsel %vm3083, 1, 0
    %v6432 = vsel %vm3084, 1, 0
    %v6433 = vcvt.s32.f32 %v6177
    %v6434 = vcvt.s32.f32 %v6178
    %v6435 = vcvt.s32.f32 %v6179
    %v6436 = vcvt.s32.f32 %v6180
    %v6437 = vcvt.s32.f32 %v6181
    %v6438 = vcvt.s32.f32 %v6182
    %v6439 = vcvt.s32.f32 %v6183
    %v6440 = vcvt.s32.f32 %v6184
    %v6441 = vcvt.s32.f32 %v6185
    %v6442 = vcvt.s32.f32 %v6186
    %v6443 = vcvt.s32.f32 %v6187
    %v6444 = vcvt.s32.f32 %v6188
    %v6445 = vcvt.s32.f32 %v6189
    %v6446 = vcvt.s32.f32 %v6190
    %v6447 = vcvt.s32.f32 %v6191
    %v6448 = vcvt.s32.f32 %v6192
    %v6449 = vcvt.s32.f32 %v6193
    %v6450 = vcvt.s32.f32 %v6194
    %v6451 = vcvt.s32.f32 %v6195
    %v6452 = vcvt.s32.f32 %v6196
    %v6453 = vcvt.s32.f32 %v6197
    %v6454 = vcvt.s32.f32 %v6198
    %v6455 = vcvt.s32.f32 %v6199
    %v6456 = vcvt.s32.f32 %v6200
    %v6457 = vcvt.s32.f32 %v6201
    %v6458 = vcvt.s32.f32 %v6202
    %v6459 = vcvt.s32.f32 %v6203
    %v6460 = vcvt.s32.f32 %v6204
    %v6461 = vcvt.s32.f32 %v6205
    %v6462 = vcvt.s32.f32 %v6206
    %v6463 = vcvt.s32.f32 %v6207
    %v6464 = vcvt.s32.f32 %v6208
    %v6465 = vcvt.s32.f32 %v6209
    %v6466 = vcvt.s32.f32 %v6210
    %v6467 = vcvt.s32.f32 %v6211
    %v6468 = vcvt.s32.f32 %v6212
    %v6469 = vcvt.s32.f32 %v6213
    %v6470 = vcvt.s32.f32 %v6214
    %v6471 = vcvt.s32.f32 %v6215
    %v6472 = vcvt.s32.f32 %v6216
    %v6473 = vcvt.s32.f32 %v6217
    %v6474 = vcvt.s32.f32 %v6218
    %v6475 = vcvt.s32.f32 %v6219
    %v6476 = vcvt.s32.f32 %v6220
    %v6477 = vcvt.s32.f32 %v6221
    %v6478 = vcvt.s32.f32 %v6222
    %v6479 = vcvt.s32.f32 %v6223
    %v6480 = vcvt.s32.f32 %v6224
    %v6481 = vcvt.s32.f32 %v6225
    %v6482 = vcvt.s32.f32 %v6226
    %v6483 = vcvt.s32.f32 %v6227
    %v6484 = vcvt.s32.f32 %v6228
    %v6485 = vcvt.s32.f32 %v6229
    %v6486 = vcvt.s32.f32 %v6230
    %v6487 = vcvt.s32.f32 %v6231
    %v6488 = vcvt.s32.f32 %v6232
    %v6489 = vcvt.s32.f32 %v6233
    %v6490 = vcvt.s32.f32 %v6234
    %v6491 = vcvt.s32.f32 %v6235
    %v6492 = vcvt.s32.f32 %v6236
    %v6493 = vcvt.s32.f32 %v6237
    %v6494 = vcvt.s32.f32 %v6238
    %v6495 = vcvt.s32.f32 %v6239
    %v6496 = vcvt.s32.f32 %v6240
    %v6497 = vcvt.s32.f32 %v6241
    %v6498 = vcvt.s32.f32 %v6242
    %v6499 = vcvt.s32.f32 %v6243
    %v6500 = vcvt.s32.f32 %v6244
    %v6501 = vcvt.s32.f32 %v6245
    %v6502 = vcvt.s32.f32 %v6246
    %v6503 = vcvt.s32.f32 %v6247
    %v6504 = vcvt.s32.f32 %v6248
    %v6505 = vcvt.s32.f32 %v6249
    %v6506 = vcvt.s32.f32 %v6250
    %v6507 = vcvt.s32.f32 %v6251
    %v6508 = vcvt.s32.f32 %v6252
    %v6509 = vcvt.s32.f32 %v6253
    %v6510 = vcvt.s32.f32 %v6254
    %v6511 = vcvt.s32.f32 %v6255
    %v6512 = vcvt.s32.f32 %v6256
    %v6513 = vcvt.s32.f32 %v6257
    %v6514 = vcvt.s32.f32 %v6258
    %v6515 = vcvt.s32.f32 %v6259
    %v6516 = vcvt.s32.f32 %v6260
    %v6517 = vcvt.s32.f32 %v6261
    %v6518 = vcvt.s32.f32 %v6262
    %v6519 = vcvt.s32.f32 %v6263
    %v6520 = vcvt.s32.f32 %v6264
    %v6521 = vcvt.s32.f32 %v6265
    %v6522 = vcvt.s32.f32 %v6266
    %v6523 = vcvt.s32.f32 %v6267
    %v6524 = vcvt.s32.f32 %v6268
    %v6525 = vcvt.s32.f32 %v6269
    %v6526 = vcvt.s32.f32 %v6270
    %v6527 = vcvt.s32.f32 %v6271
    %v6528 = vcvt.s32.f32 %v6272
    %v6529 = vcvt.s32.f32 %v6273
    %v6530 = vcvt.s32.f32 %v6274
    %v6531 = vcvt.s32.f32 %v6275
    %v6532 = vcvt.s32.f32 %v6276
    %v6533 = vcvt.s32.f32 %v6277
    %v6534 = vcvt.s32.f32 %v6278
    %v6535 = vcvt.s32.f32 %v6279
    %v6536 = vcvt.s32.f32 %v6280
    %v6537 = vcvt.s32.f32 %v6281
    %v6538 = vcvt.s32.f32 %v6282
    %v6539 = vcvt.s32.f32 %v6283
    %v6540 = vcvt.s32.f32 %v6284
    %v6541 = vcvt.s32.f32 %v6285
    %v6542 = vcvt.s32.f32 %v6286
    %v6543 = vcvt.s32.f32 %v6287
    %v6544 = vcvt.s32.f32 %v6288
    %v6545 = vcvt.s32.f32 %v6289
    %v6546 = vcvt.s32.f32 %v6290
    %v6547 = vcvt.s32.f32 %v6291
    %v6548 = vcvt.s32.f32 %v6292
    %v6549 = vcvt.s32.f32 %v6293
    %v6550 = vcvt.s32.f32 %v6294
    %v6551 = vcvt.s32.f32 %v6295
    %v6552 = vcvt.s32.f32 %v6296
    %v6553 = vcvt.s32.f32 %v6297
    %v6554 = vcvt.s32.f32 %v6298
    %v6555 = vcvt.s32.f32 %v6299
    %v6556 = vcvt.s32.f32 %v6300
    %v6557 = vcvt.s32.f32 %v6301
    %v6558 = vcvt.s32.f32 %v6302
    %v6559 = vcvt.s32.f32 %v6303
    %v6560 = vcvt.s32.f32 %v6304
    %v6561 = vcvt.s32.f32 %v6305
    %v6562 = vcvt.s32.f32 %v6306
    %v6563 = vcvt.s32.f32 %v6307
    %v6564 = vcvt.s32.f32 %v6308
    %v6565 = vcvt.s32.f32 %v6309
    %v6566 = vcvt.s32.f32 %v6310
    %v6567 = vcvt.s32.f32 %v6311
    %v6568 = vcvt.s32.f32 %v6312
    %v6569 = vcvt.s32.f32 %v6313
    %v6570 = vcvt.s32.f32 %v6314
    %v6571 = vcvt.s32.f32 %v6315
    %v6572 = vcvt.s32.f32 %v6316
    %v6573 = vcvt.s32.f32 %v6317
    %v6574 = vcvt.s32.f32 %v6318
    %v6575 = vcvt.s32.f32 %v6319
    %v6576 = vcvt.s32.f32 %v6320
    %v6577 = vcvt.s32.f32 %v6321
    %v6578 = vcvt.s32.f32 %v6322
    %v6579 = vcvt.s32.f32 %v6323
    %v6580 = vcvt.s32.f32 %v6324
    %v6581 = vcvt.s32.f32 %v6325
    %v6582 = vcvt.s32.f32 %v6326
    %v6583 = vcvt.s32.f32 %v6327
    %v6584 = vcvt.s32.f32 %v6328
    %v6585 = vcvt.s32.f32 %v6329
    %v6586 = vcvt.s32.f32 %v6330
    %v6587 = vcvt.s32.f32 %v6331
    %v6588 = vcvt.s32.f32 %v6332
    %v6589 = vcvt.s32.f32 %v6333
    %v6590 = vcvt.s32.f32 %v6334
    %v6591 = vcvt.s32.f32 %v6335
    %v6592 = vcvt.s32.f32 %v6336
    %v6593 = vcvt.s32.f32 %v6337
    %v6594 = vcvt.s32.f32 %v6338
    %v6595 = vcvt.s32.f32 %v6339
    %v6596 = vcvt.s32.f32 %v6340
    %v6597 = vcvt.s32.f32 %v6341
    %v6598 = vcvt.s32.f32 %v6342
    %v6599 = vcvt.s32.f32 %v6343
    %v6600 = vcvt.s32.f32 %v6344
    %v6601 = vcvt.s32.f32 %v6345
    %v6602 = vcvt.s32.f32 %v6346
    %v6603 = vcvt.s32.f32 %v6347
    %v6604 = vcvt.s32.f32 %v6348
    %v6605 = vcvt.s32.f32 %v6349
    %v6606 = vcvt.s32.f32 %v6350
    %v6607 = vcvt.s32.f32 %v6351
    %v6608 = vcvt.s32.f32 %v6352
    %v6609 = vcvt.s32.f32 %v6353
    %v6610 = vcvt.s32.f32 %v6354
    %v6611 = vcvt.s32.f32 %v6355
    %v6612 = vcvt.s32.f32 %v6356
    %v6613 = vcvt.s32.f32 %v6357
    %v6614 = vcvt.s32.f32 %v6358
    %v6615 = vcvt.s32.f32 %v6359
    %v6616 = vcvt.s32.f32 %v6360
    %v6617 = vcvt.s32.f32 %v6361
    %v6618 = vcvt.s32.f32 %v6362
    %v6619 = vcvt.s32.f32 %v6363
    %v6620 = vcvt.s32.f32 %v6364
    %v6621 = vcvt.s32.f32 %v6365
    %v6622 = vcvt.s32.f32 %v6366
    %v6623 = vcvt.s32.f32 %v6367
    %v6624 = vcvt.s32.f32 %v6368
    %v6625 = vcvt.s32.f32 %v6369
    %v6626 = vcvt.s32.f32 %v6370
    %v6627 = vcvt.s32.f32 %v6371
    %v6628 = vcvt.s32.f32 %v6372
    %v6629 = vcvt.s32.f32 %v6373
    %v6630 = vcvt.s32.f32 %v6374
    %v6631 = vcvt.s32.f32 %v6375
    %v6632 = vcvt.s32.f32 %v6376
    %v6633 = vcvt.s32.f32 %v6377
    %v6634 = vcvt.s32.f32 %v6378
    %v6635 = vcvt.s32.f32 %v6379
    %v6636 = vcvt.s32.f32 %v6380
    %v6637 = vcvt.s32.f32 %v6381
    %v6638 = vcvt.s32.f32 %v6382
    %v6639 = vcvt.s32.f32 %v6383
    %v6640 = vcvt.s32.f32 %v6384
    %v6641 = vcvt.s32.f32 %v6385
    %v6642 = vcvt.s32.f32 %v6386
    %v6643 = vcvt.s32.f32 %v6387
    %v6644 = vcvt.s32.f32 %v6388
    %v6645 = vcvt.s32.f32 %v6389
    %v6646 = vcvt.s32.f32 %v6390
    %v6647 = vcvt.s32.f32 %v6391
    %v6648 = vcvt.s32.f32 %v6392
    %v6649 = vcvt.s32.f32 %v6393
    %v6650 = vcvt.s32.f32 %v6394
    %v6651 = vcvt.s32.f32 %v6395
    %v6652 = vcvt.s32.f32 %v6396
    %v6653 = vcvt.s32.f32 %v6397
    %v6654 = vcvt.s32.f32 %v6398
    %v6655 = vcvt.s32.f32 %v6399
    %v6656 = vcvt.s32.f32 %v6400
    %v6657 = vcvt.s32.f32 %v6401
    %v6658 = vcvt.s32.f32 %v6402
    %v6659 = vcvt.s32.f32 %v6403
    %v6660 = vcvt.s32.f32 %v6404
    %v6661 = vcvt.s32.f32 %v6405
    %v6662 = vcvt.s32.f32 %v6406
    %v6663 = vcvt.s32.f32 %v6407
    %v6664 = vcvt.s32.f32 %v6408
    %v6665 = vcvt.s32.f32 %v6409
    %v6666 = vcvt.s32.f32 %v6410
    %v6667 = vcvt.s32.f32 %v6411
    %v6668 = vcvt.s32.f32 %v6412
    %v6669 = vcvt.s32.f32 %v6413
    %v6670 = vcvt.s32.f32 %v6414
    %v6671 = vcvt.s32.f32 %v6415
    %v6672 = vcvt.s32.f32 %v6416
    %v6673 = vcvt.s32.f32 %v6417
    %v6674 = vcvt.s32.f32 %v6418
    %v6675 = vcvt.s32.f32 %v6419
    %v6676 = vcvt.s32.f32 %v6420
    %v6677 = vcvt.s32.f32 %v6421
    %v6678 = vcvt.s32.f32 %v6422
    %v6679 = vcvt.s32.f32 %v6423
    %v6680 = vcvt.s32.f32 %v6424
    %v6681 = vcvt.s32.f32 %v6425
    %v6682 = vcvt.s32.f32 %v6426
    %v6683 = vcvt.s32.f32 %v6427
    %v6684 = vcvt.s32.f32 %v6428
    %v6685 = vcvt.s32.f32 %v6429
    %v6686 = vcvt.s32.f32 %v6430
    %v6687 = vcvt.s32.f32 %v6431
    %v6688 = vcvt.s32.f32 %v6432
    %v6689 = vsel %vm5655, %v6433, 0.0
    %v6690 = vsel %vm5655, %v6434, 0.0
    %v6691 = vadd.f32 %v6689, %v6690
    %v6692 = vsel %vm5655, %v6435, 0.0
    %v6693 = vadd.f32 %v6691, %v6692
    %v6694 = vsel %vm5655, %v6436, 0.0
    %v6695 = vadd.f32 %v6693, %v6694
    %v6696 = vsel %vm5655, %v6437, 0.0
    %v6697 = vadd.f32 %v6695, %v6696
    %v6698 = vsel %vm5655, %v6438, 0.0
    %v6699 = vadd.f32 %v6697, %v6698
    %v6700 = vsel %vm5655, %v6439, 0.0
    %v6701 = vadd.f32 %v6699, %v6700
    %v6702 = vsel %vm5655, %v6440, 0.0
    %v6703 = vadd.f32 %v6701, %v6702
    %v6704 = vsel %vm5655, %v6441, 0.0
    %v6705 = vadd.f32 %v6703, %v6704
    %v6706 = vsel %vm5655, %v6442, 0.0
    %v6707 = vadd.f32 %v6705, %v6706
    %v6708 = vsel %vm5655, %v6443, 0.0
    %v6709 = vadd.f32 %v6707, %v6708
    %v6710 = vsel %vm5655, %v6444, 0.0
    %v6711 = vadd.f32 %v6709, %v6710
    %v6712 = vsel %vm5655, %v6445, 0.0
    %v6713 = vadd.f32 %v6711, %v6712
    %v6714 = vsel %vm5655, %v6446, 0.0
    %v6715 = vadd.f32 %v6713, %v6714
    %v6716 = vsel %vm5655, %v6447, 0.0
    %v6717 = vadd.f32 %v6715, %v6716
    %v6718 = vsel %vm5655, %v6448, 0.0
    %v6719 = vadd.f32 %v6717, %v6718
    %v6720 = vsel %vm5655, %v6449, 0.0
    %v6721 = vadd.f32 %v6719, %v6720
    %v6722 = vsel %vm5655, %v6450, 0.0
    %v6723 = vadd.f32 %v6721, %v6722
    %v6724 = vsel %vm5655, %v6451, 0.0
    %v6725 = vadd.f32 %v6723, %v6724
    %v6726 = vsel %vm5655, %v6452, 0.0
    %v6727 = vadd.f32 %v6725, %v6726
    %v6728 = vsel %vm5655, %v6453, 0.0
    %v6729 = vadd.f32 %v6727, %v6728
    %v6730 = vsel %vm5655, %v6454, 0.0
    %v6731 = vadd.f32 %v6729, %v6730
    %v6732 = vsel %vm5655, %v6455, 0.0
    %v6733 = vadd.f32 %v6731, %v6732
    %v6734 = vsel %vm5655, %v6456, 0.0
    %v6735 = vadd.f32 %v6733, %v6734
    %v6736 = vsel %vm5655, %v6457, 0.0
    %v6737 = vadd.f32 %v6735, %v6736
    %v6738 = vsel %vm5655, %v6458, 0.0
    %v6739 = vadd.f32 %v6737, %v6738
    %v6740 = vsel %vm5655, %v6459, 0.0
    %v6741 = vadd.f32 %v6739, %v6740
    %v6742 = vsel %vm5655, %v6460, 0.0
    %v6743 = vadd.f32 %v6741, %v6742
    %v6744 = vsel %vm5655, %v6461, 0.0
    %v6745 = vadd.f32 %v6743, %v6744
    %v6746 = vsel %vm5655, %v6462, 0.0
    %v6747 = vadd.f32 %v6745, %v6746
    %v6748 = vsel %vm5655, %v6463, 0.0
    %v6749 = vadd.f32 %v6747, %v6748
    %v6750 = vsel %vm5655, %v6464, 0.0
    %v6751 = vadd.f32 %v6749, %v6750
    %v6752 = vsel %vm5655, %v6465, 0.0
    %v6753 = vadd.f32 %v6751, %v6752
    %v6754 = vsel %vm5655, %v6466, 0.0
    %v6755 = vadd.f32 %v6753, %v6754
    %v6756 = vsel %vm5655, %v6467, 0.0
    %v6757 = vadd.f32 %v6755, %v6756
    %v6758 = vsel %vm5655, %v6468, 0.0
    %v6759 = vadd.f32 %v6757, %v6758
    %v6760 = vsel %vm5655, %v6469, 0.0
    %v6761 = vadd.f32 %v6759, %v6760
    %v6762 = vsel %vm5655, %v6470, 0.0
    %v6763 = vadd.f32 %v6761, %v6762
    %v6764 = vsel %vm5655, %v6471, 0.0
    %v6765 = vadd.f32 %v6763, %v6764
    %v6766 = vsel %vm5655, %v6472, 0.0
    %v6767 = vadd.f32 %v6765, %v6766
    %v6768 = vsel %vm5655, %v6473, 0.0
    %v6769 = vadd.f32 %v6767, %v6768
    %v6770 = vsel %vm5655, %v6474, 0.0
    %v6771 = vadd.f32 %v6769, %v6770
    %v6772 = vsel %vm5655, %v6475, 0.0
    %v6773 = vadd.f32 %v6771, %v6772
    %v6774 = vsel %vm5655, %v6476, 0.0
    %v6775 = vadd.f32 %v6773, %v6774
    %v6776 = vsel %vm5655, %v6477, 0.0
    %v6777 = vadd.f32 %v6775, %v6776
    %v6778 = vsel %vm5655, %v6478, 0.0
    %v6779 = vadd.f32 %v6777, %v6778
    %v6780 = vsel %vm5655, %v6479, 0.0
    %v6781 = vadd.f32 %v6779, %v6780
    %v6782 = vsel %vm5655, %v6480, 0.0
    %v6783 = vadd.f32 %v6781, %v6782
    %v6784 = vsel %vm5655, %v6481, 0.0
    %v6785 = vadd.f32 %v6783, %v6784
    %v6786 = vsel %vm5655, %v6482, 0.0
    %v6787 = vadd.f32 %v6785, %v6786
    %v6788 = vsel %vm5655, %v6483, 0.0
    %v6789 = vadd.f32 %v6787, %v6788
    %v6790 = vsel %vm5655, %v6484, 0.0
    %v6791 = vadd.f32 %v6789, %v6790
    %v6792 = vsel %vm5655, %v6485, 0.0
    %v6793 = vadd.f32 %v6791, %v6792
    %v6794 = vsel %vm5655, %v6486, 0.0
    %v6795 = vadd.f32 %v6793, %v6794
    %v6796 = vsel %vm5655, %v6487, 0.0
    %v6797 = vadd.f32 %v6795, %v6796
    %v6798 = vsel %vm5655, %v6488, 0.0
    %v6799 = vadd.f32 %v6797, %v6798
    %v6800 = vsel %vm5655, %v6489, 0.0
    %v6801 = vadd.f32 %v6799, %v6800
    %v6802 = vsel %vm5655, %v6490, 0.0
    %v6803 = vadd.f32 %v6801, %v6802
    %v6804 = vsel %vm5655, %v6491, 0.0
    %v6805 = vadd.f32 %v6803, %v6804
    %v6806 = vsel %vm5655, %v6492, 0.0
    %v6807 = vadd.f32 %v6805, %v6806
    %v6808 = vsel %vm5655, %v6493, 0.0
    %v6809 = vadd.f32 %v6807, %v6808
    %v6810 = vsel %vm5655, %v6494, 0.0
    %v6811 = vadd.f32 %v6809, %v6810
    %v6812 = vsel %vm5655, %v6495, 0.0
    %v6813 = vadd.f32 %v6811, %v6812
    %v6814 = vsel %vm5655, %v6496, 0.0
    %v6815 = vadd.f32 %v6813, %v6814
    %v6816 = vsel %vm5655, %v6497, 0.0
    %v6817 = vadd.f32 %v6815, %v6816
    %v6818 = vsel %vm5655, %v6498, 0.0
    %v6819 = vadd.f32 %v6817, %v6818
    %v6820 = vsel %vm5655, %v6499, 0.0
    %v6821 = vadd.f32 %v6819, %v6820
    %v6822 = vsel %vm5655, %v6500, 0.0
    %v6823 = vadd.f32 %v6821, %v6822
    %v6824 = vsel %vm5655, %v6501, 0.0
    %v6825 = vadd.f32 %v6823, %v6824
    %v6826 = vsel %vm5655, %v6502, 0.0
    %v6827 = vadd.f32 %v6825, %v6826
    %v6828 = vsel %vm5655, %v6503, 0.0
    %v6829 = vadd.f32 %v6827, %v6828
    %v6830 = vsel %vm5655, %v6504, 0.0
    %v6831 = vadd.f32 %v6829, %v6830
    %v6832 = vsel %vm5655, %v6505, 0.0
    %v6833 = vadd.f32 %v6831, %v6832
    %v6834 = vsel %vm5655, %v6506, 0.0
    %v6835 = vadd.f32 %v6833, %v6834
    %v6836 = vsel %vm5655, %v6507, 0.0
    %v6837 = vadd.f32 %v6835, %v6836
    %v6838 = vsel %vm5655, %v6508, 0.0
    %v6839 = vadd.f32 %v6837, %v6838
    %v6840 = vsel %vm5655, %v6509, 0.0
    %v6841 = vadd.f32 %v6839, %v6840
    %v6842 = vsel %vm5655, %v6510, 0.0
    %v6843 = vadd.f32 %v6841, %v6842
    %v6844 = vsel %vm5655, %v6511, 0.0
    %v6845 = vadd.f32 %v6843, %v6844
    %v6846 = vsel %vm5655, %v6512, 0.0
    %v6847 = vadd.f32 %v6845, %v6846
    %v6848 = vsel %vm5655, %v6513, 0.0
    %v6849 = vadd.f32 %v6847, %v6848
    %v6850 = vsel %vm5655, %v6514, 0.0
    %v6851 = vadd.f32 %v6849, %v6850
    %v6852 = vsel %vm5655, %v6515, 0.0
    %v6853 = vadd.f32 %v6851, %v6852
    %v6854 = vsel %vm5655, %v6516, 0.0
    %v6855 = vadd.f32 %v6853, %v6854
    %v6856 = vsel %vm5655, %v6517, 0.0
    %v6857 = vadd.f32 %v6855, %v6856
    %v6858 = vsel %vm5655, %v6518, 0.0
    %v6859 = vadd.f32 %v6857, %v6858
    %v6860 = vsel %vm5655, %v6519, 0.0
    %v6861 = vadd.f32 %v6859, %v6860
    %v6862 = vsel %vm5655, %v6520, 0.0
    %v6863 = vadd.f32 %v6861, %v6862
    %v6864 = vsel %vm5655, %v6521, 0.0
    %v6865 = vadd.f32 %v6863, %v6864
    %v6866 = vsel %vm5655, %v6522, 0.0
    %v6867 = vadd.f32 %v6865, %v6866
    %v6868 = vsel %vm5655, %v6523, 0.0
    %v6869 = vadd.f32 %v6867, %v6868
    %v6870 = vsel %vm5655, %v6524, 0.0
    %v6871 = vadd.f32 %v6869, %v6870
    %v6872 = vsel %vm5655, %v6525, 0.0
    %v6873 = vadd.f32 %v6871, %v6872
    %v6874 = vsel %vm5655, %v6526, 0.0
    %v6875 = vadd.f32 %v6873, %v6874
    %v6876 = vsel %vm5655, %v6527, 0.0
    %v6877 = vadd.f32 %v6875, %v6876
    %v6878 = vsel %vm5655, %v6528, 0.0
    %v6879 = vadd.f32 %v6877, %v6878
    %v6880 = vsel %vm5655, %v6529, 0.0
    %v6881 = vadd.f32 %v6879, %v6880
    %v6882 = vsel %vm5655, %v6530, 0.0
    %v6883 = vadd.f32 %v6881, %v6882
    %v6884 = vsel %vm5655, %v6531, 0.0
    %v6885 = vadd.f32 %v6883, %v6884
    %v6886 = vsel %vm5655, %v6532, 0.0
    %v6887 = vadd.f32 %v6885, %v6886
    %v6888 = vsel %vm5655, %v6533, 0.0
    %v6889 = vadd.f32 %v6887, %v6888
    %v6890 = vsel %vm5655, %v6534, 0.0
    %v6891 = vadd.f32 %v6889, %v6890
    %v6892 = vsel %vm5655, %v6535, 0.0
    %v6893 = vadd.f32 %v6891, %v6892
    %v6894 = vsel %vm5655, %v6536, 0.0
    %v6895 = vadd.f32 %v6893, %v6894
    %v6896 = vsel %vm5655, %v6537, 0.0
    %v6897 = vadd.f32 %v6895, %v6896
    %v6898 = vsel %vm5655, %v6538, 0.0
    %v6899 = vadd.f32 %v6897, %v6898
    %v6900 = vsel %vm5655, %v6539, 0.0
    %v6901 = vadd.f32 %v6899, %v6900
    %v6902 = vsel %vm5655, %v6540, 0.0
    %v6903 = vadd.f32 %v6901, %v6902
    %v6904 = vsel %vm5655, %v6541, 0.0
    %v6905 = vadd.f32 %v6903, %v6904
    %v6906 = vsel %vm5655, %v6542, 0.0
    %v6907 = vadd.f32 %v6905, %v6906
    %v6908 = vsel %vm5655, %v6543, 0.0
    %v6909 = vadd.f32 %v6907, %v6908
    %v6910 = vsel %vm5655, %v6544, 0.0
    %v6911 = vadd.f32 %v6909, %v6910
    %v6912 = vsel %vm5655, %v6545, 0.0
    %v6913 = vadd.f32 %v6911, %v6912
    %v6914 = vsel %vm5655, %v6546, 0.0
    %v6915 = vadd.f32 %v6913, %v6914
    %v6916 = vsel %vm5655, %v6547, 0.0
    %v6917 = vadd.f32 %v6915, %v6916
    %v6918 = vsel %vm5655, %v6548, 0.0
    %v6919 = vadd.f32 %v6917, %v6918
    %v6920 = vsel %vm5655, %v6549, 0.0
    %v6921 = vadd.f32 %v6919, %v6920
    %v6922 = vsel %vm5655, %v6550, 0.0
    %v6923 = vadd.f32 %v6921, %v6922
    %v6924 = vsel %vm5655, %v6551, 0.0
    %v6925 = vadd.f32 %v6923, %v6924
    %v6926 = vsel %vm5655, %v6552, 0.0
    %v6927 = vadd.f32 %v6925, %v6926
    %v6928 = vsel %vm5655, %v6553, 0.0
    %v6929 = vadd.f32 %v6927, %v6928
    %v6930 = vsel %vm5655, %v6554, 0.0
    %v6931 = vadd.f32 %v6929, %v6930
    %v6932 = vsel %vm5655, %v6555, 0.0
    %v6933 = vadd.f32 %v6931, %v6932
    %v6934 = vsel %vm5655, %v6556, 0.0
    %v6935 = vadd.f32 %v6933, %v6934
    %v6936 = vsel %vm5655, %v6557, 0.0
    %v6937 = vadd.f32 %v6935, %v6936
    %v6938 = vsel %vm5655, %v6558, 0.0
    %v6939 = vadd.f32 %v6937, %v6938
    %v6940 = vsel %vm5655, %v6559, 0.0
    %v6941 = vadd.f32 %v6939, %v6940
    %v6942 = vsel %vm5655, %v6560, 0.0
    %v6943 = vadd.f32 %v6941, %v6942
    %v6944 = vsel %vm5655, %v6561, 0.0
    %v6945 = vadd.f32 %v6943, %v6944
    %v6946 = vsel %vm5655, %v6562, 0.0
    %v6947 = vadd.f32 %v6945, %v6946
    %v6948 = vsel %vm5655, %v6563, 0.0
    %v6949 = vadd.f32 %v6947, %v6948
    %v6950 = vsel %vm5655, %v6564, 0.0
    %v6951 = vadd.f32 %v6949, %v6950
    %v6952 = vsel %vm5655, %v6565, 0.0
    %v6953 = vadd.f32 %v6951, %v6952
    %v6954 = vsel %vm5655, %v6566, 0.0
    %v6955 = vadd.f32 %v6953, %v6954
    %v6956 = vsel %vm5655, %v6567, 0.0
    %v6957 = vadd.f32 %v6955, %v6956
    %v6958 = vsel %vm5655, %v6568, 0.0
    %v6959 = vadd.f32 %v6957, %v6958
    %v6960 = vsel %vm5655, %v6569, 0.0
    %v6961 = vadd.f32 %v6959, %v6960
    %v6962 = vsel %vm5655, %v6570, 0.0
    %v6963 = vadd.f32 %v6961, %v6962
    %v6964 = vsel %vm5655, %v6571, 0.0
    %v6965 = vadd.f32 %v6963, %v6964
    %v6966 = vsel %vm5655, %v6572, 0.0
    %v6967 = vadd.f32 %v6965, %v6966
    %v6968 = vsel %vm5655, %v6573, 0.0
    %v6969 = vadd.f32 %v6967, %v6968
    %v6970 = vsel %vm5655, %v6574, 0.0
    %v6971 = vadd.f32 %v6969, %v6970
    %v6972 = vsel %vm5655, %v6575, 0.0
    %v6973 = vadd.f32 %v6971, %v6972
    %v6974 = vsel %vm5655, %v6576, 0.0
    %v6975 = vadd.f32 %v6973, %v6974
    %v6976 = vsel %vm5655, %v6577, 0.0
    %v6977 = vadd.f32 %v6975, %v6976
    %v6978 = vsel %vm5655, %v6578, 0.0
    %v6979 = vadd.f32 %v6977, %v6978
    %v6980 = vsel %vm5655, %v6579, 0.0
    %v6981 = vadd.f32 %v6979, %v6980
    %v6982 = vsel %vm5655, %v6580, 0.0
    %v6983 = vadd.f32 %v6981, %v6982
    %v6984 = vsel %vm5655, %v6581, 0.0
    %v6985 = vadd.f32 %v6983, %v6984
    %v6986 = vsel %vm5655, %v6582, 0.0
    %v6987 = vadd.f32 %v6985, %v6986
    %v6988 = vsel %vm5655, %v6583, 0.0
    %v6989 = vadd.f32 %v6987, %v6988
    %v6990 = vsel %vm5655, %v6584, 0.0
    %v6991 = vadd.f32 %v6989, %v6990
    %v6992 = vsel %vm5655, %v6585, 0.0
    %v6993 = vadd.f32 %v6991, %v6992
    %v6994 = vsel %vm5655, %v6586, 0.0
    %v6995 = vadd.f32 %v6993, %v6994
    %v6996 = vsel %vm5655, %v6587, 0.0
    %v6997 = vadd.f32 %v6995, %v6996
    %v6998 = vsel %vm5655, %v6588, 0.0
    %v6999 = vadd.f32 %v6997, %v6998
    %v7000 = vsel %vm5655, %v6589, 0.0
    %v7001 = vadd.f32 %v6999, %v7000
    %v7002 = vsel %vm5655, %v6590, 0.0
    %v7003 = vadd.f32 %v7001, %v7002
    %v7004 = vsel %vm5655, %v6591, 0.0
    %v7005 = vadd.f32 %v7003, %v7004
    %v7006 = vsel %vm5655, %v6592, 0.0
    %v7007 = vadd.f32 %v7005, %v7006
    %v7008 = vsel %vm5655, %v6593, 0.0
    %v7009 = vadd.f32 %v7007, %v7008
    %v7010 = vsel %vm5655, %v6594, 0.0
    %v7011 = vadd.f32 %v7009, %v7010
    %v7012 = vsel %vm5655, %v6595, 0.0
    %v7013 = vadd.f32 %v7011, %v7012
    %v7014 = vsel %vm5655, %v6596, 0.0
    %v7015 = vadd.f32 %v7013, %v7014
    %v7016 = vsel %vm5655, %v6597, 0.0
    %v7017 = vadd.f32 %v7015, %v7016
    %v7018 = vsel %vm5655, %v6598, 0.0
    %v7019 = vadd.f32 %v7017, %v7018
    %v7020 = vsel %vm5655, %v6599, 0.0
    %v7021 = vadd.f32 %v7019, %v7020
    %v7022 = vsel %vm5655, %v6600, 0.0
    %v7023 = vadd.f32 %v7021, %v7022
    %v7024 = vsel %vm5655, %v6601, 0.0
    %v7025 = vadd.f32 %v7023, %v7024
    %v7026 = vsel %vm5655, %v6602, 0.0
    %v7027 = vadd.f32 %v7025, %v7026
    %v7028 = vsel %vm5655, %v6603, 0.0
    %v7029 = vadd.f32 %v7027, %v7028
    %v7030 = vsel %vm5655, %v6604, 0.0
    %v7031 = vadd.f32 %v7029, %v7030
    %v7032 = vsel %vm5655, %v6605, 0.0
    %v7033 = vadd.f32 %v7031, %v7032
    %v7034 = vsel %vm5655, %v6606, 0.0
    %v7035 = vadd.f32 %v7033, %v7034
    %v7036 = vsel %vm5655, %v6607, 0.0
    %v7037 = vadd.f32 %v7035, %v7036
    %v7038 = vsel %vm5655, %v6608, 0.0
    %v7039 = vadd.f32 %v7037, %v7038
    %v7040 = vsel %vm5655, %v6609, 0.0
    %v7041 = vadd.f32 %v7039, %v7040
    %v7042 = vsel %vm5655, %v6610, 0.0
    %v7043 = vadd.f32 %v7041, %v7042
    %v7044 = vsel %vm5655, %v6611, 0.0
    %v7045 = vadd.f32 %v7043, %v7044
    %v7046 = vsel %vm5655, %v6612, 0.0
    %v7047 = vadd.f32 %v7045, %v7046
    %v7048 = vsel %vm5655, %v6613, 0.0
    %v7049 = vadd.f32 %v7047, %v7048
    %v7050 = vsel %vm5655, %v6614, 0.0
    %v7051 = vadd.f32 %v7049, %v7050
    %v7052 = vsel %vm5655, %v6615, 0.0
    %v7053 = vadd.f32 %v7051, %v7052
    %v7054 = vsel %vm5655, %v6616, 0.0
    %v7055 = vadd.f32 %v7053, %v7054
    %v7056 = vsel %vm5655, %v6617, 0.0
    %v7057 = vadd.f32 %v7055, %v7056
    %v7058 = vsel %vm5655, %v6618, 0.0
    %v7059 = vadd.f32 %v7057, %v7058
    %v7060 = vsel %vm5655, %v6619, 0.0
    %v7061 = vadd.f32 %v7059, %v7060
    %v7062 = vsel %vm5655, %v6620, 0.0
    %v7063 = vadd.f32 %v7061, %v7062
    %v7064 = vsel %vm5655, %v6621, 0.0
    %v7065 = vadd.f32 %v7063, %v7064
    %v7066 = vsel %vm5655, %v6622, 0.0
    %v7067 = vadd.f32 %v7065, %v7066
    %v7068 = vsel %vm5655, %v6623, 0.0
    %v7069 = vadd.f32 %v7067, %v7068
    %v7070 = vsel %vm5655, %v6624, 0.0
    %v7071 = vadd.f32 %v7069, %v7070
    %v7072 = vsel %vm5655, %v6625, 0.0
    %v7073 = vadd.f32 %v7071, %v7072
    %v7074 = vsel %vm5655, %v6626, 0.0
    %v7075 = vadd.f32 %v7073, %v7074
    %v7076 = vsel %vm5655, %v6627, 0.0
    %v7077 = vadd.f32 %v7075, %v7076
    %v7078 = vsel %vm5655, %v6628, 0.0
    %v7079 = vadd.f32 %v7077, %v7078
    %v7080 = vsel %vm5655, %v6629, 0.0
    %v7081 = vadd.f32 %v7079, %v7080
    %v7082 = vsel %vm5655, %v6630, 0.0
    %v7083 = vadd.f32 %v7081, %v7082
    %v7084 = vsel %vm5655, %v6631, 0.0
    %v7085 = vadd.f32 %v7083, %v7084
    %v7086 = vsel %vm5655, %v6632, 0.0
    %v7087 = vadd.f32 %v7085, %v7086
    %v7088 = vsel %vm5655, %v6633, 0.0
    %v7089 = vadd.f32 %v7087, %v7088
    %v7090 = vsel %vm5655, %v6634, 0.0
    %v7091 = vadd.f32 %v7089, %v7090
    %v7092 = vsel %vm5655, %v6635, 0.0
    %v7093 = vadd.f32 %v7091, %v7092
    %v7094 = vsel %vm5655, %v6636, 0.0
    %v7095 = vadd.f32 %v7093, %v7094
    %v7096 = vsel %vm5655, %v6637, 0.0
    %v7097 = vadd.f32 %v7095, %v7096
    %v7098 = vsel %vm5655, %v6638, 0.0
    %v7099 = vadd.f32 %v7097, %v7098
    %v7100 = vsel %vm5655, %v6639, 0.0
    %v7101 = vadd.f32 %v7099, %v7100
    %v7102 = vsel %vm5655, %v6640, 0.0
    %v7103 = vadd.f32 %v7101, %v7102
    %v7104 = vsel %vm5655, %v6641, 0.0
    %v7105 = vadd.f32 %v7103, %v7104
    %v7106 = vsel %vm5655, %v6642, 0.0
    %v7107 = vadd.f32 %v7105, %v7106
    %v7108 = vsel %vm5655, %v6643, 0.0
    %v7109 = vadd.f32 %v7107, %v7108
    %v7110 = vsel %vm5655, %v6644, 0.0
    %v7111 = vadd.f32 %v7109, %v7110
    %v7112 = vsel %vm5655, %v6645, 0.0
    %v7113 = vadd.f32 %v7111, %v7112
    %v7114 = vsel %vm5655, %v6646, 0.0
    %v7115 = vadd.f32 %v7113, %v7114
    %v7116 = vsel %vm5655, %v6647, 0.0
    %v7117 = vadd.f32 %v7115, %v7116
    %v7118 = vsel %vm5655, %v6648, 0.0
    %v7119 = vadd.f32 %v7117, %v7118
    %v7120 = vsel %vm5655, %v6649, 0.0
    %v7121 = vadd.f32 %v7119, %v7120
    %v7122 = vsel %vm5655, %v6650, 0.0
    %v7123 = vadd.f32 %v7121, %v7122
    %v7124 = vsel %vm5655, %v6651, 0.0
    %v7125 = vadd.f32 %v7123, %v7124
    %v7126 = vsel %vm5655, %v6652, 0.0
    %v7127 = vadd.f32 %v7125, %v7126
    %v7128 = vsel %vm5655, %v6653, 0.0
    %v7129 = vadd.f32 %v7127, %v7128
    %v7130 = vsel %vm5655, %v6654, 0.0
    %v7131 = vadd.f32 %v7129, %v7130
    %v7132 = vsel %vm5655, %v6655, 0.0
    %v7133 = vadd.f32 %v7131, %v7132
    %v7134 = vsel %vm5655, %v6656, 0.0
    %v7135 = vadd.f32 %v7133, %v7134
    %v7136 = vsel %vm5655, %v6657, 0.0
    %v7137 = vadd.f32 %v7135, %v7136
    %v7138 = vsel %vm5655, %v6658, 0.0
    %v7139 = vadd.f32 %v7137, %v7138
    %v7140 = vsel %vm5655, %v6659, 0.0
    %v7141 = vadd.f32 %v7139, %v7140
    %v7142 = vsel %vm5655, %v6660, 0.0
    %v7143 = vadd.f32 %v7141, %v7142
    %v7144 = vsel %vm5655, %v6661, 0.0
    %v7145 = vadd.f32 %v7143, %v7144
    %v7146 = vsel %vm5655, %v6662, 0.0
    %v7147 = vadd.f32 %v7145, %v7146
    %v7148 = vsel %vm5655, %v6663, 0.0
    %v7149 = vadd.f32 %v7147, %v7148
    %v7150 = vsel %vm5655, %v6664, 0.0
    %v7151 = vadd.f32 %v7149, %v7150
    %v7152 = vsel %vm5655, %v6665, 0.0
    %v7153 = vadd.f32 %v7151, %v7152
    %v7154 = vsel %vm5655, %v6666, 0.0
    %v7155 = vadd.f32 %v7153, %v7154
    %v7156 = vsel %vm5655, %v6667, 0.0
    %v7157 = vadd.f32 %v7155, %v7156
    %v7158 = vsel %vm5655, %v6668, 0.0
    %v7159 = vadd.f32 %v7157, %v7158
    %v7160 = vsel %vm5655, %v6669, 0.0
    %v7161 = vadd.f32 %v7159, %v7160
    %v7162 = vsel %vm5655, %v6670, 0.0
    %v7163 = vadd.f32 %v7161, %v7162
    %v7164 = vsel %vm5655, %v6671, 0.0
    %v7165 = vadd.f32 %v7163, %v7164
    %v7166 = vsel %vm5655, %v6672, 0.0
    %v7167 = vadd.f32 %v7165, %v7166
    %v7168 = vsel %vm5655, %v6673, 0.0
    %v7169 = vadd.f32 %v7167, %v7168
    %v7170 = vsel %vm5655, %v6674, 0.0
    %v7171 = vadd.f32 %v7169, %v7170
    %v7172 = vsel %vm5655, %v6675, 0.0
    %v7173 = vadd.f32 %v7171, %v7172
    %v7174 = vsel %vm5655, %v6676, 0.0
    %v7175 = vadd.f32 %v7173, %v7174
    %v7176 = vsel %vm5655, %v6677, 0.0
    %v7177 = vadd.f32 %v7175, %v7176
    %v7178 = vsel %vm5655, %v6678, 0.0
    %v7179 = vadd.f32 %v7177, %v7178
    %v7180 = vsel %vm5655, %v6679, 0.0
    %v7181 = vadd.f32 %v7179, %v7180
    %v7182 = vsel %vm5655, %v6680, 0.0
    %v7183 = vadd.f32 %v7181, %v7182
    %v7184 = vsel %vm5655, %v6681, 0.0
    %v7185 = vadd.f32 %v7183, %v7184
    %v7186 = vsel %vm5655, %v6682, 0.0
    %v7187 = vadd.f32 %v7185, %v7186
    %v7188 = vsel %vm5655, %v6683, 0.0
    %v7189 = vadd.f32 %v7187, %v7188
    %v7190 = vsel %vm5655, %v6684, 0.0
    %v7191 = vadd.f32 %v7189, %v7190
    %v7192 = vsel %vm5655, %v6685, 0.0
    %v7193 = vadd.f32 %v7191, %v7192
    %v7194 = vsel %vm5655, %v6686, 0.0
    %v7195 = vadd.f32 %v7193, %v7194
    %v7196 = vsel %vm5655, %v6687, 0.0
    %v7197 = vadd.f32 %v7195, %v7196
    %v7198 = vsel %vm5655, %v6688, 0.0
    %v7199 = vadd.f32 %v7197, %v7198
    %7200 = vadd.xlane.f32.xlu0 %v7199
    %v7201 = vpop.xlane.xlu0 %7200
    %v7202 = vrot.slane %v7201, 4
    %v7203 = vadd.f32 %v7201, %v7202
    %v7204 = vrot.slane %v7203, 2
    %v7205 = vadd.f32 %v7203, %v7204
    %v7206 = vrot.slane %v7205, 1
    %v7207 = vadd.f32 %v7205, %v7206
    %s7208 = vtos %v7207
    %v7209 = vstv %s6176
    %v7210 = vstv %s7208
    %vm7211 = vcmp.eq.s32.totalorder %v3854, 0
    %vm7212 = vcmp.eq.s32.totalorder %v3854, 1
    %v7213 = vsel %vm7212, %v7210, 0.0
    %v7214 = vsel %vm7211, %v7209, %v7213
    %7215 = vst [vmem:[#allocation2] sm:$0x1] %v7214
    // Predicated region
    $region10: #{tpu_custom_call.1} parent=1 // pred_check
      _
    $region11: #{tpu_custom_call.1} parent=1 // pred_check_branch
      %7217 = sbr.rel (0) target = $region13
    $region12: #{tpu_custom_call.1} parent=1 // pred_region
      %s7219 = ssub.s32 16, 16
      %7220 = vsyncadd [#allocation3], %s7219
      %s7222 = sshll.u32 [#allocation2], 4
      %s7223 = int_to_ptr.vmem [resolvable:$true] %s7222
      %7225 = dma.vmem_to_hbm [thread:$0]  %s7223, 16, %s2, [#allocation3]
    $region13: #{tpu_custom_call.1} parent=1 // pred_fallthru
      _
    // Predicated region
    $region14: #{tpu_custom_call.1} parent=1 // pred_check
      _
    $region15: #{tpu_custom_call.1} parent=1 // pred_check_branch
      %7227 = sbr.rel (0) target = $region17
    $region16: #{tpu_custom_call.1} parent=1 // pred_region
      %7228 = dma.done [#allocation3], 16
    $region17: #{tpu_custom_call.1} parent=1 // pred_fallthru
      _
    %7229 = vsyncpa [#allocation3], 1

</llo_original>
